<compile_context>
chip_gen: v7x
topology: tpu7x:2x2x1
jax: 0.10.0
libtpu: 0.0.40
codegen_flags: <defaults>
</compile_context>

<pallas_src>
import functools

import jax
import jax.numpy as jnp
from jax import lax
from jax.experimental import pallas as pl
from jax.experimental.pallas import tpu as pltpu


# ------------------------------ math helpers -------------------------------

_SQRT_HALF = 0.7071067811865476


def _erf(x):
    """fp32 erf via Abramowitz & Stegun 7.1.26 (|err| <= 1.5e-7); VPU/EUP only."""
    a1, a2, a3, a4, a5 = (0.254829592, -0.284496736, 1.421413741,
                          -1.453152027, 1.061405429)
    p = 0.3275911
    ax = jnp.where(x >= 0.0, x, -x)
    t = 1.0 / (1.0 + p * ax)
    poly = ((((a5 * t + a4) * t + a3) * t + a2) * t + a1) * t
    y = 1.0 - poly * jnp.exp(-ax * ax)
    return jnp.where(x >= 0.0, y, -y)


def _gelu_exact(x):
    """Exact (erf-based) GELU, matching PyTorch nn.GELU default."""
    return 0.5 * x * (1.0 + _erf(x * _SQRT_HALF))


# ------------------------------ fused kernel -------------------------------

def _fused_vit_kernel(
        patches_ref, bias_ref, base_ref, vd_ref, vw_ref,
        pw_ref, qkvw_ref, projw_ref, fc1w_ref, fc2w_ref, headw_ref,
        out_ref, *, num_heads, head_dim, s_pad, b_tile, cls_row, eps):
    """Whole backbone forward + classification head for one batch tile."""
    f32 = jnp.float32
    bf16 = jnp.bfloat16
    D = pw_ref.shape[1]
    D3 = qkvw_ref.shape[1]
    hidden = fc1w_ref.shape[1]
    cpad = headw_ref.shape[1]

    def mm(a_f32, w_b16):
        # bf16 MXU operands (weights pre-cast in wrapper), fp32 accumulation.
        return jnp.dot(a_f32.astype(bf16), w_b16, preferred_element_type=f32)

    def layernorm(x, g, b):
        mu = jnp.mean(x, axis=-1, keepdims=True)
        var = jnp.mean(jnp.square(x - mu), axis=-1, keepdims=True)
        return (x - mu) * lax.rsqrt(var + eps) * g + b

    # ---- patch embedding: Conv2d(k=p, s=p) == matmul over flattened patches.
    # Rows at cls/pad positions are zero in `patches`, so they contribute 0;
    # `base` holds patch_bias+pos for patch rows and cls_token+pos for cls rows.
    tokens = jnp.dot(patches_ref[...], pw_ref[...], preferred_element_type=f32)
    xs = tokens + base_ref[...]                                     # (M_t, D)

    # ---- transformer block: x = x + proj(MHSA(LN1(x))) ----
    h1 = layernorm(xs, vd_ref[0:1, :], vd_ref[1:2, :])
    qkv = mm(h1, qkvw_ref[...]) + vw_ref[0:1, :D3]                  # (M_t, 3D)
    qkv16 = qkv.astype(bf16)                                        # cast once
    scale = head_dim ** -0.5
    bias = bias_ref[...]                      # (M_t, M_t) block-diag key mask

    attn = jnp.zeros_like(xs)                                       # (M_t, D)
    for h in range(num_heads):                                      # unrolled
        c0 = h * head_dim
        q = qkv16[:, c0:c0 + head_dim]
        k = qkv16[:, D + c0:D + c0 + head_dim]
        v = qkv16[:, 2 * D + c0:2 * D + c0 + head_dim]
        s = lax.dot_general(q, k, (((1,), (1,)), ((), ())),
                            preferred_element_type=f32) * scale + bias
        m = jnp.max(s, axis=-1, keepdims=True)
        e = jnp.exp(s - m)
        p = e * pl.reciprocal(jnp.sum(e, axis=-1, keepdims=True), approx=True)
        # Reassociated per-head output projection:
        #   concat_h(p_h @ v_h) @ W == sum_h p_h @ (v_h @ W_h)
        # -> both head-loop matmuls have N = D output lanes.
        vp = jnp.dot(v, projw_ref[c0:c0 + head_dim, :],
                     preferred_element_type=f32)                    # (M_t, D)
        attn = attn + mm(p, vp.astype(bf16))
    xs = xs + attn + vd_ref[2:3, :]                                 # + proj_b

    # ---- transformer block: x = x + MLP(LN2(x)) ----
    h2 = layernorm(xs, vd_ref[3:4, :], vd_ref[4:5, :])
    h2 = mm(h2, fc1w_ref[...]) + vw_ref[1:2, :hidden]
    h2 = _gelu_exact(h2)                                            # exact GELU
    h2 = mm(h2, fc2w_ref[...]) + vd_ref[5:6, :]
    xs = xs + h2

    # ---- final LayerNorm + classification head (128-lane padded output) ----
    feat = layernorm(xs, vd_ref[6:7, :], vd_ref[7:8, :])
    logits = mm(feat, headw_ref[...]) + vw_ref[2:3, :cpad]          # (M_t, cpad)

    # Write only the cls row of each image in the tile.
    for b in range(b_tile):
        r = b * s_pad + cls_row
        out_ref[0, b:b + 1, :] = logits[r:r + 1, :].astype(out_ref.dtype)


# --------------------------- parameter creation ----------------------------

def init_params(key, *, img_size, patch_size, in_chans, embed_dim, num_heads,
                mlp_ratio, num_classes):
    del num_heads  # head count is a runtime config, not a parameter shape
    num_patches = (img_size // patch_size) ** 2
    patch_dim = in_chans * patch_size * patch_size
    hidden = int(embed_dim * mlp_ratio)
    ks = jax.random.split(key, 8)
    n = lambda k, shape, scale=0.02: scale * jax.random.normal(k, shape, jnp.float32)
    return {
        # patch embedding (Conv2d(k=p, s=p) == matmul over flattened patches)
        "patch_w": n(ks[0], (patch_dim, embed_dim)),
        "patch_b": jnp.zeros((embed_dim,), jnp.float32),
        "cls_token": n(ks[1], (1, 1, embed_dim)),
        "pos_embed": n(ks[2], (1, num_patches + 1, embed_dim)),
        # transformer block
        "ln1_g": jnp.ones((embed_dim,), jnp.float32),
        "ln1_b": jnp.zeros((embed_dim,), jnp.float32),
        "qkv_w": n(ks[3], (embed_dim, 3 * embed_dim)),
        "qkv_b": jnp.zeros((3 * embed_dim,), jnp.float32),
        "proj_w": n(ks[4], (embed_dim, embed_dim)),
        "proj_b": jnp.zeros((embed_dim,), jnp.float32),
        "ln2_g": jnp.ones((embed_dim,), jnp.float32),
        "ln2_b": jnp.zeros((embed_dim,), jnp.float32),
        "fc1_w": n(ks[5], (embed_dim, hidden)),
        "fc1_b": jnp.zeros((hidden,), jnp.float32),
        "fc2_w": n(ks[6], (hidden, embed_dim)),
        "fc2_b": jnp.zeros((embed_dim,), jnp.float32),
        # final norm
        "lnf_g": jnp.ones((embed_dim,), jnp.float32),
        "lnf_b": jnp.zeros((embed_dim,), jnp.float32),
        # classification head
        "head_w": n(ks[7], (embed_dim, num_classes)),
        "head_b": jnp.zeros((num_classes,), jnp.float32),
    }


# ------------------------------ forward pass -------------------------------

def classification_model_forward(params, x, *, patch_size, num_heads,
                                 batch_tile=8):
    """x: (B, C, H, W) NCHW like PyTorch. Returns logits (B, num_classes)."""
    B, C, Himg, Wimg = x.shape
    p = patch_size
    D = params["patch_w"].shape[1]
    num_classes = params["head_w"].shape[1]
    hidden = params["fc1_w"].shape[1]
    Dh = D // num_heads
    nh, nw = Himg // p, Wimg // p
    P = nh * nw                        # patches per image
    S = P + 1                          # + cls token
    S_pad = ((S + 7) // 8) * 8         # pad seq to sublane multiple
    patch_dim = C * p * p

    B_t = batch_tile                   # images per grid step
    G = pl.cdiv(B, B_t)                # grid steps (>=2 on demo -> both v7x TCs)
    B_pad = G * B_t
    M_t = B_t * S_pad                  # matmul M per grid step

    C_pad = ((num_classes + 127) // 128) * 128      # lane-dense head output
    Wd = max(3 * D, hidden, C_pad)                  # packed wide-constant width

    f32, bf16 = jnp.float32, jnp.bfloat16

    # ---- patch extraction (layout plumbing; embedding matmul is in-kernel).
    # Rows P..S_pad-1 of every image are zero -> zero patch-embed output there.
    patches = x.reshape(B, C, nh, p, nw, p)
    patches = jnp.transpose(patches, (0, 2, 4, 1, 3, 5)).reshape(B, P, patch_dim)
    patches = jnp.pad(patches, ((0, B_pad - B), (0, S_pad - P), (0, 0)))
    patches = patches.reshape(B_pad * S_pad, patch_dim).astype(bf16)

    # ---- per-image sequence scaffolding: patch_b+pos for patch rows,
    #      cls_token+pos_cls for the cls row, zeros for pad rows.
    pos = params["pos_embed"][0]                                   # (S, D)
    base_img = jnp.concatenate(
        [params["patch_b"][None, :] + pos[1:],                     # patch rows
         params["cls_token"].reshape(1, D) + pos[:1],              # cls row
         jnp.zeros((S_pad - S, D), f32)], axis=0)                  # pad rows
    base = jnp.tile(base_img, (B_t, 1)).astype(f32)                # (M_t, D)

    # ---- block-diagonal attention key bias (mask cross-image + pad keys).
    img_of = jnp.arange(M_t) // S_pad
    key_valid = (jnp.arange(M_t) % S_pad) < S
    mask = (img_of[:, None] == img_of[None, :]) & key_valid[None, :]
    attn_bias = jnp.where(mask, 0.0, -1e30).astype(f32)            # (M_t, M_t)

    # ---- packed small constants.
    vecs_d = jnp.stack([params["ln1_g"], params["ln1_b"], params["proj_b"],
                        params["ln2_g"], params["ln2_b"], params["fc2_b"],
                        params["lnf_g"], params["lnf_b"]], axis=0).astype(f32)
    padw = lambda v: jnp.pad(v, (0, Wd - v.shape[0]))
    vecs_w = jnp.stack([padw(params["qkv_b"]), padw(params["fc1_b"]),
                        padw(params["head_b"])], axis=0).astype(f32)

    # ---- weights pre-cast to bf16 (halves DMA, no in-kernel weight casts).
    pw = params["patch_w"].astype(bf16)
    qkvw = params["qkv_w"].astype(bf16)
    projw = params["proj_w"].astype(bf16)
    fc1w = params["fc1_w"].astype(bf16)
    fc2w = params["fc2_w"].astype(bf16)
    headw = jnp.pad(params["head_w"],
                    ((0, 0), (0, C_pad - num_classes))).astype(bf16)

    kernel = functools.partial(
        _fused_vit_kernel, num_heads=num_heads, head_dim=Dh,
        s_pad=S_pad, b_tile=B_t, cls_row=P, eps=1e-5)

    const_inputs = (attn_bias, base, vecs_d, vecs_w,
                    pw, qkvw, projw, fc1w, fc2w, headw)
    in_specs = [pl.BlockSpec((M_t, patch_dim), lambda g: (g, 0))]
    # Constants/weights: full-array blocks with a constant index map -> fetched
    # once, VMEM-resident across the whole grid.
    in_specs += [pl.BlockSpec(a.shape, lambda g: (0, 0)) for a in const_inputs]

    out = pl.pallas_call(
        kernel,
        out_shape=jax.ShapeDtypeStruct((G, B_t, C_pad), jnp.float32),
        grid=(G,),
        in_specs=in_specs,
        out_specs=pl.BlockSpec((1, B_t, C_pad), lambda g: (g, 0, 0)),
        compiler_params=pltpu.CompilerParams(
            dimension_semantics=("parallel",)),   # v7x: 2 TCs split the grid
    )(patches, *const_inputs)

    return out.reshape(B_pad, C_pad)[:B, :num_classes]


# ---------------------------------- main -----------------------------------

if __name__ == "__main__":
    key = jax.random.PRNGKey(0)
    k_param, k_data = jax.random.split(key)

    img_size = 16
    patch_size = 4
    in_chans = 3
    embed_dim = 32
    num_heads = 4
    mlp_ratio = 4.0
    num_classes = 10
    batch = 16            # batch-tiled: 2 grid steps x 8 images (M=192 rows)

    params = init_params(
        k_param,
        img_size=img_size, patch_size=patch_size, in_chans=in_chans,
        embed_dim=embed_dim, num_heads=num_heads, mlp_ratio=mlp_ratio,
        num_classes=num_classes,
    )

    x = jax.random.normal(k_data, (batch, in_chans, img_size, img_size),
                          jnp.float32)

    fwd = jax.jit(functools.partial(classification_model_forward,
                                    patch_size=patch_size,
                                    num_heads=num_heads,
                                    batch_tile=8))
    logits = jax.block_until_ready(fwd(params, x))

    assert logits.shape == (batch, num_classes), logits.shape
    assert bool(jnp.all(jnp.isfinite(logits)))
    print("KERNEL_OK")
</pallas_src>

<mosaic_0001>
module attributes {stable_mosaic.version = 11 : i64} {
  func.func @_fused_vit_kernel(%arg0: i32, %arg1: memref<192x48xbf16, #tpu.memory_space<vmem>>, %arg2: memref<192x192xf32, #tpu.memory_space<vmem>>, %arg3: memref<192x32xf32, #tpu.memory_space<vmem>>, %arg4: memref<8x32xf32, #tpu.memory_space<vmem>>, %arg5: memref<3x128xf32, #tpu.memory_space<vmem>>, %arg6: memref<48x32xbf16, #tpu.memory_space<vmem>>, %arg7: memref<32x96xbf16, #tpu.memory_space<vmem>>, %arg8: memref<32x32xbf16, #tpu.memory_space<vmem>>, %arg9: memref<32x128xbf16, #tpu.memory_space<vmem>>, %arg10: memref<128x32xbf16, #tpu.memory_space<vmem>>, %arg11: memref<32x128xbf16, #tpu.memory_space<vmem>>, %arg12: memref<1x8x128xf32, #tpu.memory_space<vmem>>) attributes {dimension_semantics = [#tpu.dimension_semantics<parallel>], iteration_bounds = array<i64: 2>, scalar_prefetch = 0 : i64, scratch_operands = 0 : i64, tpu.core_type = #tpu.core_type<tc>, window_params = [{transform_indices = @transform_0, window_bounds = array<i64: 192, 48>}, {pipeline_mode = #tpu.pipeline_mode<synchronous>, transform_indices = @transform_1, window_bounds = array<i64: 192, 192>}, {pipeline_mode = #tpu.pipeline_mode<synchronous>, transform_indices = @transform_2, window_bounds = array<i64: 192, 32>}, {pipeline_mode = #tpu.pipeline_mode<synchronous>, transform_indices = @transform_3, window_bounds = array<i64: 8, 32>}, {pipeline_mode = #tpu.pipeline_mode<synchronous>, transform_indices = @transform_4, window_bounds = array<i64: 3, 128>}, {pipeline_mode = #tpu.pipeline_mode<synchronous>, transform_indices = @transform_5, window_bounds = array<i64: 48, 32>}, {pipeline_mode = #tpu.pipeline_mode<synchronous>, transform_indices = @transform_6, window_bounds = array<i64: 32, 96>}, {pipeline_mode = #tpu.pipeline_mode<synchronous>, transform_indices = @transform_7, window_bounds = array<i64: 32, 32>}, {pipeline_mode = #tpu.pipeline_mode<synchronous>, transform_indices = @transform_8, window_bounds = array<i64: 32, 128>}, {pipeline_mode = #tpu.pipeline_mode<synchronous>, transform_indices = @transform_9, window_bounds = array<i64: 128, 32>}, {pipeline_mode = #tpu.pipeline_mode<synchronous>, transform_indices = @transform_10, window_bounds = array<i64: 32, 128>}, {transform_indices = @transform_11, window_bounds = array<i64: 1, 8, 128>}]} {
    %c0 = arith.constant 0 : index
    %c0_0 = arith.constant 0 : index
    %0 = vector.load %arg1[%c0, %c0_0] : memref<192x48xbf16, #tpu.memory_space<vmem>>, vector<192x48xbf16>
    %c0_1 = arith.constant 0 : index
    %c0_2 = arith.constant 0 : index
    %1 = vector.load %arg6[%c0_1, %c0_2] : memref<48x32xbf16, #tpu.memory_space<vmem>>, vector<48x32xbf16>
    %cst = arith.constant dense<0.000000e+00> : vector<192x32xf32>
    %2 = tpu.matmul %0, %1, %cst {dimension_numbers = #tpu.dot_dimension_numbers<[1], [0], [0], [1], [0, 0, 1, 1], [], []>} : vector<192x48xbf16>, vector<48x32xbf16>, vector<192x32xf32> -> vector<192x32xf32>
    %c0_3 = arith.constant 0 : index
    %c0_4 = arith.constant 0 : index
    %3 = vector.load %arg3[%c0_3, %c0_4] : memref<192x32xf32, #tpu.memory_space<vmem>>, vector<192x32xf32>
    %4 = arith.addf %2, %3 : vector<192x32xf32>
    %c0_5 = arith.constant 0 : index
    %c0_6 = arith.constant 0 : index
    %5 = vector.load %arg4[%c0_5, %c0_6] : memref<8x32xf32, #tpu.memory_space<vmem>>, vector<1x32xf32>
    %c1 = arith.constant 1 : index
    %c0_7 = arith.constant 0 : index
    %6 = vector.load %arg4[%c1, %c0_7] : memref<8x32xf32, #tpu.memory_space<vmem>>, vector<1x32xf32>
    %cst_8 = arith.constant dense<0.000000e+00> : vector<192xf32>
    %7 = vector.multi_reduction <add>, %4, %cst_8 [1] : vector<192x32xf32> to vector<192xf32>
    %8 = vector.shape_cast %7 : vector<192xf32> to vector<192x1xf32>
    %cst_9 = arith.constant 3.200000e+01 : f32
    %9 = vector.broadcast %cst_9 : f32 to vector<192x1xf32>
    %10 = arith.divf %8, %9 : vector<192x1xf32>
    %11 = vector.broadcast %10 : vector<192x1xf32> to vector<192x32xf32>
    %12 = arith.subf %4, %11 : vector<192x32xf32>
    %13 = arith.mulf %12, %12 : vector<192x32xf32>
    %cst_10 = arith.constant dense<0.000000e+00> : vector<192xf32>
    %14 = vector.multi_reduction <add>, %13, %cst_10 [1] : vector<192x32xf32> to vector<192xf32>
    %15 = vector.shape_cast %14 : vector<192xf32> to vector<192x1xf32>
    %cst_11 = arith.constant 3.200000e+01 : f32
    %16 = vector.broadcast %cst_11 : f32 to vector<192x1xf32>
    %17 = arith.divf %15, %16 : vector<192x1xf32>
    %18 = vector.broadcast %10 : vector<192x1xf32> to vector<192x32xf32>
    %19 = arith.subf %4, %18 : vector<192x32xf32>
    %cst_12 = arith.constant 9.99999974E-6 : f32
    %20 = vector.broadcast %cst_12 : f32 to vector<192x1xf32>
    %21 = arith.addf %17, %20 : vector<192x1xf32>
    %22 = math.rsqrt %21 : vector<192x1xf32>
    %23 = vector.broadcast %22 : vector<192x1xf32> to vector<192x32xf32>
    %24 = arith.mulf %19, %23 : vector<192x32xf32>
    %25 = vector.broadcast %5 : vector<1x32xf32> to vector<192x32xf32>
    %26 = arith.mulf %24, %25 : vector<192x32xf32>
    %27 = vector.broadcast %6 : vector<1x32xf32> to vector<192x32xf32>
    %28 = arith.addf %26, %27 : vector<192x32xf32>
    %c0_13 = arith.constant 0 : index
    %c0_14 = arith.constant 0 : index
    %29 = vector.load %arg7[%c0_13, %c0_14] : memref<32x96xbf16, #tpu.memory_space<vmem>>, vector<32x96xbf16>
    %30 = arith.truncf %28 : vector<192x32xf32> to vector<192x32xbf16>
    %cst_15 = arith.constant dense<0.000000e+00> : vector<192x96xf32>
    %31 = tpu.matmul %30, %29, %cst_15 {dimension_numbers = #tpu.dot_dimension_numbers<[1], [0], [0], [1], [0, 0, 1, 1], [], []>} : vector<192x32xbf16>, vector<32x96xbf16>, vector<192x96xf32> -> vector<192x96xf32>
    %c0_16 = arith.constant 0 : index
    %c0_17 = arith.constant 0 : index
    %32 = vector.load %arg5[%c0_16, %c0_17] : memref<3x128xf32, #tpu.memory_space<vmem>>, vector<1x96xf32>
    %33 = vector.broadcast %32 : vector<1x96xf32> to vector<192x96xf32>
    %34 = arith.addf %31, %33 : vector<192x96xf32>
    %35 = arith.truncf %34 : vector<192x96xf32> to vector<192x96xbf16>
    %c0_18 = arith.constant 0 : index
    %c0_19 = arith.constant 0 : index
    %36 = vector.load %arg2[%c0_18, %c0_19] : memref<192x192xf32, #tpu.memory_space<vmem>>, vector<192x192xf32>
    %cst_20 = arith.constant 0.000000e+00 : f32
    %37 = vector.broadcast %cst_20 : f32 to vector<192x32xf32>
    %38 = vector.extract_strided_slice %35 {offsets = [0, 0], sizes = [192, 8], strides = [1, 1]} : vector<192x96xbf16> to vector<192x8xbf16>
    %39 = vector.extract_strided_slice %35 {offsets = [0, 32], sizes = [192, 8], strides = [1, 1]} : vector<192x96xbf16> to vector<192x8xbf16>
    %40 = vector.extract_strided_slice %35 {offsets = [0, 64], sizes = [192, 8], strides = [1, 1]} : vector<192x96xbf16> to vector<192x8xbf16>
    %cst_21 = arith.constant dense<0.000000e+00> : vector<192x192xf32>
    %41 = tpu.matmul %38, %39, %cst_21 {dimension_numbers = #tpu.dot_dimension_numbers<[1], [1], [0], [0], [0, 0, 1, 0], [], []>} : vector<192x8xbf16>, vector<192x8xbf16>, vector<192x192xf32> -> vector<192x192xf32>
    %cst_22 = arith.constant 0.353553385 : f32
    %42 = vector.broadcast %cst_22 : f32 to vector<192x192xf32>
    %43 = arith.mulf %41, %42 : vector<192x192xf32>
    %44 = arith.addf %43, %36 : vector<192x192xf32>
    %cst_23 = arith.constant dense<0xFF800000> : vector<192xf32>
    %45 = vector.multi_reduction <maximumf>, %44, %cst_23 [1] : vector<192x192xf32> to vector<192xf32>
    %46 = vector.shape_cast %45 : vector<192xf32> to vector<192x1xf32>
    %47 = vector.broadcast %46 : vector<192x1xf32> to vector<192x192xf32>
    %48 = arith.subf %44, %47 : vector<192x192xf32>
    %49 = math.exp %48 : vector<192x192xf32>
    %cst_24 = arith.constant dense<0.000000e+00> : vector<192xf32>
    %50 = vector.multi_reduction <add>, %49, %cst_24 [1] : vector<192x192xf32> to vector<192xf32>
    %51 = vector.shape_cast %50 : vector<192xf32> to vector<192x1xf32>
    %52 = tpu.reciprocal %51 {approx = true} : vector<192x1xf32> -> vector<192x1xf32>
    %53 = vector.broadcast %52 : vector<192x1xf32> to vector<192x192xf32>
    %54 = arith.mulf %49, %53 : vector<192x192xf32>
    %c0_25 = arith.constant 0 : index
    %c0_26 = arith.constant 0 : index
    %55 = vector.load %arg8[%c0_25, %c0_26] : memref<32x32xbf16, #tpu.memory_space<vmem>>, vector<8x32xbf16>
    %cst_27 = arith.constant dense<0.000000e+00> : vector<192x32xf32>
    %56 = tpu.matmul %40, %55, %cst_27 {dimension_numbers = #tpu.dot_dimension_numbers<[1], [0], [0], [1], [0, 0, 1, 1], [], []>} : vector<192x8xbf16>, vector<8x32xbf16>, vector<192x32xf32> -> vector<192x32xf32>
    %57 = arith.truncf %56 : vector<192x32xf32> to vector<192x32xbf16>
    %58 = arith.truncf %54 : vector<192x192xf32> to vector<192x192xbf16>
    %cst_28 = arith.constant dense<0.000000e+00> : vector<192x32xf32>
    %59 = tpu.matmul %58, %57, %cst_28 {dimension_numbers = #tpu.dot_dimension_numbers<[1], [0], [0], [1], [0, 0, 1, 1], [], []>} : vector<192x192xbf16>, vector<192x32xbf16>, vector<192x32xf32> -> vector<192x32xf32>
    %60 = arith.addf %37, %59 : vector<192x32xf32>
    %61 = vector.extract_strided_slice %35 {offsets = [0, 8], sizes = [192, 8], strides = [1, 1]} : vector<192x96xbf16> to vector<192x8xbf16>
    %62 = vector.extract_strided_slice %35 {offsets = [0, 40], sizes = [192, 8], strides = [1, 1]} : vector<192x96xbf16> to vector<192x8xbf16>
    %63 = vector.extract_strided_slice %35 {offsets = [0, 72], sizes = [192, 8], strides = [1, 1]} : vector<192x96xbf16> to vector<192x8xbf16>
    %cst_29 = arith.constant dense<0.000000e+00> : vector<192x192xf32>
    %64 = tpu.matmul %61, %62, %cst_29 {dimension_numbers = #tpu.dot_dimension_numbers<[1], [1], [0], [0], [0, 0, 1, 0], [], []>} : vector<192x8xbf16>, vector<192x8xbf16>, vector<192x192xf32> -> vector<192x192xf32>
    %cst_30 = arith.constant 0.353553385 : f32
    %65 = vector.broadcast %cst_30 : f32 to vector<192x192xf32>
    %66 = arith.mulf %64, %65 : vector<192x192xf32>
    %67 = arith.addf %66, %36 : vector<192x192xf32>
    %cst_31 = arith.constant dense<0xFF800000> : vector<192xf32>
    %68 = vector.multi_reduction <maximumf>, %67, %cst_31 [1] : vector<192x192xf32> to vector<192xf32>
    %69 = vector.shape_cast %68 : vector<192xf32> to vector<192x1xf32>
    %70 = vector.broadcast %69 : vector<192x1xf32> to vector<192x192xf32>
    %71 = arith.subf %67, %70 : vector<192x192xf32>
    %72 = math.exp %71 : vector<192x192xf32>
    %cst_32 = arith.constant dense<0.000000e+00> : vector<192xf32>
    %73 = vector.multi_reduction <add>, %72, %cst_32 [1] : vector<192x192xf32> to vector<192xf32>
    %74 = vector.shape_cast %73 : vector<192xf32> to vector<192x1xf32>
    %75 = tpu.reciprocal %74 {approx = true} : vector<192x1xf32> -> vector<192x1xf32>
    %76 = vector.broadcast %75 : vector<192x1xf32> to vector<192x192xf32>
    %77 = arith.mulf %72, %76 : vector<192x192xf32>
    %c8 = arith.constant 8 : index
    %c0_33 = arith.constant 0 : index
    %78 = vector.load %arg8[%c8, %c0_33] : memref<32x32xbf16, #tpu.memory_space<vmem>>, vector<8x32xbf16>
    %cst_34 = arith.constant dense<0.000000e+00> : vector<192x32xf32>
    %79 = tpu.matmul %63, %78, %cst_34 {dimension_numbers = #tpu.dot_dimension_numbers<[1], [0], [0], [1], [0, 0, 1, 1], [], []>} : vector<192x8xbf16>, vector<8x32xbf16>, vector<192x32xf32> -> vector<192x32xf32>
    %80 = arith.truncf %79 : vector<192x32xf32> to vector<192x32xbf16>
    %81 = arith.truncf %77 : vector<192x192xf32> to vector<192x192xbf16>
    %cst_35 = arith.constant dense<0.000000e+00> : vector<192x32xf32>
    %82 = tpu.matmul %81, %80, %cst_35 {dimension_numbers = #tpu.dot_dimension_numbers<[1], [0], [0], [1], [0, 0, 1, 1], [], []>} : vector<192x192xbf16>, vector<192x32xbf16>, vector<192x32xf32> -> vector<192x32xf32>
    %83 = arith.addf %60, %82 : vector<192x32xf32>
    %84 = vector.extract_strided_slice %35 {offsets = [0, 16], sizes = [192, 8], strides = [1, 1]} : vector<192x96xbf16> to vector<192x8xbf16>
    %85 = vector.extract_strided_slice %35 {offsets = [0, 48], sizes = [192, 8], strides = [1, 1]} : vector<192x96xbf16> to vector<192x8xbf16>
    %86 = vector.extract_strided_slice %35 {offsets = [0, 80], sizes = [192, 8], strides = [1, 1]} : vector<192x96xbf16> to vector<192x8xbf16>
    %cst_36 = arith.constant dense<0.000000e+00> : vector<192x192xf32>
    %87 = tpu.matmul %84, %85, %cst_36 {dimension_numbers = #tpu.dot_dimension_numbers<[1], [1], [0], [0], [0, 0, 1, 0], [], []>} : vector<192x8xbf16>, vector<192x8xbf16>, vector<192x192xf32> -> vector<192x192xf32>
    %cst_37 = arith.constant 0.353553385 : f32
    %88 = vector.broadcast %cst_37 : f32 to vector<192x192xf32>
    %89 = arith.mulf %87, %88 : vector<192x192xf32>
    %90 = arith.addf %89, %36 : vector<192x192xf32>
    %cst_38 = arith.constant dense<0xFF800000> : vector<192xf32>
    %91 = vector.multi_reduction <maximumf>, %90, %cst_38 [1] : vector<192x192xf32> to vector<192xf32>
    %92 = vector.shape_cast %91 : vector<192xf32> to vector<192x1xf32>
    %93 = vector.broadcast %92 : vector<192x1xf32> to vector<192x192xf32>
    %94 = arith.subf %90, %93 : vector<192x192xf32>
    %95 = math.exp %94 : vector<192x192xf32>
    %cst_39 = arith.constant dense<0.000000e+00> : vector<192xf32>
    %96 = vector.multi_reduction <add>, %95, %cst_39 [1] : vector<192x192xf32> to vector<192xf32>
    %97 = vector.shape_cast %96 : vector<192xf32> to vector<192x1xf32>
    %98 = tpu.reciprocal %97 {approx = true} : vector<192x1xf32> -> vector<192x1xf32>
    %99 = vector.broadcast %98 : vector<192x1xf32> to vector<192x192xf32>
    %100 = arith.mulf %95, %99 : vector<192x192xf32>
    %c16 = arith.constant 16 : index
    %c0_40 = arith.constant 0 : index
    %101 = vector.load %arg8[%c16, %c0_40] : memref<32x32xbf16, #tpu.memory_space<vmem>>, vector<8x32xbf16>
    %cst_41 = arith.constant dense<0.000000e+00> : vector<192x32xf32>
    %102 = tpu.matmul %86, %101, %cst_41 {dimension_numbers = #tpu.dot_dimension_numbers<[1], [0], [0], [1], [0, 0, 1, 1], [], []>} : vector<192x8xbf16>, vector<8x32xbf16>, vector<192x32xf32> -> vector<192x32xf32>
    %103 = arith.truncf %102 : vector<192x32xf32> to vector<192x32xbf16>
    %104 = arith.truncf %100 : vector<192x192xf32> to vector<192x192xbf16>
    %cst_42 = arith.constant dense<0.000000e+00> : vector<192x32xf32>
    %105 = tpu.matmul %104, %103, %cst_42 {dimension_numbers = #tpu.dot_dimension_numbers<[1], [0], [0], [1], [0, 0, 1, 1], [], []>} : vector<192x192xbf16>, vector<192x32xbf16>, vector<192x32xf32> -> vector<192x32xf32>
    %106 = arith.addf %83, %105 : vector<192x32xf32>
    %107 = vector.extract_strided_slice %35 {offsets = [0, 24], sizes = [192, 8], strides = [1, 1]} : vector<192x96xbf16> to vector<192x8xbf16>
    %108 = vector.extract_strided_slice %35 {offsets = [0, 56], sizes = [192, 8], strides = [1, 1]} : vector<192x96xbf16> to vector<192x8xbf16>
    %109 = vector.extract_strided_slice %35 {offsets = [0, 88], sizes = [192, 8], strides = [1, 1]} : vector<192x96xbf16> to vector<192x8xbf16>
    %cst_43 = arith.constant dense<0.000000e+00> : vector<192x192xf32>
    %110 = tpu.matmul %107, %108, %cst_43 {dimension_numbers = #tpu.dot_dimension_numbers<[1], [1], [0], [0], [0, 0, 1, 0], [], []>} : vector<192x8xbf16>, vector<192x8xbf16>, vector<192x192xf32> -> vector<192x192xf32>
    %cst_44 = arith.constant 0.353553385 : f32
    %111 = vector.broadcast %cst_44 : f32 to vector<192x192xf32>
    %112 = arith.mulf %110, %111 : vector<192x192xf32>
    %113 = arith.addf %112, %36 : vector<192x192xf32>
    %cst_45 = arith.constant dense<0xFF800000> : vector<192xf32>
    %114 = vector.multi_reduction <maximumf>, %113, %cst_45 [1] : vector<192x192xf32> to vector<192xf32>
    %115 = vector.shape_cast %114 : vector<192xf32> to vector<192x1xf32>
    %116 = vector.broadcast %115 : vector<192x1xf32> to vector<192x192xf32>
    %117 = arith.subf %113, %116 : vector<192x192xf32>
    %118 = math.exp %117 : vector<192x192xf32>
    %cst_46 = arith.constant dense<0.000000e+00> : vector<192xf32>
    %119 = vector.multi_reduction <add>, %118, %cst_46 [1] : vector<192x192xf32> to vector<192xf32>
    %120 = vector.shape_cast %119 : vector<192xf32> to vector<192x1xf32>
    %121 = tpu.reciprocal %120 {approx = true} : vector<192x1xf32> -> vector<192x1xf32>
    %122 = vector.broadcast %121 : vector<192x1xf32> to vector<192x192xf32>
    %123 = arith.mulf %118, %122 : vector<192x192xf32>
    %c24 = arith.constant 24 : index
    %c0_47 = arith.constant 0 : index
    %124 = vector.load %arg8[%c24, %c0_47] : memref<32x32xbf16, #tpu.memory_space<vmem>>, vector<8x32xbf16>
    %cst_48 = arith.constant dense<0.000000e+00> : vector<192x32xf32>
    %125 = tpu.matmul %109, %124, %cst_48 {dimension_numbers = #tpu.dot_dimension_numbers<[1], [0], [0], [1], [0, 0, 1, 1], [], []>} : vector<192x8xbf16>, vector<8x32xbf16>, vector<192x32xf32> -> vector<192x32xf32>
    %126 = arith.truncf %125 : vector<192x32xf32> to vector<192x32xbf16>
    %127 = arith.truncf %123 : vector<192x192xf32> to vector<192x192xbf16>
    %cst_49 = arith.constant dense<0.000000e+00> : vector<192x32xf32>
    %128 = tpu.matmul %127, %126, %cst_49 {dimension_numbers = #tpu.dot_dimension_numbers<[1], [0], [0], [1], [0, 0, 1, 1], [], []>} : vector<192x192xbf16>, vector<192x32xbf16>, vector<192x32xf32> -> vector<192x32xf32>
    %129 = arith.addf %106, %128 : vector<192x32xf32>
    %130 = arith.addf %4, %129 : vector<192x32xf32>
    %c2 = arith.constant 2 : index
    %c0_50 = arith.constant 0 : index
    %131 = vector.load %arg4[%c2, %c0_50] : memref<8x32xf32, #tpu.memory_space<vmem>>, vector<1x32xf32>
    %132 = vector.broadcast %131 : vector<1x32xf32> to vector<192x32xf32>
    %133 = arith.addf %130, %132 : vector<192x32xf32>
    %c3 = arith.constant 3 : index
    %c0_51 = arith.constant 0 : index
    %134 = vector.load %arg4[%c3, %c0_51] : memref<8x32xf32, #tpu.memory_space<vmem>>, vector<1x32xf32>
    %c4 = arith.constant 4 : index
    %c0_52 = arith.constant 0 : index
    %135 = vector.load %arg4[%c4, %c0_52] : memref<8x32xf32, #tpu.memory_space<vmem>>, vector<1x32xf32>
    %cst_53 = arith.constant dense<0.000000e+00> : vector<192xf32>
    %136 = vector.multi_reduction <add>, %133, %cst_53 [1] : vector<192x32xf32> to vector<192xf32>
    %137 = vector.shape_cast %136 : vector<192xf32> to vector<192x1xf32>
    %cst_54 = arith.constant 3.200000e+01 : f32
    %138 = vector.broadcast %cst_54 : f32 to vector<192x1xf32>
    %139 = arith.divf %137, %138 : vector<192x1xf32>
    %140 = vector.broadcast %139 : vector<192x1xf32> to vector<192x32xf32>
    %141 = arith.subf %133, %140 : vector<192x32xf32>
    %142 = arith.mulf %141, %141 : vector<192x32xf32>
    %cst_55 = arith.constant dense<0.000000e+00> : vector<192xf32>
    %143 = vector.multi_reduction <add>, %142, %cst_55 [1] : vector<192x32xf32> to vector<192xf32>
    %144 = vector.shape_cast %143 : vector<192xf32> to vector<192x1xf32>
    %cst_56 = arith.constant 3.200000e+01 : f32
    %145 = vector.broadcast %cst_56 : f32 to vector<192x1xf32>
    %146 = arith.divf %144, %145 : vector<192x1xf32>
    %147 = vector.broadcast %139 : vector<192x1xf32> to vector<192x32xf32>
    %148 = arith.subf %133, %147 : vector<192x32xf32>
    %cst_57 = arith.constant 9.99999974E-6 : f32
    %149 = vector.broadcast %cst_57 : f32 to vector<192x1xf32>
    %150 = arith.addf %146, %149 : vector<192x1xf32>
    %151 = math.rsqrt %150 : vector<192x1xf32>
    %152 = vector.broadcast %151 : vector<192x1xf32> to vector<192x32xf32>
    %153 = arith.mulf %148, %152 : vector<192x32xf32>
    %154 = vector.broadcast %134 : vector<1x32xf32> to vector<192x32xf32>
    %155 = arith.mulf %153, %154 : vector<192x32xf32>
    %156 = vector.broadcast %135 : vector<1x32xf32> to vector<192x32xf32>
    %157 = arith.addf %155, %156 : vector<192x32xf32>
    %c0_58 = arith.constant 0 : index
    %c0_59 = arith.constant 0 : index
    %158 = vector.load %arg9[%c0_58, %c0_59] : memref<32x128xbf16, #tpu.memory_space<vmem>>, vector<32x128xbf16>
    %159 = arith.truncf %157 : vector<192x32xf32> to vector<192x32xbf16>
    %cst_60 = arith.constant dense<0.000000e+00> : vector<192x128xf32>
    %160 = tpu.matmul %159, %158, %cst_60 {dimension_numbers = #tpu.dot_dimension_numbers<[1], [0], [0], [1], [0, 0, 1, 1], [], []>} : vector<192x32xbf16>, vector<32x128xbf16>, vector<192x128xf32> -> vector<192x128xf32>
    %c1_61 = arith.constant 1 : index
    %c0_62 = arith.constant 0 : index
    %161 = vector.load %arg5[%c1_61, %c0_62] : memref<3x128xf32, #tpu.memory_space<vmem>>, vector<1x128xf32>
    %162 = vector.broadcast %161 : vector<1x128xf32> to vector<192x128xf32>
    %163 = arith.addf %160, %162 : vector<192x128xf32>
    %cst_63 = arith.constant 5.000000e-01 : f32
    %164 = vector.broadcast %cst_63 : f32 to vector<192x128xf32>
    %165 = arith.mulf %164, %163 : vector<192x128xf32>
    %cst_64 = arith.constant 0.707106769 : f32
    %166 = vector.broadcast %cst_64 : f32 to vector<192x128xf32>
    %167 = arith.mulf %163, %166 : vector<192x128xf32>
    %cst_65 = arith.constant 0.000000e+00 : f32
    %168 = vector.broadcast %cst_65 : f32 to vector<192x128xf32>
    %169 = arith.cmpf oge, %167, %168 : vector<192x128xf32>
    %cst_66 = arith.constant 0.000000e+00 : f32
    %170 = vector.broadcast %cst_66 : f32 to vector<192x128xf32>
    %171 = arith.subf %170, %167 : vector<192x128xf32>
    %172 = arith.select %169, %167, %171 : vector<192x128xi1>, vector<192x128xf32>
    %cst_67 = arith.constant 0.327591091 : f32
    %173 = vector.broadcast %cst_67 : f32 to vector<192x128xf32>
    %174 = arith.mulf %173, %172 : vector<192x128xf32>
    %cst_68 = arith.constant 1.000000e+00 : f32
    %175 = vector.broadcast %cst_68 : f32 to vector<192x128xf32>
    %176 = arith.addf %175, %174 : vector<192x128xf32>
    %cst_69 = arith.constant 1.000000e+00 : f32
    %177 = vector.broadcast %cst_69 : f32 to vector<192x128xf32>
    %178 = arith.divf %177, %176 : vector<192x128xf32>
    %cst_70 = arith.constant 1.06140542 : f32
    %179 = vector.broadcast %cst_70 : f32 to vector<192x128xf32>
    %180 = arith.mulf %179, %178 : vector<192x128xf32>
    %cst_71 = arith.constant -1.45315206 : f32
    %181 = vector.broadcast %cst_71 : f32 to vector<192x128xf32>
    %182 = arith.addf %180, %181 : vector<192x128xf32>
    %183 = arith.mulf %182, %178 : vector<192x128xf32>
    %cst_72 = arith.constant 1.42141378 : f32
    %184 = vector.broadcast %cst_72 : f32 to vector<192x128xf32>
    %185 = arith.addf %183, %184 : vector<192x128xf32>
    %186 = arith.mulf %185, %178 : vector<192x128xf32>
    %cst_73 = arith.constant -0.284496725 : f32
    %187 = vector.broadcast %cst_73 : f32 to vector<192x128xf32>
    %188 = arith.addf %186, %187 : vector<192x128xf32>
    %189 = arith.mulf %188, %178 : vector<192x128xf32>
    %cst_74 = arith.constant 0.254829586 : f32
    %190 = vector.broadcast %cst_74 : f32 to vector<192x128xf32>
    %191 = arith.addf %189, %190 : vector<192x128xf32>
    %192 = arith.mulf %191, %178 : vector<192x128xf32>
    %cst_75 = arith.constant 0.000000e+00 : f32
    %193 = vector.broadcast %cst_75 : f32 to vector<192x128xf32>
    %194 = arith.subf %193, %172 : vector<192x128xf32>
    %195 = arith.mulf %194, %172 : vector<192x128xf32>
    %196 = math.exp %195 : vector<192x128xf32>
    %197 = arith.mulf %192, %196 : vector<192x128xf32>
    %cst_76 = arith.constant 1.000000e+00 : f32
    %198 = vector.broadcast %cst_76 : f32 to vector<192x128xf32>
    %199 = arith.subf %198, %197 : vector<192x128xf32>
    %cst_77 = arith.constant 0.000000e+00 : f32
    %200 = vector.broadcast %cst_77 : f32 to vector<192x128xf32>
    %201 = arith.cmpf oge, %167, %200 : vector<192x128xf32>
    %cst_78 = arith.constant 0.000000e+00 : f32
    %202 = vector.broadcast %cst_78 : f32 to vector<192x128xf32>
    %203 = arith.subf %202, %199 : vector<192x128xf32>
    %204 = arith.select %201, %199, %203 : vector<192x128xi1>, vector<192x128xf32>
    %cst_79 = arith.constant 1.000000e+00 : f32
    %205 = vector.broadcast %cst_79 : f32 to vector<192x128xf32>
    %206 = arith.addf %205, %204 : vector<192x128xf32>
    %207 = arith.mulf %165, %206 : vector<192x128xf32>
    %c0_80 = arith.constant 0 : index
    %c0_81 = arith.constant 0 : index
    %208 = vector.load %arg10[%c0_80, %c0_81] : memref<128x32xbf16, #tpu.memory_space<vmem>>, vector<128x32xbf16>
    %209 = arith.truncf %207 : vector<192x128xf32> to vector<192x128xbf16>
    %cst_82 = arith.constant dense<0.000000e+00> : vector<192x32xf32>
    %210 = tpu.matmul %209, %208, %cst_82 {dimension_numbers = #tpu.dot_dimension_numbers<[1], [0], [0], [1], [0, 0, 1, 1], [], []>} : vector<192x128xbf16>, vector<128x32xbf16>, vector<192x32xf32> -> vector<192x32xf32>
    %c5 = arith.constant 5 : index
    %c0_83 = arith.constant 0 : index
    %211 = vector.load %arg4[%c5, %c0_83] : memref<8x32xf32, #tpu.memory_space<vmem>>, vector<1x32xf32>
    %212 = vector.broadcast %211 : vector<1x32xf32> to vector<192x32xf32>
    %213 = arith.addf %210, %212 : vector<192x32xf32>
    %214 = arith.addf %133, %213 : vector<192x32xf32>
    %c6 = arith.constant 6 : index
    %c0_84 = arith.constant 0 : index
    %215 = vector.load %arg4[%c6, %c0_84] : memref<8x32xf32, #tpu.memory_space<vmem>>, vector<1x32xf32>
    %c7 = arith.constant 7 : index
    %c0_85 = arith.constant 0 : index
    %216 = vector.load %arg4[%c7, %c0_85] : memref<8x32xf32, #tpu.memory_space<vmem>>, vector<1x32xf32>
    %cst_86 = arith.constant dense<0.000000e+00> : vector<192xf32>
    %217 = vector.multi_reduction <add>, %214, %cst_86 [1] : vector<192x32xf32> to vector<192xf32>
    %218 = vector.shape_cast %217 : vector<192xf32> to vector<192x1xf32>
    %cst_87 = arith.constant 3.200000e+01 : f32
    %219 = vector.broadcast %cst_87 : f32 to vector<192x1xf32>
    %220 = arith.divf %218, %219 : vector<192x1xf32>
    %221 = vector.broadcast %220 : vector<192x1xf32> to vector<192x32xf32>
    %222 = arith.subf %214, %221 : vector<192x32xf32>
    %223 = arith.mulf %222, %222 : vector<192x32xf32>
    %cst_88 = arith.constant dense<0.000000e+00> : vector<192xf32>
    %224 = vector.multi_reduction <add>, %223, %cst_88 [1] : vector<192x32xf32> to vector<192xf32>
    %225 = vector.shape_cast %224 : vector<192xf32> to vector<192x1xf32>
    %cst_89 = arith.constant 3.200000e+01 : f32
    %226 = vector.broadcast %cst_89 : f32 to vector<192x1xf32>
    %227 = arith.divf %225, %226 : vector<192x1xf32>
    %228 = vector.broadcast %220 : vector<192x1xf32> to vector<192x32xf32>
    %229 = arith.subf %214, %228 : vector<192x32xf32>
    %cst_90 = arith.constant 9.99999974E-6 : f32
    %230 = vector.broadcast %cst_90 : f32 to vector<192x1xf32>
    %231 = arith.addf %227, %230 : vector<192x1xf32>
    %232 = math.rsqrt %231 : vector<192x1xf32>
    %233 = vector.broadcast %232 : vector<192x1xf32> to vector<192x32xf32>
    %234 = arith.mulf %229, %233 : vector<192x32xf32>
    %235 = vector.broadcast %215 : vector<1x32xf32> to vector<192x32xf32>
    %236 = arith.mulf %234, %235 : vector<192x32xf32>
    %237 = vector.broadcast %216 : vector<1x32xf32> to vector<192x32xf32>
    %238 = arith.addf %236, %237 : vector<192x32xf32>
    %c0_91 = arith.constant 0 : index
    %c0_92 = arith.constant 0 : index
    %239 = vector.load %arg11[%c0_91, %c0_92] : memref<32x128xbf16, #tpu.memory_space<vmem>>, vector<32x128xbf16>
    %240 = arith.truncf %238 : vector<192x32xf32> to vector<192x32xbf16>
    %cst_93 = arith.constant dense<0.000000e+00> : vector<192x128xf32>
    %241 = tpu.matmul %240, %239, %cst_93 {dimension_numbers = #tpu.dot_dimension_numbers<[1], [0], [0], [1], [0, 0, 1, 1], [], []>} : vector<192x32xbf16>, vector<32x128xbf16>, vector<192x128xf32> -> vector<192x128xf32>
    %c2_94 = arith.constant 2 : index
    %c0_95 = arith.constant 0 : index
    %242 = vector.load %arg5[%c2_94, %c0_95] : memref<3x128xf32, #tpu.memory_space<vmem>>, vector<1x128xf32>
    %243 = vector.broadcast %242 : vector<1x128xf32> to vector<192x128xf32>
    %244 = arith.addf %241, %243 : vector<192x128xf32>
    %245 = vector.extract_strided_slice %244 {offsets = [16, 0], sizes = [1, 128], strides = [1, 1]} : vector<192x128xf32> to vector<1x128xf32>
    %c0_96 = arith.constant 0 : index
    %c0_97 = arith.constant 0 : index
    %c0_98 = arith.constant 0 : index
    %246 = vector.load %arg12[%c0_96, %c0_97, %c0_98] : memref<1x8x128xf32, #tpu.memory_space<vmem>>, vector<1x1x128xf32>
    %247 = vector.shape_cast %246 : vector<1x1x128xf32> to vector<1x128xf32>
    %248 = vector.shape_cast %245 : vector<1x128xf32> to vector<1x1x128xf32>
    tpu.vector_store %arg12[%c0_96, %c0_97, %c0_98], %248 {strides = array<i32>} : memref<1x8x128xf32, #tpu.memory_space<vmem>>, vector<1x1x128xf32>,
    %249 = vector.extract_strided_slice %244 {offsets = [40, 0], sizes = [1, 128], strides = [1, 1]} : vector<192x128xf32> to vector<1x128xf32>
    %c0_99 = arith.constant 0 : index
    %c1_100 = arith.constant 1 : index
    %c0_101 = arith.constant 0 : index
    %250 = vector.load %arg12[%c0_99, %c1_100, %c0_101] : memref<1x8x128xf32, #tpu.memory_space<vmem>>, vector<1x1x128xf32>
    %251 = vector.shape_cast %250 : vector<1x1x128xf32> to vector<1x128xf32>
    %252 = vector.shape_cast %249 : vector<1x128xf32> to vector<1x1x128xf32>
    tpu.vector_store %arg12[%c0_99, %c1_100, %c0_101], %252 {strides = array<i32>} : memref<1x8x128xf32, #tpu.memory_space<vmem>>, vector<1x1x128xf32>,
    %253 = vector.extract_strided_slice %244 {offsets = [64, 0], sizes = [1, 128], strides = [1, 1]} : vector<192x128xf32> to vector<1x128xf32>
    %c0_102 = arith.constant 0 : index
    %c2_103 = arith.constant 2 : index
    %c0_104 = arith.constant 0 : index
    %254 = vector.load %arg12[%c0_102, %c2_103, %c0_104] : memref<1x8x128xf32, #tpu.memory_space<vmem>>, vector<1x1x128xf32>
    %255 = vector.shape_cast %254 : vector<1x1x128xf32> to vector<1x128xf32>
    %256 = vector.shape_cast %253 : vector<1x128xf32> to vector<1x1x128xf32>
    tpu.vector_store %arg12[%c0_102, %c2_103, %c0_104], %256 {strides = array<i32>} : memref<1x8x128xf32, #tpu.memory_space<vmem>>, vector<1x1x128xf32>,
    %257 = vector.extract_strided_slice %244 {offsets = [88, 0], sizes = [1, 128], strides = [1, 1]} : vector<192x128xf32> to vector<1x128xf32>
    %c0_105 = arith.constant 0 : index
    %c3_106 = arith.constant 3 : index
    %c0_107 = arith.constant 0 : index
    %258 = vector.load %arg12[%c0_105, %c3_106, %c0_107] : memref<1x8x128xf32, #tpu.memory_space<vmem>>, vector<1x1x128xf32>
    %259 = vector.shape_cast %258 : vector<1x1x128xf32> to vector<1x128xf32>
    %260 = vector.shape_cast %257 : vector<1x128xf32> to vector<1x1x128xf32>
    tpu.vector_store %arg12[%c0_105, %c3_106, %c0_107], %260 {strides = array<i32>} : memref<1x8x128xf32, #tpu.memory_space<vmem>>, vector<1x1x128xf32>,
    %261 = vector.extract_strided_slice %244 {offsets = [112, 0], sizes = [1, 128], strides = [1, 1]} : vector<192x128xf32> to vector<1x128xf32>
    %c0_108 = arith.constant 0 : index
    %c4_109 = arith.constant 4 : index
    %c0_110 = arith.constant 0 : index
    %262 = vector.load %arg12[%c0_108, %c4_109, %c0_110] : memref<1x8x128xf32, #tpu.memory_space<vmem>>, vector<1x1x128xf32>
    %263 = vector.shape_cast %262 : vector<1x1x128xf32> to vector<1x128xf32>
    %264 = vector.shape_cast %261 : vector<1x128xf32> to vector<1x1x128xf32>
    tpu.vector_store %arg12[%c0_108, %c4_109, %c0_110], %264 {strides = array<i32>} : memref<1x8x128xf32, #tpu.memory_space<vmem>>, vector<1x1x128xf32>,
    %265 = vector.extract_strided_slice %244 {offsets = [136, 0], sizes = [1, 128], strides = [1, 1]} : vector<192x128xf32> to vector<1x128xf32>
    %c0_111 = arith.constant 0 : index
    %c5_112 = arith.constant 5 : index
    %c0_113 = arith.constant 0 : index
    %266 = vector.load %arg12[%c0_111, %c5_112, %c0_113] : memref<1x8x128xf32, #tpu.memory_space<vmem>>, vector<1x1x128xf32>
    %267 = vector.shape_cast %266 : vector<1x1x128xf32> to vector<1x128xf32>
    %268 = vector.shape_cast %265 : vector<1x128xf32> to vector<1x1x128xf32>
    tpu.vector_store %arg12[%c0_111, %c5_112, %c0_113], %268 {strides = array<i32>} : memref<1x8x128xf32, #tpu.memory_space<vmem>>, vector<1x1x128xf32>,
    %269 = vector.extract_strided_slice %244 {offsets = [160, 0], sizes = [1, 128], strides = [1, 1]} : vector<192x128xf32> to vector<1x128xf32>
    %c0_114 = arith.constant 0 : index
    %c6_115 = arith.constant 6 : index
    %c0_116 = arith.constant 0 : index
    %270 = vector.load %arg12[%c0_114, %c6_115, %c0_116] : memref<1x8x128xf32, #tpu.memory_space<vmem>>, vector<1x1x128xf32>
    %271 = vector.shape_cast %270 : vector<1x1x128xf32> to vector<1x128xf32>
    %272 = vector.shape_cast %269 : vector<1x128xf32> to vector<1x1x128xf32>
    tpu.vector_store %arg12[%c0_114, %c6_115, %c0_116], %272 {strides = array<i32>} : memref<1x8x128xf32, #tpu.memory_space<vmem>>, vector<1x1x128xf32>,
    %273 = vector.extract_strided_slice %244 {offsets = [184, 0], sizes = [1, 128], strides = [1, 1]} : vector<192x128xf32> to vector<1x128xf32>
    %c0_117 = arith.constant 0 : index
    %c7_118 = arith.constant 7 : index
    %c0_119 = arith.constant 0 : index
    %274 = vector.load %arg12[%c0_117, %c7_118, %c0_119] : memref<1x8x128xf32, #tpu.memory_space<vmem>>, vector<1x1x128xf32>
    %275 = vector.shape_cast %274 : vector<1x1x128xf32> to vector<1x128xf32>
    %276 = vector.shape_cast %273 : vector<1x128xf32> to vector<1x1x128xf32>
    tpu.vector_store %arg12[%c0_117, %c7_118, %c0_119], %276 {strides = array<i32>} : memref<1x8x128xf32, #tpu.memory_space<vmem>>, vector<1x1x128xf32>,
    return
  }
  func.func @transform_0(%arg0: i32) -> (i32, i32) {
    %c0_i32 = arith.constant 0 : i32
    %c0_i32_0 = arith.constant 0 : i32
    return %arg0, %c0_i32 : i32, i32
  }
  func.func @transform_1(%arg0: i32) -> (i32, i32) {
    %c0_i32 = arith.constant 0 : i32
    %c0_i32_0 = arith.constant 0 : i32
    %c0_i32_1 = arith.constant 0 : i32
    return %c0_i32, %c0_i32_0 : i32, i32
  }
  func.func @transform_2(%arg0: i32) -> (i32, i32) {
    %c0_i32 = arith.constant 0 : i32
    %c0_i32_0 = arith.constant 0 : i32
    %c0_i32_1 = arith.constant 0 : i32
    return %c0_i32, %c0_i32_0 : i32, i32
  }
  func.func @transform_3(%arg0: i32) -> (i32, i32) {
    %c0_i32 = arith.constant 0 : i32
    %c0_i32_0 = arith.constant 0 : i32
    %c0_i32_1 = arith.constant 0 : i32
    return %c0_i32, %c0_i32_0 : i32, i32
  }
  func.func @transform_4(%arg0: i32) -> (i32, i32) {
    %c0_i32 = arith.constant 0 : i32
    %c0_i32_0 = arith.constant 0 : i32
    %c0_i32_1 = arith.constant 0 : i32
    return %c0_i32, %c0_i32_0 : i32, i32
  }
  func.func @transform_5(%arg0: i32) -> (i32, i32) {
    %c0_i32 = arith.constant 0 : i32
    %c0_i32_0 = arith.constant 0 : i32
    %c0_i32_1 = arith.constant 0 : i32
    return %c0_i32, %c0_i32_0 : i32, i32
  }
  func.func @transform_6(%arg0: i32) -> (i32, i32) {
    %c0_i32 = arith.constant 0 : i32
    %c0_i32_0 = arith.constant 0 : i32
    %c0_i32_1 = arith.constant 0 : i32
    return %c0_i32, %c0_i32_0 : i32, i32
  }
  func.func @transform_7(%arg0: i32) -> (i32, i32) {
    %c0_i32 = arith.constant 0 : i32
    %c0_i32_0 = arith.constant 0 : i32
    %c0_i32_1 = arith.constant 0 : i32
    return %c0_i32, %c0_i32_0 : i32, i32
  }
  func.func @transform_8(%arg0: i32) -> (i32, i32) {
    %c0_i32 = arith.constant 0 : i32
    %c0_i32_0 = arith.constant 0 : i32
    %c0_i32_1 = arith.constant 0 : i32
    return %c0_i32, %c0_i32_0 : i32, i32
  }
  func.func @transform_9(%arg0: i32) -> (i32, i32) {
    %c0_i32 = arith.constant 0 : i32
    %c0_i32_0 = arith.constant 0 : i32
    %c0_i32_1 = arith.constant 0 : i32
    return %c0_i32, %c0_i32_0 : i32, i32
  }
  func.func @transform_10(%arg0: i32) -> (i32, i32) {
    %c0_i32 = arith.constant 0 : i32
    %c0_i32_0 = arith.constant 0 : i32
    %c0_i32_1 = arith.constant 0 : i32
    return %c0_i32, %c0_i32_0 : i32, i32
  }
  func.func @transform_11(%arg0: i32) -> (i32, i32, i32) {
    %c0_i32 = arith.constant 0 : i32
    %c0_i32_0 = arith.constant 0 : i32
    %c0_i32_1 = arith.constant 0 : i32
    return %arg0, %c0_i32, %c0_i32_0 : i32, i32, i32
  }
}

</mosaic_0001>

<llo_original>
// kernel: classification_model_forward.1
$region0: #{classification_model_forward.1}
  #allocation0 [shape = 'u32[]', space=smem, size = 0x4, offset = 0x4, fixed_abs, tag = 'smem constant byte address 0x4 - core index']
  #allocation1 [shape = 'u32[144,128]{1,0:T(1,128)}', space=vmem, size = 0x12000, scoped, tag = 'internal scratch']
  %s0 = inlined_call_operand.vmem [shape: bf16[384,48], index: 0, kind: input, shape index: {}]
  %s1 = inlined_call_operand.vmem [shape: f32[192,192], index: 1, kind: input, shape index: {}]
  %s2 = inlined_call_operand.vmem [shape: f32[192,32], index: 2, kind: input, shape index: {}]
  %s3 = inlined_call_operand.vmem [shape: f32[8,32], index: 3, kind: input, shape index: {}]
  %s4 = inlined_call_operand.vmem [shape: f32[3,128], index: 4, kind: input, shape index: {}]
  %s5 = inlined_call_operand.vmem [shape: bf16[48,32], index: 5, kind: input, shape index: {}]
  %s6 = inlined_call_operand.vmem [shape: bf16[32,96], index: 6, kind: input, shape index: {}]
  %s7 = inlined_call_operand.vmem [shape: bf16[32,32], index: 7, kind: input, shape index: {}]
  %s8 = inlined_call_operand.vmem [shape: bf16[32,128], index: 8, kind: input, shape index: {}]
  %s9 = inlined_call_operand.vmem [shape: bf16[128,32], index: 9, kind: input, shape index: {}]
  %s10 = inlined_call_operand.vmem [shape: bf16[32,128], index: 10, kind: input, shape index: {}]
  %s11 = inlined_call_operand.hbm [shape: f32[2,8,128], index: 11, kind: output, shape index: {}]
  %s12 = sld [smem:[#allocation0]]
  $region77: #{classification_model_forward.1} parent=0
    _
  %s14 = ssub.s32 1, %s12
  %s15 = scalar_select 0, %s14, %s12
  $region1: #{classification_model_forward.1} parent=0
    #allocation2 [shape = 'u8[8192]{0}', space=vmem, size = 0x2000, scoped, tag = 'output window, operand 0']
    #allocation3 [shape = 's32[2]{0}', space=sflag, size = 0x8, scoped, tag = 'scoped memory for classification_model_forward.1']
    %16 = vsyncpa [#allocation3], 0
    %s17 = scalar_lea.sflag [#allocation3], 1
    %18 = vsyncpa %s17, 0
    loop: start=0, step=1, limit=4
    $region2: #{classification_model_forward.1} parent=1 // loop_pre_header
      _
    $region3: #{classification_model_forward.1} parent=1 // loop_header
      %s20 = sphi 0, %s24
      %p21 = scmp.ge.s32.totalorder %s20, 4
      %s30 = sphi 0, %s32
      %s33 = sphi 0, %s30
      %s34 = sphi 0, %s33
      %s50 = sphi 0, %s34
      %s54 = sphi 0, %s54
      %s56 = sphi 0, %s54
      %s57 = sphi 0, %s56
      %s71 = sphi 0, %s57
      %s75 = sphi 0, %s75
      %s77 = sphi 0, %s75
      %s78 = sphi 0, %s77
      %s92 = sphi 0, %s78
      %s96 = sphi 0, %s96
      %s98 = sphi 0, %s96
      %s99 = sphi 0, %s98
      %s113 = sphi 0, %s99
      %s117 = sphi 0, %s117
      %s119 = sphi 0, %s117
      %s120 = sphi 0, %s119
      %s134 = sphi 0, %s120
      %s138 = sphi 0, %s138
      %s140 = sphi 0, %s138
      %s141 = sphi 0, %s140
      %s155 = sphi 0, %s141
      %s159 = sphi 0, %s159
      %s161 = sphi 0, %s159
      %s162 = sphi 0, %s161
      %s176 = sphi 0, %s162
      %s180 = sphi 0, %s180
      %s182 = sphi 0, %s180
      %s183 = sphi 0, %s182
      %s197 = sphi 0, %s183
      %s201 = sphi 0, %s201
      %s203 = sphi 0, %s201
      %s204 = sphi 0, %s203
      %s218 = sphi 0, %s204
      %s222 = sphi 0, %s222
      %s224 = sphi 0, %s222
      %s225 = sphi 0, %s224
      %s239 = sphi 0, %s225
      %s243 = sphi 0, %s243
      %s245 = sphi 0, %s243
      %s246 = sphi 0, %s245
      %s260 = sphi 0, %s246
      %s266 = sphi 0, %s268
      %s269 = sphi 0, %s266
      %s270 = sphi 0, %s269
      %s286 = sphi 0, %s270
    $region4: #{classification_model_forward.1} parent=1 // loop_header_branch
      %23 = sbr.rel (%p21) target = $region8
    $region5: #{classification_model_forward.1} parent=1 // loop_body
      %s25 = ssub.s32 %s20, 1
      %s26 = ssub.s32 %s20, 2
      %s27 = sadd.s32 %s20, 1
      %s28 = ssub.s32 %s20, %s27
      %p29 = scmp.eq.s32.totalorder %s28, 0
      %s31 = sadd.s32 %s30, 1
      %s32 = scalar_select %p29, %s30, %s31
      %p35 = pneg %p29
      %p36 = scmp.eq.s32.totalorder %s20, 1
      %p37 = por %p35, %p36
      %p38 = scmp.ne.s32.totalorder %s30, %s33
      %p39 = scmp.eq.s32.totalorder %s20, 0
      %p40 = por %p38, %p39
      %p41 = scmp.ne.s32.totalorder %s30, %s33
      %p42 = scmp.eq.s32.totalorder %s25, 1
      %p43 = por %p41, %p42
      %p44 = scmp.ne.s32.totalorder %s33, %s34
      %p45 = scmp.eq.s32.totalorder %s25, 0
      %p46 = por %p44, %p45
      %p47 = scmp.ne.s32.totalorder %s33, %s34
      %p48 = scmp.eq.s32.totalorder %s26, 1
      %p49 = por %p47, %p48
      %p51 = scmp.ne.s32.totalorder %s34, %s50
      %p52 = scmp.eq.s32.totalorder %s26, 0
      %p53 = por %p51, %p52
      %s55 = sadd.s32 %s54, 1
      %p58 = scmp.eq.s32.totalorder %s20, 1
      %p59 = scmp.ne.s32.totalorder %s54, %s56
      %p60 = scmp.eq.s32.totalorder %s20, 0
      %p61 = por %p59, %p60
      %p62 = scmp.ne.s32.totalorder %s54, %s56
      %p63 = scmp.eq.s32.totalorder %s25, 1
      %p64 = por %p62, %p63
      %p65 = scmp.ne.s32.totalorder %s56, %s57
      %p66 = scmp.eq.s32.totalorder %s25, 0
      %p67 = por %p65, %p66
      %p68 = scmp.ne.s32.totalorder %s56, %s57
      %p69 = scmp.eq.s32.totalorder %s26, 1
      %p70 = por %p68, %p69
      %p72 = scmp.ne.s32.totalorder %s57, %s71
      %p73 = scmp.eq.s32.totalorder %s26, 0
      %p74 = por %p72, %p73
      %s76 = sadd.s32 %s75, 1
      %p79 = scmp.eq.s32.totalorder %s20, 1
      %p80 = scmp.ne.s32.totalorder %s75, %s77
      %p81 = scmp.eq.s32.totalorder %s20, 0
      %p82 = por %p80, %p81
      %p83 = scmp.ne.s32.totalorder %s75, %s77
      %p84 = scmp.eq.s32.totalorder %s25, 1
      %p85 = por %p83, %p84
      %p86 = scmp.ne.s32.totalorder %s77, %s78
      %p87 = scmp.eq.s32.totalorder %s25, 0
      %p88 = por %p86, %p87
      %p89 = scmp.ne.s32.totalorder %s77, %s78
      %p90 = scmp.eq.s32.totalorder %s26, 1
      %p91 = por %p89, %p90
      %p93 = scmp.ne.s32.totalorder %s78, %s92
      %p94 = scmp.eq.s32.totalorder %s26, 0
      %p95 = por %p93, %p94
      %s97 = sadd.s32 %s96, 1
      %p100 = scmp.eq.s32.totalorder %s20, 1
      %p101 = scmp.ne.s32.totalorder %s96, %s98
      %p102 = scmp.eq.s32.totalorder %s20, 0
      %p103 = por %p101, %p102
      %p104 = scmp.ne.s32.totalorder %s96, %s98
      %p105 = scmp.eq.s32.totalorder %s25, 1
      %p106 = por %p104, %p105
      %p107 = scmp.ne.s32.totalorder %s98, %s99
      %p108 = scmp.eq.s32.totalorder %s25, 0
      %p109 = por %p107, %p108
      %p110 = scmp.ne.s32.totalorder %s98, %s99
      %p111 = scmp.eq.s32.totalorder %s26, 1
      %p112 = por %p110, %p111
      %p114 = scmp.ne.s32.totalorder %s99, %s113
      %p115 = scmp.eq.s32.totalorder %s26, 0
      %p116 = por %p114, %p115
      %s118 = sadd.s32 %s117, 1
      %p121 = scmp.eq.s32.totalorder %s20, 1
      %p122 = scmp.ne.s32.totalorder %s117, %s119
      %p123 = scmp.eq.s32.totalorder %s20, 0
      %p124 = por %p122, %p123
      %p125 = scmp.ne.s32.totalorder %s117, %s119
      %p126 = scmp.eq.s32.totalorder %s25, 1
      %p127 = por %p125, %p126
      %p128 = scmp.ne.s32.totalorder %s119, %s120
      %p129 = scmp.eq.s32.totalorder %s25, 0
      %p130 = por %p128, %p129
      %p131 = scmp.ne.s32.totalorder %s119, %s120
      %p132 = scmp.eq.s32.totalorder %s26, 1
      %p133 = por %p131, %p132
      %p135 = scmp.ne.s32.totalorder %s120, %s134
      %p136 = scmp.eq.s32.totalorder %s26, 0
      %p137 = por %p135, %p136
      %s139 = sadd.s32 %s138, 1
      %p142 = scmp.eq.s32.totalorder %s20, 1
      %p143 = scmp.ne.s32.totalorder %s138, %s140
      %p144 = scmp.eq.s32.totalorder %s20, 0
      %p145 = por %p143, %p144
      %p146 = scmp.ne.s32.totalorder %s138, %s140
      %p147 = scmp.eq.s32.totalorder %s25, 1
      %p148 = por %p146, %p147
      %p149 = scmp.ne.s32.totalorder %s140, %s141
      %p150 = scmp.eq.s32.totalorder %s25, 0
      %p151 = por %p149, %p150
      %p152 = scmp.ne.s32.totalorder %s140, %s141
      %p153 = scmp.eq.s32.totalorder %s26, 1
      %p154 = por %p152, %p153
      %p156 = scmp.ne.s32.totalorder %s141, %s155
      %p157 = scmp.eq.s32.totalorder %s26, 0
      %p158 = por %p156, %p157
      %s160 = sadd.s32 %s159, 1
      %p163 = scmp.eq.s32.totalorder %s20, 1
      %p164 = scmp.ne.s32.totalorder %s159, %s161
      %p165 = scmp.eq.s32.totalorder %s20, 0
      %p166 = por %p164, %p165
      %p167 = scmp.ne.s32.totalorder %s159, %s161
      %p168 = scmp.eq.s32.totalorder %s25, 1
      %p169 = por %p167, %p168
      %p170 = scmp.ne.s32.totalorder %s161, %s162
      %p171 = scmp.eq.s32.totalorder %s25, 0
      %p172 = por %p170, %p171
      %p173 = scmp.ne.s32.totalorder %s161, %s162
      %p174 = scmp.eq.s32.totalorder %s26, 1
      %p175 = por %p173, %p174
      %p177 = scmp.ne.s32.totalorder %s162, %s176
      %p178 = scmp.eq.s32.totalorder %s26, 0
      %p179 = por %p177, %p178
      %s181 = sadd.s32 %s180, 1
      %p184 = scmp.eq.s32.totalorder %s20, 1
      %p185 = scmp.ne.s32.totalorder %s180, %s182
      %p186 = scmp.eq.s32.totalorder %s20, 0
      %p187 = por %p185, %p186
      %p188 = scmp.ne.s32.totalorder %s180, %s182
      %p189 = scmp.eq.s32.totalorder %s25, 1
      %p190 = por %p188, %p189
      %p191 = scmp.ne.s32.totalorder %s182, %s183
      %p192 = scmp.eq.s32.totalorder %s25, 0
      %p193 = por %p191, %p192
      %p194 = scmp.ne.s32.totalorder %s182, %s183
      %p195 = scmp.eq.s32.totalorder %s26, 1
      %p196 = por %p194, %p195
      %p198 = scmp.ne.s32.totalorder %s183, %s197
      %p199 = scmp.eq.s32.totalorder %s26, 0
      %p200 = por %p198, %p199
      %s202 = sadd.s32 %s201, 1
      %p205 = scmp.eq.s32.totalorder %s20, 1
      %p206 = scmp.ne.s32.totalorder %s201, %s203
      %p207 = scmp.eq.s32.totalorder %s20, 0
      %p208 = por %p206, %p207
      %p209 = scmp.ne.s32.totalorder %s201, %s203
      %p210 = scmp.eq.s32.totalorder %s25, 1
      %p211 = por %p209, %p210
      %p212 = scmp.ne.s32.totalorder %s203, %s204
      %p213 = scmp.eq.s32.totalorder %s25, 0
      %p214 = por %p212, %p213
      %p215 = scmp.ne.s32.totalorder %s203, %s204
      %p216 = scmp.eq.s32.totalorder %s26, 1
      %p217 = por %p215, %p216
      %p219 = scmp.ne.s32.totalorder %s204, %s218
      %p220 = scmp.eq.s32.totalorder %s26, 0
      %p221 = por %p219, %p220
      %s223 = sadd.s32 %s222, 1
      %p226 = scmp.eq.s32.totalorder %s20, 1
      %p227 = scmp.ne.s32.totalorder %s222, %s224
      %p228 = scmp.eq.s32.totalorder %s20, 0
      %p229 = por %p227, %p228
      %p230 = scmp.ne.s32.totalorder %s222, %s224
      %p231 = scmp.eq.s32.totalorder %s25, 1
      %p232 = por %p230, %p231
      %p233 = scmp.ne.s32.totalorder %s224, %s225
      %p234 = scmp.eq.s32.totalorder %s25, 0
      %p235 = por %p233, %p234
      %p236 = scmp.ne.s32.totalorder %s224, %s225
      %p237 = scmp.eq.s32.totalorder %s26, 1
      %p238 = por %p236, %p237
      %p240 = scmp.ne.s32.totalorder %s225, %s239
      %p241 = scmp.eq.s32.totalorder %s26, 0
      %p242 = por %p240, %p241
      %s244 = sadd.s32 %s243, 1
      %p247 = scmp.eq.s32.totalorder %s20, 1
      %p248 = scmp.ne.s32.totalorder %s243, %s245
      %p249 = scmp.eq.s32.totalorder %s20, 0
      %p250 = por %p248, %p249
      %p251 = scmp.ne.s32.totalorder %s243, %s245
      %p252 = scmp.eq.s32.totalorder %s25, 1
      %p253 = por %p251, %p252
      %p254 = scmp.ne.s32.totalorder %s245, %s246
      %p255 = scmp.eq.s32.totalorder %s25, 0
      %p256 = por %p254, %p255
      %p257 = scmp.ne.s32.totalorder %s245, %s246
      %p258 = scmp.eq.s32.totalorder %s26, 1
      %p259 = por %p257, %p258
      %p261 = scmp.ne.s32.totalorder %s246, %s260
      %p262 = scmp.eq.s32.totalorder %s26, 0
      %p263 = por %p261, %p262
      %s264 = ssub.s32 %s20, %s27
      %p265 = scmp.eq.s32.totalorder %s264, 0
      %s267 = sadd.s32 %s266, 1
      %s268 = scalar_select %p265, %s266, %s267
      %p271 = pneg %p265
      %p272 = scmp.eq.s32.totalorder %s20, 1
      %p273 = por %p271, %p272
      %p274 = scmp.ne.s32.totalorder %s266, %s269
      %p275 = scmp.eq.s32.totalorder %s20, 0
      %p276 = por %p274, %p275
      %p277 = scmp.ne.s32.totalorder %s266, %s269
      %p278 = scmp.eq.s32.totalorder %s25, 1
      %p279 = por %p277, %p278
      %p280 = scmp.ne.s32.totalorder %s269, %s270
      %p281 = scmp.eq.s32.totalorder %s25, 0
      %p282 = por %p280, %p281
      %p283 = scmp.ne.s32.totalorder %s269, %s270
      %p284 = scmp.eq.s32.totalorder %s26, 1
      %p285 = por %p283, %p284
      %p287 = scmp.ne.s32.totalorder %s270, %s286
      %p288 = scmp.eq.s32.totalorder %s26, 0
      %p289 = por %p287, %p288
      %p290 = scmp.le.s32.totalorder 1, %s20
      %p291 = scmp.lt.s32.totalorder %s20, 3
      %p292 = pnand %p290, %p291
      %p293 = pneg %p292
      // Predicated region
      $region9: #{classification_model_forward.1} parent=5 // pred_check
        _
      $region10: #{classification_model_forward.1} parent=5 // pred_check_branch
        %295 = sbr.rel (%p292) target = $region12
      $region11: #{classification_model_forward.1} parent=5 // pred_region
        %s296 = ssub.s32 %s20, 1
        // Predicated region
        $region13: #{classification_model_forward.1} parent=11 // pred_check
          %p297 = pneg %p67
        $region14: #{classification_model_forward.1} parent=11 // pred_check_branch
          %299 = sbr.rel (%p297) target = $region16
        $region15: #{classification_model_forward.1} parent=11 // pred_region
          _
        $region16: #{classification_model_forward.1} parent=11 // pred_fallthru
          _
        // Predicated region
        $region17: #{classification_model_forward.1} parent=11 // pred_check
          %p300 = pneg %p88
        $region18: #{classification_model_forward.1} parent=11 // pred_check_branch
          %302 = sbr.rel (%p300) target = $region20
        $region19: #{classification_model_forward.1} parent=11 // pred_region
          _
        $region20: #{classification_model_forward.1} parent=11 // pred_fallthru
          _
        // Predicated region
        $region21: #{classification_model_forward.1} parent=11 // pred_check
          %p303 = pneg %p109
        $region22: #{classification_model_forward.1} parent=11 // pred_check_branch
          %305 = sbr.rel (%p303) target = $region24
        $region23: #{classification_model_forward.1} parent=11 // pred_region
          _
        $region24: #{classification_model_forward.1} parent=11 // pred_fallthru
          _
        // Predicated region
        $region25: #{classification_model_forward.1} parent=11 // pred_check
          %p306 = pneg %p130
        $region26: #{classification_model_forward.1} parent=11 // pred_check_branch
          %308 = sbr.rel (%p306) target = $region28
        $region27: #{classification_model_forward.1} parent=11 // pred_region
          _
        $region28: #{classification_model_forward.1} parent=11 // pred_fallthru
          _
        // Predicated region
        $region29: #{classification_model_forward.1} parent=11 // pred_check
          %p309 = pneg %p151
        $region30: #{classification_model_forward.1} parent=11 // pred_check_branch
          %311 = sbr.rel (%p309) target = $region32
        $region31: #{classification_model_forward.1} parent=11 // pred_region
          _
        $region32: #{classification_model_forward.1} parent=11 // pred_fallthru
          _
        // Predicated region
        $region33: #{classification_model_forward.1} parent=11 // pred_check
          %p312 = pneg %p172
        $region34: #{classification_model_forward.1} parent=11 // pred_check_branch
          %314 = sbr.rel (%p312) target = $region36
        $region35: #{classification_model_forward.1} parent=11 // pred_region
          _
        $region36: #{classification_model_forward.1} parent=11 // pred_fallthru
          _
        // Predicated region
        $region37: #{classification_model_forward.1} parent=11 // pred_check
          %p315 = pneg %p193
        $region38: #{classification_model_forward.1} parent=11 // pred_check_branch
          %317 = sbr.rel (%p315) target = $region40
        $region39: #{classification_model_forward.1} parent=11 // pred_region
          _
        $region40: #{classification_model_forward.1} parent=11 // pred_fallthru
          _
        // Predicated region
        $region41: #{classification_model_forward.1} parent=11 // pred_check
          %p318 = pneg %p214
        $region42: #{classification_model_forward.1} parent=11 // pred_check_branch
          %320 = sbr.rel (%p318) target = $region44
        $region43: #{classification_model_forward.1} parent=11 // pred_region
          _
        $region44: #{classification_model_forward.1} parent=11 // pred_fallthru
          _
        // Predicated region
        $region45: #{classification_model_forward.1} parent=11 // pred_check
          %p321 = pneg %p235
        $region46: #{classification_model_forward.1} parent=11 // pred_check_branch
          %323 = sbr.rel (%p321) target = $region48
        $region47: #{classification_model_forward.1} parent=11 // pred_region
          _
        $region48: #{classification_model_forward.1} parent=11 // pred_fallthru
          _
        // Predicated region
        $region49: #{classification_model_forward.1} parent=11 // pred_check
          %p324 = pneg %p256
        $region50: #{classification_model_forward.1} parent=11 // pred_check_branch
          %326 = sbr.rel (%p324) target = $region52
        $region51: #{classification_model_forward.1} parent=11 // pred_region
          _
        $region52: #{classification_model_forward.1} parent=11 // pred_fallthru
          _
      $region12: #{classification_model_forward.1} parent=5 // pred_fallthru
        _
      %p327 = scmp.lt.s32.totalorder %s20, 2
      // Predicated region
      $region53: #{classification_model_forward.1} parent=5 // pred_check
        %p328 = pneg %p327
      $region54: #{classification_model_forward.1} parent=5 // pred_check_branch
        %330 = sbr.rel (%p328) target = $region56
      $region55: #{classification_model_forward.1} parent=5 // pred_region
        // Predicated region
        $region57: #{classification_model_forward.1} parent=55 // pred_check
          %p331 = pneg %p40
        $region58: #{classification_model_forward.1} parent=55 // pred_check_branch
          %333 = sbr.rel (%p331) target = $region60
        $region59: #{classification_model_forward.1} parent=55 // pred_region
          %s334 = smul.u32 24, %s20
          %p335 = scmp.lt.s32.totalorder %s334, 47
          %s336 = scalar_select %p335, %s334, 47
          %s337 = smul.addr %s336, 4
          %s338 = scalar_lea.vmem %s0, %s337
          %s339 = smul.u32 24, %s20
        $region60: #{classification_model_forward.1} parent=55 // pred_fallthru
          _
      $region56: #{classification_model_forward.1} parent=5 // pred_fallthru
        _
      %p340 = scmp.le.s32.totalorder 1, %s20
      %p341 = scmp.lt.s32.totalorder %s20, 3
      %p342 = pnand %p340, %p341
      %p343 = pneg %p342
      // Predicated region
      $region61: #{classification_model_forward.1} parent=5 // pred_check
        _
      $region62: #{classification_model_forward.1} parent=5 // pred_check_branch
        %345 = sbr.rel (%p342) target = $region64
      $region63: #{classification_model_forward.1} parent=5 // pred_region
        %s346 = ssub.s32 %s20, 1
        %s347 = smul.u32 24, %s25
        %p348 = scmp.lt.s32.totalorder %s347, 47
        %s349 = scalar_select %p348, %s347, 47
        %s350 = smul.addr %s349, 4
        %s351 = scalar_lea.vmem %s0, %s350
        %p352 = pneg %p46
        %p353 = pneg %p43
        %p354 = pneg %p67
        %p355 = pneg %p64
        %p356 = pneg %p88
        %p357 = pneg %p85
        %p358 = pneg %p109
        %p359 = pneg %p106
        %p360 = pneg %p130
        %p361 = pneg %p127
        %p362 = pneg %p151
        %p363 = pneg %p148
        %p364 = pneg %p172
        %p365 = pneg %p169
        %p366 = pneg %p193
        %p367 = pneg %p190
        %p368 = pneg %p214
        %p369 = pneg %p211
        %p370 = pneg %p235
        %p371 = pneg %p232
        %p372 = pneg %p256
        %p373 = pneg %p253
        %p374 = pneg %p282
        %p375 = pneg %p279
        %s376 = sand.u32 %s269, 1
        %s377 = scalar_lea.sflag [#allocation3], %s376
        %s378 = sand.u32 %s269, 1
        %s379 = smul.addr %s378, 8
        %s380 = scalar_lea.vmem [#allocation2], %s379
        %s381 = smul.u32 24, %s25
        %p382 = scmp.lt.s32.totalorder %s381, 47
        %s383 = scalar_select %p382, %s381, 47
        %s384 = smul.addr %s383, 4
        %s385 = scalar_lea.vmem %s0, %s384
        %s386 = smul.u32 24, %s25
        %v388 = vld [vmem:[%s385] sm:$0xf]
        %v389 = vld [vmem:[%s385 + $0x4] sm:$0xf]
        %v390 = vld [vmem:[%s385 + $0x8] sm:$0xf]
        %v391 = vld [vmem:[%s385 + $0xc] sm:$0xf]
        %v392 = vld [vmem:[%s385 + $0x10] sm:$0xf]
        %v393 = vld [vmem:[%s385 + $0x14] sm:$0xf]
        %v394 = vld [vmem:[%s385 + $0x18] sm:$0xf]
        %v395 = vld [vmem:[%s385 + $0x1c] sm:$0xf]
        %v396 = vld [vmem:[%s385 + $0x20] sm:$0xf]
        %v397 = vld [vmem:[%s385 + $0x24] sm:$0xf]
        %v398 = vld [vmem:[%s385 + $0x28] sm:$0xf]
        %v399 = vld [vmem:[%s385 + $0x2c] sm:$0xf]
        %v400 = vld [vmem:[%s385 + $0x30] sm:$0xf]
        %v401 = vld [vmem:[%s385 + $0x34] sm:$0xf]
        %v402 = vld [vmem:[%s385 + $0x38] sm:$0xf]
        %v403 = vld [vmem:[%s385 + $0x3c] sm:$0xf]
        %v404 = vld [vmem:[%s385 + $0x40] sm:$0xf]
        %v405 = vld [vmem:[%s385 + $0x44] sm:$0xf]
        %v406 = vld [vmem:[%s385 + $0x48] sm:$0xf]
        %v407 = vld [vmem:[%s385 + $0x4c] sm:$0xf]
        %v408 = vld [vmem:[%s385 + $0x50] sm:$0xf]
        %v409 = vld [vmem:[%s385 + $0x54] sm:$0xf]
        %v410 = vld [vmem:[%s385 + $0x58] sm:$0xf]
        %v411 = vld [vmem:[%s385 + $0x5c] sm:$0xf]
        %v412 = vld [vmem:[%s5] sm:$0xf]
        %v413 = vld [vmem:[%s5 + $0x4] sm:$0xf]
        %v414 = vld [vmem:[%s5 + $0x8] sm:$0xf]
        %v415 = vld [vmem:[%s5 + $0xc] sm:$0xf]
        %v416 = vld [vmem:[%s5 + $0x10] sm:$0xf]
        %v417 = vld [vmem:[%s5 + $0x14] sm:$0xf]
        %v418 = vld [vmem:[%s2] sm:$0xff]
        %v419 = vld [vmem:[%s2 + $0x8] sm:$0xff]
        %v420 = vld [vmem:[%s2 + $0x10] sm:$0xff]
        %v421 = vld [vmem:[%s2 + $0x18] sm:$0xff]
        %v422 = vld [vmem:[%s2 + $0x20] sm:$0xff]
        %v423 = vld [vmem:[%s2 + $0x28] sm:$0xff]
        %v424 = vld [vmem:[%s2 + $0x30] sm:$0xff]
        %v425 = vld [vmem:[%s2 + $0x38] sm:$0xff]
        %v426 = vld [vmem:[%s2 + $0x40] sm:$0xff]
        %v427 = vld [vmem:[%s2 + $0x48] sm:$0xff]
        %v428 = vld [vmem:[%s2 + $0x50] sm:$0xff]
        %v429 = vld [vmem:[%s2 + $0x58] sm:$0xff]
        %v430 = vld [vmem:[%s2 + $0x60] sm:$0xff]
        %v431 = vld [vmem:[%s2 + $0x68] sm:$0xff]
        %v432 = vld [vmem:[%s2 + $0x70] sm:$0xff]
        %v433 = vld [vmem:[%s2 + $0x78] sm:$0xff]
        %v434 = vld [vmem:[%s2 + $0x80] sm:$0xff]
        %v435 = vld [vmem:[%s2 + $0x88] sm:$0xff]
        %v436 = vld [vmem:[%s2 + $0x90] sm:$0xff]
        %v437 = vld [vmem:[%s2 + $0x98] sm:$0xff]
        %v438 = vld [vmem:[%s2 + $0xa0] sm:$0xff]
        %v439 = vld [vmem:[%s2 + $0xa8] sm:$0xff]
        %v440 = vld [vmem:[%s2 + $0xb0] sm:$0xff]
        %v441 = vld [vmem:[%s2 + $0xb8] sm:$0xff]
        %v466 = vunpack.c.l.b16 %v388
        %v467 = vunpack.c.l.b16 %v389
        %v468 = vunpack.c.l.b16 %v390
        %v469 = vunpack.c.l.b16 %v391
        %v470 = vunpack.c.l.b16 %v392
        %v471 = vunpack.c.l.b16 %v393
        %v472 = vunpack.c.l.b16 %v394
        %v473 = vunpack.c.l.b16 %v395
        %v474 = vunpack.c.l.b16 %v396
        %v475 = vunpack.c.l.b16 %v397
        %v476 = vunpack.c.l.b16 %v398
        %v477 = vunpack.c.l.b16 %v399
        %v478 = vunpack.c.l.b16 %v400
        %v479 = vunpack.c.l.b16 %v401
        %v480 = vunpack.c.l.b16 %v402
        %v481 = vunpack.c.l.b16 %v403
        %v482 = vunpack.c.l.b16 %v404
        %v483 = vunpack.c.l.b16 %v405
        %v484 = vunpack.c.l.b16 %v406
        %v485 = vunpack.c.l.b16 %v407
        %v486 = vunpack.c.l.b16 %v408
        %v487 = vunpack.c.l.b16 %v409
        %v488 = vunpack.c.l.b16 %v410
        %v489 = vunpack.c.l.b16 %v411
        %v490 = vpack.c.b16 %v467, %v466
        %v491 = vpack.c.b16 %v469, %v468
        %v492 = vpack.c.b16 %v471, %v470
        %v493 = vpack.c.b16 %v473, %v472
        %v494 = vpack.c.b16 %v475, %v474
        %v495 = vpack.c.b16 %v477, %v476
        %v496 = vpack.c.b16 %v479, %v478
        %v497 = vpack.c.b16 %v481, %v480
        %v498 = vpack.c.b16 %v483, %v482
        %v499 = vpack.c.b16 %v485, %v484
        %v500 = vpack.c.b16 %v487, %v486
        %v501 = vpack.c.b16 %v489, %v488
        %v508 = vunpack.c.l.b16 %v412
        %v509 = vunpack.c.l.b16 %v413
        %v510 = vunpack.c.l.b16 %v414
        %v511 = vunpack.c.l.b16 %v415
        %v512 = vunpack.c.l.b16 %v416
        %v513 = vunpack.c.l.b16 %v417
        %v514 = vpack.c.b16 %v509, %v508
        %v515 = vpack.c.b16 %v511, %v510
        %v516 = vpack.c.b16 %v513, %v512
        %vm520 = vcmask 392192
        %v522 = vsel %vm520, %v490, 0
        %v525 = vsel %vm520, %v491, 0
        %v528 = vsel %vm520, %v492, 0
        %v531 = vsel %vm520, %v493, 0
        %v534 = vsel %vm520, %v494, 0
        %v537 = vsel %vm520, %v495, 0
        %v540 = vsel %vm520, %v496, 0
        %v543 = vsel %vm520, %v497, 0
        %v546 = vsel %vm520, %v498, 0
        %v549 = vsel %vm520, %v499, 0
        %v552 = vsel %vm520, %v500, 0
        %v555 = vsel %vm520, %v501, 0
        %557 = vmatprep.subr.bf16.mxu0 0
        %558 = vmatpush1.bf16.msra.mxu0 %v514
        %559 = vmatprep.subr.bf16.mxu0 0
        %560 = vmatpush1.bf16.msra.mxu0 %v515
        %561 = vmatprep.subr.bf16.mxu0 0
        %562 = vmatpush1.bf16.msra.mxu0 %v516
        %563 = vmatprep.subr.bf16.mxu0 0
        %564 = vmatpush1.bf16.msra.mxu0 0
        %565 = vmatprep.subr.bf16.mxu0 0
        %566 = vmatpush1.bf16.msra.mxu0 0
        %567 = vmatprep.subr.bf16.mxu0 0
        %568 = vmatpush1.bf16.msra.mxu0 0
        %569 = vmatprep.subr.bf16.mxu0 0
        %570 = vmatpush1.bf16.msra.mxu0 0
        %571 = vmatprep.subr.bf16.mxu0 0
        %572 = vmatpush1.bf16.msra.mxu0 0
        %573 = vmatprep.subr.bf16.mxu0 0
        %574 = vmatpush1.bf16.msra.mxu0 0
        %575 = vmatprep.subr.bf16.mxu0 0
        %576 = vmatpush1.bf16.msra.mxu0 0
        %577 = vmatprep.subr.bf16.mxu0 0
        %578 = vmatpush1.bf16.msra.mxu0 0
        %579 = vmatprep.subr.bf16.mxu0 0
        %580 = vmatpush1.bf16.msra.mxu0 0
        %581 = vmatprep.subr.bf16.mxu0 0
        %582 = vmatpush1.bf16.msra.mxu0 0
        %583 = vmatprep.subr.bf16.mxu0 0
        %584 = vmatpush1.bf16.msra.mxu0 0
        %585 = vmatprep.subr.bf16.mxu0 0
        %586 = vmatpush1.bf16.msra.mxu0 0
        %587 = vmatprep.subr.bf16.mxu0 0
        %588 = vmatpush1.bf16.msra.mxu0 0
        %589 = vmatprep.mubr.bf16.mxu0 0
        %590 = vmatmul.mubr.bf16.gmra.mrb[0].mxu0 %v522
        %v591 = vpop.f32.mrb[0].mxu0
        %v592 = vadd.f32 %v418, %v591
        %v593 = vpop.f32.mrb[0].mxu0
        %v594 = vpop.f32.mrb[0].mxu0
        %v595 = vadd.f32 %v419, %v594
        %v596 = vpop.f32.mrb[0].mxu0
        %597 = vmatprep.mubr.bf16.mxu0 0
        %598 = vmatmul.mubr.bf16.gmra.mrb[0].mxu0 %v525
        %v599 = vpop.f32.mrb[0].mxu0
        %v600 = vadd.f32 %v420, %v599
        %v601 = vpop.f32.mrb[0].mxu0
        %v602 = vpop.f32.mrb[0].mxu0
        %v603 = vadd.f32 %v421, %v602
        %v604 = vpop.f32.mrb[0].mxu0
        %605 = vmatprep.mubr.bf16.mxu0 0
        %606 = vmatmul.mubr.bf16.gmra.mrb[0].mxu0 %v528
        %v607 = vpop.f32.mrb[0].mxu0
        %v608 = vadd.f32 %v422, %v607
        %v609 = vpop.f32.mrb[0].mxu0
        %v610 = vpop.f32.mrb[0].mxu0
        %v611 = vadd.f32 %v423, %v610
        %v612 = vpop.f32.mrb[0].mxu0
        %613 = vmatprep.mubr.bf16.mxu0 0
        %614 = vmatmul.mubr.bf16.gmra.mrb[0].mxu0 %v531
        %v615 = vpop.f32.mrb[0].mxu0
        %v616 = vadd.f32 %v424, %v615
        %v617 = vpop.f32.mrb[0].mxu0
        %v618 = vpop.f32.mrb[0].mxu0
        %v619 = vadd.f32 %v425, %v618
        %v620 = vpop.f32.mrb[0].mxu0
        %621 = vmatprep.mubr.bf16.mxu0 0
        %622 = vmatmul.mubr.bf16.gmra.mrb[0].mxu0 %v534
        %v623 = vpop.f32.mrb[0].mxu0
        %v624 = vadd.f32 %v426, %v623
        %v625 = vpop.f32.mrb[0].mxu0
        %v626 = vpop.f32.mrb[0].mxu0
        %v627 = vadd.f32 %v427, %v626
        %v628 = vpop.f32.mrb[0].mxu0
        %629 = vmatprep.mubr.bf16.mxu0 0
        %630 = vmatmul.mubr.bf16.gmra.mrb[0].mxu0 %v537
        %v631 = vpop.f32.mrb[0].mxu0
        %v632 = vadd.f32 %v428, %v631
        %v633 = vpop.f32.mrb[0].mxu0
        %v634 = vpop.f32.mrb[0].mxu0
        %v635 = vadd.f32 %v429, %v634
        %v636 = vpop.f32.mrb[0].mxu0
        %637 = vmatprep.mubr.bf16.mxu0 0
        %638 = vmatmul.mubr.bf16.gmra.mrb[0].mxu0 %v540
        %v639 = vpop.f32.mrb[0].mxu0
        %v640 = vadd.f32 %v430, %v639
        %v641 = vpop.f32.mrb[0].mxu0
        %v642 = vpop.f32.mrb[0].mxu0
        %v643 = vadd.f32 %v431, %v642
        %v644 = vpop.f32.mrb[0].mxu0
        %645 = vmatprep.mubr.bf16.mxu0 0
        %646 = vmatmul.mubr.bf16.gmra.mrb[0].mxu0 %v543
        %v647 = vpop.f32.mrb[0].mxu0
        %v648 = vadd.f32 %v432, %v647
        %v649 = vpop.f32.mrb[0].mxu0
        %v650 = vpop.f32.mrb[0].mxu0
        %v651 = vadd.f32 %v433, %v650
        %v652 = vpop.f32.mrb[0].mxu0
        %653 = vmatprep.mubr.bf16.mxu0 0
        %654 = vmatmul.mubr.bf16.gmra.mrb[0].mxu0 %v546
        %v655 = vpop.f32.mrb[0].mxu0
        %v656 = vadd.f32 %v434, %v655
        %v657 = vpop.f32.mrb[0].mxu0
        %v658 = vpop.f32.mrb[0].mxu0
        %v659 = vadd.f32 %v435, %v658
        %v660 = vpop.f32.mrb[0].mxu0
        %661 = vmatprep.mubr.bf16.mxu0 0
        %662 = vmatmul.mubr.bf16.gmra.mrb[0].mxu0 %v549
        %v663 = vpop.f32.mrb[0].mxu0
        %v664 = vadd.f32 %v436, %v663
        %v665 = vpop.f32.mrb[0].mxu0
        %v666 = vpop.f32.mrb[0].mxu0
        %v667 = vadd.f32 %v437, %v666
        %v668 = vpop.f32.mrb[0].mxu0
        %669 = vmatprep.mubr.bf16.mxu0 0
        %670 = vmatmul.mubr.bf16.gmra.mrb[0].mxu0 %v552
        %v671 = vpop.f32.mrb[0].mxu0
        %v672 = vadd.f32 %v438, %v671
        %v673 = vpop.f32.mrb[0].mxu0
        %v674 = vpop.f32.mrb[0].mxu0
        %v675 = vadd.f32 %v439, %v674
        %v676 = vpop.f32.mrb[0].mxu0
        %677 = vmatprep.mubr.bf16.mxu0 0
        %678 = vmatmul.mubr.bf16.gmra.mrb[0].mxu0 %v555
        %v679 = vpop.f32.mrb[0].mxu0
        %v680 = vadd.f32 %v440, %v679
        %v681 = vpop.f32.mrb[0].mxu0
        %v682 = vpop.f32.mrb[0].mxu0
        %v683 = vadd.f32 %v441, %v682
        %v684 = vpop.f32.mrb[0].mxu0
        %685 = vdwg.mxu0
        %v686 = vld [vmem:[%s3] sm:$0x1]
        %v687 = vld [vmem:[%s3 + $0x1] sm:$0x1]
        %vm688 = vcmask 261120
        %v689 = vsel %vm688, %v592, 0.0
        %690 = vadd.xlane.f32.xlu0 %v689
        %v691 = vpop.xlane.xlu0 %690
        %v692 = vsel %vm688, %v595, 0.0
        %693 = vadd.xlane.f32.xlu0 %v692
        %v694 = vpop.xlane.xlu0 %693
        %v695 = vsel %vm688, %v600, 0.0
        %696 = vadd.xlane.f32.xlu0 %v695
        %v697 = vpop.xlane.xlu0 %696
        %v698 = vsel %vm688, %v603, 0.0
        %699 = vadd.xlane.f32.xlu0 %v698
        %v700 = vpop.xlane.xlu0 %699
        %v701 = vsel %vm688, %v608, 0.0
        %702 = vadd.xlane.f32.xlu0 %v701
        %v703 = vpop.xlane.xlu0 %702
        %v704 = vsel %vm688, %v611, 0.0
        %705 = vadd.xlane.f32.xlu0 %v704
        %v706 = vpop.xlane.xlu0 %705
        %v707 = vsel %vm688, %v616, 0.0
        %708 = vadd.xlane.f32.xlu0 %v707
        %v709 = vpop.xlane.xlu0 %708
        %v710 = vsel %vm688, %v619, 0.0
        %711 = vadd.xlane.f32.xlu0 %v710
        %v712 = vpop.xlane.xlu0 %711
        %v713 = vsel %vm688, %v624, 0.0
        %714 = vadd.xlane.f32.xlu0 %v713
        %v715 = vpop.xlane.xlu0 %714
        %v716 = vsel %vm688, %v627, 0.0
        %717 = vadd.xlane.f32.xlu0 %v716
        %v718 = vpop.xlane.xlu0 %717
        %v719 = vsel %vm688, %v632, 0.0
        %720 = vadd.xlane.f32.xlu0 %v719
        %v721 = vpop.xlane.xlu0 %720
        %v722 = vsel %vm688, %v635, 0.0
        %723 = vadd.xlane.f32.xlu0 %v722
        %v724 = vpop.xlane.xlu0 %723
        %v725 = vsel %vm688, %v640, 0.0
        %726 = vadd.xlane.f32.xlu0 %v725
        %v727 = vpop.xlane.xlu0 %726
        %v728 = vsel %vm688, %v643, 0.0
        %729 = vadd.xlane.f32.xlu0 %v728
        %v730 = vpop.xlane.xlu0 %729
        %v731 = vsel %vm688, %v648, 0.0
        %732 = vadd.xlane.f32.xlu0 %v731
        %v733 = vpop.xlane.xlu0 %732
        %v734 = vsel %vm688, %v651, 0.0
        %735 = vadd.xlane.f32.xlu0 %v734
        %v736 = vpop.xlane.xlu0 %735
        %v737 = vsel %vm688, %v656, 0.0
        %738 = vadd.xlane.f32.xlu0 %v737
        %v739 = vpop.xlane.xlu0 %738
        %v740 = vsel %vm688, %v659, 0.0
        %741 = vadd.xlane.f32.xlu0 %v740
        %v742 = vpop.xlane.xlu0 %741
        %v743 = vsel %vm688, %v664, 0.0
        %744 = vadd.xlane.f32.xlu0 %v743
        %v745 = vpop.xlane.xlu0 %744
        %v746 = vsel %vm688, %v667, 0.0
        %747 = vadd.xlane.f32.xlu0 %v746
        %v748 = vpop.xlane.xlu0 %747
        %v749 = vsel %vm688, %v672, 0.0
        %750 = vadd.xlane.f32.xlu0 %v749
        %v751 = vpop.xlane.xlu0 %750
        %v752 = vsel %vm688, %v675, 0.0
        %753 = vadd.xlane.f32.xlu0 %v752
        %v754 = vpop.xlane.xlu0 %753
        %v755 = vsel %vm688, %v680, 0.0
        %756 = vadd.xlane.f32.xlu0 %v755
        %v757 = vpop.xlane.xlu0 %756
        %v758 = vsel %vm688, %v683, 0.0
        %759 = vadd.xlane.f32.xlu0 %v758
        %v760 = vpop.xlane.xlu0 %759
        %v761 = vrcp.pop 32.0
        %v762 = vmul.f32 %v691, %v761
        %v763 = vmul.f32 %v694, %v761
        %v764 = vmul.f32 %v697, %v761
        %v765 = vmul.f32 %v700, %v761
        %v766 = vmul.f32 %v703, %v761
        %v767 = vmul.f32 %v706, %v761
        %v768 = vmul.f32 %v709, %v761
        %v769 = vmul.f32 %v712, %v761
        %v770 = vmul.f32 %v715, %v761
        %v771 = vmul.f32 %v718, %v761
        %v772 = vmul.f32 %v721, %v761
        %v773 = vmul.f32 %v724, %v761
        %v774 = vmul.f32 %v727, %v761
        %v775 = vmul.f32 %v730, %v761
        %v776 = vmul.f32 %v733, %v761
        %v777 = vmul.f32 %v736, %v761
        %v778 = vmul.f32 %v739, %v761
        %v779 = vmul.f32 %v742, %v761
        %v780 = vmul.f32 %v745, %v761
        %v781 = vmul.f32 %v748, %v761
        %v782 = vmul.f32 %v751, %v761
        %v783 = vmul.f32 %v754, %v761
        %v784 = vmul.f32 %v757, %v761
        %v785 = vmul.f32 %v760, %v761
        %v786 = vsub.f32 %v592, %v762
        %v787 = vsub.f32 %v595, %v763
        %v788 = vsub.f32 %v600, %v764
        %v789 = vsub.f32 %v603, %v765
        %v790 = vsub.f32 %v608, %v766
        %v791 = vsub.f32 %v611, %v767
        %v792 = vsub.f32 %v616, %v768
        %v793 = vsub.f32 %v619, %v769
        %v794 = vsub.f32 %v624, %v770
        %v795 = vsub.f32 %v627, %v771
        %v796 = vsub.f32 %v632, %v772
        %v797 = vsub.f32 %v635, %v773
        %v798 = vsub.f32 %v640, %v774
        %v799 = vsub.f32 %v643, %v775
        %v800 = vsub.f32 %v648, %v776
        %v801 = vsub.f32 %v651, %v777
        %v802 = vsub.f32 %v656, %v778
        %v803 = vsub.f32 %v659, %v779
        %v804 = vsub.f32 %v664, %v780
        %v805 = vsub.f32 %v667, %v781
        %v806 = vsub.f32 %v672, %v782
        %v807 = vsub.f32 %v675, %v783
        %v808 = vsub.f32 %v680, %v784
        %v809 = vsub.f32 %v683, %v785
        %v810 = vmul.f32 %v786, %v786
        %v811 = vmul.f32 %v787, %v787
        %v812 = vmul.f32 %v788, %v788
        %v813 = vmul.f32 %v789, %v789
        %v814 = vmul.f32 %v790, %v790
        %v815 = vmul.f32 %v791, %v791
        %v816 = vmul.f32 %v792, %v792
        %v817 = vmul.f32 %v793, %v793
        %v818 = vmul.f32 %v794, %v794
        %v819 = vmul.f32 %v795, %v795
        %v820 = vmul.f32 %v796, %v796
        %v821 = vmul.f32 %v797, %v797
        %v822 = vmul.f32 %v798, %v798
        %v823 = vmul.f32 %v799, %v799
        %v824 = vmul.f32 %v800, %v800
        %v825 = vmul.f32 %v801, %v801
        %v826 = vmul.f32 %v802, %v802
        %v827 = vmul.f32 %v803, %v803
        %v828 = vmul.f32 %v804, %v804
        %v829 = vmul.f32 %v805, %v805
        %v830 = vmul.f32 %v806, %v806
        %v831 = vmul.f32 %v807, %v807
        %v832 = vmul.f32 %v808, %v808
        %v833 = vmul.f32 %v809, %v809
        %v834 = vsel %vm688, %v810, 0.0
        %835 = vadd.xlane.f32.xlu0 %v834
        %v836 = vpop.xlane.xlu0 %835
        %v837 = vsel %vm688, %v811, 0.0
        %838 = vadd.xlane.f32.xlu0 %v837
        %v839 = vpop.xlane.xlu0 %838
        %v840 = vsel %vm688, %v812, 0.0
        %841 = vadd.xlane.f32.xlu0 %v840
        %v842 = vpop.xlane.xlu0 %841
        %v843 = vsel %vm688, %v813, 0.0
        %844 = vadd.xlane.f32.xlu0 %v843
        %v845 = vpop.xlane.xlu0 %844
        %v846 = vsel %vm688, %v814, 0.0
        %847 = vadd.xlane.f32.xlu0 %v846
        %v848 = vpop.xlane.xlu0 %847
        %v849 = vsel %vm688, %v815, 0.0
        %850 = vadd.xlane.f32.xlu0 %v849
        %v851 = vpop.xlane.xlu0 %850
        %v852 = vsel %vm688, %v816, 0.0
        %853 = vadd.xlane.f32.xlu0 %v852
        %v854 = vpop.xlane.xlu0 %853
        %v855 = vsel %vm688, %v817, 0.0
        %856 = vadd.xlane.f32.xlu0 %v855
        %v857 = vpop.xlane.xlu0 %856
        %v858 = vsel %vm688, %v818, 0.0
        %859 = vadd.xlane.f32.xlu0 %v858
        %v860 = vpop.xlane.xlu0 %859
        %v861 = vsel %vm688, %v819, 0.0
        %862 = vadd.xlane.f32.xlu0 %v861
        %v863 = vpop.xlane.xlu0 %862
        %v864 = vsel %vm688, %v820, 0.0
        %865 = vadd.xlane.f32.xlu0 %v864
        %v866 = vpop.xlane.xlu0 %865
        %v867 = vsel %vm688, %v821, 0.0
        %868 = vadd.xlane.f32.xlu0 %v867
        %v869 = vpop.xlane.xlu0 %868
        %v870 = vsel %vm688, %v822, 0.0
        %871 = vadd.xlane.f32.xlu0 %v870
        %v872 = vpop.xlane.xlu0 %871
        %v873 = vsel %vm688, %v823, 0.0
        %874 = vadd.xlane.f32.xlu0 %v873
        %v875 = vpop.xlane.xlu0 %874
        %v876 = vsel %vm688, %v824, 0.0
        %877 = vadd.xlane.f32.xlu0 %v876
        %v878 = vpop.xlane.xlu0 %877
        %v879 = vsel %vm688, %v825, 0.0
        %880 = vadd.xlane.f32.xlu0 %v879
        %v881 = vpop.xlane.xlu0 %880
        %v882 = vsel %vm688, %v826, 0.0
        %883 = vadd.xlane.f32.xlu0 %v882
        %v884 = vpop.xlane.xlu0 %883
        %v885 = vsel %vm688, %v827, 0.0
        %886 = vadd.xlane.f32.xlu0 %v885
        %v887 = vpop.xlane.xlu0 %886
        %v888 = vsel %vm688, %v828, 0.0
        %889 = vadd.xlane.f32.xlu0 %v888
        %v890 = vpop.xlane.xlu0 %889
        %v891 = vsel %vm688, %v829, 0.0
        %892 = vadd.xlane.f32.xlu0 %v891
        %v893 = vpop.xlane.xlu0 %892
        %v894 = vsel %vm688, %v830, 0.0
        %895 = vadd.xlane.f32.xlu0 %v894
        %v896 = vpop.xlane.xlu0 %895
        %v897 = vsel %vm688, %v831, 0.0
        %898 = vadd.xlane.f32.xlu0 %v897
        %v899 = vpop.xlane.xlu0 %898
        %v900 = vsel %vm688, %v832, 0.0
        %901 = vadd.xlane.f32.xlu0 %v900
        %v902 = vpop.xlane.xlu0 %901
        %v903 = vsel %vm688, %v833, 0.0
        %904 = vadd.xlane.f32.xlu0 %v903
        %v905 = vpop.xlane.xlu0 %904
        %v906 = vmul.f32 %v836, %v761
        %v907 = vmul.f32 %v839, %v761
        %v908 = vmul.f32 %v842, %v761
        %v909 = vmul.f32 %v845, %v761
        %v910 = vmul.f32 %v848, %v761
        %v911 = vmul.f32 %v851, %v761
        %v912 = vmul.f32 %v854, %v761
        %v913 = vmul.f32 %v857, %v761
        %v914 = vmul.f32 %v860, %v761
        %v915 = vmul.f32 %v863, %v761
        %v916 = vmul.f32 %v866, %v761
        %v917 = vmul.f32 %v869, %v761
        %v918 = vmul.f32 %v872, %v761
        %v919 = vmul.f32 %v875, %v761
        %v920 = vmul.f32 %v878, %v761
        %v921 = vmul.f32 %v881, %v761
        %v922 = vmul.f32 %v884, %v761
        %v923 = vmul.f32 %v887, %v761
        %v924 = vmul.f32 %v890, %v761
        %v925 = vmul.f32 %v893, %v761
        %v926 = vmul.f32 %v896, %v761
        %v927 = vmul.f32 %v899, %v761
        %v928 = vmul.f32 %v902, %v761
        %v929 = vmul.f32 %v905, %v761
        %v930 = vadd.f32 %v906, 1e-05
        %v931 = vadd.f32 %v907, 1e-05
        %v932 = vadd.f32 %v908, 1e-05
        %v933 = vadd.f32 %v909, 1e-05
        %v934 = vadd.f32 %v910, 1e-05
        %v935 = vadd.f32 %v911, 1e-05
        %v936 = vadd.f32 %v912, 1e-05
        %v937 = vadd.f32 %v913, 1e-05
        %v938 = vadd.f32 %v914, 1e-05
        %v939 = vadd.f32 %v915, 1e-05
        %v940 = vadd.f32 %v916, 1e-05
        %v941 = vadd.f32 %v917, 1e-05
        %v942 = vadd.f32 %v918, 1e-05
        %v943 = vadd.f32 %v919, 1e-05
        %v944 = vadd.f32 %v920, 1e-05
        %v945 = vadd.f32 %v921, 1e-05
        %v946 = vadd.f32 %v922, 1e-05
        %v947 = vadd.f32 %v923, 1e-05
        %v948 = vadd.f32 %v924, 1e-05
        %v949 = vadd.f32 %v925, 1e-05
        %v950 = vadd.f32 %v926, 1e-05
        %v951 = vadd.f32 %v927, 1e-05
        %v952 = vadd.f32 %v928, 1e-05
        %v953 = vadd.f32 %v929, 1e-05
        %v954 = vrsqrt.pop %v930
        %v955 = vrsqrt.pop %v931
        %v956 = vrsqrt.pop %v932
        %v957 = vrsqrt.pop %v933
        %v958 = vrsqrt.pop %v934
        %v959 = vrsqrt.pop %v935
        %v960 = vrsqrt.pop %v936
        %v961 = vrsqrt.pop %v937
        %v962 = vrsqrt.pop %v938
        %v963 = vrsqrt.pop %v939
        %v964 = vrsqrt.pop %v940
        %v965 = vrsqrt.pop %v941
        %v966 = vrsqrt.pop %v942
        %v967 = vrsqrt.pop %v943
        %v968 = vrsqrt.pop %v944
        %v969 = vrsqrt.pop %v945
        %v970 = vrsqrt.pop %v946
        %v971 = vrsqrt.pop %v947
        %v972 = vrsqrt.pop %v948
        %v973 = vrsqrt.pop %v949
        %v974 = vrsqrt.pop %v950
        %v975 = vrsqrt.pop %v951
        %v976 = vrsqrt.pop %v952
        %v977 = vrsqrt.pop %v953
        %v978 = vmul.f32 %v786, %v954
        %v979 = vmul.f32 %v787, %v955
        %v980 = vmul.f32 %v788, %v956
        %v981 = vmul.f32 %v789, %v957
        %v982 = vmul.f32 %v790, %v958
        %v983 = vmul.f32 %v791, %v959
        %v984 = vmul.f32 %v792, %v960
        %v985 = vmul.f32 %v793, %v961
        %v986 = vmul.f32 %v794, %v962
        %v987 = vmul.f32 %v795, %v963
        %v988 = vmul.f32 %v796, %v964
        %v989 = vmul.f32 %v797, %v965
        %v990 = vmul.f32 %v798, %v966
        %v991 = vmul.f32 %v799, %v967
        %v992 = vmul.f32 %v800, %v968
        %v993 = vmul.f32 %v801, %v969
        %v994 = vmul.f32 %v802, %v970
        %v995 = vmul.f32 %v803, %v971
        %v996 = vmul.f32 %v804, %v972
        %v997 = vmul.f32 %v805, %v973
        %v998 = vmul.f32 %v806, %v974
        %v999 = vmul.f32 %v807, %v975
        %v1000 = vmul.f32 %v808, %v976
        %v1001 = vmul.f32 %v809, %v977
        %v1002 = vlaneseq
        %v1003 = vshrl.u32 %v1002, 7
        %v1004 = vsub.s32 0, %v1003
        %v1005 = vrot.slane %v686, %v1004
        %v1006 = vmul.f32 %v978, %v1005
        %v1007 = vmul.f32 %v979, %v1005
        %v1008 = vmul.f32 %v980, %v1005
        %v1009 = vmul.f32 %v981, %v1005
        %v1010 = vmul.f32 %v982, %v1005
        %v1011 = vmul.f32 %v983, %v1005
        %v1012 = vmul.f32 %v984, %v1005
        %v1013 = vmul.f32 %v985, %v1005
        %v1014 = vmul.f32 %v986, %v1005
        %v1015 = vmul.f32 %v987, %v1005
        %v1016 = vmul.f32 %v988, %v1005
        %v1017 = vmul.f32 %v989, %v1005
        %v1018 = vmul.f32 %v990, %v1005
        %v1019 = vmul.f32 %v991, %v1005
        %v1020 = vmul.f32 %v992, %v1005
        %v1021 = vmul.f32 %v993, %v1005
        %v1022 = vmul.f32 %v994, %v1005
        %v1023 = vmul.f32 %v995, %v1005
        %v1024 = vmul.f32 %v996, %v1005
        %v1025 = vmul.f32 %v997, %v1005
        %v1026 = vmul.f32 %v998, %v1005
        %v1027 = vmul.f32 %v999, %v1005
        %v1028 = vmul.f32 %v1000, %v1005
        %v1029 = vmul.f32 %v1001, %v1005
        %v1030 = vlaneseq
        %v1031 = vshrl.u32 %v1030, 7
        %v1032 = vsub.s32 0, %v1031
        %v1033 = vrot.slane %v687, %v1032
        %v1034 = vadd.f32 %v1006, %v1033
        %v1035 = vadd.f32 %v1007, %v1033
        %v1036 = vadd.f32 %v1008, %v1033
        %v1037 = vadd.f32 %v1009, %v1033
        %v1038 = vadd.f32 %v1010, %v1033
        %v1039 = vadd.f32 %v1011, %v1033
        %v1040 = vadd.f32 %v1012, %v1033
        %v1041 = vadd.f32 %v1013, %v1033
        %v1042 = vadd.f32 %v1014, %v1033
        %v1043 = vadd.f32 %v1015, %v1033
        %v1044 = vadd.f32 %v1016, %v1033
        %v1045 = vadd.f32 %v1017, %v1033
        %v1046 = vadd.f32 %v1018, %v1033
        %v1047 = vadd.f32 %v1019, %v1033
        %v1048 = vadd.f32 %v1020, %v1033
        %v1049 = vadd.f32 %v1021, %v1033
        %v1050 = vadd.f32 %v1022, %v1033
        %v1051 = vadd.f32 %v1023, %v1033
        %v1052 = vadd.f32 %v1024, %v1033
        %v1053 = vadd.f32 %v1025, %v1033
        %v1054 = vadd.f32 %v1026, %v1033
        %v1055 = vadd.f32 %v1027, %v1033
        %v1056 = vadd.f32 %v1028, %v1033
        %v1057 = vadd.f32 %v1029, %v1033
        %v1058 = vld [vmem:[%s6] sm:$0xf]
        %v1059 = vld [vmem:[%s6 + $0x4] sm:$0xf]
        %v1060 = vld [vmem:[%s6 + $0x8] sm:$0xf]
        %v1061 = vld [vmem:[%s6 + $0xc] sm:$0xf]
        %v1062 = vpack.c.bf16 %v1035, %v1034
        %v1063 = vpack.c.bf16 %v1037, %v1036
        %v1064 = vpack.c.bf16 %v1039, %v1038
        %v1065 = vpack.c.bf16 %v1041, %v1040
        %v1066 = vpack.c.bf16 %v1043, %v1042
        %v1067 = vpack.c.bf16 %v1045, %v1044
        %v1068 = vpack.c.bf16 %v1047, %v1046
        %v1069 = vpack.c.bf16 %v1049, %v1048
        %v1070 = vpack.c.bf16 %v1051, %v1050
        %v1071 = vpack.c.bf16 %v1053, %v1052
        %v1072 = vpack.c.bf16 %v1055, %v1054
        %v1073 = vpack.c.bf16 %v1057, %v1056
        %v1074 = vld [vmem:[%s4] sm:$0x1]
        %v1075 = vlaneseq
        %v1076 = vshrl.u32 %v1075, 7
        %v1077 = vsub.s32 0, %v1076
        %v1078 = vrot.slane %v1074, %v1077
        %v1083 = vunpack.c.l.b16 %v1058
        %v1084 = vunpack.c.l.b16 %v1059
        %v1085 = vunpack.c.l.b16 %v1060
        %v1086 = vunpack.c.l.b16 %v1061
        %v1087 = vpack.c.b16 %v1084, %v1083
        %v1088 = vpack.c.b16 %v1086, %v1085
        %v1092 = vsel %vm688, %v1062, 0
        %v1095 = vsel %vm688, %v1063, 0
        %v1098 = vsel %vm688, %v1064, 0
        %v1101 = vsel %vm688, %v1065, 0
        %v1104 = vsel %vm688, %v1066, 0
        %v1107 = vsel %vm688, %v1067, 0
        %v1110 = vsel %vm688, %v1068, 0
        %v1113 = vsel %vm688, %v1069, 0
        %v1116 = vsel %vm688, %v1070, 0
        %v1119 = vsel %vm688, %v1071, 0
        %v1122 = vsel %vm688, %v1072, 0
        %v1125 = vsel %vm688, %v1073, 0
        %1127 = vmatprep.subr.bf16.mxu0 0
        %1128 = vmatpush1.bf16.msra.mxu0 %v1087
        %1129 = vmatprep.subr.bf16.mxu0 0
        %1130 = vmatpush1.bf16.msra.mxu0 %v1088
        %1131 = vmatprep.subr.bf16.mxu0 0
        %1132 = vmatpush1.bf16.msra.mxu0 0
        %1133 = vmatprep.subr.bf16.mxu0 0
        %1134 = vmatpush1.bf16.msra.mxu0 0
        %1135 = vmatprep.subr.bf16.mxu0 0
        %1136 = vmatpush1.bf16.msra.mxu0 0
        %1137 = vmatprep.subr.bf16.mxu0 0
        %1138 = vmatpush1.bf16.msra.mxu0 0
        %1139 = vmatprep.subr.bf16.mxu0 0
        %1140 = vmatpush1.bf16.msra.mxu0 0
        %1141 = vmatprep.subr.bf16.mxu0 0
        %1142 = vmatpush1.bf16.msra.mxu0 0
        %1143 = vmatprep.subr.bf16.mxu0 0
        %1144 = vmatpush1.bf16.msra.mxu0 0
        %1145 = vmatprep.subr.bf16.mxu0 0
        %1146 = vmatpush1.bf16.msra.mxu0 0
        %1147 = vmatprep.subr.bf16.mxu0 0
        %1148 = vmatpush1.bf16.msra.mxu0 0
        %1149 = vmatprep.subr.bf16.mxu0 0
        %1150 = vmatpush1.bf16.msra.mxu0 0
        %1151 = vmatprep.subr.bf16.mxu0 0
        %1152 = vmatpush1.bf16.msra.mxu0 0
        %1153 = vmatprep.subr.bf16.mxu0 0
        %1154 = vmatpush1.bf16.msra.mxu0 0
        %1155 = vmatprep.subr.bf16.mxu0 0
        %1156 = vmatpush1.bf16.msra.mxu0 0
        %1157 = vmatprep.subr.bf16.mxu0 0
        %1158 = vmatpush1.bf16.msra.mxu0 0
        %1159 = vmatprep.mubr.bf16.mxu0 0
        %1160 = vmatmul.mubr.bf16.gmra.mrb[0].mxu0 %v1092
        %v1161 = vpop.f32.mrb[0].mxu0
        %v1162 = vadd.f32 %v1078, %v1161
        %v1163 = vpop.f32.mrb[0].mxu0
        %v1164 = vpop.f32.mrb[0].mxu0
        %v1165 = vadd.f32 %v1078, %v1164
        %v1166 = vpop.f32.mrb[0].mxu0
        %1167 = vmatprep.mubr.bf16.mxu0 0
        %1168 = vmatmul.mubr.bf16.gmra.mrb[0].mxu0 %v1095
        %v1169 = vpop.f32.mrb[0].mxu0
        %v1170 = vadd.f32 %v1078, %v1169
        %v1171 = vpop.f32.mrb[0].mxu0
        %v1172 = vpop.f32.mrb[0].mxu0
        %v1173 = vadd.f32 %v1078, %v1172
        %v1174 = vpop.f32.mrb[0].mxu0
        %1175 = vmatprep.mubr.bf16.mxu0 0
        %1176 = vmatmul.mubr.bf16.gmra.mrb[0].mxu0 %v1098
        %v1177 = vpop.f32.mrb[0].mxu0
        %v1178 = vadd.f32 %v1078, %v1177
        %v1179 = vpop.f32.mrb[0].mxu0
        %v1180 = vpop.f32.mrb[0].mxu0
        %v1181 = vadd.f32 %v1078, %v1180
        %v1182 = vpop.f32.mrb[0].mxu0
        %1183 = vmatprep.mubr.bf16.mxu0 0
        %1184 = vmatmul.mubr.bf16.gmra.mrb[0].mxu0 %v1101
        %v1185 = vpop.f32.mrb[0].mxu0
        %v1186 = vadd.f32 %v1078, %v1185
        %v1187 = vpop.f32.mrb[0].mxu0
        %v1188 = vpop.f32.mrb[0].mxu0
        %v1189 = vadd.f32 %v1078, %v1188
        %v1190 = vpop.f32.mrb[0].mxu0
        %1191 = vmatprep.mubr.bf16.mxu0 0
        %1192 = vmatmul.mubr.bf16.gmra.mrb[0].mxu0 %v1104
        %v1193 = vpop.f32.mrb[0].mxu0
        %v1194 = vadd.f32 %v1078, %v1193
        %v1195 = vpop.f32.mrb[0].mxu0
        %v1196 = vpop.f32.mrb[0].mxu0
        %v1197 = vadd.f32 %v1078, %v1196
        %v1198 = vpop.f32.mrb[0].mxu0
        %1199 = vmatprep.mubr.bf16.mxu0 0
        %1200 = vmatmul.mubr.bf16.gmra.mrb[0].mxu0 %v1107
        %v1201 = vpop.f32.mrb[0].mxu0
        %v1202 = vadd.f32 %v1078, %v1201
        %v1203 = vpop.f32.mrb[0].mxu0
        %v1204 = vpop.f32.mrb[0].mxu0
        %v1205 = vadd.f32 %v1078, %v1204
        %v1206 = vpop.f32.mrb[0].mxu0
        %1207 = vmatprep.mubr.bf16.mxu0 0
        %1208 = vmatmul.mubr.bf16.gmra.mrb[0].mxu0 %v1110
        %v1209 = vpop.f32.mrb[0].mxu0
        %v1210 = vadd.f32 %v1078, %v1209
        %v1211 = vpop.f32.mrb[0].mxu0
        %v1212 = vpop.f32.mrb[0].mxu0
        %v1213 = vadd.f32 %v1078, %v1212
        %v1214 = vpop.f32.mrb[0].mxu0
        %1215 = vmatprep.mubr.bf16.mxu0 0
        %1216 = vmatmul.mubr.bf16.gmra.mrb[0].mxu0 %v1113
        %v1217 = vpop.f32.mrb[0].mxu0
        %v1218 = vadd.f32 %v1078, %v1217
        %v1219 = vpop.f32.mrb[0].mxu0
        %v1220 = vpop.f32.mrb[0].mxu0
        %v1221 = vadd.f32 %v1078, %v1220
        %v1222 = vpop.f32.mrb[0].mxu0
        %1223 = vmatprep.mubr.bf16.mxu0 0
        %1224 = vmatmul.mubr.bf16.gmra.mrb[0].mxu0 %v1116
        %v1225 = vpop.f32.mrb[0].mxu0
        %v1226 = vadd.f32 %v1078, %v1225
        %v1227 = vpop.f32.mrb[0].mxu0
        %v1228 = vpop.f32.mrb[0].mxu0
        %v1229 = vadd.f32 %v1078, %v1228
        %v1230 = vpop.f32.mrb[0].mxu0
        %1231 = vmatprep.mubr.bf16.mxu0 0
        %1232 = vmatmul.mubr.bf16.gmra.mrb[0].mxu0 %v1119
        %v1233 = vpop.f32.mrb[0].mxu0
        %v1234 = vadd.f32 %v1078, %v1233
        %v1235 = vpop.f32.mrb[0].mxu0
        %v1236 = vpop.f32.mrb[0].mxu0
        %v1237 = vadd.f32 %v1078, %v1236
        %v1238 = vpop.f32.mrb[0].mxu0
        %1239 = vmatprep.mubr.bf16.mxu0 0
        %1240 = vmatmul.mubr.bf16.gmra.mrb[0].mxu0 %v1122
        %v1241 = vpop.f32.mrb[0].mxu0
        %v1242 = vadd.f32 %v1078, %v1241
        %v1243 = vpop.f32.mrb[0].mxu0
        %v1244 = vpop.f32.mrb[0].mxu0
        %v1245 = vadd.f32 %v1078, %v1244
        %v1246 = vpop.f32.mrb[0].mxu0
        %1247 = vmatprep.mubr.bf16.mxu0 0
        %1248 = vmatmul.mubr.bf16.gmra.mrb[0].mxu0 %v1125
        %v1249 = vpop.f32.mrb[0].mxu0
        %v1250 = vadd.f32 %v1078, %v1249
        %v1251 = vpop.f32.mrb[0].mxu0
        %v1252 = vpop.f32.mrb[0].mxu0
        %v1253 = vadd.f32 %v1078, %v1252
        %v1254 = vpop.f32.mrb[0].mxu0
        %1255 = vdwg.mxu0
        %v1256 = vpack.c.bf16 %v1165, %v1162
        %v1257 = vpack.c.bf16 %v1173, %v1170
        %v1258 = vpack.c.bf16 %v1181, %v1178
        %v1259 = vpack.c.bf16 %v1189, %v1186
        %v1260 = vpack.c.bf16 %v1197, %v1194
        %v1261 = vpack.c.bf16 %v1205, %v1202
        %v1262 = vpack.c.bf16 %v1213, %v1210
        %v1263 = vpack.c.bf16 %v1221, %v1218
        %v1264 = vpack.c.bf16 %v1229, %v1226
        %v1265 = vpack.c.bf16 %v1237, %v1234
        %v1266 = vpack.c.bf16 %v1245, %v1242
        %v1267 = vpack.c.bf16 %v1253, %v1250
        %v1268 = vld [vmem:[%s1] sm:$0xff]
        %v1269 = vld [vmem:[%s1 + $0x8] sm:$0xff]
        %v1270 = vld [vmem:[%s1 + $0x10] sm:$0xff]
        %v1271 = vld [vmem:[%s1 + $0x18] sm:$0xff]
        %v1272 = vld [vmem:[%s1 + $0x20] sm:$0xff]
        %v1273 = vld [vmem:[%s1 + $0x28] sm:$0xff]
        %v1274 = vld [vmem:[%s1 + $0x30] sm:$0xff]
        %v1275 = vld [vmem:[%s1 + $0x38] sm:$0xff]
        %v1276 = vld [vmem:[%s1 + $0x40] sm:$0xff]
        %v1277 = vld [vmem:[%s1 + $0x48] sm:$0xff]
        %v1278 = vld [vmem:[%s1 + $0x50] sm:$0xff]
        %v1279 = vld [vmem:[%s1 + $0x58] sm:$0xff]
        %v1280 = vld [vmem:[%s1 + $0x60] sm:$0xff]
        %v1281 = vld [vmem:[%s1 + $0x68] sm:$0xff]
        %v1282 = vld [vmem:[%s1 + $0x70] sm:$0xff]
        %v1283 = vld [vmem:[%s1 + $0x78] sm:$0xff]
        %v1284 = vld [vmem:[%s1 + $0x80] sm:$0xff]
        %v1285 = vld [vmem:[%s1 + $0x88] sm:$0xff]
        %v1286 = vld [vmem:[%s1 + $0x90] sm:$0xff]
        %v1287 = vld [vmem:[%s1 + $0x98] sm:$0xff]
        %v1288 = vld [vmem:[%s1 + $0xa0] sm:$0xff]
        %v1289 = vld [vmem:[%s1 + $0xa8] sm:$0xff]
        %v1290 = vld [vmem:[%s1 + $0xb0] sm:$0xff]
        %v1291 = vld [vmem:[%s1 + $0xb8] sm:$0xff]
        %v1292 = vld [vmem:[%s1 + $0xc0] sm:$0xff]
        %v1293 = vld [vmem:[%s1 + $0xc8] sm:$0xff]
        %v1294 = vld [vmem:[%s1 + $0xd0] sm:$0xff]
        %v1295 = vld [vmem:[%s1 + $0xd8] sm:$0xff]
        %v1296 = vld [vmem:[%s1 + $0xe0] sm:$0xff]
        %v1297 = vld [vmem:[%s1 + $0xe8] sm:$0xff]
        %v1298 = vld [vmem:[%s1 + $0xf0] sm:$0xff]
        %v1299 = vld [vmem:[%s1 + $0xf8] sm:$0xff]
        %v1300 = vld [vmem:[%s1 + $0x100] sm:$0xff]
        %v1301 = vld [vmem:[%s1 + $0x108] sm:$0xff]
        %v1302 = vld [vmem:[%s1 + $0x110] sm:$0xff]
        %v1303 = vld [vmem:[%s1 + $0x118] sm:$0xff]
        %v1304 = vld [vmem:[%s1 + $0x120] sm:$0xff]
        %v1305 = vld [vmem:[%s1 + $0x128] sm:$0xff]
        %v1306 = vld [vmem:[%s1 + $0x130] sm:$0xff]
        %v1307 = vld [vmem:[%s1 + $0x138] sm:$0xff]
        %v1308 = vld [vmem:[%s1 + $0x140] sm:$0xff]
        %v1309 = vld [vmem:[%s1 + $0x148] sm:$0xff]
        %v1310 = vld [vmem:[%s1 + $0x150] sm:$0xff]
        %v1311 = vld [vmem:[%s1 + $0x158] sm:$0xff]
        %v1312 = vld [vmem:[%s1 + $0x160] sm:$0xff]
        %v1313 = vld [vmem:[%s1 + $0x168] sm:$0xff]
        %v1314 = vld [vmem:[%s1 + $0x170] sm:$0xff]
        %v1315 = vld [vmem:[%s1 + $0x178] sm:$0xff]
        %1328 = vrot.lane.b32.xlu0 %v1256, 96
        %v1329 = vpop.permute.xlu0 %1328
        %1330 = vrot.lane.b32.xlu0 %v1257, 96
        %v1331 = vpop.permute.xlu0 %1330
        %1332 = vrot.lane.b32.xlu0 %v1258, 96
        %v1333 = vpop.permute.xlu0 %1332
        %1334 = vrot.lane.b32.xlu0 %v1259, 96
        %v1335 = vpop.permute.xlu0 %1334
        %1336 = vrot.lane.b32.xlu0 %v1260, 96
        %v1337 = vpop.permute.xlu0 %1336
        %1338 = vrot.lane.b32.xlu0 %v1261, 96
        %v1339 = vpop.permute.xlu0 %1338
        %1340 = vrot.lane.b32.xlu0 %v1262, 96
        %v1341 = vpop.permute.xlu0 %1340
        %1342 = vrot.lane.b32.xlu0 %v1263, 96
        %v1343 = vpop.permute.xlu0 %1342
        %1344 = vrot.lane.b32.xlu0 %v1264, 96
        %v1345 = vpop.permute.xlu0 %1344
        %1346 = vrot.lane.b32.xlu0 %v1265, 96
        %v1347 = vpop.permute.xlu0 %1346
        %1348 = vrot.lane.b32.xlu0 %v1266, 96
        %v1349 = vpop.permute.xlu0 %1348
        %1350 = vrot.lane.b32.xlu0 %v1267, 96
        %v1351 = vpop.permute.xlu0 %1350
        %vm1352 = vcmask 64512
        %v1354 = vsel %vm1352, %v1256, 0
        %v1357 = vsel %vm1352, %v1257, 0
        %v1360 = vsel %vm1352, %v1258, 0
        %v1363 = vsel %vm1352, %v1259, 0
        %v1366 = vsel %vm1352, %v1260, 0
        %v1369 = vsel %vm1352, %v1261, 0
        %v1372 = vsel %vm1352, %v1262, 0
        %v1375 = vsel %vm1352, %v1263, 0
        %v1378 = vsel %vm1352, %v1264, 0
        %v1381 = vsel %vm1352, %v1265, 0
        %v1384 = vsel %vm1352, %v1266, 0
        %v1387 = vsel %vm1352, %v1267, 0
        %v1390 = vsel %vm1352, %v1329, 0
        %v1393 = vsel %vm1352, %v1331, 0
        %v1396 = vsel %vm1352, %v1333, 0
        %v1399 = vsel %vm1352, %v1335, 0
        %v1402 = vsel %vm1352, %v1337, 0
        %v1405 = vsel %vm1352, %v1339, 0
        %v1408 = vsel %vm1352, %v1341, 0
        %v1411 = vsel %vm1352, %v1343, 0
        %v1414 = vsel %vm1352, %v1345, 0
        %v1417 = vsel %vm1352, %v1347, 0
        %v1420 = vsel %vm1352, %v1349, 0
        %v1423 = vsel %vm1352, %v1351, 0
        %1425 = vmatprep.subr.bf16.mxu0 0
        %1426 = vmatpush1.bf16.xpose.msra.mxu0 %v1390
        %1427 = vmatprep.subr.bf16.mxu0 0
        %1428 = vmatpush1.bf16.xpose.msra.mxu0 %v1393
        %1429 = vmatprep.subr.bf16.mxu0 0
        %1430 = vmatpush1.bf16.xpose.msra.mxu0 %v1396
        %1431 = vmatprep.subr.bf16.mxu0 0
        %1432 = vmatpush1.bf16.xpose.msra.mxu0 %v1399
        %1433 = vmatprep.subr.bf16.mxu0 0
        %1434 = vmatpush1.bf16.xpose.msra.mxu0 %v1402
        %1435 = vmatprep.subr.bf16.mxu0 0
        %1436 = vmatpush1.bf16.xpose.msra.mxu0 %v1405
        %1437 = vmatprep.subr.bf16.mxu0 0
        %1438 = vmatpush1.bf16.xpose.msra.mxu0 %v1408
        %1439 = vmatprep.subr.bf16.mxu0 0
        %1440 = vmatpush1.bf16.xpose.msra.mxu0 %v1411
        %1441 = vmatprep.subr.bf16.mxu0 0
        %1442 = vmatpush1.bf16.xpose.msra.mxu0 %v1414
        %1443 = vmatprep.subr.bf16.mxu0 0
        %1444 = vmatpush1.bf16.xpose.msra.mxu0 %v1417
        %1445 = vmatprep.subr.bf16.mxu0 0
        %1446 = vmatpush1.bf16.xpose.msra.mxu0 %v1420
        %1447 = vmatprep.subr.bf16.mxu0 0
        %1448 = vmatpush1.bf16.xpose.msra.mxu0 %v1423
        %1449 = vmatprep.subr.bf16.mxu0 0
        %1450 = vmatpush1.bf16.xpose.msra.mxu0 0
        %1451 = vmatprep.subr.bf16.mxu0 0
        %1452 = vmatpush1.bf16.xpose.msra.mxu0 0
        %1453 = vmatprep.subr.bf16.mxu0 0
        %1454 = vmatpush1.bf16.xpose.msra.mxu0 0
        %1455 = vmatprep.subr.bf16.mxu0 0
        %1456 = vmatpush1.bf16.xpose.msra.mxu0 0
        %1457 = vmatprep.mubr.bf16.mxu0 0
        %1458 = vmatmul.mubr.bf16.gmra.mrb[0].mxu0 %v1354
        %v1459 = vpop.f32.mrb[0].mxu0
        %v1460 = vadd.f32 0.0, %v1459
        %v1461 = vpop.f32.mrb[0].mxu0
        %v1462 = vadd.f32 0.0, %v1461
        %v1463 = vpop.f32.mrb[0].mxu0
        %v1464 = vadd.f32 0.0, %v1463
        %v1465 = vpop.f32.mrb[0].mxu0
        %v1466 = vadd.f32 0.0, %v1465
        %1467 = vmatprep.mubr.bf16.mxu0 0
        %1468 = vmatmul.mubr.bf16.gmra.mrb[0].mxu0 %v1357
        %v1469 = vpop.f32.mrb[0].mxu0
        %v1470 = vadd.f32 0.0, %v1469
        %v1471 = vpop.f32.mrb[0].mxu0
        %v1472 = vadd.f32 0.0, %v1471
        %v1473 = vpop.f32.mrb[0].mxu0
        %v1474 = vadd.f32 0.0, %v1473
        %v1475 = vpop.f32.mrb[0].mxu0
        %v1476 = vadd.f32 0.0, %v1475
        %1477 = vmatprep.mubr.bf16.mxu0 0
        %1478 = vmatmul.mubr.bf16.gmra.mrb[0].mxu0 %v1360
        %v1479 = vpop.f32.mrb[0].mxu0
        %v1480 = vadd.f32 0.0, %v1479
        %v1481 = vpop.f32.mrb[0].mxu0
        %v1482 = vadd.f32 0.0, %v1481
        %v1483 = vpop.f32.mrb[0].mxu0
        %v1484 = vadd.f32 0.0, %v1483
        %v1485 = vpop.f32.mrb[0].mxu0
        %v1486 = vadd.f32 0.0, %v1485
        %1487 = vmatprep.mubr.bf16.mxu0 0
        %1488 = vmatmul.mubr.bf16.gmra.mrb[0].mxu0 %v1363
        %v1489 = vpop.f32.mrb[0].mxu0
        %v1490 = vadd.f32 0.0, %v1489
        %v1491 = vpop.f32.mrb[0].mxu0
        %v1492 = vadd.f32 0.0, %v1491
        %v1493 = vpop.f32.mrb[0].mxu0
        %v1494 = vadd.f32 0.0, %v1493
        %v1495 = vpop.f32.mrb[0].mxu0
        %v1496 = vadd.f32 0.0, %v1495
        %1497 = vmatprep.mubr.bf16.mxu0 0
        %1498 = vmatmul.mubr.bf16.gmra.mrb[0].mxu0 %v1366
        %v1499 = vpop.f32.mrb[0].mxu0
        %v1500 = vadd.f32 0.0, %v1499
        %v1501 = vpop.f32.mrb[0].mxu0
        %v1502 = vadd.f32 0.0, %v1501
        %v1503 = vpop.f32.mrb[0].mxu0
        %v1504 = vadd.f32 0.0, %v1503
        %v1505 = vpop.f32.mrb[0].mxu0
        %v1506 = vadd.f32 0.0, %v1505
        %1507 = vmatprep.mubr.bf16.mxu0 0
        %1508 = vmatmul.mubr.bf16.gmra.mrb[0].mxu0 %v1369
        %v1509 = vpop.f32.mrb[0].mxu0
        %v1510 = vadd.f32 0.0, %v1509
        %v1511 = vpop.f32.mrb[0].mxu0
        %v1512 = vadd.f32 0.0, %v1511
        %v1513 = vpop.f32.mrb[0].mxu0
        %v1514 = vadd.f32 0.0, %v1513
        %v1515 = vpop.f32.mrb[0].mxu0
        %v1516 = vadd.f32 0.0, %v1515
        %1517 = vmatprep.mubr.bf16.mxu0 0
        %1518 = vmatmul.mubr.bf16.gmra.mrb[0].mxu0 %v1372
        %v1519 = vpop.f32.mrb[0].mxu0
        %v1520 = vadd.f32 0.0, %v1519
        %v1521 = vpop.f32.mrb[0].mxu0
        %v1522 = vadd.f32 0.0, %v1521
        %v1523 = vpop.f32.mrb[0].mxu0
        %v1524 = vadd.f32 0.0, %v1523
        %v1525 = vpop.f32.mrb[0].mxu0
        %v1526 = vadd.f32 0.0, %v1525
        %1527 = vmatprep.mubr.bf16.mxu0 0
        %1528 = vmatmul.mubr.bf16.gmra.mrb[0].mxu0 %v1375
        %v1529 = vpop.f32.mrb[0].mxu0
        %v1530 = vadd.f32 0.0, %v1529
        %v1531 = vpop.f32.mrb[0].mxu0
        %v1532 = vadd.f32 0.0, %v1531
        %v1533 = vpop.f32.mrb[0].mxu0
        %v1534 = vadd.f32 0.0, %v1533
        %v1535 = vpop.f32.mrb[0].mxu0
        %v1536 = vadd.f32 0.0, %v1535
        %1537 = vmatprep.mubr.bf16.mxu0 0
        %1538 = vmatmul.mubr.bf16.gmra.mrb[0].mxu0 %v1378
        %v1539 = vpop.f32.mrb[0].mxu0
        %v1540 = vadd.f32 0.0, %v1539
        %v1541 = vpop.f32.mrb[0].mxu0
        %v1542 = vadd.f32 0.0, %v1541
        %v1543 = vpop.f32.mrb[0].mxu0
        %v1544 = vadd.f32 0.0, %v1543
        %v1545 = vpop.f32.mrb[0].mxu0
        %v1546 = vadd.f32 0.0, %v1545
        %1547 = vmatprep.mubr.bf16.mxu0 0
        %1548 = vmatmul.mubr.bf16.gmra.mrb[0].mxu0 %v1381
        %v1549 = vpop.f32.mrb[0].mxu0
        %v1550 = vadd.f32 0.0, %v1549
        %v1551 = vpop.f32.mrb[0].mxu0
        %v1552 = vadd.f32 0.0, %v1551
        %v1553 = vpop.f32.mrb[0].mxu0
        %v1554 = vadd.f32 0.0, %v1553
        %v1555 = vpop.f32.mrb[0].mxu0
        %v1556 = vadd.f32 0.0, %v1555
        %1557 = vmatprep.mubr.bf16.mxu0 0
        %1558 = vmatmul.mubr.bf16.gmra.mrb[0].mxu0 %v1384
        %v1559 = vpop.f32.mrb[0].mxu0
        %v1560 = vadd.f32 0.0, %v1559
        %v1561 = vpop.f32.mrb[0].mxu0
        %v1562 = vadd.f32 0.0, %v1561
        %v1563 = vpop.f32.mrb[0].mxu0
        %v1564 = vadd.f32 0.0, %v1563
        %v1565 = vpop.f32.mrb[0].mxu0
        %v1566 = vadd.f32 0.0, %v1565
        %1567 = vmatprep.mubr.bf16.mxu0 0
        %1568 = vmatmul.mubr.bf16.gmra.mrb[0].mxu0 %v1387
        %v1569 = vpop.f32.mrb[0].mxu0
        %v1570 = vadd.f32 0.0, %v1569
        %v1571 = vpop.f32.mrb[0].mxu0
        %v1572 = vadd.f32 0.0, %v1571
        %v1573 = vpop.f32.mrb[0].mxu0
        %v1574 = vadd.f32 0.0, %v1573
        %v1575 = vpop.f32.mrb[0].mxu0
        %v1576 = vadd.f32 0.0, %v1575
        %1577 = vdwg.mxu0
        %v1578 = vmul.f32 %v1460, 0.35355338
        %v1579 = vmul.f32 %v1462, 0.35355338
        %v1580 = vmul.f32 %v1464, 0.35355338
        %v1581 = vmul.f32 %v1466, 0.35355338
        %v1582 = vmul.f32 %v1470, 0.35355338
        %v1583 = vmul.f32 %v1472, 0.35355338
        %v1584 = vmul.f32 %v1474, 0.35355338
        %v1585 = vmul.f32 %v1476, 0.35355338
        %v1586 = vmul.f32 %v1480, 0.35355338
        %v1587 = vmul.f32 %v1482, 0.35355338
        %v1588 = vmul.f32 %v1484, 0.35355338
        %v1589 = vmul.f32 %v1486, 0.35355338
        %v1590 = vmul.f32 %v1490, 0.35355338
        %v1591 = vmul.f32 %v1492, 0.35355338
        %v1592 = vmul.f32 %v1494, 0.35355338
        %v1593 = vmul.f32 %v1496, 0.35355338
        %v1594 = vmul.f32 %v1500, 0.35355338
        %v1595 = vmul.f32 %v1502, 0.35355338
        %v1596 = vmul.f32 %v1504, 0.35355338
        %v1597 = vmul.f32 %v1506, 0.35355338
        %v1598 = vmul.f32 %v1510, 0.35355338
        %v1599 = vmul.f32 %v1512, 0.35355338
        %v1600 = vmul.f32 %v1514, 0.35355338
        %v1601 = vmul.f32 %v1516, 0.35355338
        %v1602 = vmul.f32 %v1520, 0.35355338
        %v1603 = vmul.f32 %v1522, 0.35355338
        %v1604 = vmul.f32 %v1524, 0.35355338
        %v1605 = vmul.f32 %v1526, 0.35355338
        %v1606 = vmul.f32 %v1530, 0.35355338
        %v1607 = vmul.f32 %v1532, 0.35355338
        %v1608 = vmul.f32 %v1534, 0.35355338
        %v1609 = vmul.f32 %v1536, 0.35355338
        %v1610 = vmul.f32 %v1540, 0.35355338
        %v1611 = vmul.f32 %v1542, 0.35355338
        %v1612 = vmul.f32 %v1544, 0.35355338
        %v1613 = vmul.f32 %v1546, 0.35355338
        %v1614 = vmul.f32 %v1550, 0.35355338
        %v1615 = vmul.f32 %v1552, 0.35355338
        %v1616 = vmul.f32 %v1554, 0.35355338
        %v1617 = vmul.f32 %v1556, 0.35355338
        %v1618 = vmul.f32 %v1560, 0.35355338
        %v1619 = vmul.f32 %v1562, 0.35355338
        %v1620 = vmul.f32 %v1564, 0.35355338
        %v1621 = vmul.f32 %v1566, 0.35355338
        %v1622 = vmul.f32 %v1570, 0.35355338
        %v1623 = vmul.f32 %v1572, 0.35355338
        %v1624 = vmul.f32 %v1574, 0.35355338
        %v1625 = vmul.f32 %v1576, 0.35355338
        %v1626 = vadd.f32 %v1578, %v1268
        %v1627 = vadd.f32 %v1579, %v1269
        %v1628 = vadd.f32 %v1580, %v1270
        %v1629 = vadd.f32 %v1581, %v1271
        %v1630 = vadd.f32 %v1582, %v1272
        %v1631 = vadd.f32 %v1583, %v1273
        %v1632 = vadd.f32 %v1584, %v1274
        %v1633 = vadd.f32 %v1585, %v1275
        %v1634 = vadd.f32 %v1586, %v1276
        %v1635 = vadd.f32 %v1587, %v1277
        %v1636 = vadd.f32 %v1588, %v1278
        %v1637 = vadd.f32 %v1589, %v1279
        %v1638 = vadd.f32 %v1590, %v1280
        %v1639 = vadd.f32 %v1591, %v1281
        %v1640 = vadd.f32 %v1592, %v1282
        %v1641 = vadd.f32 %v1593, %v1283
        %v1642 = vadd.f32 %v1594, %v1284
        %v1643 = vadd.f32 %v1595, %v1285
        %v1644 = vadd.f32 %v1596, %v1286
        %v1645 = vadd.f32 %v1597, %v1287
        %v1646 = vadd.f32 %v1598, %v1288
        %v1647 = vadd.f32 %v1599, %v1289
        %v1648 = vadd.f32 %v1600, %v1290
        %v1649 = vadd.f32 %v1601, %v1291
        %v1650 = vadd.f32 %v1602, %v1292
        %v1651 = vadd.f32 %v1603, %v1293
        %v1652 = vadd.f32 %v1604, %v1294
        %v1653 = vadd.f32 %v1605, %v1295
        %v1654 = vadd.f32 %v1606, %v1296
        %v1655 = vadd.f32 %v1607, %v1297
        %v1656 = vadd.f32 %v1608, %v1298
        %v1657 = vadd.f32 %v1609, %v1299
        %v1658 = vadd.f32 %v1610, %v1300
        %v1659 = vadd.f32 %v1611, %v1301
        %v1660 = vadd.f32 %v1612, %v1302
        %v1661 = vadd.f32 %v1613, %v1303
        %v1662 = vadd.f32 %v1614, %v1304
        %v1663 = vadd.f32 %v1615, %v1305
        %v1664 = vadd.f32 %v1616, %v1306
        %v1665 = vadd.f32 %v1617, %v1307
        %v1666 = vadd.f32 %v1618, %v1308
        %v1667 = vadd.f32 %v1619, %v1309
        %v1668 = vadd.f32 %v1620, %v1310
        %v1669 = vadd.f32 %v1621, %v1311
        %v1670 = vadd.f32 %v1622, %v1312
        %v1671 = vadd.f32 %v1623, %v1313
        %v1672 = vadd.f32 %v1624, %v1314
        %v1673 = vadd.f32 %v1625, %v1315
        %vm1674 = vcmask 523264
        %v1675 = vsel %vm1674, %v1627, -inf
        %v1676 = vmax.f32 %v1626, %v1675
        %1677 = vmax.xlane.f32.xlu0 %v1676
        %v1678 = vpop.xlane.xlu0 %1677
        %v1679 = vsel %vm1674, %v1629, -inf
        %v1680 = vmax.f32 %v1628, %v1679
        %1681 = vmax.xlane.f32.xlu0 %v1680
        %v1682 = vpop.xlane.xlu0 %1681
        %v1683 = vsel %vm1674, %v1631, -inf
        %v1684 = vmax.f32 %v1630, %v1683
        %1685 = vmax.xlane.f32.xlu0 %v1684
        %v1686 = vpop.xlane.xlu0 %1685
        %v1687 = vsel %vm1674, %v1633, -inf
        %v1688 = vmax.f32 %v1632, %v1687
        %1689 = vmax.xlane.f32.xlu0 %v1688
        %v1690 = vpop.xlane.xlu0 %1689
        %v1691 = vsel %vm1674, %v1635, -inf
        %v1692 = vmax.f32 %v1634, %v1691
        %1693 = vmax.xlane.f32.xlu0 %v1692
        %v1694 = vpop.xlane.xlu0 %1693
        %v1695 = vsel %vm1674, %v1637, -inf
        %v1696 = vmax.f32 %v1636, %v1695
        %1697 = vmax.xlane.f32.xlu0 %v1696
        %v1698 = vpop.xlane.xlu0 %1697
        %v1699 = vsel %vm1674, %v1639, -inf
        %v1700 = vmax.f32 %v1638, %v1699
        %1701 = vmax.xlane.f32.xlu0 %v1700
        %v1702 = vpop.xlane.xlu0 %1701
        %v1703 = vsel %vm1674, %v1641, -inf
        %v1704 = vmax.f32 %v1640, %v1703
        %1705 = vmax.xlane.f32.xlu0 %v1704
        %v1706 = vpop.xlane.xlu0 %1705
        %v1707 = vsel %vm1674, %v1643, -inf
        %v1708 = vmax.f32 %v1642, %v1707
        %1709 = vmax.xlane.f32.xlu0 %v1708
        %v1710 = vpop.xlane.xlu0 %1709
        %v1711 = vsel %vm1674, %v1645, -inf
        %v1712 = vmax.f32 %v1644, %v1711
        %1713 = vmax.xlane.f32.xlu0 %v1712
        %v1714 = vpop.xlane.xlu0 %1713
        %v1715 = vsel %vm1674, %v1647, -inf
        %v1716 = vmax.f32 %v1646, %v1715
        %1717 = vmax.xlane.f32.xlu0 %v1716
        %v1718 = vpop.xlane.xlu0 %1717
        %v1719 = vsel %vm1674, %v1649, -inf
        %v1720 = vmax.f32 %v1648, %v1719
        %1721 = vmax.xlane.f32.xlu0 %v1720
        %v1722 = vpop.xlane.xlu0 %1721
        %v1723 = vsel %vm1674, %v1651, -inf
        %v1724 = vmax.f32 %v1650, %v1723
        %1725 = vmax.xlane.f32.xlu0 %v1724
        %v1726 = vpop.xlane.xlu0 %1725
        %v1727 = vsel %vm1674, %v1653, -inf
        %v1728 = vmax.f32 %v1652, %v1727
        %1729 = vmax.xlane.f32.xlu0 %v1728
        %v1730 = vpop.xlane.xlu0 %1729
        %v1731 = vsel %vm1674, %v1655, -inf
        %v1732 = vmax.f32 %v1654, %v1731
        %1733 = vmax.xlane.f32.xlu0 %v1732
        %v1734 = vpop.xlane.xlu0 %1733
        %v1735 = vsel %vm1674, %v1657, -inf
        %v1736 = vmax.f32 %v1656, %v1735
        %1737 = vmax.xlane.f32.xlu0 %v1736
        %v1738 = vpop.xlane.xlu0 %1737
        %v1739 = vsel %vm1674, %v1659, -inf
        %v1740 = vmax.f32 %v1658, %v1739
        %1741 = vmax.xlane.f32.xlu0 %v1740
        %v1742 = vpop.xlane.xlu0 %1741
        %v1743 = vsel %vm1674, %v1661, -inf
        %v1744 = vmax.f32 %v1660, %v1743
        %1745 = vmax.xlane.f32.xlu0 %v1744
        %v1746 = vpop.xlane.xlu0 %1745
        %v1747 = vsel %vm1674, %v1663, -inf
        %v1748 = vmax.f32 %v1662, %v1747
        %1749 = vmax.xlane.f32.xlu0 %v1748
        %v1750 = vpop.xlane.xlu0 %1749
        %v1751 = vsel %vm1674, %v1665, -inf
        %v1752 = vmax.f32 %v1664, %v1751
        %1753 = vmax.xlane.f32.xlu0 %v1752
        %v1754 = vpop.xlane.xlu0 %1753
        %v1755 = vsel %vm1674, %v1667, -inf
        %v1756 = vmax.f32 %v1666, %v1755
        %1757 = vmax.xlane.f32.xlu0 %v1756
        %v1758 = vpop.xlane.xlu0 %1757
        %v1759 = vsel %vm1674, %v1669, -inf
        %v1760 = vmax.f32 %v1668, %v1759
        %1761 = vmax.xlane.f32.xlu0 %v1760
        %v1762 = vpop.xlane.xlu0 %1761
        %v1763 = vsel %vm1674, %v1671, -inf
        %v1764 = vmax.f32 %v1670, %v1763
        %1765 = vmax.xlane.f32.xlu0 %v1764
        %v1766 = vpop.xlane.xlu0 %1765
        %v1767 = vsel %vm1674, %v1673, -inf
        %v1768 = vmax.f32 %v1672, %v1767
        %1769 = vmax.xlane.f32.xlu0 %v1768
        %v1770 = vpop.xlane.xlu0 %1769
        %v1771 = vsub.f32 %v1626, %v1678
        %v1772 = vsub.f32 %v1627, %v1678
        %v1773 = vsub.f32 %v1628, %v1682
        %v1774 = vsub.f32 %v1629, %v1682
        %v1775 = vsub.f32 %v1630, %v1686
        %v1776 = vsub.f32 %v1631, %v1686
        %v1777 = vsub.f32 %v1632, %v1690
        %v1778 = vsub.f32 %v1633, %v1690
        %v1779 = vsub.f32 %v1634, %v1694
        %v1780 = vsub.f32 %v1635, %v1694
        %v1781 = vsub.f32 %v1636, %v1698
        %v1782 = vsub.f32 %v1637, %v1698
        %v1783 = vsub.f32 %v1638, %v1702
        %v1784 = vsub.f32 %v1639, %v1702
        %v1785 = vsub.f32 %v1640, %v1706
        %v1786 = vsub.f32 %v1641, %v1706
        %v1787 = vsub.f32 %v1642, %v1710
        %v1788 = vsub.f32 %v1643, %v1710
        %v1789 = vsub.f32 %v1644, %v1714
        %v1790 = vsub.f32 %v1645, %v1714
        %v1791 = vsub.f32 %v1646, %v1718
        %v1792 = vsub.f32 %v1647, %v1718
        %v1793 = vsub.f32 %v1648, %v1722
        %v1794 = vsub.f32 %v1649, %v1722
        %v1795 = vsub.f32 %v1650, %v1726
        %v1796 = vsub.f32 %v1651, %v1726
        %v1797 = vsub.f32 %v1652, %v1730
        %v1798 = vsub.f32 %v1653, %v1730
        %v1799 = vsub.f32 %v1654, %v1734
        %v1800 = vsub.f32 %v1655, %v1734
        %v1801 = vsub.f32 %v1656, %v1738
        %v1802 = vsub.f32 %v1657, %v1738
        %v1803 = vsub.f32 %v1658, %v1742
        %v1804 = vsub.f32 %v1659, %v1742
        %v1805 = vsub.f32 %v1660, %v1746
        %v1806 = vsub.f32 %v1661, %v1746
        %v1807 = vsub.f32 %v1662, %v1750
        %v1808 = vsub.f32 %v1663, %v1750
        %v1809 = vsub.f32 %v1664, %v1754
        %v1810 = vsub.f32 %v1665, %v1754
        %v1811 = vsub.f32 %v1666, %v1758
        %v1812 = vsub.f32 %v1667, %v1758
        %v1813 = vsub.f32 %v1668, %v1762
        %v1814 = vsub.f32 %v1669, %v1762
        %v1815 = vsub.f32 %v1670, %v1766
        %v1816 = vsub.f32 %v1671, %v1766
        %v1817 = vsub.f32 %v1672, %v1770
        %v1818 = vsub.f32 %v1673, %v1770
        %v1819 = vmul.f32 %v1771, 1.442695
        %v1820 = vpow.pop %v1819
        %v1821 = vmul.f32 %v1772, 1.442695
        %v1822 = vpow.pop %v1821
        %v1823 = vmul.f32 %v1773, 1.442695
        %v1824 = vpow.pop %v1823
        %v1825 = vmul.f32 %v1774, 1.442695
        %v1826 = vpow.pop %v1825
        %v1827 = vmul.f32 %v1775, 1.442695
        %v1828 = vpow.pop %v1827
        %v1829 = vmul.f32 %v1776, 1.442695
        %v1830 = vpow.pop %v1829
        %v1831 = vmul.f32 %v1777, 1.442695
        %v1832 = vpow.pop %v1831
        %v1833 = vmul.f32 %v1778, 1.442695
        %v1834 = vpow.pop %v1833
        %v1835 = vmul.f32 %v1779, 1.442695
        %v1836 = vpow.pop %v1835
        %v1837 = vmul.f32 %v1780, 1.442695
        %v1838 = vpow.pop %v1837
        %v1839 = vmul.f32 %v1781, 1.442695
        %v1840 = vpow.pop %v1839
        %v1841 = vmul.f32 %v1782, 1.442695
        %v1842 = vpow.pop %v1841
        %v1843 = vmul.f32 %v1783, 1.442695
        %v1844 = vpow.pop %v1843
        %v1845 = vmul.f32 %v1784, 1.442695
        %v1846 = vpow.pop %v1845
        %v1847 = vmul.f32 %v1785, 1.442695
        %v1848 = vpow.pop %v1847
        %v1849 = vmul.f32 %v1786, 1.442695
        %v1850 = vpow.pop %v1849
        %v1851 = vmul.f32 %v1787, 1.442695
        %v1852 = vpow.pop %v1851
        %v1853 = vmul.f32 %v1788, 1.442695
        %v1854 = vpow.pop %v1853
        %v1855 = vmul.f32 %v1789, 1.442695
        %v1856 = vpow.pop %v1855
        %v1857 = vmul.f32 %v1790, 1.442695
        %v1858 = vpow.pop %v1857
        %v1859 = vmul.f32 %v1791, 1.442695
        %v1860 = vpow.pop %v1859
        %v1861 = vmul.f32 %v1792, 1.442695
        %v1862 = vpow.pop %v1861
        %v1863 = vmul.f32 %v1793, 1.442695
        %v1864 = vpow.pop %v1863
        %v1865 = vmul.f32 %v1794, 1.442695
        %v1866 = vpow.pop %v1865
        %v1867 = vmul.f32 %v1795, 1.442695
        %v1868 = vpow.pop %v1867
        %v1869 = vmul.f32 %v1796, 1.442695
        %v1870 = vpow.pop %v1869
        %v1871 = vmul.f32 %v1797, 1.442695
        %v1872 = vpow.pop %v1871
        %v1873 = vmul.f32 %v1798, 1.442695
        %v1874 = vpow.pop %v1873
        %v1875 = vmul.f32 %v1799, 1.442695
        %v1876 = vpow.pop %v1875
        %v1877 = vmul.f32 %v1800, 1.442695
        %v1878 = vpow.pop %v1877
        %v1879 = vmul.f32 %v1801, 1.442695
        %v1880 = vpow.pop %v1879
        %v1881 = vmul.f32 %v1802, 1.442695
        %v1882 = vpow.pop %v1881
        %v1883 = vmul.f32 %v1803, 1.442695
        %v1884 = vpow.pop %v1883
        %v1885 = vmul.f32 %v1804, 1.442695
        %v1886 = vpow.pop %v1885
        %v1887 = vmul.f32 %v1805, 1.442695
        %v1888 = vpow.pop %v1887
        %v1889 = vmul.f32 %v1806, 1.442695
        %v1890 = vpow.pop %v1889
        %v1891 = vmul.f32 %v1807, 1.442695
        %v1892 = vpow.pop %v1891
        %v1893 = vmul.f32 %v1808, 1.442695
        %v1894 = vpow.pop %v1893
        %v1895 = vmul.f32 %v1809, 1.442695
        %v1896 = vpow.pop %v1895
        %v1897 = vmul.f32 %v1810, 1.442695
        %v1898 = vpow.pop %v1897
        %v1899 = vmul.f32 %v1811, 1.442695
        %v1900 = vpow.pop %v1899
        %v1901 = vmul.f32 %v1812, 1.442695
        %v1902 = vpow.pop %v1901
        %v1903 = vmul.f32 %v1813, 1.442695
        %v1904 = vpow.pop %v1903
        %v1905 = vmul.f32 %v1814, 1.442695
        %v1906 = vpow.pop %v1905
        %v1907 = vmul.f32 %v1815, 1.442695
        %v1908 = vpow.pop %v1907
        %v1909 = vmul.f32 %v1816, 1.442695
        %v1910 = vpow.pop %v1909
        %v1911 = vmul.f32 %v1817, 1.442695
        %v1912 = vpow.pop %v1911
        %v1913 = vmul.f32 %v1818, 1.442695
        %v1914 = vpow.pop %v1913
        %v1915 = vsel %vm1674, %v1822, 0.0
        %v1916 = vadd.f32 %v1820, %v1915
        %1917 = vadd.xlane.f32.xlu0 %v1916
        %v1918 = vpop.xlane.xlu0 %1917
        %v1919 = vsel %vm1674, %v1826, 0.0
        %v1920 = vadd.f32 %v1824, %v1919
        %1921 = vadd.xlane.f32.xlu0 %v1920
        %v1922 = vpop.xlane.xlu0 %1921
        %v1923 = vsel %vm1674, %v1830, 0.0
        %v1924 = vadd.f32 %v1828, %v1923
        %1925 = vadd.xlane.f32.xlu0 %v1924
        %v1926 = vpop.xlane.xlu0 %1925
        %v1927 = vsel %vm1674, %v1834, 0.0
        %v1928 = vadd.f32 %v1832, %v1927
        %1929 = vadd.xlane.f32.xlu0 %v1928
        %v1930 = vpop.xlane.xlu0 %1929
        %v1931 = vsel %vm1674, %v1838, 0.0
        %v1932 = vadd.f32 %v1836, %v1931
        %1933 = vadd.xlane.f32.xlu0 %v1932
        %v1934 = vpop.xlane.xlu0 %1933
        %v1935 = vsel %vm1674, %v1842, 0.0
        %v1936 = vadd.f32 %v1840, %v1935
        %1937 = vadd.xlane.f32.xlu0 %v1936
        %v1938 = vpop.xlane.xlu0 %1937
        %v1939 = vsel %vm1674, %v1846, 0.0
        %v1940 = vadd.f32 %v1844, %v1939
        %1941 = vadd.xlane.f32.xlu0 %v1940
        %v1942 = vpop.xlane.xlu0 %1941
        %v1943 = vsel %vm1674, %v1850, 0.0
        %v1944 = vadd.f32 %v1848, %v1943
        %1945 = vadd.xlane.f32.xlu0 %v1944
        %v1946 = vpop.xlane.xlu0 %1945
        %v1947 = vsel %vm1674, %v1854, 0.0
        %v1948 = vadd.f32 %v1852, %v1947
        %1949 = vadd.xlane.f32.xlu0 %v1948
        %v1950 = vpop.xlane.xlu0 %1949
        %v1951 = vsel %vm1674, %v1858, 0.0
        %v1952 = vadd.f32 %v1856, %v1951
        %1953 = vadd.xlane.f32.xlu0 %v1952
        %v1954 = vpop.xlane.xlu0 %1953
        %v1955 = vsel %vm1674, %v1862, 0.0
        %v1956 = vadd.f32 %v1860, %v1955
        %1957 = vadd.xlane.f32.xlu0 %v1956
        %v1958 = vpop.xlane.xlu0 %1957
        %v1959 = vsel %vm1674, %v1866, 0.0
        %v1960 = vadd.f32 %v1864, %v1959
        %1961 = vadd.xlane.f32.xlu0 %v1960
        %v1962 = vpop.xlane.xlu0 %1961
        %v1963 = vsel %vm1674, %v1870, 0.0
        %v1964 = vadd.f32 %v1868, %v1963
        %1965 = vadd.xlane.f32.xlu0 %v1964
        %v1966 = vpop.xlane.xlu0 %1965
        %v1967 = vsel %vm1674, %v1874, 0.0
        %v1968 = vadd.f32 %v1872, %v1967
        %1969 = vadd.xlane.f32.xlu0 %v1968
        %v1970 = vpop.xlane.xlu0 %1969
        %v1971 = vsel %vm1674, %v1878, 0.0
        %v1972 = vadd.f32 %v1876, %v1971
        %1973 = vadd.xlane.f32.xlu0 %v1972
        %v1974 = vpop.xlane.xlu0 %1973
        %v1975 = vsel %vm1674, %v1882, 0.0
        %v1976 = vadd.f32 %v1880, %v1975
        %1977 = vadd.xlane.f32.xlu0 %v1976
        %v1978 = vpop.xlane.xlu0 %1977
        %v1979 = vsel %vm1674, %v1886, 0.0
        %v1980 = vadd.f32 %v1884, %v1979
        %1981 = vadd.xlane.f32.xlu0 %v1980
        %v1982 = vpop.xlane.xlu0 %1981
        %v1983 = vsel %vm1674, %v1890, 0.0
        %v1984 = vadd.f32 %v1888, %v1983
        %1985 = vadd.xlane.f32.xlu0 %v1984
        %v1986 = vpop.xlane.xlu0 %1985
        %v1987 = vsel %vm1674, %v1894, 0.0
        %v1988 = vadd.f32 %v1892, %v1987
        %1989 = vadd.xlane.f32.xlu0 %v1988
        %v1990 = vpop.xlane.xlu0 %1989
        %v1991 = vsel %vm1674, %v1898, 0.0
        %v1992 = vadd.f32 %v1896, %v1991
        %1993 = vadd.xlane.f32.xlu0 %v1992
        %v1994 = vpop.xlane.xlu0 %1993
        %v1995 = vsel %vm1674, %v1902, 0.0
        %v1996 = vadd.f32 %v1900, %v1995
        %1997 = vadd.xlane.f32.xlu0 %v1996
        %v1998 = vpop.xlane.xlu0 %1997
        %v1999 = vsel %vm1674, %v1906, 0.0
        %v2000 = vadd.f32 %v1904, %v1999
        %2001 = vadd.xlane.f32.xlu0 %v2000
        %v2002 = vpop.xlane.xlu0 %2001
        %v2003 = vsel %vm1674, %v1910, 0.0
        %v2004 = vadd.f32 %v1908, %v2003
        %2005 = vadd.xlane.f32.xlu0 %v2004
        %v2006 = vpop.xlane.xlu0 %2005
        %v2007 = vsel %vm1674, %v1914, 0.0
        %v2008 = vadd.f32 %v1912, %v2007
        %2009 = vadd.xlane.f32.xlu0 %v2008
        %v2010 = vpop.xlane.xlu0 %2009
        %v2011 = vrcp.pop %v1918
        %v2012 = vrcp.pop %v1922
        %v2013 = vrcp.pop %v1926
        %v2014 = vrcp.pop %v1930
        %v2015 = vrcp.pop %v1934
        %v2016 = vrcp.pop %v1938
        %v2017 = vrcp.pop %v1942
        %v2018 = vrcp.pop %v1946
        %v2019 = vrcp.pop %v1950
        %v2020 = vrcp.pop %v1954
        %v2021 = vrcp.pop %v1958
        %v2022 = vrcp.pop %v1962
        %v2023 = vrcp.pop %v1966
        %v2024 = vrcp.pop %v1970
        %v2025 = vrcp.pop %v1974
        %v2026 = vrcp.pop %v1978
        %v2027 = vrcp.pop %v1982
        %v2028 = vrcp.pop %v1986
        %v2029 = vrcp.pop %v1990
        %v2030 = vrcp.pop %v1994
        %v2031 = vrcp.pop %v1998
        %v2032 = vrcp.pop %v2002
        %v2033 = vrcp.pop %v2006
        %v2034 = vrcp.pop %v2010
        %v2035 = vmul.f32 %v1820, %v2011
        %v2036 = vmul.f32 %v1822, %v2011
        %v2037 = vmul.f32 %v1824, %v2012
        %v2038 = vmul.f32 %v1826, %v2012
        %v2039 = vmul.f32 %v1828, %v2013
        %v2040 = vmul.f32 %v1830, %v2013
        %v2041 = vmul.f32 %v1832, %v2014
        %v2042 = vmul.f32 %v1834, %v2014
        %v2043 = vmul.f32 %v1836, %v2015
        %v2044 = vmul.f32 %v1838, %v2015
        %v2045 = vmul.f32 %v1840, %v2016
        %v2046 = vmul.f32 %v1842, %v2016
        %v2047 = vmul.f32 %v1844, %v2017
        %v2048 = vmul.f32 %v1846, %v2017
        %v2049 = vmul.f32 %v1848, %v2018
        %v2050 = vmul.f32 %v1850, %v2018
        %v2051 = vmul.f32 %v1852, %v2019
        %v2052 = vmul.f32 %v1854, %v2019
        %v2053 = vmul.f32 %v1856, %v2020
        %v2054 = vmul.f32 %v1858, %v2020
        %v2055 = vmul.f32 %v1860, %v2021
        %v2056 = vmul.f32 %v1862, %v2021
        %v2057 = vmul.f32 %v1864, %v2022
        %v2058 = vmul.f32 %v1866, %v2022
        %v2059 = vmul.f32 %v1868, %v2023
        %v2060 = vmul.f32 %v1870, %v2023
        %v2061 = vmul.f32 %v1872, %v2024
        %v2062 = vmul.f32 %v1874, %v2024
        %v2063 = vmul.f32 %v1876, %v2025
        %v2064 = vmul.f32 %v1878, %v2025
        %v2065 = vmul.f32 %v1880, %v2026
        %v2066 = vmul.f32 %v1882, %v2026
        %v2067 = vmul.f32 %v1884, %v2027
        %v2068 = vmul.f32 %v1886, %v2027
        %v2069 = vmul.f32 %v1888, %v2028
        %v2070 = vmul.f32 %v1890, %v2028
        %v2071 = vmul.f32 %v1892, %v2029
        %v2072 = vmul.f32 %v1894, %v2029
        %v2073 = vmul.f32 %v1896, %v2030
        %v2074 = vmul.f32 %v1898, %v2030
        %v2075 = vmul.f32 %v1900, %v2031
        %v2076 = vmul.f32 %v1902, %v2031
        %v2077 = vmul.f32 %v1904, %v2032
        %v2078 = vmul.f32 %v1906, %v2032
        %v2079 = vmul.f32 %v1908, %v2033
        %v2080 = vmul.f32 %v1910, %v2033
        %v2081 = vmul.f32 %v1912, %v2034
        %v2082 = vmul.f32 %v1914, %v2034
        %v2083 = vld [vmem:[%s7] sm:$0xf]
        %2084 = vrot.lane.b32.xlu0 %v1256, 64
        %v2085 = vpop.permute.xlu0 %2084
        %2086 = vrot.lane.b32.xlu0 %v1257, 64
        %v2087 = vpop.permute.xlu0 %2086
        %2088 = vrot.lane.b32.xlu0 %v1258, 64
        %v2089 = vpop.permute.xlu0 %2088
        %2090 = vrot.lane.b32.xlu0 %v1259, 64
        %v2091 = vpop.permute.xlu0 %2090
        %2092 = vrot.lane.b32.xlu0 %v1260, 64
        %v2093 = vpop.permute.xlu0 %2092
        %2094 = vrot.lane.b32.xlu0 %v1261, 64
        %v2095 = vpop.permute.xlu0 %2094
        %2096 = vrot.lane.b32.xlu0 %v1262, 64
        %v2097 = vpop.permute.xlu0 %2096
        %2098 = vrot.lane.b32.xlu0 %v1263, 64
        %v2099 = vpop.permute.xlu0 %2098
        %2100 = vrot.lane.b32.xlu0 %v1264, 64
        %v2101 = vpop.permute.xlu0 %2100
        %2102 = vrot.lane.b32.xlu0 %v1265, 64
        %v2103 = vpop.permute.xlu0 %2102
        %2104 = vrot.lane.b32.xlu0 %v1266, 64
        %v2105 = vpop.permute.xlu0 %2104
        %2106 = vrot.lane.b32.xlu0 %v1267, 64
        %v2107 = vpop.permute.xlu0 %2106
        %v2109 = vsel %vm1352, %v2085, 0
        %v2112 = vsel %vm1352, %v2087, 0
        %v2115 = vsel %vm1352, %v2089, 0
        %v2118 = vsel %vm1352, %v2091, 0
        %v2121 = vsel %vm1352, %v2093, 0
        %v2124 = vsel %vm1352, %v2095, 0
        %v2127 = vsel %vm1352, %v2097, 0
        %v2130 = vsel %vm1352, %v2099, 0
        %v2133 = vsel %vm1352, %v2101, 0
        %v2136 = vsel %vm1352, %v2103, 0
        %v2139 = vsel %vm1352, %v2105, 0
        %v2142 = vsel %vm1352, %v2107, 0
        %vm2144 = vcmask 1043456
        %v2146 = vsel %vm2144, %v2083, 0
        %2148 = vmatprep.subr.bf16.mxu0 0
        %2149 = vmatpush1.bf16.msra.mxu0 %v2146
        %2150 = vmatprep.subr.bf16.mxu0 0
        %2151 = vmatpush1.bf16.msra.mxu0 0
        %2152 = vmatprep.subr.bf16.mxu0 0
        %2153 = vmatpush1.bf16.msra.mxu0 0
        %2154 = vmatprep.subr.bf16.mxu0 0
        %2155 = vmatpush1.bf16.msra.mxu0 0
        %2156 = vmatprep.subr.bf16.mxu0 0
        %2157 = vmatpush1.bf16.msra.mxu0 0
        %2158 = vmatprep.subr.bf16.mxu0 0
        %2159 = vmatpush1.bf16.msra.mxu0 0
        %2160 = vmatprep.subr.bf16.mxu0 0
        %2161 = vmatpush1.bf16.msra.mxu0 0
        %2162 = vmatprep.subr.bf16.mxu0 0
        %2163 = vmatpush1.bf16.msra.mxu0 0
        %2164 = vmatprep.subr.bf16.mxu0 0
        %2165 = vmatpush1.bf16.msra.mxu0 0
        %2166 = vmatprep.subr.bf16.mxu0 0
        %2167 = vmatpush1.bf16.msra.mxu0 0
        %2168 = vmatprep.subr.bf16.mxu0 0
        %2169 = vmatpush1.bf16.msra.mxu0 0
        %2170 = vmatprep.subr.bf16.mxu0 0
        %2171 = vmatpush1.bf16.msra.mxu0 0
        %2172 = vmatprep.subr.bf16.mxu0 0
        %2173 = vmatpush1.bf16.msra.mxu0 0
        %2174 = vmatprep.subr.bf16.mxu0 0
        %2175 = vmatpush1.bf16.msra.mxu0 0
        %2176 = vmatprep.subr.bf16.mxu0 0
        %2177 = vmatpush1.bf16.msra.mxu0 0
        %2178 = vmatprep.subr.bf16.mxu0 0
        %2179 = vmatpush1.bf16.msra.mxu0 0
        %2180 = vmatprep.mubr.bf16.mxu0 0
        %2181 = vmatmul.mubr.bf16.gmra.mrb[0].mxu0 %v2109
        %v2182 = vpop.f32.mrb[0].mxu0
        %v2183 = vadd.f32 0.0, %v2182
        %v2184 = vpop.f32.mrb[0].mxu0
        %v2185 = vpop.f32.mrb[0].mxu0
        %v2186 = vadd.f32 0.0, %v2185
        %v2187 = vpop.f32.mrb[0].mxu0
        %2188 = vmatprep.mubr.bf16.mxu0 0
        %2189 = vmatmul.mubr.bf16.gmra.mrb[0].mxu0 %v2112
        %v2190 = vpop.f32.mrb[0].mxu0
        %v2191 = vadd.f32 0.0, %v2190
        %v2192 = vpop.f32.mrb[0].mxu0
        %v2193 = vpop.f32.mrb[0].mxu0
        %v2194 = vadd.f32 0.0, %v2193
        %v2195 = vpop.f32.mrb[0].mxu0
        %2196 = vmatprep.mubr.bf16.mxu0 0
        %2197 = vmatmul.mubr.bf16.gmra.mrb[0].mxu0 %v2115
        %v2198 = vpop.f32.mrb[0].mxu0
        %v2199 = vadd.f32 0.0, %v2198
        %v2200 = vpop.f32.mrb[0].mxu0
        %v2201 = vpop.f32.mrb[0].mxu0
        %v2202 = vadd.f32 0.0, %v2201
        %v2203 = vpop.f32.mrb[0].mxu0
        %2204 = vmatprep.mubr.bf16.mxu0 0
        %2205 = vmatmul.mubr.bf16.gmra.mrb[0].mxu0 %v2118
        %v2206 = vpop.f32.mrb[0].mxu0
        %v2207 = vadd.f32 0.0, %v2206
        %v2208 = vpop.f32.mrb[0].mxu0
        %v2209 = vpop.f32.mrb[0].mxu0
        %v2210 = vadd.f32 0.0, %v2209
        %v2211 = vpop.f32.mrb[0].mxu0
        %2212 = vmatprep.mubr.bf16.mxu0 0
        %2213 = vmatmul.mubr.bf16.gmra.mrb[0].mxu0 %v2121
        %v2214 = vpop.f32.mrb[0].mxu0
        %v2215 = vadd.f32 0.0, %v2214
        %v2216 = vpop.f32.mrb[0].mxu0
        %v2217 = vpop.f32.mrb[0].mxu0
        %v2218 = vadd.f32 0.0, %v2217
        %v2219 = vpop.f32.mrb[0].mxu0
        %2220 = vmatprep.mubr.bf16.mxu0 0
        %2221 = vmatmul.mubr.bf16.gmra.mrb[0].mxu0 %v2124
        %v2222 = vpop.f32.mrb[0].mxu0
        %v2223 = vadd.f32 0.0, %v2222
        %v2224 = vpop.f32.mrb[0].mxu0
        %v2225 = vpop.f32.mrb[0].mxu0
        %v2226 = vadd.f32 0.0, %v2225
        %v2227 = vpop.f32.mrb[0].mxu0
        %2228 = vmatprep.mubr.bf16.mxu0 0
        %2229 = vmatmul.mubr.bf16.gmra.mrb[0].mxu0 %v2127
        %v2230 = vpop.f32.mrb[0].mxu0
        %v2231 = vadd.f32 0.0, %v2230
        %v2232 = vpop.f32.mrb[0].mxu0
        %v2233 = vpop.f32.mrb[0].mxu0
        %v2234 = vadd.f32 0.0, %v2233
        %v2235 = vpop.f32.mrb[0].mxu0
        %2236 = vmatprep.mubr.bf16.mxu0 0
        %2237 = vmatmul.mubr.bf16.gmra.mrb[0].mxu0 %v2130
        %v2238 = vpop.f32.mrb[0].mxu0
        %v2239 = vadd.f32 0.0, %v2238
        %v2240 = vpop.f32.mrb[0].mxu0
        %v2241 = vpop.f32.mrb[0].mxu0
        %v2242 = vadd.f32 0.0, %v2241
        %v2243 = vpop.f32.mrb[0].mxu0
        %2244 = vmatprep.mubr.bf16.mxu0 0
        %2245 = vmatmul.mubr.bf16.gmra.mrb[0].mxu0 %v2133
        %v2246 = vpop.f32.mrb[0].mxu0
        %v2247 = vadd.f32 0.0, %v2246
        %v2248 = vpop.f32.mrb[0].mxu0
        %v2249 = vpop.f32.mrb[0].mxu0
        %v2250 = vadd.f32 0.0, %v2249
        %v2251 = vpop.f32.mrb[0].mxu0
        %2252 = vmatprep.mubr.bf16.mxu0 0
        %2253 = vmatmul.mubr.bf16.gmra.mrb[0].mxu0 %v2136
        %v2254 = vpop.f32.mrb[0].mxu0
        %v2255 = vadd.f32 0.0, %v2254
        %v2256 = vpop.f32.mrb[0].mxu0
        %v2257 = vpop.f32.mrb[0].mxu0
        %v2258 = vadd.f32 0.0, %v2257
        %v2259 = vpop.f32.mrb[0].mxu0
        %2260 = vmatprep.mubr.bf16.mxu0 0
        %2261 = vmatmul.mubr.bf16.gmra.mrb[0].mxu0 %v2139
        %v2262 = vpop.f32.mrb[0].mxu0
        %v2263 = vadd.f32 0.0, %v2262
        %v2264 = vpop.f32.mrb[0].mxu0
        %v2265 = vpop.f32.mrb[0].mxu0
        %v2266 = vadd.f32 0.0, %v2265
        %v2267 = vpop.f32.mrb[0].mxu0
        %2268 = vmatprep.mubr.bf16.mxu0 0
        %2269 = vmatmul.mubr.bf16.gmra.mrb[0].mxu0 %v2142
        %v2270 = vpop.f32.mrb[0].mxu0
        %v2271 = vadd.f32 0.0, %v2270
        %v2272 = vpop.f32.mrb[0].mxu0
        %v2273 = vpop.f32.mrb[0].mxu0
        %v2274 = vadd.f32 0.0, %v2273
        %v2275 = vpop.f32.mrb[0].mxu0
        %2276 = vdwg.mxu0
        %v2277 = vpack.c.bf16 %v2186, %v2183
        %v2278 = vpack.c.bf16 %v2194, %v2191
        %v2279 = vpack.c.bf16 %v2202, %v2199
        %v2280 = vpack.c.bf16 %v2210, %v2207
        %v2281 = vpack.c.bf16 %v2218, %v2215
        %v2282 = vpack.c.bf16 %v2226, %v2223
        %v2283 = vpack.c.bf16 %v2234, %v2231
        %v2284 = vpack.c.bf16 %v2242, %v2239
        %v2285 = vpack.c.bf16 %v2250, %v2247
        %v2286 = vpack.c.bf16 %v2258, %v2255
        %v2287 = vpack.c.bf16 %v2266, %v2263
        %v2288 = vpack.c.bf16 %v2274, %v2271
        %v2289 = vpack.c.bf16 %v2037, %v2035
        %v2290 = vpack.c.bf16 %v2038, %v2036
        %v2291 = vpack.c.bf16 %v2041, %v2039
        %v2292 = vpack.c.bf16 %v2042, %v2040
        %v2293 = vpack.c.bf16 %v2045, %v2043
        %v2294 = vpack.c.bf16 %v2046, %v2044
        %v2295 = vpack.c.bf16 %v2049, %v2047
        %v2296 = vpack.c.bf16 %v2050, %v2048
        %v2297 = vpack.c.bf16 %v2053, %v2051
        %v2298 = vpack.c.bf16 %v2054, %v2052
        %v2299 = vpack.c.bf16 %v2057, %v2055
        %v2300 = vpack.c.bf16 %v2058, %v2056
        %v2301 = vpack.c.bf16 %v2061, %v2059
        %v2302 = vpack.c.bf16 %v2062, %v2060
        %v2303 = vpack.c.bf16 %v2065, %v2063
        %v2304 = vpack.c.bf16 %v2066, %v2064
        %v2305 = vpack.c.bf16 %v2069, %v2067
        %v2306 = vpack.c.bf16 %v2070, %v2068
        %v2307 = vpack.c.bf16 %v2073, %v2071
        %v2308 = vpack.c.bf16 %v2074, %v2072
        %v2309 = vpack.c.bf16 %v2077, %v2075
        %v2310 = vpack.c.bf16 %v2078, %v2076
        %v2311 = vpack.c.bf16 %v2081, %v2079
        %v2312 = vpack.c.bf16 %v2082, %v2080
        %2313 = vrot.lane.b32.xlu0 %v1256, 120
        %v2314 = vpop.permute.xlu0 %2313
        %2315 = vrot.lane.b32.xlu0 %v1257, 120
        %v2316 = vpop.permute.xlu0 %2315
        %2317 = vrot.lane.b32.xlu0 %v1258, 120
        %v2318 = vpop.permute.xlu0 %2317
        %2319 = vrot.lane.b32.xlu0 %v1259, 120
        %v2320 = vpop.permute.xlu0 %2319
        %2321 = vrot.lane.b32.xlu0 %v1260, 120
        %v2322 = vpop.permute.xlu0 %2321
        %2323 = vrot.lane.b32.xlu0 %v1261, 120
        %v2324 = vpop.permute.xlu0 %2323
        %2325 = vrot.lane.b32.xlu0 %v1262, 120
        %v2326 = vpop.permute.xlu0 %2325
        %2327 = vrot.lane.b32.xlu0 %v1263, 120
        %v2328 = vpop.permute.xlu0 %2327
        %2329 = vrot.lane.b32.xlu0 %v1264, 120
        %v2330 = vpop.permute.xlu0 %2329
        %2331 = vrot.lane.b32.xlu0 %v1265, 120
        %v2332 = vpop.permute.xlu0 %2331
        %2333 = vrot.lane.b32.xlu0 %v1266, 120
        %v2334 = vpop.permute.xlu0 %2333
        %2335 = vrot.lane.b32.xlu0 %v1267, 120
        %v2336 = vpop.permute.xlu0 %2335
        %2337 = vrot.lane.b32.xlu0 %v1256, 88
        %v2338 = vpop.permute.xlu0 %2337
        %2339 = vrot.lane.b32.xlu0 %v1257, 88
        %v2340 = vpop.permute.xlu0 %2339
        %2341 = vrot.lane.b32.xlu0 %v1258, 88
        %v2342 = vpop.permute.xlu0 %2341
        %2343 = vrot.lane.b32.xlu0 %v1259, 88
        %v2344 = vpop.permute.xlu0 %2343
        %2345 = vrot.lane.b32.xlu0 %v1260, 88
        %v2346 = vpop.permute.xlu0 %2345
        %2347 = vrot.lane.b32.xlu0 %v1261, 88
        %v2348 = vpop.permute.xlu0 %2347
        %2349 = vrot.lane.b32.xlu0 %v1262, 88
        %v2350 = vpop.permute.xlu0 %2349
        %2351 = vrot.lane.b32.xlu0 %v1263, 88
        %v2352 = vpop.permute.xlu0 %2351
        %2353 = vrot.lane.b32.xlu0 %v1264, 88
        %v2354 = vpop.permute.xlu0 %2353
        %2355 = vrot.lane.b32.xlu0 %v1265, 88
        %v2356 = vpop.permute.xlu0 %2355
        %2357 = vrot.lane.b32.xlu0 %v1266, 88
        %v2358 = vpop.permute.xlu0 %2357
        %2359 = vrot.lane.b32.xlu0 %v1267, 88
        %v2360 = vpop.permute.xlu0 %2359
        %v2362 = vsel %vm1352, %v2314, 0
        %v2365 = vsel %vm1352, %v2316, 0
        %v2368 = vsel %vm1352, %v2318, 0
        %v2371 = vsel %vm1352, %v2320, 0
        %v2374 = vsel %vm1352, %v2322, 0
        %v2377 = vsel %vm1352, %v2324, 0
        %v2380 = vsel %vm1352, %v2326, 0
        %v2383 = vsel %vm1352, %v2328, 0
        %v2386 = vsel %vm1352, %v2330, 0
        %v2389 = vsel %vm1352, %v2332, 0
        %v2392 = vsel %vm1352, %v2334, 0
        %v2395 = vsel %vm1352, %v2336, 0
        %v2398 = vsel %vm1352, %v2338, 0
        %v2401 = vsel %vm1352, %v2340, 0
        %v2404 = vsel %vm1352, %v2342, 0
        %v2407 = vsel %vm1352, %v2344, 0
        %v2410 = vsel %vm1352, %v2346, 0
        %v2413 = vsel %vm1352, %v2348, 0
        %v2416 = vsel %vm1352, %v2350, 0
        %v2419 = vsel %vm1352, %v2352, 0
        %v2422 = vsel %vm1352, %v2354, 0
        %v2425 = vsel %vm1352, %v2356, 0
        %v2428 = vsel %vm1352, %v2358, 0
        %v2431 = vsel %vm1352, %v2360, 0
        %2433 = vmatprep.subr.bf16.mxu0 0
        %2434 = vmatpush1.bf16.xpose.msra.mxu0 %v2398
        %2435 = vmatprep.subr.bf16.mxu0 0
        %2436 = vmatpush1.bf16.xpose.msra.mxu0 %v2401
        %2437 = vmatprep.subr.bf16.mxu0 0
        %2438 = vmatpush1.bf16.xpose.msra.mxu0 %v2404
        %2439 = vmatprep.subr.bf16.mxu0 0
        %2440 = vmatpush1.bf16.xpose.msra.mxu0 %v2407
        %2441 = vmatprep.subr.bf16.mxu0 0
        %2442 = vmatpush1.bf16.xpose.msra.mxu0 %v2410
        %2443 = vmatprep.subr.bf16.mxu0 0
        %2444 = vmatpush1.bf16.xpose.msra.mxu0 %v2413
        %2445 = vmatprep.subr.bf16.mxu0 0
        %2446 = vmatpush1.bf16.xpose.msra.mxu0 %v2416
        %2447 = vmatprep.subr.bf16.mxu0 0
        %2448 = vmatpush1.bf16.xpose.msra.mxu0 %v2419
        %2449 = vmatprep.subr.bf16.mxu0 0
        %2450 = vmatpush1.bf16.xpose.msra.mxu0 %v2422
        %2451 = vmatprep.subr.bf16.mxu0 0
        %2452 = vmatpush1.bf16.xpose.msra.mxu0 %v2425
        %2453 = vmatprep.subr.bf16.mxu0 0
        %2454 = vmatpush1.bf16.xpose.msra.mxu0 %v2428
        %2455 = vmatprep.subr.bf16.mxu0 0
        %2456 = vmatpush1.bf16.xpose.msra.mxu0 %v2431
        %2457 = vmatprep.subr.bf16.mxu0 0
        %2458 = vmatpush1.bf16.xpose.msra.mxu0 0
        %2459 = vmatprep.subr.bf16.mxu0 0
        %2460 = vmatpush1.bf16.xpose.msra.mxu0 0
        %2461 = vmatprep.subr.bf16.mxu0 0
        %2462 = vmatpush1.bf16.xpose.msra.mxu0 0
        %2463 = vmatprep.subr.bf16.mxu0 0
        %2464 = vmatpush1.bf16.xpose.msra.mxu0 0
        %2465 = vmatprep.mubr.bf16.mxu0 0
        %2466 = vmatmul.mubr.bf16.gmra.mrb[0].mxu0 %v2362
        %v2467 = vpop.f32.mrb[0].mxu0
        %v2468 = vadd.f32 0.0, %v2467
        %v2469 = vpop.f32.mrb[0].mxu0
        %v2470 = vadd.f32 0.0, %v2469
        %v2471 = vpop.f32.mrb[0].mxu0
        %v2472 = vadd.f32 0.0, %v2471
        %v2473 = vpop.f32.mrb[0].mxu0
        %v2474 = vadd.f32 0.0, %v2473
        %2475 = vmatprep.mubr.bf16.mxu0 0
        %2476 = vmatmul.mubr.bf16.gmra.mrb[0].mxu0 %v2365
        %v2477 = vpop.f32.mrb[0].mxu0
        %v2478 = vadd.f32 0.0, %v2477
        %v2479 = vpop.f32.mrb[0].mxu0
        %v2480 = vadd.f32 0.0, %v2479
        %v2481 = vpop.f32.mrb[0].mxu0
        %v2482 = vadd.f32 0.0, %v2481
        %v2483 = vpop.f32.mrb[0].mxu0
        %v2484 = vadd.f32 0.0, %v2483
        %2485 = vmatprep.mubr.bf16.mxu0 0
        %2486 = vmatmul.mubr.bf16.gmra.mrb[0].mxu0 %v2368
        %v2487 = vpop.f32.mrb[0].mxu0
        %v2488 = vadd.f32 0.0, %v2487
        %v2489 = vpop.f32.mrb[0].mxu0
        %v2490 = vadd.f32 0.0, %v2489
        %v2491 = vpop.f32.mrb[0].mxu0
        %v2492 = vadd.f32 0.0, %v2491
        %v2493 = vpop.f32.mrb[0].mxu0
        %v2494 = vadd.f32 0.0, %v2493
        %2495 = vmatprep.mubr.bf16.mxu0 0
        %2496 = vmatmul.mubr.bf16.gmra.mrb[0].mxu0 %v2371
        %v2497 = vpop.f32.mrb[0].mxu0
        %v2498 = vadd.f32 0.0, %v2497
        %v2499 = vpop.f32.mrb[0].mxu0
        %v2500 = vadd.f32 0.0, %v2499
        %v2501 = vpop.f32.mrb[0].mxu0
        %v2502 = vadd.f32 0.0, %v2501
        %v2503 = vpop.f32.mrb[0].mxu0
        %v2504 = vadd.f32 0.0, %v2503
        %2505 = vmatprep.mubr.bf16.mxu0 0
        %2506 = vmatmul.mubr.bf16.gmra.mrb[0].mxu0 %v2374
        %v2507 = vpop.f32.mrb[0].mxu0
        %v2508 = vadd.f32 0.0, %v2507
        %v2509 = vpop.f32.mrb[0].mxu0
        %v2510 = vadd.f32 0.0, %v2509
        %v2511 = vpop.f32.mrb[0].mxu0
        %v2512 = vadd.f32 0.0, %v2511
        %v2513 = vpop.f32.mrb[0].mxu0
        %v2514 = vadd.f32 0.0, %v2513
        %2515 = vmatprep.mubr.bf16.mxu0 0
        %2516 = vmatmul.mubr.bf16.gmra.mrb[0].mxu0 %v2377
        %v2517 = vpop.f32.mrb[0].mxu0
        %v2518 = vadd.f32 0.0, %v2517
        %v2519 = vpop.f32.mrb[0].mxu0
        %v2520 = vadd.f32 0.0, %v2519
        %v2521 = vpop.f32.mrb[0].mxu0
        %v2522 = vadd.f32 0.0, %v2521
        %v2523 = vpop.f32.mrb[0].mxu0
        %v2524 = vadd.f32 0.0, %v2523
        %2525 = vmatprep.mubr.bf16.mxu0 0
        %2526 = vmatmul.mubr.bf16.gmra.mrb[0].mxu0 %v2380
        %v2527 = vpop.f32.mrb[0].mxu0
        %v2528 = vadd.f32 0.0, %v2527
        %v2529 = vpop.f32.mrb[0].mxu0
        %v2530 = vadd.f32 0.0, %v2529
        %v2531 = vpop.f32.mrb[0].mxu0
        %v2532 = vadd.f32 0.0, %v2531
        %v2533 = vpop.f32.mrb[0].mxu0
        %v2534 = vadd.f32 0.0, %v2533
        %2535 = vmatprep.mubr.bf16.mxu0 0
        %2536 = vmatmul.mubr.bf16.gmra.mrb[0].mxu0 %v2383
        %v2537 = vpop.f32.mrb[0].mxu0
        %v2538 = vadd.f32 0.0, %v2537
        %v2539 = vpop.f32.mrb[0].mxu0
        %v2540 = vadd.f32 0.0, %v2539
        %v2541 = vpop.f32.mrb[0].mxu0
        %v2542 = vadd.f32 0.0, %v2541
        %v2543 = vpop.f32.mrb[0].mxu0
        %v2544 = vadd.f32 0.0, %v2543
        %2545 = vmatprep.mubr.bf16.mxu0 0
        %2546 = vmatmul.mubr.bf16.gmra.mrb[0].mxu0 %v2386
        %v2547 = vpop.f32.mrb[0].mxu0
        %v2548 = vadd.f32 0.0, %v2547
        %v2549 = vpop.f32.mrb[0].mxu0
        %v2550 = vadd.f32 0.0, %v2549
        %v2551 = vpop.f32.mrb[0].mxu0
        %v2552 = vadd.f32 0.0, %v2551
        %v2553 = vpop.f32.mrb[0].mxu0
        %v2554 = vadd.f32 0.0, %v2553
        %2555 = vmatprep.mubr.bf16.mxu0 0
        %2556 = vmatmul.mubr.bf16.gmra.mrb[0].mxu0 %v2389
        %v2557 = vpop.f32.mrb[0].mxu0
        %v2558 = vadd.f32 0.0, %v2557
        %v2559 = vpop.f32.mrb[0].mxu0
        %v2560 = vadd.f32 0.0, %v2559
        %v2561 = vpop.f32.mrb[0].mxu0
        %v2562 = vadd.f32 0.0, %v2561
        %v2563 = vpop.f32.mrb[0].mxu0
        %v2564 = vadd.f32 0.0, %v2563
        %2565 = vmatprep.mubr.bf16.mxu0 0
        %2566 = vmatmul.mubr.bf16.gmra.mrb[0].mxu0 %v2392
        %v2567 = vpop.f32.mrb[0].mxu0
        %v2568 = vadd.f32 0.0, %v2567
        %v2569 = vpop.f32.mrb[0].mxu0
        %v2570 = vadd.f32 0.0, %v2569
        %v2571 = vpop.f32.mrb[0].mxu0
        %v2572 = vadd.f32 0.0, %v2571
        %v2573 = vpop.f32.mrb[0].mxu0
        %v2574 = vadd.f32 0.0, %v2573
        %2575 = vmatprep.mubr.bf16.mxu0 0
        %2576 = vmatmul.mubr.bf16.gmra.mrb[0].mxu0 %v2395
        %v2577 = vpop.f32.mrb[0].mxu0
        %v2578 = vadd.f32 0.0, %v2577
        %v2579 = vpop.f32.mrb[0].mxu0
        %v2580 = vadd.f32 0.0, %v2579
        %v2581 = vpop.f32.mrb[0].mxu0
        %v2582 = vadd.f32 0.0, %v2581
        %v2583 = vpop.f32.mrb[0].mxu0
        %v2584 = vadd.f32 0.0, %v2583
        %2585 = vdwg.mxu0
        %v2586 = vmul.f32 %v2468, 0.35355338
        %v2587 = vmul.f32 %v2470, 0.35355338
        %v2588 = vmul.f32 %v2472, 0.35355338
        %v2589 = vmul.f32 %v2474, 0.35355338
        %v2590 = vmul.f32 %v2478, 0.35355338
        %v2591 = vmul.f32 %v2480, 0.35355338
        %v2592 = vmul.f32 %v2482, 0.35355338
        %v2593 = vmul.f32 %v2484, 0.35355338
        %v2594 = vmul.f32 %v2488, 0.35355338
        %v2595 = vmul.f32 %v2490, 0.35355338
        %v2596 = vmul.f32 %v2492, 0.35355338
        %v2597 = vmul.f32 %v2494, 0.35355338
        %v2598 = vmul.f32 %v2498, 0.35355338
        %v2599 = vmul.f32 %v2500, 0.35355338
        %v2600 = vmul.f32 %v2502, 0.35355338
        %v2601 = vmul.f32 %v2504, 0.35355338
        %v2602 = vmul.f32 %v2508, 0.35355338
        %v2603 = vmul.f32 %v2510, 0.35355338
        %v2604 = vmul.f32 %v2512, 0.35355338
        %v2605 = vmul.f32 %v2514, 0.35355338
        %v2606 = vmul.f32 %v2518, 0.35355338
        %v2607 = vmul.f32 %v2520, 0.35355338
        %v2608 = vmul.f32 %v2522, 0.35355338
        %v2609 = vmul.f32 %v2524, 0.35355338
        %v2610 = vmul.f32 %v2528, 0.35355338
        %v2611 = vmul.f32 %v2530, 0.35355338
        %v2612 = vmul.f32 %v2532, 0.35355338
        %v2613 = vmul.f32 %v2534, 0.35355338
        %v2614 = vmul.f32 %v2538, 0.35355338
        %v2615 = vmul.f32 %v2540, 0.35355338
        %v2616 = vmul.f32 %v2542, 0.35355338
        %v2617 = vmul.f32 %v2544, 0.35355338
        %v2618 = vmul.f32 %v2548, 0.35355338
        %v2619 = vmul.f32 %v2550, 0.35355338
        %v2620 = vmul.f32 %v2552, 0.35355338
        %v2621 = vmul.f32 %v2554, 0.35355338
        %v2622 = vmul.f32 %v2558, 0.35355338
        %v2623 = vmul.f32 %v2560, 0.35355338
        %v2624 = vmul.f32 %v2562, 0.35355338
        %v2625 = vmul.f32 %v2564, 0.35355338
        %v2626 = vmul.f32 %v2568, 0.35355338
        %v2627 = vmul.f32 %v2570, 0.35355338
        %v2628 = vmul.f32 %v2572, 0.35355338
        %v2629 = vmul.f32 %v2574, 0.35355338
        %v2630 = vmul.f32 %v2578, 0.35355338
        %v2631 = vmul.f32 %v2580, 0.35355338
        %v2632 = vmul.f32 %v2582, 0.35355338
        %v2633 = vmul.f32 %v2584, 0.35355338
        %v2634 = vadd.f32 %v2586, %v1268
        %v2635 = vadd.f32 %v2587, %v1269
        %v2636 = vadd.f32 %v2588, %v1270
        %v2637 = vadd.f32 %v2589, %v1271
        %v2638 = vadd.f32 %v2590, %v1272
        %v2639 = vadd.f32 %v2591, %v1273
        %v2640 = vadd.f32 %v2592, %v1274
        %v2641 = vadd.f32 %v2593, %v1275
        %v2642 = vadd.f32 %v2594, %v1276
        %v2643 = vadd.f32 %v2595, %v1277
        %v2644 = vadd.f32 %v2596, %v1278
        %v2645 = vadd.f32 %v2597, %v1279
        %v2646 = vadd.f32 %v2598, %v1280
        %v2647 = vadd.f32 %v2599, %v1281
        %v2648 = vadd.f32 %v2600, %v1282
        %v2649 = vadd.f32 %v2601, %v1283
        %v2650 = vadd.f32 %v2602, %v1284
        %v2651 = vadd.f32 %v2603, %v1285
        %v2652 = vadd.f32 %v2604, %v1286
        %v2653 = vadd.f32 %v2605, %v1287
        %v2654 = vadd.f32 %v2606, %v1288
        %v2655 = vadd.f32 %v2607, %v1289
        %v2656 = vadd.f32 %v2608, %v1290
        %v2657 = vadd.f32 %v2609, %v1291
        %v2658 = vadd.f32 %v2610, %v1292
        %v2659 = vadd.f32 %v2611, %v1293
        %v2660 = vadd.f32 %v2612, %v1294
        %v2661 = vadd.f32 %v2613, %v1295
        %v2662 = vadd.f32 %v2614, %v1296
        %v2663 = vadd.f32 %v2615, %v1297
        %v2664 = vadd.f32 %v2616, %v1298
        %v2665 = vadd.f32 %v2617, %v1299
        %v2666 = vadd.f32 %v2618, %v1300
        %v2667 = vadd.f32 %v2619, %v1301
        %v2668 = vadd.f32 %v2620, %v1302
        %v2669 = vadd.f32 %v2621, %v1303
        %v2670 = vadd.f32 %v2622, %v1304
        %v2671 = vadd.f32 %v2623, %v1305
        %v2672 = vadd.f32 %v2624, %v1306
        %v2673 = vadd.f32 %v2625, %v1307
        %v2674 = vadd.f32 %v2626, %v1308
        %v2675 = vadd.f32 %v2627, %v1309
        %v2676 = vadd.f32 %v2628, %v1310
        %v2677 = vadd.f32 %v2629, %v1311
        %v2678 = vadd.f32 %v2630, %v1312
        %v2679 = vadd.f32 %v2631, %v1313
        %v2680 = vadd.f32 %v2632, %v1314
        %v2681 = vadd.f32 %v2633, %v1315
        %v2682 = vsel %vm1674, %v2635, -inf
        %v2683 = vmax.f32 %v2634, %v2682
        %2684 = vmax.xlane.f32.xlu0 %v2683
        %v2685 = vpop.xlane.xlu0 %2684
        %v2686 = vsel %vm1674, %v2637, -inf
        %v2687 = vmax.f32 %v2636, %v2686
        %2688 = vmax.xlane.f32.xlu0 %v2687
        %v2689 = vpop.xlane.xlu0 %2688
        %v2690 = vsel %vm1674, %v2639, -inf
        %v2691 = vmax.f32 %v2638, %v2690
        %2692 = vmax.xlane.f32.xlu0 %v2691
        %v2693 = vpop.xlane.xlu0 %2692
        %v2694 = vsel %vm1674, %v2641, -inf
        %v2695 = vmax.f32 %v2640, %v2694
        %2696 = vmax.xlane.f32.xlu0 %v2695
        %v2697 = vpop.xlane.xlu0 %2696
        %v2698 = vsel %vm1674, %v2643, -inf
        %v2699 = vmax.f32 %v2642, %v2698
        %2700 = vmax.xlane.f32.xlu0 %v2699
        %v2701 = vpop.xlane.xlu0 %2700
        %v2702 = vsel %vm1674, %v2645, -inf
        %v2703 = vmax.f32 %v2644, %v2702
        %2704 = vmax.xlane.f32.xlu0 %v2703
        %v2705 = vpop.xlane.xlu0 %2704
        %v2706 = vsel %vm1674, %v2647, -inf
        %v2707 = vmax.f32 %v2646, %v2706
        %2708 = vmax.xlane.f32.xlu0 %v2707
        %v2709 = vpop.xlane.xlu0 %2708
        %v2710 = vsel %vm1674, %v2649, -inf
        %v2711 = vmax.f32 %v2648, %v2710
        %2712 = vmax.xlane.f32.xlu0 %v2711
        %v2713 = vpop.xlane.xlu0 %2712
        %v2714 = vsel %vm1674, %v2651, -inf
        %v2715 = vmax.f32 %v2650, %v2714
        %2716 = vmax.xlane.f32.xlu0 %v2715
        %v2717 = vpop.xlane.xlu0 %2716
        %v2718 = vsel %vm1674, %v2653, -inf
        %v2719 = vmax.f32 %v2652, %v2718
        %2720 = vmax.xlane.f32.xlu0 %v2719
        %v2721 = vpop.xlane.xlu0 %2720
        %v2722 = vsel %vm1674, %v2655, -inf
        %v2723 = vmax.f32 %v2654, %v2722
        %2724 = vmax.xlane.f32.xlu0 %v2723
        %v2725 = vpop.xlane.xlu0 %2724
        %v2726 = vsel %vm1674, %v2657, -inf
        %v2727 = vmax.f32 %v2656, %v2726
        %2728 = vmax.xlane.f32.xlu0 %v2727
        %v2729 = vpop.xlane.xlu0 %2728
        %v2730 = vsel %vm1674, %v2659, -inf
        %v2731 = vmax.f32 %v2658, %v2730
        %2732 = vmax.xlane.f32.xlu0 %v2731
        %v2733 = vpop.xlane.xlu0 %2732
        %v2734 = vsel %vm1674, %v2661, -inf
        %v2735 = vmax.f32 %v2660, %v2734
        %2736 = vmax.xlane.f32.xlu0 %v2735
        %v2737 = vpop.xlane.xlu0 %2736
        %v2738 = vsel %vm1674, %v2663, -inf
        %v2739 = vmax.f32 %v2662, %v2738
        %2740 = vmax.xlane.f32.xlu0 %v2739
        %v2741 = vpop.xlane.xlu0 %2740
        %v2742 = vsel %vm1674, %v2665, -inf
        %v2743 = vmax.f32 %v2664, %v2742
        %2744 = vmax.xlane.f32.xlu0 %v2743
        %v2745 = vpop.xlane.xlu0 %2744
        %v2746 = vsel %vm1674, %v2667, -inf
        %v2747 = vmax.f32 %v2666, %v2746
        %2748 = vmax.xlane.f32.xlu0 %v2747
        %v2749 = vpop.xlane.xlu0 %2748
        %v2750 = vsel %vm1674, %v2669, -inf
        %v2751 = vmax.f32 %v2668, %v2750
        %2752 = vmax.xlane.f32.xlu0 %v2751
        %v2753 = vpop.xlane.xlu0 %2752
        %v2754 = vsel %vm1674, %v2671, -inf
        %v2755 = vmax.f32 %v2670, %v2754
        %2756 = vmax.xlane.f32.xlu0 %v2755
        %v2757 = vpop.xlane.xlu0 %2756
        %v2758 = vsel %vm1674, %v2673, -inf
        %v2759 = vmax.f32 %v2672, %v2758
        %2760 = vmax.xlane.f32.xlu0 %v2759
        %v2761 = vpop.xlane.xlu0 %2760
        %v2762 = vsel %vm1674, %v2675, -inf
        %v2763 = vmax.f32 %v2674, %v2762
        %2764 = vmax.xlane.f32.xlu0 %v2763
        %v2765 = vpop.xlane.xlu0 %2764
        %v2766 = vsel %vm1674, %v2677, -inf
        %v2767 = vmax.f32 %v2676, %v2766
        %2768 = vmax.xlane.f32.xlu0 %v2767
        %v2769 = vpop.xlane.xlu0 %2768
        %v2770 = vsel %vm1674, %v2679, -inf
        %v2771 = vmax.f32 %v2678, %v2770
        %2772 = vmax.xlane.f32.xlu0 %v2771
        %v2773 = vpop.xlane.xlu0 %2772
        %v2774 = vsel %vm1674, %v2681, -inf
        %v2775 = vmax.f32 %v2680, %v2774
        %2776 = vmax.xlane.f32.xlu0 %v2775
        %v2777 = vpop.xlane.xlu0 %2776
        %v2778 = vsub.f32 %v2634, %v2685
        %v2779 = vsub.f32 %v2635, %v2685
        %v2780 = vsub.f32 %v2636, %v2689
        %v2781 = vsub.f32 %v2637, %v2689
        %v2782 = vsub.f32 %v2638, %v2693
        %v2783 = vsub.f32 %v2639, %v2693
        %v2784 = vsub.f32 %v2640, %v2697
        %v2785 = vsub.f32 %v2641, %v2697
        %v2786 = vsub.f32 %v2642, %v2701
        %v2787 = vsub.f32 %v2643, %v2701
        %v2788 = vsub.f32 %v2644, %v2705
        %v2789 = vsub.f32 %v2645, %v2705
        %v2790 = vsub.f32 %v2646, %v2709
        %v2791 = vsub.f32 %v2647, %v2709
        %v2792 = vsub.f32 %v2648, %v2713
        %v2793 = vsub.f32 %v2649, %v2713
        %v2794 = vsub.f32 %v2650, %v2717
        %v2795 = vsub.f32 %v2651, %v2717
        %v2796 = vsub.f32 %v2652, %v2721
        %v2797 = vsub.f32 %v2653, %v2721
        %v2798 = vsub.f32 %v2654, %v2725
        %v2799 = vsub.f32 %v2655, %v2725
        %v2800 = vsub.f32 %v2656, %v2729
        %v2801 = vsub.f32 %v2657, %v2729
        %v2802 = vsub.f32 %v2658, %v2733
        %v2803 = vsub.f32 %v2659, %v2733
        %v2804 = vsub.f32 %v2660, %v2737
        %v2805 = vsub.f32 %v2661, %v2737
        %v2806 = vsub.f32 %v2662, %v2741
        %v2807 = vsub.f32 %v2663, %v2741
        %v2808 = vsub.f32 %v2664, %v2745
        %v2809 = vsub.f32 %v2665, %v2745
        %v2810 = vsub.f32 %v2666, %v2749
        %v2811 = vsub.f32 %v2667, %v2749
        %v2812 = vsub.f32 %v2668, %v2753
        %v2813 = vsub.f32 %v2669, %v2753
        %v2814 = vsub.f32 %v2670, %v2757
        %v2815 = vsub.f32 %v2671, %v2757
        %v2816 = vsub.f32 %v2672, %v2761
        %v2817 = vsub.f32 %v2673, %v2761
        %v2818 = vsub.f32 %v2674, %v2765
        %v2819 = vsub.f32 %v2675, %v2765
        %v2820 = vsub.f32 %v2676, %v2769
        %v2821 = vsub.f32 %v2677, %v2769
        %v2822 = vsub.f32 %v2678, %v2773
        %v2823 = vsub.f32 %v2679, %v2773
        %v2824 = vsub.f32 %v2680, %v2777
        %v2825 = vsub.f32 %v2681, %v2777
        %v2826 = vmul.f32 %v2778, 1.442695
        %v2827 = vpow.pop %v2826
        %v2828 = vmul.f32 %v2779, 1.442695
        %v2829 = vpow.pop %v2828
        %v2830 = vmul.f32 %v2780, 1.442695
        %v2831 = vpow.pop %v2830
        %v2832 = vmul.f32 %v2781, 1.442695
        %v2833 = vpow.pop %v2832
        %v2834 = vmul.f32 %v2782, 1.442695
        %v2835 = vpow.pop %v2834
        %v2836 = vmul.f32 %v2783, 1.442695
        %v2837 = vpow.pop %v2836
        %v2838 = vmul.f32 %v2784, 1.442695
        %v2839 = vpow.pop %v2838
        %v2840 = vmul.f32 %v2785, 1.442695
        %v2841 = vpow.pop %v2840
        %v2842 = vmul.f32 %v2786, 1.442695
        %v2843 = vpow.pop %v2842
        %v2844 = vmul.f32 %v2787, 1.442695
        %v2845 = vpow.pop %v2844
        %v2846 = vmul.f32 %v2788, 1.442695
        %v2847 = vpow.pop %v2846
        %v2848 = vmul.f32 %v2789, 1.442695
        %v2849 = vpow.pop %v2848
        %v2850 = vmul.f32 %v2790, 1.442695
        %v2851 = vpow.pop %v2850
        %v2852 = vmul.f32 %v2791, 1.442695
        %v2853 = vpow.pop %v2852
        %v2854 = vmul.f32 %v2792, 1.442695
        %v2855 = vpow.pop %v2854
        %v2856 = vmul.f32 %v2793, 1.442695
        %v2857 = vpow.pop %v2856
        %v2858 = vmul.f32 %v2794, 1.442695
        %v2859 = vpow.pop %v2858
        %v2860 = vmul.f32 %v2795, 1.442695
        %v2861 = vpow.pop %v2860
        %v2862 = vmul.f32 %v2796, 1.442695
        %v2863 = vpow.pop %v2862
        %v2864 = vmul.f32 %v2797, 1.442695
        %v2865 = vpow.pop %v2864
        %v2866 = vmul.f32 %v2798, 1.442695
        %v2867 = vpow.pop %v2866
        %v2868 = vmul.f32 %v2799, 1.442695
        %v2869 = vpow.pop %v2868
        %v2870 = vmul.f32 %v2800, 1.442695
        %v2871 = vpow.pop %v2870
        %v2872 = vmul.f32 %v2801, 1.442695
        %v2873 = vpow.pop %v2872
        %v2874 = vmul.f32 %v2802, 1.442695
        %v2875 = vpow.pop %v2874
        %v2876 = vmul.f32 %v2803, 1.442695
        %v2877 = vpow.pop %v2876
        %v2878 = vmul.f32 %v2804, 1.442695
        %v2879 = vpow.pop %v2878
        %v2880 = vmul.f32 %v2805, 1.442695
        %v2881 = vpow.pop %v2880
        %v2882 = vmul.f32 %v2806, 1.442695
        %v2883 = vpow.pop %v2882
        %v2884 = vmul.f32 %v2807, 1.442695
        %v2885 = vpow.pop %v2884
        %v2886 = vmul.f32 %v2808, 1.442695
        %v2887 = vpow.pop %v2886
        %v2888 = vmul.f32 %v2809, 1.442695
        %v2889 = vpow.pop %v2888
        %v2890 = vmul.f32 %v2810, 1.442695
        %v2891 = vpow.pop %v2890
        %v2892 = vmul.f32 %v2811, 1.442695
        %v2893 = vpow.pop %v2892
        %v2894 = vmul.f32 %v2812, 1.442695
        %v2895 = vpow.pop %v2894
        %v2896 = vmul.f32 %v2813, 1.442695
        %v2897 = vpow.pop %v2896
        %v2898 = vmul.f32 %v2814, 1.442695
        %v2899 = vpow.pop %v2898
        %v2900 = vmul.f32 %v2815, 1.442695
        %v2901 = vpow.pop %v2900
        %v2902 = vmul.f32 %v2816, 1.442695
        %v2903 = vpow.pop %v2902
        %v2904 = vmul.f32 %v2817, 1.442695
        %v2905 = vpow.pop %v2904
        %v2906 = vmul.f32 %v2818, 1.442695
        %v2907 = vpow.pop %v2906
        %v2908 = vmul.f32 %v2819, 1.442695
        %v2909 = vpow.pop %v2908
        %v2910 = vmul.f32 %v2820, 1.442695
        %v2911 = vpow.pop %v2910
        %v2912 = vmul.f32 %v2821, 1.442695
        %v2913 = vpow.pop %v2912
        %v2914 = vmul.f32 %v2822, 1.442695
        %v2915 = vpow.pop %v2914
        %v2916 = vmul.f32 %v2823, 1.442695
        %v2917 = vpow.pop %v2916
        %v2918 = vmul.f32 %v2824, 1.442695
        %v2919 = vpow.pop %v2918
        %v2920 = vmul.f32 %v2825, 1.442695
        %v2921 = vpow.pop %v2920
        %v2922 = vsel %vm1674, %v2829, 0.0
        %v2923 = vadd.f32 %v2827, %v2922
        %2924 = vadd.xlane.f32.xlu0 %v2923
        %v2925 = vpop.xlane.xlu0 %2924
        %v2926 = vsel %vm1674, %v2833, 0.0
        %v2927 = vadd.f32 %v2831, %v2926
        %2928 = vadd.xlane.f32.xlu0 %v2927
        %v2929 = vpop.xlane.xlu0 %2928
        %v2930 = vsel %vm1674, %v2837, 0.0
        %v2931 = vadd.f32 %v2835, %v2930
        %2932 = vadd.xlane.f32.xlu0 %v2931
        %v2933 = vpop.xlane.xlu0 %2932
        %v2934 = vsel %vm1674, %v2841, 0.0
        %v2935 = vadd.f32 %v2839, %v2934
        %2936 = vadd.xlane.f32.xlu0 %v2935
        %v2937 = vpop.xlane.xlu0 %2936
        %v2938 = vsel %vm1674, %v2845, 0.0
        %v2939 = vadd.f32 %v2843, %v2938
        %2940 = vadd.xlane.f32.xlu0 %v2939
        %v2941 = vpop.xlane.xlu0 %2940
        %v2942 = vsel %vm1674, %v2849, 0.0
        %v2943 = vadd.f32 %v2847, %v2942
        %2944 = vadd.xlane.f32.xlu0 %v2943
        %v2945 = vpop.xlane.xlu0 %2944
        %v2946 = vsel %vm1674, %v2853, 0.0
        %v2947 = vadd.f32 %v2851, %v2946
        %2948 = vadd.xlane.f32.xlu0 %v2947
        %v2949 = vpop.xlane.xlu0 %2948
        %v2950 = vsel %vm1674, %v2857, 0.0
        %v2951 = vadd.f32 %v2855, %v2950
        %2952 = vadd.xlane.f32.xlu0 %v2951
        %v2953 = vpop.xlane.xlu0 %2952
        %v2954 = vsel %vm1674, %v2861, 0.0
        %v2955 = vadd.f32 %v2859, %v2954
        %2956 = vadd.xlane.f32.xlu0 %v2955
        %v2957 = vpop.xlane.xlu0 %2956
        %v2958 = vsel %vm1674, %v2865, 0.0
        %v2959 = vadd.f32 %v2863, %v2958
        %2960 = vadd.xlane.f32.xlu0 %v2959
        %v2961 = vpop.xlane.xlu0 %2960
        %v2962 = vsel %vm1674, %v2869, 0.0
        %v2963 = vadd.f32 %v2867, %v2962
        %2964 = vadd.xlane.f32.xlu0 %v2963
        %v2965 = vpop.xlane.xlu0 %2964
        %v2966 = vsel %vm1674, %v2873, 0.0
        %v2967 = vadd.f32 %v2871, %v2966
        %2968 = vadd.xlane.f32.xlu0 %v2967
        %v2969 = vpop.xlane.xlu0 %2968
        %v2970 = vsel %vm1674, %v2877, 0.0
        %v2971 = vadd.f32 %v2875, %v2970
        %2972 = vadd.xlane.f32.xlu0 %v2971
        %v2973 = vpop.xlane.xlu0 %2972
        %v2974 = vsel %vm1674, %v2881, 0.0
        %v2975 = vadd.f32 %v2879, %v2974
        %2976 = vadd.xlane.f32.xlu0 %v2975
        %v2977 = vpop.xlane.xlu0 %2976
        %v2978 = vsel %vm1674, %v2885, 0.0
        %v2979 = vadd.f32 %v2883, %v2978
        %2980 = vadd.xlane.f32.xlu0 %v2979
        %v2981 = vpop.xlane.xlu0 %2980
        %v2982 = vsel %vm1674, %v2889, 0.0
        %v2983 = vadd.f32 %v2887, %v2982
        %2984 = vadd.xlane.f32.xlu0 %v2983
        %v2985 = vpop.xlane.xlu0 %2984
        %v2986 = vsel %vm1674, %v2893, 0.0
        %v2987 = vadd.f32 %v2891, %v2986
        %2988 = vadd.xlane.f32.xlu0 %v2987
        %v2989 = vpop.xlane.xlu0 %2988
        %v2990 = vsel %vm1674, %v2897, 0.0
        %v2991 = vadd.f32 %v2895, %v2990
        %2992 = vadd.xlane.f32.xlu0 %v2991
        %v2993 = vpop.xlane.xlu0 %2992
        %v2994 = vsel %vm1674, %v2901, 0.0
        %v2995 = vadd.f32 %v2899, %v2994
        %2996 = vadd.xlane.f32.xlu0 %v2995
        %v2997 = vpop.xlane.xlu0 %2996
        %v2998 = vsel %vm1674, %v2905, 0.0
        %v2999 = vadd.f32 %v2903, %v2998
        %3000 = vadd.xlane.f32.xlu0 %v2999
        %v3001 = vpop.xlane.xlu0 %3000
        %v3002 = vsel %vm1674, %v2909, 0.0
        %v3003 = vadd.f32 %v2907, %v3002
        %3004 = vadd.xlane.f32.xlu0 %v3003
        %v3005 = vpop.xlane.xlu0 %3004
        %v3006 = vsel %vm1674, %v2913, 0.0
        %v3007 = vadd.f32 %v2911, %v3006
        %3008 = vadd.xlane.f32.xlu0 %v3007
        %v3009 = vpop.xlane.xlu0 %3008
        %v3010 = vsel %vm1674, %v2917, 0.0
        %v3011 = vadd.f32 %v2915, %v3010
        %3012 = vadd.xlane.f32.xlu0 %v3011
        %v3013 = vpop.xlane.xlu0 %3012
        %v3014 = vsel %vm1674, %v2921, 0.0
        %v3015 = vadd.f32 %v2919, %v3014
        %3016 = vadd.xlane.f32.xlu0 %v3015
        %v3017 = vpop.xlane.xlu0 %3016
        %v3018 = vrcp.pop %v2925
        %v3019 = vrcp.pop %v2929
        %v3020 = vrcp.pop %v2933
        %v3021 = vrcp.pop %v2937
        %v3022 = vrcp.pop %v2941
        %v3023 = vrcp.pop %v2945
        %v3024 = vrcp.pop %v2949
        %v3025 = vrcp.pop %v2953
        %v3026 = vrcp.pop %v2957
        %v3027 = vrcp.pop %v2961
        %v3028 = vrcp.pop %v2965
        %v3029 = vrcp.pop %v2969
        %v3030 = vrcp.pop %v2973
        %v3031 = vrcp.pop %v2977
        %v3032 = vrcp.pop %v2981
        %v3033 = vrcp.pop %v2985
        %v3034 = vrcp.pop %v2989
        %v3035 = vrcp.pop %v2993
        %v3036 = vrcp.pop %v2997
        %v3037 = vrcp.pop %v3001
        %v3038 = vrcp.pop %v3005
        %v3039 = vrcp.pop %v3009
        %v3040 = vrcp.pop %v3013
        %v3041 = vrcp.pop %v3017
        %v3042 = vmul.f32 %v2827, %v3018
        %v3043 = vmul.f32 %v2829, %v3018
        %v3044 = vmul.f32 %v2831, %v3019
        %v3045 = vmul.f32 %v2833, %v3019
        %v3046 = vmul.f32 %v2835, %v3020
        %v3047 = vmul.f32 %v2837, %v3020
        %v3048 = vmul.f32 %v2839, %v3021
        %v3049 = vmul.f32 %v2841, %v3021
        %v3050 = vmul.f32 %v2843, %v3022
        %v3051 = vmul.f32 %v2845, %v3022
        %v3052 = vmul.f32 %v2847, %v3023
        %v3053 = vmul.f32 %v2849, %v3023
        %v3054 = vmul.f32 %v2851, %v3024
        %v3055 = vmul.f32 %v2853, %v3024
        %v3056 = vmul.f32 %v2855, %v3025
        %v3057 = vmul.f32 %v2857, %v3025
        %v3058 = vmul.f32 %v2859, %v3026
        %v3059 = vmul.f32 %v2861, %v3026
        %v3060 = vmul.f32 %v2863, %v3027
        %v3061 = vmul.f32 %v2865, %v3027
        %v3062 = vmul.f32 %v2867, %v3028
        %v3063 = vmul.f32 %v2869, %v3028
        %v3064 = vmul.f32 %v2871, %v3029
        %v3065 = vmul.f32 %v2873, %v3029
        %v3066 = vmul.f32 %v2875, %v3030
        %v3067 = vmul.f32 %v2877, %v3030
        %v3068 = vmul.f32 %v2879, %v3031
        %v3069 = vmul.f32 %v2881, %v3031
        %v3070 = vmul.f32 %v2883, %v3032
        %v3071 = vmul.f32 %v2885, %v3032
        %v3072 = vmul.f32 %v2887, %v3033
        %v3073 = vmul.f32 %v2889, %v3033
        %v3074 = vmul.f32 %v2891, %v3034
        %v3075 = vmul.f32 %v2893, %v3034
        %v3076 = vmul.f32 %v2895, %v3035
        %v3077 = vmul.f32 %v2897, %v3035
        %v3078 = vmul.f32 %v2899, %v3036
        %v3079 = vmul.f32 %v2901, %v3036
        %v3080 = vmul.f32 %v2903, %v3037
        %v3081 = vmul.f32 %v2905, %v3037
        %v3082 = vmul.f32 %v2907, %v3038
        %v3083 = vmul.f32 %v2909, %v3038
        %v3084 = vmul.f32 %v2911, %v3039
        %v3085 = vmul.f32 %v2913, %v3039
        %v3086 = vmul.f32 %v2915, %v3040
        %v3087 = vmul.f32 %v2917, %v3040
        %v3088 = vmul.f32 %v2919, %v3041
        %v3089 = vmul.f32 %v2921, %v3041
        %v3090 = vld [vmem:[%s7 + $0x4] sm:$0xf]
        %3091 = vrot.lane.b32.xlu0 %v1256, 56
        %v3092 = vpop.permute.xlu0 %3091
        %3093 = vrot.lane.b32.xlu0 %v1257, 56
        %v3094 = vpop.permute.xlu0 %3093
        %3095 = vrot.lane.b32.xlu0 %v1258, 56
        %v3096 = vpop.permute.xlu0 %3095
        %3097 = vrot.lane.b32.xlu0 %v1259, 56
        %v3098 = vpop.permute.xlu0 %3097
        %3099 = vrot.lane.b32.xlu0 %v1260, 56
        %v3100 = vpop.permute.xlu0 %3099
        %3101 = vrot.lane.b32.xlu0 %v1261, 56
        %v3102 = vpop.permute.xlu0 %3101
        %3103 = vrot.lane.b32.xlu0 %v1262, 56
        %v3104 = vpop.permute.xlu0 %3103
        %3105 = vrot.lane.b32.xlu0 %v1263, 56
        %v3106 = vpop.permute.xlu0 %3105
        %3107 = vrot.lane.b32.xlu0 %v1264, 56
        %v3108 = vpop.permute.xlu0 %3107
        %3109 = vrot.lane.b32.xlu0 %v1265, 56
        %v3110 = vpop.permute.xlu0 %3109
        %3111 = vrot.lane.b32.xlu0 %v1266, 56
        %v3112 = vpop.permute.xlu0 %3111
        %3113 = vrot.lane.b32.xlu0 %v1267, 56
        %v3114 = vpop.permute.xlu0 %3113
        %v3116 = vsel %vm1352, %v3092, 0
        %v3119 = vsel %vm1352, %v3094, 0
        %v3122 = vsel %vm1352, %v3096, 0
        %v3125 = vsel %vm1352, %v3098, 0
        %v3128 = vsel %vm1352, %v3100, 0
        %v3131 = vsel %vm1352, %v3102, 0
        %v3134 = vsel %vm1352, %v3104, 0
        %v3137 = vsel %vm1352, %v3106, 0
        %v3140 = vsel %vm1352, %v3108, 0
        %v3143 = vsel %vm1352, %v3110, 0
        %v3146 = vsel %vm1352, %v3112, 0
        %v3149 = vsel %vm1352, %v3114, 0
        %v3152 = vsel %vm2144, %v3090, 0
        %3154 = vmatprep.subr.bf16.mxu0 0
        %3155 = vmatpush1.bf16.msra.mxu0 %v3152
        %3156 = vmatprep.subr.bf16.mxu0 0
        %3157 = vmatpush1.bf16.msra.mxu0 0
        %3158 = vmatprep.subr.bf16.mxu0 0
        %3159 = vmatpush1.bf16.msra.mxu0 0
        %3160 = vmatprep.subr.bf16.mxu0 0
        %3161 = vmatpush1.bf16.msra.mxu0 0
        %3162 = vmatprep.subr.bf16.mxu0 0
        %3163 = vmatpush1.bf16.msra.mxu0 0
        %3164 = vmatprep.subr.bf16.mxu0 0
        %3165 = vmatpush1.bf16.msra.mxu0 0
        %3166 = vmatprep.subr.bf16.mxu0 0
        %3167 = vmatpush1.bf16.msra.mxu0 0
        %3168 = vmatprep.subr.bf16.mxu0 0
        %3169 = vmatpush1.bf16.msra.mxu0 0
        %3170 = vmatprep.subr.bf16.mxu0 0
        %3171 = vmatpush1.bf16.msra.mxu0 0
        %3172 = vmatprep.subr.bf16.mxu0 0
        %3173 = vmatpush1.bf16.msra.mxu0 0
        %3174 = vmatprep.subr.bf16.mxu0 0
        %3175 = vmatpush1.bf16.msra.mxu0 0
        %3176 = vmatprep.subr.bf16.mxu0 0
        %3177 = vmatpush1.bf16.msra.mxu0 0
        %3178 = vmatprep.subr.bf16.mxu0 0
        %3179 = vmatpush1.bf16.msra.mxu0 0
        %3180 = vmatprep.subr.bf16.mxu0 0
        %3181 = vmatpush1.bf16.msra.mxu0 0
        %3182 = vmatprep.subr.bf16.mxu0 0
        %3183 = vmatpush1.bf16.msra.mxu0 0
        %3184 = vmatprep.subr.bf16.mxu0 0
        %3185 = vmatpush1.bf16.msra.mxu0 0
        %3186 = vmatprep.mubr.bf16.mxu0 0
        %3187 = vmatmul.mubr.bf16.gmra.mrb[0].mxu0 %v3116
        %v3188 = vpop.f32.mrb[0].mxu0
        %v3189 = vadd.f32 0.0, %v3188
        %v3190 = vpop.f32.mrb[0].mxu0
        %v3191 = vpop.f32.mrb[0].mxu0
        %v3192 = vadd.f32 0.0, %v3191
        %v3193 = vpop.f32.mrb[0].mxu0
        %3194 = vmatprep.mubr.bf16.mxu0 0
        %3195 = vmatmul.mubr.bf16.gmra.mrb[0].mxu0 %v3119
        %v3196 = vpop.f32.mrb[0].mxu0
        %v3197 = vadd.f32 0.0, %v3196
        %v3198 = vpop.f32.mrb[0].mxu0
        %v3199 = vpop.f32.mrb[0].mxu0
        %v3200 = vadd.f32 0.0, %v3199
        %v3201 = vpop.f32.mrb[0].mxu0
        %3202 = vmatprep.mubr.bf16.mxu0 0
        %3203 = vmatmul.mubr.bf16.gmra.mrb[0].mxu0 %v3122
        %v3204 = vpop.f32.mrb[0].mxu0
        %v3205 = vadd.f32 0.0, %v3204
        %v3206 = vpop.f32.mrb[0].mxu0
        %v3207 = vpop.f32.mrb[0].mxu0
        %v3208 = vadd.f32 0.0, %v3207
        %v3209 = vpop.f32.mrb[0].mxu0
        %3210 = vmatprep.mubr.bf16.mxu0 0
        %3211 = vmatmul.mubr.bf16.gmra.mrb[0].mxu0 %v3125
        %v3212 = vpop.f32.mrb[0].mxu0
        %v3213 = vadd.f32 0.0, %v3212
        %v3214 = vpop.f32.mrb[0].mxu0
        %v3215 = vpop.f32.mrb[0].mxu0
        %v3216 = vadd.f32 0.0, %v3215
        %v3217 = vpop.f32.mrb[0].mxu0
        %3218 = vmatprep.mubr.bf16.mxu0 0
        %3219 = vmatmul.mubr.bf16.gmra.mrb[0].mxu0 %v3128
        %v3220 = vpop.f32.mrb[0].mxu0
        %v3221 = vadd.f32 0.0, %v3220
        %v3222 = vpop.f32.mrb[0].mxu0
        %v3223 = vpop.f32.mrb[0].mxu0
        %v3224 = vadd.f32 0.0, %v3223
        %v3225 = vpop.f32.mrb[0].mxu0
        %3226 = vmatprep.mubr.bf16.mxu0 0
        %3227 = vmatmul.mubr.bf16.gmra.mrb[0].mxu0 %v3131
        %v3228 = vpop.f32.mrb[0].mxu0
        %v3229 = vadd.f32 0.0, %v3228
        %v3230 = vpop.f32.mrb[0].mxu0
        %v3231 = vpop.f32.mrb[0].mxu0
        %v3232 = vadd.f32 0.0, %v3231
        %v3233 = vpop.f32.mrb[0].mxu0
        %3234 = vmatprep.mubr.bf16.mxu0 0
        %3235 = vmatmul.mubr.bf16.gmra.mrb[0].mxu0 %v3134
        %v3236 = vpop.f32.mrb[0].mxu0
        %v3237 = vadd.f32 0.0, %v3236
        %v3238 = vpop.f32.mrb[0].mxu0
        %v3239 = vpop.f32.mrb[0].mxu0
        %v3240 = vadd.f32 0.0, %v3239
        %v3241 = vpop.f32.mrb[0].mxu0
        %3242 = vmatprep.mubr.bf16.mxu0 0
        %3243 = vmatmul.mubr.bf16.gmra.mrb[0].mxu0 %v3137
        %v3244 = vpop.f32.mrb[0].mxu0
        %v3245 = vadd.f32 0.0, %v3244
        %v3246 = vpop.f32.mrb[0].mxu0
        %v3247 = vpop.f32.mrb[0].mxu0
        %v3248 = vadd.f32 0.0, %v3247
        %v3249 = vpop.f32.mrb[0].mxu0
        %3250 = vmatprep.mubr.bf16.mxu0 0
        %3251 = vmatmul.mubr.bf16.gmra.mrb[0].mxu0 %v3140
        %v3252 = vpop.f32.mrb[0].mxu0
        %v3253 = vadd.f32 0.0, %v3252
        %v3254 = vpop.f32.mrb[0].mxu0
        %v3255 = vpop.f32.mrb[0].mxu0
        %v3256 = vadd.f32 0.0, %v3255
        %v3257 = vpop.f32.mrb[0].mxu0
        %3258 = vmatprep.mubr.bf16.mxu0 0
        %3259 = vmatmul.mubr.bf16.gmra.mrb[0].mxu0 %v3143
        %v3260 = vpop.f32.mrb[0].mxu0
        %v3261 = vadd.f32 0.0, %v3260
        %v3262 = vpop.f32.mrb[0].mxu0
        %v3263 = vpop.f32.mrb[0].mxu0
        %v3264 = vadd.f32 0.0, %v3263
        %v3265 = vpop.f32.mrb[0].mxu0
        %3266 = vmatprep.mubr.bf16.mxu0 0
        %3267 = vmatmul.mubr.bf16.gmra.mrb[0].mxu0 %v3146
        %v3268 = vpop.f32.mrb[0].mxu0
        %v3269 = vadd.f32 0.0, %v3268
        %v3270 = vpop.f32.mrb[0].mxu0
        %v3271 = vpop.f32.mrb[0].mxu0
        %v3272 = vadd.f32 0.0, %v3271
        %v3273 = vpop.f32.mrb[0].mxu0
        %3274 = vmatprep.mubr.bf16.mxu0 0
        %3275 = vmatmul.mubr.bf16.gmra.mrb[0].mxu0 %v3149
        %v3276 = vpop.f32.mrb[0].mxu0
        %v3277 = vadd.f32 0.0, %v3276
        %v3278 = vpop.f32.mrb[0].mxu0
        %v3279 = vpop.f32.mrb[0].mxu0
        %v3280 = vadd.f32 0.0, %v3279
        %v3281 = vpop.f32.mrb[0].mxu0
        %3282 = vdwg.mxu0
        %v3283 = vpack.c.bf16 %v3192, %v3189
        %v3284 = vpack.c.bf16 %v3200, %v3197
        %v3285 = vpack.c.bf16 %v3208, %v3205
        %v3286 = vpack.c.bf16 %v3216, %v3213
        %v3287 = vpack.c.bf16 %v3224, %v3221
        %v3288 = vpack.c.bf16 %v3232, %v3229
        %v3289 = vpack.c.bf16 %v3240, %v3237
        %v3290 = vpack.c.bf16 %v3248, %v3245
        %v3291 = vpack.c.bf16 %v3256, %v3253
        %v3292 = vpack.c.bf16 %v3264, %v3261
        %v3293 = vpack.c.bf16 %v3272, %v3269
        %v3294 = vpack.c.bf16 %v3280, %v3277
        %v3295 = vpack.c.bf16 %v3044, %v3042
        %v3296 = vpack.c.bf16 %v3045, %v3043
        %v3297 = vpack.c.bf16 %v3048, %v3046
        %v3298 = vpack.c.bf16 %v3049, %v3047
        %v3299 = vpack.c.bf16 %v3052, %v3050
        %v3300 = vpack.c.bf16 %v3053, %v3051
        %v3301 = vpack.c.bf16 %v3056, %v3054
        %v3302 = vpack.c.bf16 %v3057, %v3055
        %v3303 = vpack.c.bf16 %v3060, %v3058
        %v3304 = vpack.c.bf16 %v3061, %v3059
        %v3305 = vpack.c.bf16 %v3064, %v3062
        %v3306 = vpack.c.bf16 %v3065, %v3063
        %v3307 = vpack.c.bf16 %v3068, %v3066
        %v3308 = vpack.c.bf16 %v3069, %v3067
        %v3309 = vpack.c.bf16 %v3072, %v3070
        %v3310 = vpack.c.bf16 %v3073, %v3071
        %v3311 = vpack.c.bf16 %v3076, %v3074
        %v3312 = vpack.c.bf16 %v3077, %v3075
        %v3313 = vpack.c.bf16 %v3080, %v3078
        %v3314 = vpack.c.bf16 %v3081, %v3079
        %v3315 = vpack.c.bf16 %v3084, %v3082
        %v3316 = vpack.c.bf16 %v3085, %v3083
        %v3317 = vpack.c.bf16 %v3088, %v3086
        %v3318 = vpack.c.bf16 %v3089, %v3087
        %v3320 = vsel %vm1674, %v3296, 0
        %v3323 = vsel %vm1674, %v3298, 0
        %v3326 = vsel %vm1674, %v3300, 0
        %v3329 = vsel %vm1674, %v3302, 0
        %v3332 = vsel %vm1674, %v3304, 0
        %v3335 = vsel %vm1674, %v3306, 0
        %v3338 = vsel %vm1674, %v3308, 0
        %v3341 = vsel %vm1674, %v3310, 0
        %v3344 = vsel %vm1674, %v3312, 0
        %v3347 = vsel %vm1674, %v3314, 0
        %v3350 = vsel %vm1674, %v3316, 0
        %v3353 = vsel %vm1674, %v3318, 0
        %3355 = vmatprep.subr.bf16.mxu0 0
        %3356 = vmatpush1.bf16.msra.mxu0 %v3283
        %3357 = vmatprep.subr.bf16.mxu0 0
        %3358 = vmatpush1.bf16.msra.mxu0 %v3284
        %3359 = vmatprep.subr.bf16.mxu0 0
        %3360 = vmatpush1.bf16.msra.mxu0 %v3285
        %3361 = vmatprep.subr.bf16.mxu0 0
        %3362 = vmatpush1.bf16.msra.mxu0 %v3286
        %3363 = vmatprep.subr.bf16.mxu0 0
        %3364 = vmatpush1.bf16.msra.mxu0 %v3287
        %3365 = vmatprep.subr.bf16.mxu0 0
        %3366 = vmatpush1.bf16.msra.mxu0 %v3288
        %3367 = vmatprep.subr.bf16.mxu0 0
        %3368 = vmatpush1.bf16.msra.mxu0 %v3289
        %3369 = vmatprep.subr.bf16.mxu0 0
        %3370 = vmatpush1.bf16.msra.mxu0 %v3290
        %3371 = vmatprep.subr.bf16.mxu0 0
        %3372 = vmatpush1.bf16.msra.mxu0 %v3291
        %3373 = vmatprep.subr.bf16.mxu0 0
        %3374 = vmatpush1.bf16.msra.mxu0 %v3292
        %3375 = vmatprep.subr.bf16.mxu0 0
        %3376 = vmatpush1.bf16.msra.mxu0 %v3293
        %3377 = vmatprep.subr.bf16.mxu0 0
        %3378 = vmatpush1.bf16.msra.mxu0 %v3294
        %3379 = vmatprep.subr.bf16.mxu0 0
        %3380 = vmatpush1.bf16.msra.mxu0 0
        %3381 = vmatprep.subr.bf16.mxu0 0
        %3382 = vmatpush1.bf16.msra.mxu0 0
        %3383 = vmatprep.subr.bf16.mxu0 0
        %3384 = vmatpush1.bf16.msra.mxu0 0
        %3385 = vmatprep.subr.bf16.mxu0 0
        %3386 = vmatpush1.bf16.msra.mxu0 0
        %3387 = vmatprep.mubr.bf16.mxu0 %v3320
        %3388 = vmatmul.mubr.bf16.gmra.mrb[0].mxu0 %v3295
        %v3389 = vpop.f32.mrb[0].mxu0
        %v3390 = vadd.f32 0.0, %v3389
        %v3391 = vpop.f32.mrb[0].mxu0
        %v3392 = vpop.f32.mrb[0].mxu0
        %v3393 = vadd.f32 0.0, %v3392
        %v3394 = vpop.f32.mrb[0].mxu0
        %3395 = vmatprep.mubr.bf16.mxu0 %v3323
        %3396 = vmatmul.mubr.bf16.gmra.mrb[0].mxu0 %v3297
        %v3397 = vpop.f32.mrb[0].mxu0
        %v3398 = vadd.f32 0.0, %v3397
        %v3399 = vpop.f32.mrb[0].mxu0
        %v3400 = vpop.f32.mrb[0].mxu0
        %v3401 = vadd.f32 0.0, %v3400
        %v3402 = vpop.f32.mrb[0].mxu0
        %3403 = vmatprep.mubr.bf16.mxu0 %v3326
        %3404 = vmatmul.mubr.bf16.gmra.mrb[0].mxu0 %v3299
        %v3405 = vpop.f32.mrb[0].mxu0
        %v3406 = vadd.f32 0.0, %v3405
        %v3407 = vpop.f32.mrb[0].mxu0
        %v3408 = vpop.f32.mrb[0].mxu0
        %v3409 = vadd.f32 0.0, %v3408
        %v3410 = vpop.f32.mrb[0].mxu0
        %3411 = vmatprep.mubr.bf16.mxu0 %v3329
        %3412 = vmatmul.mubr.bf16.gmra.mrb[0].mxu0 %v3301
        %v3413 = vpop.f32.mrb[0].mxu0
        %v3414 = vadd.f32 0.0, %v3413
        %v3415 = vpop.f32.mrb[0].mxu0
        %v3416 = vpop.f32.mrb[0].mxu0
        %v3417 = vadd.f32 0.0, %v3416
        %v3418 = vpop.f32.mrb[0].mxu0
        %3419 = vmatprep.mubr.bf16.mxu0 %v3332
        %3420 = vmatmul.mubr.bf16.gmra.mrb[0].mxu0 %v3303
        %v3421 = vpop.f32.mrb[0].mxu0
        %v3422 = vadd.f32 0.0, %v3421
        %v3423 = vpop.f32.mrb[0].mxu0
        %v3424 = vpop.f32.mrb[0].mxu0
        %v3425 = vadd.f32 0.0, %v3424
        %v3426 = vpop.f32.mrb[0].mxu0
        %3427 = vmatprep.mubr.bf16.mxu0 %v3335
        %3428 = vmatmul.mubr.bf16.gmra.mrb[0].mxu0 %v3305
        %v3429 = vpop.f32.mrb[0].mxu0
        %v3430 = vadd.f32 0.0, %v3429
        %v3431 = vpop.f32.mrb[0].mxu0
        %v3432 = vpop.f32.mrb[0].mxu0
        %v3433 = vadd.f32 0.0, %v3432
        %v3434 = vpop.f32.mrb[0].mxu0
        %3435 = vmatprep.mubr.bf16.mxu0 %v3338
        %3436 = vmatmul.mubr.bf16.gmra.mrb[0].mxu0 %v3307
        %v3437 = vpop.f32.mrb[0].mxu0
        %v3438 = vadd.f32 0.0, %v3437
        %v3439 = vpop.f32.mrb[0].mxu0
        %v3440 = vpop.f32.mrb[0].mxu0
        %v3441 = vadd.f32 0.0, %v3440
        %v3442 = vpop.f32.mrb[0].mxu0
        %3443 = vmatprep.mubr.bf16.mxu0 %v3341
        %3444 = vmatmul.mubr.bf16.gmra.mrb[0].mxu0 %v3309
        %v3445 = vpop.f32.mrb[0].mxu0
        %v3446 = vadd.f32 0.0, %v3445
        %v3447 = vpop.f32.mrb[0].mxu0
        %v3448 = vpop.f32.mrb[0].mxu0
        %v3449 = vadd.f32 0.0, %v3448
        %v3450 = vpop.f32.mrb[0].mxu0
        %3451 = vmatprep.mubr.bf16.mxu0 %v3344
        %3452 = vmatmul.mubr.bf16.gmra.mrb[0].mxu0 %v3311
        %v3453 = vpop.f32.mrb[0].mxu0
        %v3454 = vadd.f32 0.0, %v3453
        %v3455 = vpop.f32.mrb[0].mxu0
        %v3456 = vpop.f32.mrb[0].mxu0
        %v3457 = vadd.f32 0.0, %v3456
        %v3458 = vpop.f32.mrb[0].mxu0
        %3459 = vmatprep.mubr.bf16.mxu0 %v3347
        %3460 = vmatmul.mubr.bf16.gmra.mrb[0].mxu0 %v3313
        %v3461 = vpop.f32.mrb[0].mxu0
        %v3462 = vadd.f32 0.0, %v3461
        %v3463 = vpop.f32.mrb[0].mxu0
        %v3464 = vpop.f32.mrb[0].mxu0
        %v3465 = vadd.f32 0.0, %v3464
        %v3466 = vpop.f32.mrb[0].mxu0
        %3467 = vmatprep.mubr.bf16.mxu0 %v3350
        %3468 = vmatmul.mubr.bf16.gmra.mrb[0].mxu0 %v3315
        %v3469 = vpop.f32.mrb[0].mxu0
        %v3470 = vadd.f32 0.0, %v3469
        %v3471 = vpop.f32.mrb[0].mxu0
        %v3472 = vpop.f32.mrb[0].mxu0
        %v3473 = vadd.f32 0.0, %v3472
        %v3474 = vpop.f32.mrb[0].mxu0
        %3475 = vmatprep.mubr.bf16.mxu0 %v3353
        %3476 = vmatmul.mubr.bf16.gmra.mrb[0].mxu0 %v3317
        %v3477 = vpop.f32.mrb[0].mxu0
        %v3478 = vadd.f32 0.0, %v3477
        %v3479 = vpop.f32.mrb[0].mxu0
        %v3480 = vpop.f32.mrb[0].mxu0
        %v3481 = vadd.f32 0.0, %v3480
        %v3482 = vpop.f32.mrb[0].mxu0
        %3483 = vdwg.mxu0
        %v3485 = vsel %vm1674, %v2290, 0
        %v3488 = vsel %vm1674, %v2292, 0
        %v3491 = vsel %vm1674, %v2294, 0
        %v3494 = vsel %vm1674, %v2296, 0
        %v3497 = vsel %vm1674, %v2298, 0
        %v3500 = vsel %vm1674, %v2300, 0
        %v3503 = vsel %vm1674, %v2302, 0
        %v3506 = vsel %vm1674, %v2304, 0
        %v3509 = vsel %vm1674, %v2306, 0
        %v3512 = vsel %vm1674, %v2308, 0
        %v3515 = vsel %vm1674, %v2310, 0
        %v3518 = vsel %vm1674, %v2312, 0
        %3520 = vmatprep.subr.bf16.mxu0 0
        %3521 = vmatpush1.bf16.msra.mxu0 %v2277
        %3522 = vmatprep.subr.bf16.mxu0 0
        %3523 = vmatpush1.bf16.msra.mxu0 %v2278
        %3524 = vmatprep.subr.bf16.mxu0 0
        %3525 = vmatpush1.bf16.msra.mxu0 %v2279
        %3526 = vmatprep.subr.bf16.mxu0 0
        %3527 = vmatpush1.bf16.msra.mxu0 %v2280
        %3528 = vmatprep.subr.bf16.mxu0 0
        %3529 = vmatpush1.bf16.msra.mxu0 %v2281
        %3530 = vmatprep.subr.bf16.mxu0 0
        %3531 = vmatpush1.bf16.msra.mxu0 %v2282
        %3532 = vmatprep.subr.bf16.mxu0 0
        %3533 = vmatpush1.bf16.msra.mxu0 %v2283
        %3534 = vmatprep.subr.bf16.mxu0 0
        %3535 = vmatpush1.bf16.msra.mxu0 %v2284
        %3536 = vmatprep.subr.bf16.mxu0 0
        %3537 = vmatpush1.bf16.msra.mxu0 %v2285
        %3538 = vmatprep.subr.bf16.mxu0 0
        %3539 = vmatpush1.bf16.msra.mxu0 %v2286
        %3540 = vmatprep.subr.bf16.mxu0 0
        %3541 = vmatpush1.bf16.msra.mxu0 %v2287
        %3542 = vmatprep.subr.bf16.mxu0 0
        %3543 = vmatpush1.bf16.msra.mxu0 %v2288
        %3544 = vmatprep.subr.bf16.mxu0 0
        %3545 = vmatpush1.bf16.msra.mxu0 0
        %3546 = vmatprep.subr.bf16.mxu0 0
        %3547 = vmatpush1.bf16.msra.mxu0 0
        %3548 = vmatprep.subr.bf16.mxu0 0
        %3549 = vmatpush1.bf16.msra.mxu0 0
        %3550 = vmatprep.subr.bf16.mxu0 0
        %3551 = vmatpush1.bf16.msra.mxu0 0
        %3552 = vmatprep.mubr.bf16.mxu0 %v3485
        %3553 = vmatmul.mubr.bf16.gmra.mrb[0].mxu0 %v2289
        %v3554 = vpop.f32.mrb[0].mxu0
        %v3555 = vadd.f32 %v3390, %v3554
        %v3556 = vpop.f32.mrb[0].mxu0
        %v3557 = vpop.f32.mrb[0].mxu0
        %v3558 = vadd.f32 %v3393, %v3557
        %v3559 = vpop.f32.mrb[0].mxu0
        %3560 = vmatprep.mubr.bf16.mxu0 %v3488
        %3561 = vmatmul.mubr.bf16.gmra.mrb[0].mxu0 %v2291
        %v3562 = vpop.f32.mrb[0].mxu0
        %v3563 = vadd.f32 %v3398, %v3562
        %v3564 = vpop.f32.mrb[0].mxu0
        %v3565 = vpop.f32.mrb[0].mxu0
        %v3566 = vadd.f32 %v3401, %v3565
        %v3567 = vpop.f32.mrb[0].mxu0
        %3568 = vmatprep.mubr.bf16.mxu0 %v3491
        %3569 = vmatmul.mubr.bf16.gmra.mrb[0].mxu0 %v2293
        %v3570 = vpop.f32.mrb[0].mxu0
        %v3571 = vadd.f32 %v3406, %v3570
        %v3572 = vpop.f32.mrb[0].mxu0
        %v3573 = vpop.f32.mrb[0].mxu0
        %v3574 = vadd.f32 %v3409, %v3573
        %v3575 = vpop.f32.mrb[0].mxu0
        %3576 = vmatprep.mubr.bf16.mxu0 %v3494
        %3577 = vmatmul.mubr.bf16.gmra.mrb[0].mxu0 %v2295
        %v3578 = vpop.f32.mrb[0].mxu0
        %v3579 = vadd.f32 %v3414, %v3578
        %v3580 = vpop.f32.mrb[0].mxu0
        %v3581 = vpop.f32.mrb[0].mxu0
        %v3582 = vadd.f32 %v3417, %v3581
        %v3583 = vpop.f32.mrb[0].mxu0
        %3584 = vmatprep.mubr.bf16.mxu0 %v3497
        %3585 = vmatmul.mubr.bf16.gmra.mrb[0].mxu0 %v2297
        %v3586 = vpop.f32.mrb[0].mxu0
        %v3587 = vadd.f32 %v3422, %v3586
        %v3588 = vpop.f32.mrb[0].mxu0
        %v3589 = vpop.f32.mrb[0].mxu0
        %v3590 = vadd.f32 %v3425, %v3589
        %v3591 = vpop.f32.mrb[0].mxu0
        %3592 = vmatprep.mubr.bf16.mxu0 %v3500
        %3593 = vmatmul.mubr.bf16.gmra.mrb[0].mxu0 %v2299
        %v3594 = vpop.f32.mrb[0].mxu0
        %v3595 = vadd.f32 %v3430, %v3594
        %v3596 = vpop.f32.mrb[0].mxu0
        %v3597 = vpop.f32.mrb[0].mxu0
        %v3598 = vadd.f32 %v3433, %v3597
        %v3599 = vpop.f32.mrb[0].mxu0
        %3600 = vmatprep.mubr.bf16.mxu0 %v3503
        %3601 = vmatmul.mubr.bf16.gmra.mrb[0].mxu0 %v2301
        %v3602 = vpop.f32.mrb[0].mxu0
        %v3603 = vadd.f32 %v3438, %v3602
        %v3604 = vpop.f32.mrb[0].mxu0
        %v3605 = vpop.f32.mrb[0].mxu0
        %v3606 = vadd.f32 %v3441, %v3605
        %v3607 = vpop.f32.mrb[0].mxu0
        %3608 = vmatprep.mubr.bf16.mxu0 %v3506
        %3609 = vmatmul.mubr.bf16.gmra.mrb[0].mxu0 %v2303
        %v3610 = vpop.f32.mrb[0].mxu0
        %v3611 = vadd.f32 %v3446, %v3610
        %v3612 = vpop.f32.mrb[0].mxu0
        %v3613 = vpop.f32.mrb[0].mxu0
        %v3614 = vadd.f32 %v3449, %v3613
        %v3615 = vpop.f32.mrb[0].mxu0
        %3616 = vmatprep.mubr.bf16.mxu0 %v3509
        %3617 = vmatmul.mubr.bf16.gmra.mrb[0].mxu0 %v2305
        %v3618 = vpop.f32.mrb[0].mxu0
        %v3619 = vadd.f32 %v3454, %v3618
        %v3620 = vpop.f32.mrb[0].mxu0
        %v3621 = vpop.f32.mrb[0].mxu0
        %v3622 = vadd.f32 %v3457, %v3621
        %v3623 = vpop.f32.mrb[0].mxu0
        %3624 = vmatprep.mubr.bf16.mxu0 %v3512
        %3625 = vmatmul.mubr.bf16.gmra.mrb[0].mxu0 %v2307
        %v3626 = vpop.f32.mrb[0].mxu0
        %v3627 = vadd.f32 %v3462, %v3626
        %v3628 = vpop.f32.mrb[0].mxu0
        %v3629 = vpop.f32.mrb[0].mxu0
        %v3630 = vadd.f32 %v3465, %v3629
        %v3631 = vpop.f32.mrb[0].mxu0
        %3632 = vmatprep.mubr.bf16.mxu0 %v3515
        %3633 = vmatmul.mubr.bf16.gmra.mrb[0].mxu0 %v2309
        %v3634 = vpop.f32.mrb[0].mxu0
        %v3635 = vadd.f32 %v3470, %v3634
        %v3636 = vpop.f32.mrb[0].mxu0
        %v3637 = vpop.f32.mrb[0].mxu0
        %v3638 = vadd.f32 %v3473, %v3637
        %v3639 = vpop.f32.mrb[0].mxu0
        %3640 = vmatprep.mubr.bf16.mxu0 %v3518
        %3641 = vmatmul.mubr.bf16.gmra.mrb[0].mxu0 %v2311
        %v3642 = vpop.f32.mrb[0].mxu0
        %v3643 = vadd.f32 %v3478, %v3642
        %v3644 = vpop.f32.mrb[0].mxu0
        %v3645 = vpop.f32.mrb[0].mxu0
        %v3646 = vadd.f32 %v3481, %v3645
        %v3647 = vpop.f32.mrb[0].mxu0
        %3648 = vdwg.mxu0
        %3649 = vrot.lane.b32.xlu0 %v1256, 112
        %v3650 = vpop.permute.xlu0 %3649
        %3651 = vrot.lane.b32.xlu0 %v1257, 112
        %v3652 = vpop.permute.xlu0 %3651
        %3653 = vrot.lane.b32.xlu0 %v1258, 112
        %v3654 = vpop.permute.xlu0 %3653
        %3655 = vrot.lane.b32.xlu0 %v1259, 112
        %v3656 = vpop.permute.xlu0 %3655
        %3657 = vrot.lane.b32.xlu0 %v1260, 112
        %v3658 = vpop.permute.xlu0 %3657
        %3659 = vrot.lane.b32.xlu0 %v1261, 112
        %v3660 = vpop.permute.xlu0 %3659
        %3661 = vrot.lane.b32.xlu0 %v1262, 112
        %v3662 = vpop.permute.xlu0 %3661
        %3663 = vrot.lane.b32.xlu0 %v1263, 112
        %v3664 = vpop.permute.xlu0 %3663
        %3665 = vrot.lane.b32.xlu0 %v1264, 112
        %v3666 = vpop.permute.xlu0 %3665
        %3667 = vrot.lane.b32.xlu0 %v1265, 112
        %v3668 = vpop.permute.xlu0 %3667
        %3669 = vrot.lane.b32.xlu0 %v1266, 112
        %v3670 = vpop.permute.xlu0 %3669
        %3671 = vrot.lane.b32.xlu0 %v1267, 112
        %v3672 = vpop.permute.xlu0 %3671
        %3673 = vrot.lane.b32.xlu0 %v1256, 80
        %v3674 = vpop.permute.xlu0 %3673
        %3675 = vrot.lane.b32.xlu0 %v1257, 80
        %v3676 = vpop.permute.xlu0 %3675
        %3677 = vrot.lane.b32.xlu0 %v1258, 80
        %v3678 = vpop.permute.xlu0 %3677
        %3679 = vrot.lane.b32.xlu0 %v1259, 80
        %v3680 = vpop.permute.xlu0 %3679
        %3681 = vrot.lane.b32.xlu0 %v1260, 80
        %v3682 = vpop.permute.xlu0 %3681
        %3683 = vrot.lane.b32.xlu0 %v1261, 80
        %v3684 = vpop.permute.xlu0 %3683
        %3685 = vrot.lane.b32.xlu0 %v1262, 80
        %v3686 = vpop.permute.xlu0 %3685
        %3687 = vrot.lane.b32.xlu0 %v1263, 80
        %v3688 = vpop.permute.xlu0 %3687
        %3689 = vrot.lane.b32.xlu0 %v1264, 80
        %v3690 = vpop.permute.xlu0 %3689
        %3691 = vrot.lane.b32.xlu0 %v1265, 80
        %v3692 = vpop.permute.xlu0 %3691
        %3693 = vrot.lane.b32.xlu0 %v1266, 80
        %v3694 = vpop.permute.xlu0 %3693
        %3695 = vrot.lane.b32.xlu0 %v1267, 80
        %v3696 = vpop.permute.xlu0 %3695
        %v3698 = vsel %vm1352, %v3650, 0
        %v3701 = vsel %vm1352, %v3652, 0
        %v3704 = vsel %vm1352, %v3654, 0
        %v3707 = vsel %vm1352, %v3656, 0
        %v3710 = vsel %vm1352, %v3658, 0
        %v3713 = vsel %vm1352, %v3660, 0
        %v3716 = vsel %vm1352, %v3662, 0
        %v3719 = vsel %vm1352, %v3664, 0
        %v3722 = vsel %vm1352, %v3666, 0
        %v3725 = vsel %vm1352, %v3668, 0
        %v3728 = vsel %vm1352, %v3670, 0
        %v3731 = vsel %vm1352, %v3672, 0
        %v3734 = vsel %vm1352, %v3674, 0
        %v3737 = vsel %vm1352, %v3676, 0
        %v3740 = vsel %vm1352, %v3678, 0
        %v3743 = vsel %vm1352, %v3680, 0
        %v3746 = vsel %vm1352, %v3682, 0
        %v3749 = vsel %vm1352, %v3684, 0
        %v3752 = vsel %vm1352, %v3686, 0
        %v3755 = vsel %vm1352, %v3688, 0
        %v3758 = vsel %vm1352, %v3690, 0
        %v3761 = vsel %vm1352, %v3692, 0
        %v3764 = vsel %vm1352, %v3694, 0
        %v3767 = vsel %vm1352, %v3696, 0
        %3769 = vmatprep.subr.bf16.mxu0 0
        %3770 = vmatpush1.bf16.xpose.msra.mxu0 %v3734
        %3771 = vmatprep.subr.bf16.mxu0 0
        %3772 = vmatpush1.bf16.xpose.msra.mxu0 %v3737
        %3773 = vmatprep.subr.bf16.mxu0 0
        %3774 = vmatpush1.bf16.xpose.msra.mxu0 %v3740
        %3775 = vmatprep.subr.bf16.mxu0 0
        %3776 = vmatpush1.bf16.xpose.msra.mxu0 %v3743
        %3777 = vmatprep.subr.bf16.mxu0 0
        %3778 = vmatpush1.bf16.xpose.msra.mxu0 %v3746
        %3779 = vmatprep.subr.bf16.mxu0 0
        %3780 = vmatpush1.bf16.xpose.msra.mxu0 %v3749
        %3781 = vmatprep.subr.bf16.mxu0 0
        %3782 = vmatpush1.bf16.xpose.msra.mxu0 %v3752
        %3783 = vmatprep.subr.bf16.mxu0 0
        %3784 = vmatpush1.bf16.xpose.msra.mxu0 %v3755
        %3785 = vmatprep.subr.bf16.mxu0 0
        %3786 = vmatpush1.bf16.xpose.msra.mxu0 %v3758
        %3787 = vmatprep.subr.bf16.mxu0 0
        %3788 = vmatpush1.bf16.xpose.msra.mxu0 %v3761
        %3789 = vmatprep.subr.bf16.mxu0 0
        %3790 = vmatpush1.bf16.xpose.msra.mxu0 %v3764
        %3791 = vmatprep.subr.bf16.mxu0 0
        %3792 = vmatpush1.bf16.xpose.msra.mxu0 %v3767
        %3793 = vmatprep.subr.bf16.mxu0 0
        %3794 = vmatpush1.bf16.xpose.msra.mxu0 0
        %3795 = vmatprep.subr.bf16.mxu0 0
        %3796 = vmatpush1.bf16.xpose.msra.mxu0 0
        %3797 = vmatprep.subr.bf16.mxu0 0
        %3798 = vmatpush1.bf16.xpose.msra.mxu0 0
        %3799 = vmatprep.subr.bf16.mxu0 0
        %3800 = vmatpush1.bf16.xpose.msra.mxu0 0
        %3801 = vmatprep.mubr.bf16.mxu0 0
        %3802 = vmatmul.mubr.bf16.gmra.mrb[0].mxu0 %v3698
        %v3803 = vpop.f32.mrb[0].mxu0
        %v3804 = vadd.f32 0.0, %v3803
        %v3805 = vpop.f32.mrb[0].mxu0
        %v3806 = vadd.f32 0.0, %v3805
        %v3807 = vpop.f32.mrb[0].mxu0
        %v3808 = vadd.f32 0.0, %v3807
        %v3809 = vpop.f32.mrb[0].mxu0
        %v3810 = vadd.f32 0.0, %v3809
        %3811 = vmatprep.mubr.bf16.mxu0 0
        %3812 = vmatmul.mubr.bf16.gmra.mrb[0].mxu0 %v3701
        %v3813 = vpop.f32.mrb[0].mxu0
        %v3814 = vadd.f32 0.0, %v3813
        %v3815 = vpop.f32.mrb[0].mxu0
        %v3816 = vadd.f32 0.0, %v3815
        %v3817 = vpop.f32.mrb[0].mxu0
        %v3818 = vadd.f32 0.0, %v3817
        %v3819 = vpop.f32.mrb[0].mxu0
        %v3820 = vadd.f32 0.0, %v3819
        %3821 = vmatprep.mubr.bf16.mxu0 0
        %3822 = vmatmul.mubr.bf16.gmra.mrb[0].mxu0 %v3704
        %v3823 = vpop.f32.mrb[0].mxu0
        %v3824 = vadd.f32 0.0, %v3823
        %v3825 = vpop.f32.mrb[0].mxu0
        %v3826 = vadd.f32 0.0, %v3825
        %v3827 = vpop.f32.mrb[0].mxu0
        %v3828 = vadd.f32 0.0, %v3827
        %v3829 = vpop.f32.mrb[0].mxu0
        %v3830 = vadd.f32 0.0, %v3829
        %3831 = vmatprep.mubr.bf16.mxu0 0
        %3832 = vmatmul.mubr.bf16.gmra.mrb[0].mxu0 %v3707
        %v3833 = vpop.f32.mrb[0].mxu0
        %v3834 = vadd.f32 0.0, %v3833
        %v3835 = vpop.f32.mrb[0].mxu0
        %v3836 = vadd.f32 0.0, %v3835
        %v3837 = vpop.f32.mrb[0].mxu0
        %v3838 = vadd.f32 0.0, %v3837
        %v3839 = vpop.f32.mrb[0].mxu0
        %v3840 = vadd.f32 0.0, %v3839
        %3841 = vmatprep.mubr.bf16.mxu0 0
        %3842 = vmatmul.mubr.bf16.gmra.mrb[0].mxu0 %v3710
        %v3843 = vpop.f32.mrb[0].mxu0
        %v3844 = vadd.f32 0.0, %v3843
        %v3845 = vpop.f32.mrb[0].mxu0
        %v3846 = vadd.f32 0.0, %v3845
        %v3847 = vpop.f32.mrb[0].mxu0
        %v3848 = vadd.f32 0.0, %v3847
        %v3849 = vpop.f32.mrb[0].mxu0
        %v3850 = vadd.f32 0.0, %v3849
        %3851 = vmatprep.mubr.bf16.mxu0 0
        %3852 = vmatmul.mubr.bf16.gmra.mrb[0].mxu0 %v3713
        %v3853 = vpop.f32.mrb[0].mxu0
        %v3854 = vadd.f32 0.0, %v3853
        %v3855 = vpop.f32.mrb[0].mxu0
        %v3856 = vadd.f32 0.0, %v3855
        %v3857 = vpop.f32.mrb[0].mxu0
        %v3858 = vadd.f32 0.0, %v3857
        %v3859 = vpop.f32.mrb[0].mxu0
        %v3860 = vadd.f32 0.0, %v3859
        %3861 = vmatprep.mubr.bf16.mxu0 0
        %3862 = vmatmul.mubr.bf16.gmra.mrb[0].mxu0 %v3716
        %v3863 = vpop.f32.mrb[0].mxu0
        %v3864 = vadd.f32 0.0, %v3863
        %v3865 = vpop.f32.mrb[0].mxu0
        %v3866 = vadd.f32 0.0, %v3865
        %v3867 = vpop.f32.mrb[0].mxu0
        %v3868 = vadd.f32 0.0, %v3867
        %v3869 = vpop.f32.mrb[0].mxu0
        %v3870 = vadd.f32 0.0, %v3869
        %3871 = vmatprep.mubr.bf16.mxu0 0
        %3872 = vmatmul.mubr.bf16.gmra.mrb[0].mxu0 %v3719
        %v3873 = vpop.f32.mrb[0].mxu0
        %v3874 = vadd.f32 0.0, %v3873
        %v3875 = vpop.f32.mrb[0].mxu0
        %v3876 = vadd.f32 0.0, %v3875
        %v3877 = vpop.f32.mrb[0].mxu0
        %v3878 = vadd.f32 0.0, %v3877
        %v3879 = vpop.f32.mrb[0].mxu0
        %v3880 = vadd.f32 0.0, %v3879
        %3881 = vmatprep.mubr.bf16.mxu0 0
        %3882 = vmatmul.mubr.bf16.gmra.mrb[0].mxu0 %v3722
        %v3883 = vpop.f32.mrb[0].mxu0
        %v3884 = vadd.f32 0.0, %v3883
        %v3885 = vpop.f32.mrb[0].mxu0
        %v3886 = vadd.f32 0.0, %v3885
        %v3887 = vpop.f32.mrb[0].mxu0
        %v3888 = vadd.f32 0.0, %v3887
        %v3889 = vpop.f32.mrb[0].mxu0
        %v3890 = vadd.f32 0.0, %v3889
        %3891 = vmatprep.mubr.bf16.mxu0 0
        %3892 = vmatmul.mubr.bf16.gmra.mrb[0].mxu0 %v3725
        %v3893 = vpop.f32.mrb[0].mxu0
        %v3894 = vadd.f32 0.0, %v3893
        %v3895 = vpop.f32.mrb[0].mxu0
        %v3896 = vadd.f32 0.0, %v3895
        %v3897 = vpop.f32.mrb[0].mxu0
        %v3898 = vadd.f32 0.0, %v3897
        %v3899 = vpop.f32.mrb[0].mxu0
        %v3900 = vadd.f32 0.0, %v3899
        %3901 = vmatprep.mubr.bf16.mxu0 0
        %3902 = vmatmul.mubr.bf16.gmra.mrb[0].mxu0 %v3728
        %v3903 = vpop.f32.mrb[0].mxu0
        %v3904 = vadd.f32 0.0, %v3903
        %v3905 = vpop.f32.mrb[0].mxu0
        %v3906 = vadd.f32 0.0, %v3905
        %v3907 = vpop.f32.mrb[0].mxu0
        %v3908 = vadd.f32 0.0, %v3907
        %v3909 = vpop.f32.mrb[0].mxu0
        %v3910 = vadd.f32 0.0, %v3909
        %3911 = vmatprep.mubr.bf16.mxu0 0
        %3912 = vmatmul.mubr.bf16.gmra.mrb[0].mxu0 %v3731
        %v3913 = vpop.f32.mrb[0].mxu0
        %v3914 = vadd.f32 0.0, %v3913
        %v3915 = vpop.f32.mrb[0].mxu0
        %v3916 = vadd.f32 0.0, %v3915
        %v3917 = vpop.f32.mrb[0].mxu0
        %v3918 = vadd.f32 0.0, %v3917
        %v3919 = vpop.f32.mrb[0].mxu0
        %v3920 = vadd.f32 0.0, %v3919
        %3921 = vdwg.mxu0
        %v3922 = vmul.f32 %v3804, 0.35355338
        %v3923 = vmul.f32 %v3806, 0.35355338
        %v3924 = vmul.f32 %v3808, 0.35355338
        %v3925 = vmul.f32 %v3810, 0.35355338
        %v3926 = vmul.f32 %v3814, 0.35355338
        %v3927 = vmul.f32 %v3816, 0.35355338
        %v3928 = vmul.f32 %v3818, 0.35355338
        %v3929 = vmul.f32 %v3820, 0.35355338
        %v3930 = vmul.f32 %v3824, 0.35355338
        %v3931 = vmul.f32 %v3826, 0.35355338
        %v3932 = vmul.f32 %v3828, 0.35355338
        %v3933 = vmul.f32 %v3830, 0.35355338
        %v3934 = vmul.f32 %v3834, 0.35355338
        %v3935 = vmul.f32 %v3836, 0.35355338
        %v3936 = vmul.f32 %v3838, 0.35355338
        %v3937 = vmul.f32 %v3840, 0.35355338
        %v3938 = vmul.f32 %v3844, 0.35355338
        %v3939 = vmul.f32 %v3846, 0.35355338
        %v3940 = vmul.f32 %v3848, 0.35355338
        %v3941 = vmul.f32 %v3850, 0.35355338
        %v3942 = vmul.f32 %v3854, 0.35355338
        %v3943 = vmul.f32 %v3856, 0.35355338
        %v3944 = vmul.f32 %v3858, 0.35355338
        %v3945 = vmul.f32 %v3860, 0.35355338
        %v3946 = vmul.f32 %v3864, 0.35355338
        %v3947 = vmul.f32 %v3866, 0.35355338
        %v3948 = vmul.f32 %v3868, 0.35355338
        %v3949 = vmul.f32 %v3870, 0.35355338
        %v3950 = vmul.f32 %v3874, 0.35355338
        %v3951 = vmul.f32 %v3876, 0.35355338
        %v3952 = vmul.f32 %v3878, 0.35355338
        %v3953 = vmul.f32 %v3880, 0.35355338
        %v3954 = vmul.f32 %v3884, 0.35355338
        %v3955 = vmul.f32 %v3886, 0.35355338
        %v3956 = vmul.f32 %v3888, 0.35355338
        %v3957 = vmul.f32 %v3890, 0.35355338
        %v3958 = vmul.f32 %v3894, 0.35355338
        %v3959 = vmul.f32 %v3896, 0.35355338
        %v3960 = vmul.f32 %v3898, 0.35355338
        %v3961 = vmul.f32 %v3900, 0.35355338
        %v3962 = vmul.f32 %v3904, 0.35355338
        %v3963 = vmul.f32 %v3906, 0.35355338
        %v3964 = vmul.f32 %v3908, 0.35355338
        %v3965 = vmul.f32 %v3910, 0.35355338
        %v3966 = vmul.f32 %v3914, 0.35355338
        %v3967 = vmul.f32 %v3916, 0.35355338
        %v3968 = vmul.f32 %v3918, 0.35355338
        %v3969 = vmul.f32 %v3920, 0.35355338
        %v3970 = vadd.f32 %v3922, %v1268
        %v3971 = vadd.f32 %v3923, %v1269
        %v3972 = vadd.f32 %v3924, %v1270
        %v3973 = vadd.f32 %v3925, %v1271
        %v3974 = vadd.f32 %v3926, %v1272
        %v3975 = vadd.f32 %v3927, %v1273
        %v3976 = vadd.f32 %v3928, %v1274
        %v3977 = vadd.f32 %v3929, %v1275
        %v3978 = vadd.f32 %v3930, %v1276
        %v3979 = vadd.f32 %v3931, %v1277
        %v3980 = vadd.f32 %v3932, %v1278
        %v3981 = vadd.f32 %v3933, %v1279
        %v3982 = vadd.f32 %v3934, %v1280
        %v3983 = vadd.f32 %v3935, %v1281
        %v3984 = vadd.f32 %v3936, %v1282
        %v3985 = vadd.f32 %v3937, %v1283
        %v3986 = vadd.f32 %v3938, %v1284
        %v3987 = vadd.f32 %v3939, %v1285
        %v3988 = vadd.f32 %v3940, %v1286
        %v3989 = vadd.f32 %v3941, %v1287
        %v3990 = vadd.f32 %v3942, %v1288
        %v3991 = vadd.f32 %v3943, %v1289
        %v3992 = vadd.f32 %v3944, %v1290
        %v3993 = vadd.f32 %v3945, %v1291
        %v3994 = vadd.f32 %v3946, %v1292
        %v3995 = vadd.f32 %v3947, %v1293
        %v3996 = vadd.f32 %v3948, %v1294
        %v3997 = vadd.f32 %v3949, %v1295
        %v3998 = vadd.f32 %v3950, %v1296
        %v3999 = vadd.f32 %v3951, %v1297
        %v4000 = vadd.f32 %v3952, %v1298
        %v4001 = vadd.f32 %v3953, %v1299
        %v4002 = vadd.f32 %v3954, %v1300
        %v4003 = vadd.f32 %v3955, %v1301
        %v4004 = vadd.f32 %v3956, %v1302
        %v4005 = vadd.f32 %v3957, %v1303
        %v4006 = vadd.f32 %v3958, %v1304
        %v4007 = vadd.f32 %v3959, %v1305
        %v4008 = vadd.f32 %v3960, %v1306
        %v4009 = vadd.f32 %v3961, %v1307
        %v4010 = vadd.f32 %v3962, %v1308
        %v4011 = vadd.f32 %v3963, %v1309
        %v4012 = vadd.f32 %v3964, %v1310
        %v4013 = vadd.f32 %v3965, %v1311
        %v4014 = vadd.f32 %v3966, %v1312
        %v4015 = vadd.f32 %v3967, %v1313
        %v4016 = vadd.f32 %v3968, %v1314
        %v4017 = vadd.f32 %v3969, %v1315
        %v4018 = vsel %vm1674, %v3971, -inf
        %v4019 = vmax.f32 %v3970, %v4018
        %4020 = vmax.xlane.f32.xlu0 %v4019
        %v4021 = vpop.xlane.xlu0 %4020
        %v4022 = vsel %vm1674, %v3973, -inf
        %v4023 = vmax.f32 %v3972, %v4022
        %4024 = vmax.xlane.f32.xlu0 %v4023
        %v4025 = vpop.xlane.xlu0 %4024
        %v4026 = vsel %vm1674, %v3975, -inf
        %v4027 = vmax.f32 %v3974, %v4026
        %4028 = vmax.xlane.f32.xlu0 %v4027
        %v4029 = vpop.xlane.xlu0 %4028
        %v4030 = vsel %vm1674, %v3977, -inf
        %v4031 = vmax.f32 %v3976, %v4030
        %4032 = vmax.xlane.f32.xlu0 %v4031
        %v4033 = vpop.xlane.xlu0 %4032
        %v4034 = vsel %vm1674, %v3979, -inf
        %v4035 = vmax.f32 %v3978, %v4034
        %4036 = vmax.xlane.f32.xlu0 %v4035
        %v4037 = vpop.xlane.xlu0 %4036
        %v4038 = vsel %vm1674, %v3981, -inf
        %v4039 = vmax.f32 %v3980, %v4038
        %4040 = vmax.xlane.f32.xlu0 %v4039
        %v4041 = vpop.xlane.xlu0 %4040
        %v4042 = vsel %vm1674, %v3983, -inf
        %v4043 = vmax.f32 %v3982, %v4042
        %4044 = vmax.xlane.f32.xlu0 %v4043
        %v4045 = vpop.xlane.xlu0 %4044
        %v4046 = vsel %vm1674, %v3985, -inf
        %v4047 = vmax.f32 %v3984, %v4046
        %4048 = vmax.xlane.f32.xlu0 %v4047
        %v4049 = vpop.xlane.xlu0 %4048
        %v4050 = vsel %vm1674, %v3987, -inf
        %v4051 = vmax.f32 %v3986, %v4050
        %4052 = vmax.xlane.f32.xlu0 %v4051
        %v4053 = vpop.xlane.xlu0 %4052
        %v4054 = vsel %vm1674, %v3989, -inf
        %v4055 = vmax.f32 %v3988, %v4054
        %4056 = vmax.xlane.f32.xlu0 %v4055
        %v4057 = vpop.xlane.xlu0 %4056
        %v4058 = vsel %vm1674, %v3991, -inf
        %v4059 = vmax.f32 %v3990, %v4058
        %4060 = vmax.xlane.f32.xlu0 %v4059
        %v4061 = vpop.xlane.xlu0 %4060
        %v4062 = vsel %vm1674, %v3993, -inf
        %v4063 = vmax.f32 %v3992, %v4062
        %4064 = vmax.xlane.f32.xlu0 %v4063
        %v4065 = vpop.xlane.xlu0 %4064
        %v4066 = vsel %vm1674, %v3995, -inf
        %v4067 = vmax.f32 %v3994, %v4066
        %4068 = vmax.xlane.f32.xlu0 %v4067
        %v4069 = vpop.xlane.xlu0 %4068
        %v4070 = vsel %vm1674, %v3997, -inf
        %v4071 = vmax.f32 %v3996, %v4070
        %4072 = vmax.xlane.f32.xlu0 %v4071
        %v4073 = vpop.xlane.xlu0 %4072
        %v4074 = vsel %vm1674, %v3999, -inf
        %v4075 = vmax.f32 %v3998, %v4074
        %4076 = vmax.xlane.f32.xlu0 %v4075
        %v4077 = vpop.xlane.xlu0 %4076
        %v4078 = vsel %vm1674, %v4001, -inf
        %v4079 = vmax.f32 %v4000, %v4078
        %4080 = vmax.xlane.f32.xlu0 %v4079
        %v4081 = vpop.xlane.xlu0 %4080
        %v4082 = vsel %vm1674, %v4003, -inf
        %v4083 = vmax.f32 %v4002, %v4082
        %4084 = vmax.xlane.f32.xlu0 %v4083
        %v4085 = vpop.xlane.xlu0 %4084
        %v4086 = vsel %vm1674, %v4005, -inf
        %v4087 = vmax.f32 %v4004, %v4086
        %4088 = vmax.xlane.f32.xlu0 %v4087
        %v4089 = vpop.xlane.xlu0 %4088
        %v4090 = vsel %vm1674, %v4007, -inf
        %v4091 = vmax.f32 %v4006, %v4090
        %4092 = vmax.xlane.f32.xlu0 %v4091
        %v4093 = vpop.xlane.xlu0 %4092
        %v4094 = vsel %vm1674, %v4009, -inf
        %v4095 = vmax.f32 %v4008, %v4094
        %4096 = vmax.xlane.f32.xlu0 %v4095
        %v4097 = vpop.xlane.xlu0 %4096
        %v4098 = vsel %vm1674, %v4011, -inf
        %v4099 = vmax.f32 %v4010, %v4098
        %4100 = vmax.xlane.f32.xlu0 %v4099
        %v4101 = vpop.xlane.xlu0 %4100
        %v4102 = vsel %vm1674, %v4013, -inf
        %v4103 = vmax.f32 %v4012, %v4102
        %4104 = vmax.xlane.f32.xlu0 %v4103
        %v4105 = vpop.xlane.xlu0 %4104
        %v4106 = vsel %vm1674, %v4015, -inf
        %v4107 = vmax.f32 %v4014, %v4106
        %4108 = vmax.xlane.f32.xlu0 %v4107
        %v4109 = vpop.xlane.xlu0 %4108
        %v4110 = vsel %vm1674, %v4017, -inf
        %v4111 = vmax.f32 %v4016, %v4110
        %4112 = vmax.xlane.f32.xlu0 %v4111
        %v4113 = vpop.xlane.xlu0 %4112
        %v4114 = vsub.f32 %v3970, %v4021
        %v4115 = vsub.f32 %v3971, %v4021
        %v4116 = vsub.f32 %v3972, %v4025
        %v4117 = vsub.f32 %v3973, %v4025
        %v4118 = vsub.f32 %v3974, %v4029
        %v4119 = vsub.f32 %v3975, %v4029
        %v4120 = vsub.f32 %v3976, %v4033
        %v4121 = vsub.f32 %v3977, %v4033
        %v4122 = vsub.f32 %v3978, %v4037
        %v4123 = vsub.f32 %v3979, %v4037
        %v4124 = vsub.f32 %v3980, %v4041
        %v4125 = vsub.f32 %v3981, %v4041
        %v4126 = vsub.f32 %v3982, %v4045
        %v4127 = vsub.f32 %v3983, %v4045
        %v4128 = vsub.f32 %v3984, %v4049
        %v4129 = vsub.f32 %v3985, %v4049
        %v4130 = vsub.f32 %v3986, %v4053
        %v4131 = vsub.f32 %v3987, %v4053
        %v4132 = vsub.f32 %v3988, %v4057
        %v4133 = vsub.f32 %v3989, %v4057
        %v4134 = vsub.f32 %v3990, %v4061
        %v4135 = vsub.f32 %v3991, %v4061
        %v4136 = vsub.f32 %v3992, %v4065
        %v4137 = vsub.f32 %v3993, %v4065
        %v4138 = vsub.f32 %v3994, %v4069
        %v4139 = vsub.f32 %v3995, %v4069
        %v4140 = vsub.f32 %v3996, %v4073
        %v4141 = vsub.f32 %v3997, %v4073
        %v4142 = vsub.f32 %v3998, %v4077
        %v4143 = vsub.f32 %v3999, %v4077
        %v4144 = vsub.f32 %v4000, %v4081
        %v4145 = vsub.f32 %v4001, %v4081
        %v4146 = vsub.f32 %v4002, %v4085
        %v4147 = vsub.f32 %v4003, %v4085
        %v4148 = vsub.f32 %v4004, %v4089
        %v4149 = vsub.f32 %v4005, %v4089
        %v4150 = vsub.f32 %v4006, %v4093
        %v4151 = vsub.f32 %v4007, %v4093
        %v4152 = vsub.f32 %v4008, %v4097
        %v4153 = vsub.f32 %v4009, %v4097
        %v4154 = vsub.f32 %v4010, %v4101
        %v4155 = vsub.f32 %v4011, %v4101
        %v4156 = vsub.f32 %v4012, %v4105
        %v4157 = vsub.f32 %v4013, %v4105
        %v4158 = vsub.f32 %v4014, %v4109
        %v4159 = vsub.f32 %v4015, %v4109
        %v4160 = vsub.f32 %v4016, %v4113
        %v4161 = vsub.f32 %v4017, %v4113
        %v4162 = vmul.f32 %v4114, 1.442695
        %v4163 = vpow.pop %v4162
        %v4164 = vmul.f32 %v4115, 1.442695
        %v4165 = vpow.pop %v4164
        %v4166 = vmul.f32 %v4116, 1.442695
        %v4167 = vpow.pop %v4166
        %v4168 = vmul.f32 %v4117, 1.442695
        %v4169 = vpow.pop %v4168
        %v4170 = vmul.f32 %v4118, 1.442695
        %v4171 = vpow.pop %v4170
        %v4172 = vmul.f32 %v4119, 1.442695
        %v4173 = vpow.pop %v4172
        %v4174 = vmul.f32 %v4120, 1.442695
        %v4175 = vpow.pop %v4174
        %v4176 = vmul.f32 %v4121, 1.442695
        %v4177 = vpow.pop %v4176
        %v4178 = vmul.f32 %v4122, 1.442695
        %v4179 = vpow.pop %v4178
        %v4180 = vmul.f32 %v4123, 1.442695
        %v4181 = vpow.pop %v4180
        %v4182 = vmul.f32 %v4124, 1.442695
        %v4183 = vpow.pop %v4182
        %v4184 = vmul.f32 %v4125, 1.442695
        %v4185 = vpow.pop %v4184
        %v4186 = vmul.f32 %v4126, 1.442695
        %v4187 = vpow.pop %v4186
        %v4188 = vmul.f32 %v4127, 1.442695
        %v4189 = vpow.pop %v4188
        %v4190 = vmul.f32 %v4128, 1.442695
        %v4191 = vpow.pop %v4190
        %v4192 = vmul.f32 %v4129, 1.442695
        %v4193 = vpow.pop %v4192
        %v4194 = vmul.f32 %v4130, 1.442695
        %v4195 = vpow.pop %v4194
        %v4196 = vmul.f32 %v4131, 1.442695
        %v4197 = vpow.pop %v4196
        %v4198 = vmul.f32 %v4132, 1.442695
        %v4199 = vpow.pop %v4198
        %v4200 = vmul.f32 %v4133, 1.442695
        %v4201 = vpow.pop %v4200
        %v4202 = vmul.f32 %v4134, 1.442695
        %v4203 = vpow.pop %v4202
        %v4204 = vmul.f32 %v4135, 1.442695
        %v4205 = vpow.pop %v4204
        %v4206 = vmul.f32 %v4136, 1.442695
        %v4207 = vpow.pop %v4206
        %v4208 = vmul.f32 %v4137, 1.442695
        %v4209 = vpow.pop %v4208
        %v4210 = vmul.f32 %v4138, 1.442695
        %v4211 = vpow.pop %v4210
        %v4212 = vmul.f32 %v4139, 1.442695
        %v4213 = vpow.pop %v4212
        %v4214 = vmul.f32 %v4140, 1.442695
        %v4215 = vpow.pop %v4214
        %v4216 = vmul.f32 %v4141, 1.442695
        %v4217 = vpow.pop %v4216
        %v4218 = vmul.f32 %v4142, 1.442695
        %v4219 = vpow.pop %v4218
        %v4220 = vmul.f32 %v4143, 1.442695
        %v4221 = vpow.pop %v4220
        %v4222 = vmul.f32 %v4144, 1.442695
        %v4223 = vpow.pop %v4222
        %v4224 = vmul.f32 %v4145, 1.442695
        %v4225 = vpow.pop %v4224
        %v4226 = vmul.f32 %v4146, 1.442695
        %v4227 = vpow.pop %v4226
        %v4228 = vmul.f32 %v4147, 1.442695
        %v4229 = vpow.pop %v4228
        %v4230 = vmul.f32 %v4148, 1.442695
        %v4231 = vpow.pop %v4230
        %v4232 = vmul.f32 %v4149, 1.442695
        %v4233 = vpow.pop %v4232
        %v4234 = vmul.f32 %v4150, 1.442695
        %v4235 = vpow.pop %v4234
        %v4236 = vmul.f32 %v4151, 1.442695
        %v4237 = vpow.pop %v4236
        %v4238 = vmul.f32 %v4152, 1.442695
        %v4239 = vpow.pop %v4238
        %v4240 = vmul.f32 %v4153, 1.442695
        %v4241 = vpow.pop %v4240
        %v4242 = vmul.f32 %v4154, 1.442695
        %v4243 = vpow.pop %v4242
        %v4244 = vmul.f32 %v4155, 1.442695
        %v4245 = vpow.pop %v4244
        %v4246 = vmul.f32 %v4156, 1.442695
        %v4247 = vpow.pop %v4246
        %v4248 = vmul.f32 %v4157, 1.442695
        %v4249 = vpow.pop %v4248
        %v4250 = vmul.f32 %v4158, 1.442695
        %v4251 = vpow.pop %v4250
        %v4252 = vmul.f32 %v4159, 1.442695
        %v4253 = vpow.pop %v4252
        %v4254 = vmul.f32 %v4160, 1.442695
        %v4255 = vpow.pop %v4254
        %v4256 = vmul.f32 %v4161, 1.442695
        %v4257 = vpow.pop %v4256
        %v4258 = vsel %vm1674, %v4165, 0.0
        %v4259 = vadd.f32 %v4163, %v4258
        %4260 = vadd.xlane.f32.xlu0 %v4259
        %v4261 = vpop.xlane.xlu0 %4260
        %v4262 = vsel %vm1674, %v4169, 0.0
        %v4263 = vadd.f32 %v4167, %v4262
        %4264 = vadd.xlane.f32.xlu0 %v4263
        %v4265 = vpop.xlane.xlu0 %4264
        %v4266 = vsel %vm1674, %v4173, 0.0
        %v4267 = vadd.f32 %v4171, %v4266
        %4268 = vadd.xlane.f32.xlu0 %v4267
        %v4269 = vpop.xlane.xlu0 %4268
        %v4270 = vsel %vm1674, %v4177, 0.0
        %v4271 = vadd.f32 %v4175, %v4270
        %4272 = vadd.xlane.f32.xlu0 %v4271
        %v4273 = vpop.xlane.xlu0 %4272
        %v4274 = vsel %vm1674, %v4181, 0.0
        %v4275 = vadd.f32 %v4179, %v4274
        %4276 = vadd.xlane.f32.xlu0 %v4275
        %v4277 = vpop.xlane.xlu0 %4276
        %v4278 = vsel %vm1674, %v4185, 0.0
        %v4279 = vadd.f32 %v4183, %v4278
        %4280 = vadd.xlane.f32.xlu0 %v4279
        %v4281 = vpop.xlane.xlu0 %4280
        %v4282 = vsel %vm1674, %v4189, 0.0
        %v4283 = vadd.f32 %v4187, %v4282
        %4284 = vadd.xlane.f32.xlu0 %v4283
        %v4285 = vpop.xlane.xlu0 %4284
        %v4286 = vsel %vm1674, %v4193, 0.0
        %v4287 = vadd.f32 %v4191, %v4286
        %4288 = vadd.xlane.f32.xlu0 %v4287
        %v4289 = vpop.xlane.xlu0 %4288
        %v4290 = vsel %vm1674, %v4197, 0.0
        %v4291 = vadd.f32 %v4195, %v4290
        %4292 = vadd.xlane.f32.xlu0 %v4291
        %v4293 = vpop.xlane.xlu0 %4292
        %v4294 = vsel %vm1674, %v4201, 0.0
        %v4295 = vadd.f32 %v4199, %v4294
        %4296 = vadd.xlane.f32.xlu0 %v4295
        %v4297 = vpop.xlane.xlu0 %4296
        %v4298 = vsel %vm1674, %v4205, 0.0
        %v4299 = vadd.f32 %v4203, %v4298
        %4300 = vadd.xlane.f32.xlu0 %v4299
        %v4301 = vpop.xlane.xlu0 %4300
        %v4302 = vsel %vm1674, %v4209, 0.0
        %v4303 = vadd.f32 %v4207, %v4302
        %4304 = vadd.xlane.f32.xlu0 %v4303
        %v4305 = vpop.xlane.xlu0 %4304
        %v4306 = vsel %vm1674, %v4213, 0.0
        %v4307 = vadd.f32 %v4211, %v4306
        %4308 = vadd.xlane.f32.xlu0 %v4307
        %v4309 = vpop.xlane.xlu0 %4308
        %v4310 = vsel %vm1674, %v4217, 0.0
        %v4311 = vadd.f32 %v4215, %v4310
        %4312 = vadd.xlane.f32.xlu0 %v4311
        %v4313 = vpop.xlane.xlu0 %4312
        %v4314 = vsel %vm1674, %v4221, 0.0
        %v4315 = vadd.f32 %v4219, %v4314
        %4316 = vadd.xlane.f32.xlu0 %v4315
        %v4317 = vpop.xlane.xlu0 %4316
        %v4318 = vsel %vm1674, %v4225, 0.0
        %v4319 = vadd.f32 %v4223, %v4318
        %4320 = vadd.xlane.f32.xlu0 %v4319
        %v4321 = vpop.xlane.xlu0 %4320
        %v4322 = vsel %vm1674, %v4229, 0.0
        %v4323 = vadd.f32 %v4227, %v4322
        %4324 = vadd.xlane.f32.xlu0 %v4323
        %v4325 = vpop.xlane.xlu0 %4324
        %v4326 = vsel %vm1674, %v4233, 0.0
        %v4327 = vadd.f32 %v4231, %v4326
        %4328 = vadd.xlane.f32.xlu0 %v4327
        %v4329 = vpop.xlane.xlu0 %4328
        %v4330 = vsel %vm1674, %v4237, 0.0
        %v4331 = vadd.f32 %v4235, %v4330
        %4332 = vadd.xlane.f32.xlu0 %v4331
        %v4333 = vpop.xlane.xlu0 %4332
        %v4334 = vsel %vm1674, %v4241, 0.0
        %v4335 = vadd.f32 %v4239, %v4334
        %4336 = vadd.xlane.f32.xlu0 %v4335
        %v4337 = vpop.xlane.xlu0 %4336
        %v4338 = vsel %vm1674, %v4245, 0.0
        %v4339 = vadd.f32 %v4243, %v4338
        %4340 = vadd.xlane.f32.xlu0 %v4339
        %v4341 = vpop.xlane.xlu0 %4340
        %v4342 = vsel %vm1674, %v4249, 0.0
        %v4343 = vadd.f32 %v4247, %v4342
        %4344 = vadd.xlane.f32.xlu0 %v4343
        %v4345 = vpop.xlane.xlu0 %4344
        %v4346 = vsel %vm1674, %v4253, 0.0
        %v4347 = vadd.f32 %v4251, %v4346
        %4348 = vadd.xlane.f32.xlu0 %v4347
        %v4349 = vpop.xlane.xlu0 %4348
        %v4350 = vsel %vm1674, %v4257, 0.0
        %v4351 = vadd.f32 %v4255, %v4350
        %4352 = vadd.xlane.f32.xlu0 %v4351
        %v4353 = vpop.xlane.xlu0 %4352
        %v4354 = vrcp.pop %v4261
        %v4355 = vrcp.pop %v4265
        %v4356 = vrcp.pop %v4269
        %v4357 = vrcp.pop %v4273
        %v4358 = vrcp.pop %v4277
        %v4359 = vrcp.pop %v4281
        %v4360 = vrcp.pop %v4285
        %v4361 = vrcp.pop %v4289
        %v4362 = vrcp.pop %v4293
        %v4363 = vrcp.pop %v4297
        %v4364 = vrcp.pop %v4301
        %v4365 = vrcp.pop %v4305
        %v4366 = vrcp.pop %v4309
        %v4367 = vrcp.pop %v4313
        %v4368 = vrcp.pop %v4317
        %v4369 = vrcp.pop %v4321
        %v4370 = vrcp.pop %v4325
        %v4371 = vrcp.pop %v4329
        %v4372 = vrcp.pop %v4333
        %v4373 = vrcp.pop %v4337
        %v4374 = vrcp.pop %v4341
        %v4375 = vrcp.pop %v4345
        %v4376 = vrcp.pop %v4349
        %v4377 = vrcp.pop %v4353
        %v4378 = vmul.f32 %v4163, %v4354
        %v4379 = vmul.f32 %v4165, %v4354
        %v4380 = vmul.f32 %v4167, %v4355
        %v4381 = vmul.f32 %v4169, %v4355
        %v4382 = vmul.f32 %v4171, %v4356
        %v4383 = vmul.f32 %v4173, %v4356
        %v4384 = vmul.f32 %v4175, %v4357
        %v4385 = vmul.f32 %v4177, %v4357
        %v4386 = vmul.f32 %v4179, %v4358
        %v4387 = vmul.f32 %v4181, %v4358
        %v4388 = vmul.f32 %v4183, %v4359
        %v4389 = vmul.f32 %v4185, %v4359
        %v4390 = vmul.f32 %v4187, %v4360
        %v4391 = vmul.f32 %v4189, %v4360
        %v4392 = vmul.f32 %v4191, %v4361
        %v4393 = vmul.f32 %v4193, %v4361
        %v4394 = vmul.f32 %v4195, %v4362
        %v4395 = vmul.f32 %v4197, %v4362
        %v4396 = vmul.f32 %v4199, %v4363
        %v4397 = vmul.f32 %v4201, %v4363
        %v4398 = vmul.f32 %v4203, %v4364
        %v4399 = vmul.f32 %v4205, %v4364
        %v4400 = vmul.f32 %v4207, %v4365
        %v4401 = vmul.f32 %v4209, %v4365
        %v4402 = vmul.f32 %v4211, %v4366
        %v4403 = vmul.f32 %v4213, %v4366
        %v4404 = vmul.f32 %v4215, %v4367
        %v4405 = vmul.f32 %v4217, %v4367
        %v4406 = vmul.f32 %v4219, %v4368
        %v4407 = vmul.f32 %v4221, %v4368
        %v4408 = vmul.f32 %v4223, %v4369
        %v4409 = vmul.f32 %v4225, %v4369
        %v4410 = vmul.f32 %v4227, %v4370
        %v4411 = vmul.f32 %v4229, %v4370
        %v4412 = vmul.f32 %v4231, %v4371
        %v4413 = vmul.f32 %v4233, %v4371
        %v4414 = vmul.f32 %v4235, %v4372
        %v4415 = vmul.f32 %v4237, %v4372
        %v4416 = vmul.f32 %v4239, %v4373
        %v4417 = vmul.f32 %v4241, %v4373
        %v4418 = vmul.f32 %v4243, %v4374
        %v4419 = vmul.f32 %v4245, %v4374
        %v4420 = vmul.f32 %v4247, %v4375
        %v4421 = vmul.f32 %v4249, %v4375
        %v4422 = vmul.f32 %v4251, %v4376
        %v4423 = vmul.f32 %v4253, %v4376
        %v4424 = vmul.f32 %v4255, %v4377
        %v4425 = vmul.f32 %v4257, %v4377
        %v4426 = vld [vmem:[%s7 + $0x8] sm:$0xf]
        %4427 = vrot.lane.b32.xlu0 %v1256, 48
        %v4428 = vpop.permute.xlu0 %4427
        %4429 = vrot.lane.b32.xlu0 %v1257, 48
        %v4430 = vpop.permute.xlu0 %4429
        %4431 = vrot.lane.b32.xlu0 %v1258, 48
        %v4432 = vpop.permute.xlu0 %4431
        %4433 = vrot.lane.b32.xlu0 %v1259, 48
        %v4434 = vpop.permute.xlu0 %4433
        %4435 = vrot.lane.b32.xlu0 %v1260, 48
        %v4436 = vpop.permute.xlu0 %4435
        %4437 = vrot.lane.b32.xlu0 %v1261, 48
        %v4438 = vpop.permute.xlu0 %4437
        %4439 = vrot.lane.b32.xlu0 %v1262, 48
        %v4440 = vpop.permute.xlu0 %4439
        %4441 = vrot.lane.b32.xlu0 %v1263, 48
        %v4442 = vpop.permute.xlu0 %4441
        %4443 = vrot.lane.b32.xlu0 %v1264, 48
        %v4444 = vpop.permute.xlu0 %4443
        %4445 = vrot.lane.b32.xlu0 %v1265, 48
        %v4446 = vpop.permute.xlu0 %4445
        %4447 = vrot.lane.b32.xlu0 %v1266, 48
        %v4448 = vpop.permute.xlu0 %4447
        %4449 = vrot.lane.b32.xlu0 %v1267, 48
        %v4450 = vpop.permute.xlu0 %4449
        %v4452 = vsel %vm1352, %v4428, 0
        %v4455 = vsel %vm1352, %v4430, 0
        %v4458 = vsel %vm1352, %v4432, 0
        %v4461 = vsel %vm1352, %v4434, 0
        %v4464 = vsel %vm1352, %v4436, 0
        %v4467 = vsel %vm1352, %v4438, 0
        %v4470 = vsel %vm1352, %v4440, 0
        %v4473 = vsel %vm1352, %v4442, 0
        %v4476 = vsel %vm1352, %v4444, 0
        %v4479 = vsel %vm1352, %v4446, 0
        %v4482 = vsel %vm1352, %v4448, 0
        %v4485 = vsel %vm1352, %v4450, 0
        %v4488 = vsel %vm2144, %v4426, 0
        %4490 = vmatprep.subr.bf16.mxu0 0
        %4491 = vmatpush1.bf16.msra.mxu0 %v4488
        %4492 = vmatprep.subr.bf16.mxu0 0
        %4493 = vmatpush1.bf16.msra.mxu0 0
        %4494 = vmatprep.subr.bf16.mxu0 0
        %4495 = vmatpush1.bf16.msra.mxu0 0
        %4496 = vmatprep.subr.bf16.mxu0 0
        %4497 = vmatpush1.bf16.msra.mxu0 0
        %4498 = vmatprep.subr.bf16.mxu0 0
        %4499 = vmatpush1.bf16.msra.mxu0 0
        %4500 = vmatprep.subr.bf16.mxu0 0
        %4501 = vmatpush1.bf16.msra.mxu0 0
        %4502 = vmatprep.subr.bf16.mxu0 0
        %4503 = vmatpush1.bf16.msra.mxu0 0
        %4504 = vmatprep.subr.bf16.mxu0 0
        %4505 = vmatpush1.bf16.msra.mxu0 0
        %4506 = vmatprep.subr.bf16.mxu0 0
        %4507 = vmatpush1.bf16.msra.mxu0 0
        %4508 = vmatprep.subr.bf16.mxu0 0
        %4509 = vmatpush1.bf16.msra.mxu0 0
        %4510 = vmatprep.subr.bf16.mxu0 0
        %4511 = vmatpush1.bf16.msra.mxu0 0
        %4512 = vmatprep.subr.bf16.mxu0 0
        %4513 = vmatpush1.bf16.msra.mxu0 0
        %4514 = vmatprep.subr.bf16.mxu0 0
        %4515 = vmatpush1.bf16.msra.mxu0 0
        %4516 = vmatprep.subr.bf16.mxu0 0
        %4517 = vmatpush1.bf16.msra.mxu0 0
        %4518 = vmatprep.subr.bf16.mxu0 0
        %4519 = vmatpush1.bf16.msra.mxu0 0
        %4520 = vmatprep.subr.bf16.mxu0 0
        %4521 = vmatpush1.bf16.msra.mxu0 0
        %4522 = vmatprep.mubr.bf16.mxu0 0
        %4523 = vmatmul.mubr.bf16.gmra.mrb[0].mxu0 %v4452
        %v4524 = vpop.f32.mrb[0].mxu0
        %v4525 = vadd.f32 0.0, %v4524
        %v4526 = vpop.f32.mrb[0].mxu0
        %v4527 = vpop.f32.mrb[0].mxu0
        %v4528 = vadd.f32 0.0, %v4527
        %v4529 = vpop.f32.mrb[0].mxu0
        %4530 = vmatprep.mubr.bf16.mxu0 0
        %4531 = vmatmul.mubr.bf16.gmra.mrb[0].mxu0 %v4455
        %v4532 = vpop.f32.mrb[0].mxu0
        %v4533 = vadd.f32 0.0, %v4532
        %v4534 = vpop.f32.mrb[0].mxu0
        %v4535 = vpop.f32.mrb[0].mxu0
        %v4536 = vadd.f32 0.0, %v4535
        %v4537 = vpop.f32.mrb[0].mxu0
        %4538 = vmatprep.mubr.bf16.mxu0 0
        %4539 = vmatmul.mubr.bf16.gmra.mrb[0].mxu0 %v4458
        %v4540 = vpop.f32.mrb[0].mxu0
        %v4541 = vadd.f32 0.0, %v4540
        %v4542 = vpop.f32.mrb[0].mxu0
        %v4543 = vpop.f32.mrb[0].mxu0
        %v4544 = vadd.f32 0.0, %v4543
        %v4545 = vpop.f32.mrb[0].mxu0
        %4546 = vmatprep.mubr.bf16.mxu0 0
        %4547 = vmatmul.mubr.bf16.gmra.mrb[0].mxu0 %v4461
        %v4548 = vpop.f32.mrb[0].mxu0
        %v4549 = vadd.f32 0.0, %v4548
        %v4550 = vpop.f32.mrb[0].mxu0
        %v4551 = vpop.f32.mrb[0].mxu0
        %v4552 = vadd.f32 0.0, %v4551
        %v4553 = vpop.f32.mrb[0].mxu0
        %4554 = vmatprep.mubr.bf16.mxu0 0
        %4555 = vmatmul.mubr.bf16.gmra.mrb[0].mxu0 %v4464
        %v4556 = vpop.f32.mrb[0].mxu0
        %v4557 = vadd.f32 0.0, %v4556
        %v4558 = vpop.f32.mrb[0].mxu0
        %v4559 = vpop.f32.mrb[0].mxu0
        %v4560 = vadd.f32 0.0, %v4559
        %v4561 = vpop.f32.mrb[0].mxu0
        %4562 = vmatprep.mubr.bf16.mxu0 0
        %4563 = vmatmul.mubr.bf16.gmra.mrb[0].mxu0 %v4467
        %v4564 = vpop.f32.mrb[0].mxu0
        %v4565 = vadd.f32 0.0, %v4564
        %v4566 = vpop.f32.mrb[0].mxu0
        %v4567 = vpop.f32.mrb[0].mxu0
        %v4568 = vadd.f32 0.0, %v4567
        %v4569 = vpop.f32.mrb[0].mxu0
        %4570 = vmatprep.mubr.bf16.mxu0 0
        %4571 = vmatmul.mubr.bf16.gmra.mrb[0].mxu0 %v4470
        %v4572 = vpop.f32.mrb[0].mxu0
        %v4573 = vadd.f32 0.0, %v4572
        %v4574 = vpop.f32.mrb[0].mxu0
        %v4575 = vpop.f32.mrb[0].mxu0
        %v4576 = vadd.f32 0.0, %v4575
        %v4577 = vpop.f32.mrb[0].mxu0
        %4578 = vmatprep.mubr.bf16.mxu0 0
        %4579 = vmatmul.mubr.bf16.gmra.mrb[0].mxu0 %v4473
        %v4580 = vpop.f32.mrb[0].mxu0
        %v4581 = vadd.f32 0.0, %v4580
        %v4582 = vpop.f32.mrb[0].mxu0
        %v4583 = vpop.f32.mrb[0].mxu0
        %v4584 = vadd.f32 0.0, %v4583
        %v4585 = vpop.f32.mrb[0].mxu0
        %4586 = vmatprep.mubr.bf16.mxu0 0
        %4587 = vmatmul.mubr.bf16.gmra.mrb[0].mxu0 %v4476
        %v4588 = vpop.f32.mrb[0].mxu0
        %v4589 = vadd.f32 0.0, %v4588
        %v4590 = vpop.f32.mrb[0].mxu0
        %v4591 = vpop.f32.mrb[0].mxu0
        %v4592 = vadd.f32 0.0, %v4591
        %v4593 = vpop.f32.mrb[0].mxu0
        %4594 = vmatprep.mubr.bf16.mxu0 0
        %4595 = vmatmul.mubr.bf16.gmra.mrb[0].mxu0 %v4479
        %v4596 = vpop.f32.mrb[0].mxu0
        %v4597 = vadd.f32 0.0, %v4596
        %v4598 = vpop.f32.mrb[0].mxu0
        %v4599 = vpop.f32.mrb[0].mxu0
        %v4600 = vadd.f32 0.0, %v4599
        %v4601 = vpop.f32.mrb[0].mxu0
        %4602 = vmatprep.mubr.bf16.mxu0 0
        %4603 = vmatmul.mubr.bf16.gmra.mrb[0].mxu0 %v4482
        %v4604 = vpop.f32.mrb[0].mxu0
        %v4605 = vadd.f32 0.0, %v4604
        %v4606 = vpop.f32.mrb[0].mxu0
        %v4607 = vpop.f32.mrb[0].mxu0
        %v4608 = vadd.f32 0.0, %v4607
        %v4609 = vpop.f32.mrb[0].mxu0
        %4610 = vmatprep.mubr.bf16.mxu0 0
        %4611 = vmatmul.mubr.bf16.gmra.mrb[0].mxu0 %v4485
        %v4612 = vpop.f32.mrb[0].mxu0
        %v4613 = vadd.f32 0.0, %v4612
        %v4614 = vpop.f32.mrb[0].mxu0
        %v4615 = vpop.f32.mrb[0].mxu0
        %v4616 = vadd.f32 0.0, %v4615
        %v4617 = vpop.f32.mrb[0].mxu0
        %4618 = vdwg.mxu0
        %v4619 = vpack.c.bf16 %v4528, %v4525
        %v4620 = vpack.c.bf16 %v4536, %v4533
        %v4621 = vpack.c.bf16 %v4544, %v4541
        %v4622 = vpack.c.bf16 %v4552, %v4549
        %v4623 = vpack.c.bf16 %v4560, %v4557
        %v4624 = vpack.c.bf16 %v4568, %v4565
        %v4625 = vpack.c.bf16 %v4576, %v4573
        %v4626 = vpack.c.bf16 %v4584, %v4581
        %v4627 = vpack.c.bf16 %v4592, %v4589
        %v4628 = vpack.c.bf16 %v4600, %v4597
        %v4629 = vpack.c.bf16 %v4608, %v4605
        %v4630 = vpack.c.bf16 %v4616, %v4613
        %v4631 = vpack.c.bf16 %v4380, %v4378
        %v4632 = vpack.c.bf16 %v4381, %v4379
        %v4633 = vpack.c.bf16 %v4384, %v4382
        %v4634 = vpack.c.bf16 %v4385, %v4383
        %v4635 = vpack.c.bf16 %v4388, %v4386
        %v4636 = vpack.c.bf16 %v4389, %v4387
        %v4637 = vpack.c.bf16 %v4392, %v4390
        %v4638 = vpack.c.bf16 %v4393, %v4391
        %v4639 = vpack.c.bf16 %v4396, %v4394
        %v4640 = vpack.c.bf16 %v4397, %v4395
        %v4641 = vpack.c.bf16 %v4400, %v4398
        %v4642 = vpack.c.bf16 %v4401, %v4399
        %v4643 = vpack.c.bf16 %v4404, %v4402
        %v4644 = vpack.c.bf16 %v4405, %v4403
        %v4645 = vpack.c.bf16 %v4408, %v4406
        %v4646 = vpack.c.bf16 %v4409, %v4407
        %v4647 = vpack.c.bf16 %v4412, %v4410
        %v4648 = vpack.c.bf16 %v4413, %v4411
        %v4649 = vpack.c.bf16 %v4416, %v4414
        %v4650 = vpack.c.bf16 %v4417, %v4415
        %v4651 = vpack.c.bf16 %v4420, %v4418
        %v4652 = vpack.c.bf16 %v4421, %v4419
        %v4653 = vpack.c.bf16 %v4424, %v4422
        %v4654 = vpack.c.bf16 %v4425, %v4423
        %v4656 = vsel %vm1674, %v4632, 0
        %v4659 = vsel %vm1674, %v4634, 0
        %v4662 = vsel %vm1674, %v4636, 0
        %v4665 = vsel %vm1674, %v4638, 0
        %v4668 = vsel %vm1674, %v4640, 0
        %v4671 = vsel %vm1674, %v4642, 0
        %v4674 = vsel %vm1674, %v4644, 0
        %v4677 = vsel %vm1674, %v4646, 0
        %v4680 = vsel %vm1674, %v4648, 0
        %v4683 = vsel %vm1674, %v4650, 0
        %v4686 = vsel %vm1674, %v4652, 0
        %v4689 = vsel %vm1674, %v4654, 0
        %4691 = vmatprep.subr.bf16.mxu0 0
        %4692 = vmatpush1.bf16.msra.mxu0 %v4619
        %4693 = vmatprep.subr.bf16.mxu0 0
        %4694 = vmatpush1.bf16.msra.mxu0 %v4620
        %4695 = vmatprep.subr.bf16.mxu0 0
        %4696 = vmatpush1.bf16.msra.mxu0 %v4621
        %4697 = vmatprep.subr.bf16.mxu0 0
        %4698 = vmatpush1.bf16.msra.mxu0 %v4622
        %4699 = vmatprep.subr.bf16.mxu0 0
        %4700 = vmatpush1.bf16.msra.mxu0 %v4623
        %4701 = vmatprep.subr.bf16.mxu0 0
        %4702 = vmatpush1.bf16.msra.mxu0 %v4624
        %4703 = vmatprep.subr.bf16.mxu0 0
        %4704 = vmatpush1.bf16.msra.mxu0 %v4625
        %4705 = vmatprep.subr.bf16.mxu0 0
        %4706 = vmatpush1.bf16.msra.mxu0 %v4626
        %4707 = vmatprep.subr.bf16.mxu0 0
        %4708 = vmatpush1.bf16.msra.mxu0 %v4627
        %4709 = vmatprep.subr.bf16.mxu0 0
        %4710 = vmatpush1.bf16.msra.mxu0 %v4628
        %4711 = vmatprep.subr.bf16.mxu0 0
        %4712 = vmatpush1.bf16.msra.mxu0 %v4629
        %4713 = vmatprep.subr.bf16.mxu0 0
        %4714 = vmatpush1.bf16.msra.mxu0 %v4630
        %4715 = vmatprep.subr.bf16.mxu0 0
        %4716 = vmatpush1.bf16.msra.mxu0 0
        %4717 = vmatprep.subr.bf16.mxu0 0
        %4718 = vmatpush1.bf16.msra.mxu0 0
        %4719 = vmatprep.subr.bf16.mxu0 0
        %4720 = vmatpush1.bf16.msra.mxu0 0
        %4721 = vmatprep.subr.bf16.mxu0 0
        %4722 = vmatpush1.bf16.msra.mxu0 0
        %4723 = vmatprep.mubr.bf16.mxu0 %v4656
        %4724 = vmatmul.mubr.bf16.gmra.mrb[0].mxu0 %v4631
        %v4725 = vpop.f32.mrb[0].mxu0
        %v4726 = vadd.f32 0.0, %v4725
        %v4727 = vpop.f32.mrb[0].mxu0
        %v4728 = vpop.f32.mrb[0].mxu0
        %v4729 = vadd.f32 0.0, %v4728
        %v4730 = vpop.f32.mrb[0].mxu0
        %4731 = vmatprep.mubr.bf16.mxu0 %v4659
        %4732 = vmatmul.mubr.bf16.gmra.mrb[0].mxu0 %v4633
        %v4733 = vpop.f32.mrb[0].mxu0
        %v4734 = vadd.f32 0.0, %v4733
        %v4735 = vpop.f32.mrb[0].mxu0
        %v4736 = vpop.f32.mrb[0].mxu0
        %v4737 = vadd.f32 0.0, %v4736
        %v4738 = vpop.f32.mrb[0].mxu0
        %4739 = vmatprep.mubr.bf16.mxu0 %v4662
        %4740 = vmatmul.mubr.bf16.gmra.mrb[0].mxu0 %v4635
        %v4741 = vpop.f32.mrb[0].mxu0
        %v4742 = vadd.f32 0.0, %v4741
        %v4743 = vpop.f32.mrb[0].mxu0
        %v4744 = vpop.f32.mrb[0].mxu0
        %v4745 = vadd.f32 0.0, %v4744
        %v4746 = vpop.f32.mrb[0].mxu0
        %4747 = vmatprep.mubr.bf16.mxu0 %v4665
        %4748 = vmatmul.mubr.bf16.gmra.mrb[0].mxu0 %v4637
        %v4749 = vpop.f32.mrb[0].mxu0
        %v4750 = vadd.f32 0.0, %v4749
        %v4751 = vpop.f32.mrb[0].mxu0
        %v4752 = vpop.f32.mrb[0].mxu0
        %v4753 = vadd.f32 0.0, %v4752
        %v4754 = vpop.f32.mrb[0].mxu0
        %4755 = vmatprep.mubr.bf16.mxu0 %v4668
        %4756 = vmatmul.mubr.bf16.gmra.mrb[0].mxu0 %v4639
        %v4757 = vpop.f32.mrb[0].mxu0
        %v4758 = vadd.f32 0.0, %v4757
        %v4759 = vpop.f32.mrb[0].mxu0
        %v4760 = vpop.f32.mrb[0].mxu0
        %v4761 = vadd.f32 0.0, %v4760
        %v4762 = vpop.f32.mrb[0].mxu0
        %4763 = vmatprep.mubr.bf16.mxu0 %v4671
        %4764 = vmatmul.mubr.bf16.gmra.mrb[0].mxu0 %v4641
        %v4765 = vpop.f32.mrb[0].mxu0
        %v4766 = vadd.f32 0.0, %v4765
        %v4767 = vpop.f32.mrb[0].mxu0
        %v4768 = vpop.f32.mrb[0].mxu0
        %v4769 = vadd.f32 0.0, %v4768
        %v4770 = vpop.f32.mrb[0].mxu0
        %4771 = vmatprep.mubr.bf16.mxu0 %v4674
        %4772 = vmatmul.mubr.bf16.gmra.mrb[0].mxu0 %v4643
        %v4773 = vpop.f32.mrb[0].mxu0
        %v4774 = vadd.f32 0.0, %v4773
        %v4775 = vpop.f32.mrb[0].mxu0
        %v4776 = vpop.f32.mrb[0].mxu0
        %v4777 = vadd.f32 0.0, %v4776
        %v4778 = vpop.f32.mrb[0].mxu0
        %4779 = vmatprep.mubr.bf16.mxu0 %v4677
        %4780 = vmatmul.mubr.bf16.gmra.mrb[0].mxu0 %v4645
        %v4781 = vpop.f32.mrb[0].mxu0
        %v4782 = vadd.f32 0.0, %v4781
        %v4783 = vpop.f32.mrb[0].mxu0
        %v4784 = vpop.f32.mrb[0].mxu0
        %v4785 = vadd.f32 0.0, %v4784
        %v4786 = vpop.f32.mrb[0].mxu0
        %4787 = vmatprep.mubr.bf16.mxu0 %v4680
        %4788 = vmatmul.mubr.bf16.gmra.mrb[0].mxu0 %v4647
        %v4789 = vpop.f32.mrb[0].mxu0
        %v4790 = vadd.f32 0.0, %v4789
        %v4791 = vpop.f32.mrb[0].mxu0
        %v4792 = vpop.f32.mrb[0].mxu0
        %v4793 = vadd.f32 0.0, %v4792
        %v4794 = vpop.f32.mrb[0].mxu0
        %4795 = vmatprep.mubr.bf16.mxu0 %v4683
        %4796 = vmatmul.mubr.bf16.gmra.mrb[0].mxu0 %v4649
        %v4797 = vpop.f32.mrb[0].mxu0
        %v4798 = vadd.f32 0.0, %v4797
        %v4799 = vpop.f32.mrb[0].mxu0
        %v4800 = vpop.f32.mrb[0].mxu0
        %v4801 = vadd.f32 0.0, %v4800
        %v4802 = vpop.f32.mrb[0].mxu0
        %4803 = vmatprep.mubr.bf16.mxu0 %v4686
        %4804 = vmatmul.mubr.bf16.gmra.mrb[0].mxu0 %v4651
        %v4805 = vpop.f32.mrb[0].mxu0
        %v4806 = vadd.f32 0.0, %v4805
        %v4807 = vpop.f32.mrb[0].mxu0
        %v4808 = vpop.f32.mrb[0].mxu0
        %v4809 = vadd.f32 0.0, %v4808
        %v4810 = vpop.f32.mrb[0].mxu0
        %4811 = vmatprep.mubr.bf16.mxu0 %v4689
        %4812 = vmatmul.mubr.bf16.gmra.mrb[0].mxu0 %v4653
        %v4813 = vpop.f32.mrb[0].mxu0
        %v4814 = vadd.f32 0.0, %v4813
        %v4815 = vpop.f32.mrb[0].mxu0
        %v4816 = vpop.f32.mrb[0].mxu0
        %v4817 = vadd.f32 0.0, %v4816
        %v4818 = vpop.f32.mrb[0].mxu0
        %4819 = vdwg.mxu0
        %v4820 = vadd.f32 %v3555, %v4726
        %v4821 = vadd.f32 %v3558, %v4729
        %v4822 = vadd.f32 %v3563, %v4734
        %v4823 = vadd.f32 %v3566, %v4737
        %v4824 = vadd.f32 %v3571, %v4742
        %v4825 = vadd.f32 %v3574, %v4745
        %v4826 = vadd.f32 %v3579, %v4750
        %v4827 = vadd.f32 %v3582, %v4753
        %v4828 = vadd.f32 %v3587, %v4758
        %v4829 = vadd.f32 %v3590, %v4761
        %v4830 = vadd.f32 %v3595, %v4766
        %v4831 = vadd.f32 %v3598, %v4769
        %v4832 = vadd.f32 %v3603, %v4774
        %v4833 = vadd.f32 %v3606, %v4777
        %v4834 = vadd.f32 %v3611, %v4782
        %v4835 = vadd.f32 %v3614, %v4785
        %v4836 = vadd.f32 %v3619, %v4790
        %v4837 = vadd.f32 %v3622, %v4793
        %v4838 = vadd.f32 %v3627, %v4798
        %v4839 = vadd.f32 %v3630, %v4801
        %v4840 = vadd.f32 %v3635, %v4806
        %v4841 = vadd.f32 %v3638, %v4809
        %v4842 = vadd.f32 %v3643, %v4814
        %v4843 = vadd.f32 %v3646, %v4817
        %4844 = vrot.lane.b32.xlu0 %v1256, 104
        %v4845 = vpop.permute.xlu0 %4844
        %4846 = vrot.lane.b32.xlu0 %v1257, 104
        %v4847 = vpop.permute.xlu0 %4846
        %4848 = vrot.lane.b32.xlu0 %v1258, 104
        %v4849 = vpop.permute.xlu0 %4848
        %4850 = vrot.lane.b32.xlu0 %v1259, 104
        %v4851 = vpop.permute.xlu0 %4850
        %4852 = vrot.lane.b32.xlu0 %v1260, 104
        %v4853 = vpop.permute.xlu0 %4852
        %4854 = vrot.lane.b32.xlu0 %v1261, 104
        %v4855 = vpop.permute.xlu0 %4854
        %4856 = vrot.lane.b32.xlu0 %v1262, 104
        %v4857 = vpop.permute.xlu0 %4856
        %4858 = vrot.lane.b32.xlu0 %v1263, 104
        %v4859 = vpop.permute.xlu0 %4858
        %4860 = vrot.lane.b32.xlu0 %v1264, 104
        %v4861 = vpop.permute.xlu0 %4860
        %4862 = vrot.lane.b32.xlu0 %v1265, 104
        %v4863 = vpop.permute.xlu0 %4862
        %4864 = vrot.lane.b32.xlu0 %v1266, 104
        %v4865 = vpop.permute.xlu0 %4864
        %4866 = vrot.lane.b32.xlu0 %v1267, 104
        %v4867 = vpop.permute.xlu0 %4866
        %4868 = vrot.lane.b32.xlu0 %v1256, 72
        %v4869 = vpop.permute.xlu0 %4868
        %4870 = vrot.lane.b32.xlu0 %v1257, 72
        %v4871 = vpop.permute.xlu0 %4870
        %4872 = vrot.lane.b32.xlu0 %v1258, 72
        %v4873 = vpop.permute.xlu0 %4872
        %4874 = vrot.lane.b32.xlu0 %v1259, 72
        %v4875 = vpop.permute.xlu0 %4874
        %4876 = vrot.lane.b32.xlu0 %v1260, 72
        %v4877 = vpop.permute.xlu0 %4876
        %4878 = vrot.lane.b32.xlu0 %v1261, 72
        %v4879 = vpop.permute.xlu0 %4878
        %4880 = vrot.lane.b32.xlu0 %v1262, 72
        %v4881 = vpop.permute.xlu0 %4880
        %4882 = vrot.lane.b32.xlu0 %v1263, 72
        %v4883 = vpop.permute.xlu0 %4882
        %4884 = vrot.lane.b32.xlu0 %v1264, 72
        %v4885 = vpop.permute.xlu0 %4884
        %4886 = vrot.lane.b32.xlu0 %v1265, 72
        %v4887 = vpop.permute.xlu0 %4886
        %4888 = vrot.lane.b32.xlu0 %v1266, 72
        %v4889 = vpop.permute.xlu0 %4888
        %4890 = vrot.lane.b32.xlu0 %v1267, 72
        %v4891 = vpop.permute.xlu0 %4890
        %v4893 = vsel %vm1352, %v4845, 0
        %v4896 = vsel %vm1352, %v4847, 0
        %v4899 = vsel %vm1352, %v4849, 0
        %v4902 = vsel %vm1352, %v4851, 0
        %v4905 = vsel %vm1352, %v4853, 0
        %v4908 = vsel %vm1352, %v4855, 0
        %v4911 = vsel %vm1352, %v4857, 0
        %v4914 = vsel %vm1352, %v4859, 0
        %v4917 = vsel %vm1352, %v4861, 0
        %v4920 = vsel %vm1352, %v4863, 0
        %v4923 = vsel %vm1352, %v4865, 0
        %v4926 = vsel %vm1352, %v4867, 0
        %v4929 = vsel %vm1352, %v4869, 0
        %v4932 = vsel %vm1352, %v4871, 0
        %v4935 = vsel %vm1352, %v4873, 0
        %v4938 = vsel %vm1352, %v4875, 0
        %v4941 = vsel %vm1352, %v4877, 0
        %v4944 = vsel %vm1352, %v4879, 0
        %v4947 = vsel %vm1352, %v4881, 0
        %v4950 = vsel %vm1352, %v4883, 0
        %v4953 = vsel %vm1352, %v4885, 0
        %v4956 = vsel %vm1352, %v4887, 0
        %v4959 = vsel %vm1352, %v4889, 0
        %v4962 = vsel %vm1352, %v4891, 0
        %4964 = vmatprep.subr.bf16.mxu0 0
        %4965 = vmatpush1.bf16.xpose.msra.mxu0 %v4929
        %4966 = vmatprep.subr.bf16.mxu0 0
        %4967 = vmatpush1.bf16.xpose.msra.mxu0 %v4932
        %4968 = vmatprep.subr.bf16.mxu0 0
        %4969 = vmatpush1.bf16.xpose.msra.mxu0 %v4935
        %4970 = vmatprep.subr.bf16.mxu0 0
        %4971 = vmatpush1.bf16.xpose.msra.mxu0 %v4938
        %4972 = vmatprep.subr.bf16.mxu0 0
        %4973 = vmatpush1.bf16.xpose.msra.mxu0 %v4941
        %4974 = vmatprep.subr.bf16.mxu0 0
        %4975 = vmatpush1.bf16.xpose.msra.mxu0 %v4944
        %4976 = vmatprep.subr.bf16.mxu0 0
        %4977 = vmatpush1.bf16.xpose.msra.mxu0 %v4947
        %4978 = vmatprep.subr.bf16.mxu0 0
        %4979 = vmatpush1.bf16.xpose.msra.mxu0 %v4950
        %4980 = vmatprep.subr.bf16.mxu0 0
        %4981 = vmatpush1.bf16.xpose.msra.mxu0 %v4953
        %4982 = vmatprep.subr.bf16.mxu0 0
        %4983 = vmatpush1.bf16.xpose.msra.mxu0 %v4956
        %4984 = vmatprep.subr.bf16.mxu0 0
        %4985 = vmatpush1.bf16.xpose.msra.mxu0 %v4959
        %4986 = vmatprep.subr.bf16.mxu0 0
        %4987 = vmatpush1.bf16.xpose.msra.mxu0 %v4962
        %4988 = vmatprep.subr.bf16.mxu0 0
        %4989 = vmatpush1.bf16.xpose.msra.mxu0 0
        %4990 = vmatprep.subr.bf16.mxu0 0
        %4991 = vmatpush1.bf16.xpose.msra.mxu0 0
        %4992 = vmatprep.subr.bf16.mxu0 0
        %4993 = vmatpush1.bf16.xpose.msra.mxu0 0
        %4994 = vmatprep.subr.bf16.mxu0 0
        %4995 = vmatpush1.bf16.xpose.msra.mxu0 0
        %4996 = vmatprep.mubr.bf16.mxu0 0
        %4997 = vmatmul.mubr.bf16.gmra.mrb[0].mxu0 %v4893
        %v4998 = vpop.f32.mrb[0].mxu0
        %v4999 = vadd.f32 0.0, %v4998
        %v5000 = vpop.f32.mrb[0].mxu0
        %v5001 = vadd.f32 0.0, %v5000
        %v5002 = vpop.f32.mrb[0].mxu0
        %v5003 = vadd.f32 0.0, %v5002
        %v5004 = vpop.f32.mrb[0].mxu0
        %v5005 = vadd.f32 0.0, %v5004
        %5006 = vmatprep.mubr.bf16.mxu0 0
        %5007 = vmatmul.mubr.bf16.gmra.mrb[0].mxu0 %v4896
        %v5008 = vpop.f32.mrb[0].mxu0
        %v5009 = vadd.f32 0.0, %v5008
        %v5010 = vpop.f32.mrb[0].mxu0
        %v5011 = vadd.f32 0.0, %v5010
        %v5012 = vpop.f32.mrb[0].mxu0
        %v5013 = vadd.f32 0.0, %v5012
        %v5014 = vpop.f32.mrb[0].mxu0
        %v5015 = vadd.f32 0.0, %v5014
        %5016 = vmatprep.mubr.bf16.mxu0 0
        %5017 = vmatmul.mubr.bf16.gmra.mrb[0].mxu0 %v4899
        %v5018 = vpop.f32.mrb[0].mxu0
        %v5019 = vadd.f32 0.0, %v5018
        %v5020 = vpop.f32.mrb[0].mxu0
        %v5021 = vadd.f32 0.0, %v5020
        %v5022 = vpop.f32.mrb[0].mxu0
        %v5023 = vadd.f32 0.0, %v5022
        %v5024 = vpop.f32.mrb[0].mxu0
        %v5025 = vadd.f32 0.0, %v5024
        %5026 = vmatprep.mubr.bf16.mxu0 0
        %5027 = vmatmul.mubr.bf16.gmra.mrb[0].mxu0 %v4902
        %v5028 = vpop.f32.mrb[0].mxu0
        %v5029 = vadd.f32 0.0, %v5028
        %v5030 = vpop.f32.mrb[0].mxu0
        %v5031 = vadd.f32 0.0, %v5030
        %v5032 = vpop.f32.mrb[0].mxu0
        %v5033 = vadd.f32 0.0, %v5032
        %v5034 = vpop.f32.mrb[0].mxu0
        %v5035 = vadd.f32 0.0, %v5034
        %5036 = vmatprep.mubr.bf16.mxu0 0
        %5037 = vmatmul.mubr.bf16.gmra.mrb[0].mxu0 %v4905
        %v5038 = vpop.f32.mrb[0].mxu0
        %v5039 = vadd.f32 0.0, %v5038
        %v5040 = vpop.f32.mrb[0].mxu0
        %v5041 = vadd.f32 0.0, %v5040
        %v5042 = vpop.f32.mrb[0].mxu0
        %v5043 = vadd.f32 0.0, %v5042
        %v5044 = vpop.f32.mrb[0].mxu0
        %v5045 = vadd.f32 0.0, %v5044
        %5046 = vmatprep.mubr.bf16.mxu0 0
        %5047 = vmatmul.mubr.bf16.gmra.mrb[0].mxu0 %v4908
        %v5048 = vpop.f32.mrb[0].mxu0
        %v5049 = vadd.f32 0.0, %v5048
        %v5050 = vpop.f32.mrb[0].mxu0
        %v5051 = vadd.f32 0.0, %v5050
        %v5052 = vpop.f32.mrb[0].mxu0
        %v5053 = vadd.f32 0.0, %v5052
        %v5054 = vpop.f32.mrb[0].mxu0
        %v5055 = vadd.f32 0.0, %v5054
        %5056 = vmatprep.mubr.bf16.mxu0 0
        %5057 = vmatmul.mubr.bf16.gmra.mrb[0].mxu0 %v4911
        %v5058 = vpop.f32.mrb[0].mxu0
        %v5059 = vadd.f32 0.0, %v5058
        %v5060 = vpop.f32.mrb[0].mxu0
        %v5061 = vadd.f32 0.0, %v5060
        %v5062 = vpop.f32.mrb[0].mxu0
        %v5063 = vadd.f32 0.0, %v5062
        %v5064 = vpop.f32.mrb[0].mxu0
        %v5065 = vadd.f32 0.0, %v5064
        %5066 = vmatprep.mubr.bf16.mxu0 0
        %5067 = vmatmul.mubr.bf16.gmra.mrb[0].mxu0 %v4914
        %v5068 = vpop.f32.mrb[0].mxu0
        %v5069 = vadd.f32 0.0, %v5068
        %v5070 = vpop.f32.mrb[0].mxu0
        %v5071 = vadd.f32 0.0, %v5070
        %v5072 = vpop.f32.mrb[0].mxu0
        %v5073 = vadd.f32 0.0, %v5072
        %v5074 = vpop.f32.mrb[0].mxu0
        %v5075 = vadd.f32 0.0, %v5074
        %5076 = vmatprep.mubr.bf16.mxu0 0
        %5077 = vmatmul.mubr.bf16.gmra.mrb[0].mxu0 %v4917
        %v5078 = vpop.f32.mrb[0].mxu0
        %v5079 = vadd.f32 0.0, %v5078
        %v5080 = vpop.f32.mrb[0].mxu0
        %v5081 = vadd.f32 0.0, %v5080
        %v5082 = vpop.f32.mrb[0].mxu0
        %v5083 = vadd.f32 0.0, %v5082
        %v5084 = vpop.f32.mrb[0].mxu0
        %v5085 = vadd.f32 0.0, %v5084
        %5086 = vmatprep.mubr.bf16.mxu0 0
        %5087 = vmatmul.mubr.bf16.gmra.mrb[0].mxu0 %v4920
        %v5088 = vpop.f32.mrb[0].mxu0
        %v5089 = vadd.f32 0.0, %v5088
        %v5090 = vpop.f32.mrb[0].mxu0
        %v5091 = vadd.f32 0.0, %v5090
        %v5092 = vpop.f32.mrb[0].mxu0
        %v5093 = vadd.f32 0.0, %v5092
        %v5094 = vpop.f32.mrb[0].mxu0
        %v5095 = vadd.f32 0.0, %v5094
        %5096 = vmatprep.mubr.bf16.mxu0 0
        %5097 = vmatmul.mubr.bf16.gmra.mrb[0].mxu0 %v4923
        %v5098 = vpop.f32.mrb[0].mxu0
        %v5099 = vadd.f32 0.0, %v5098
        %v5100 = vpop.f32.mrb[0].mxu0
        %v5101 = vadd.f32 0.0, %v5100
        %v5102 = vpop.f32.mrb[0].mxu0
        %v5103 = vadd.f32 0.0, %v5102
        %v5104 = vpop.f32.mrb[0].mxu0
        %v5105 = vadd.f32 0.0, %v5104
        %5106 = vmatprep.mubr.bf16.mxu0 0
        %5107 = vmatmul.mubr.bf16.gmra.mrb[0].mxu0 %v4926
        %v5108 = vpop.f32.mrb[0].mxu0
        %v5109 = vadd.f32 0.0, %v5108
        %v5110 = vpop.f32.mrb[0].mxu0
        %v5111 = vadd.f32 0.0, %v5110
        %v5112 = vpop.f32.mrb[0].mxu0
        %v5113 = vadd.f32 0.0, %v5112
        %v5114 = vpop.f32.mrb[0].mxu0
        %v5115 = vadd.f32 0.0, %v5114
        %5116 = vdwg.mxu0
        %v5117 = vmul.f32 %v4999, 0.35355338
        %v5118 = vmul.f32 %v5001, 0.35355338
        %v5119 = vmul.f32 %v5003, 0.35355338
        %v5120 = vmul.f32 %v5005, 0.35355338
        %v5121 = vmul.f32 %v5009, 0.35355338
        %v5122 = vmul.f32 %v5011, 0.35355338
        %v5123 = vmul.f32 %v5013, 0.35355338
        %v5124 = vmul.f32 %v5015, 0.35355338
        %v5125 = vmul.f32 %v5019, 0.35355338
        %v5126 = vmul.f32 %v5021, 0.35355338
        %v5127 = vmul.f32 %v5023, 0.35355338
        %v5128 = vmul.f32 %v5025, 0.35355338
        %v5129 = vmul.f32 %v5029, 0.35355338
        %v5130 = vmul.f32 %v5031, 0.35355338
        %v5131 = vmul.f32 %v5033, 0.35355338
        %v5132 = vmul.f32 %v5035, 0.35355338
        %v5133 = vmul.f32 %v5039, 0.35355338
        %v5134 = vmul.f32 %v5041, 0.35355338
        %v5135 = vmul.f32 %v5043, 0.35355338
        %v5136 = vmul.f32 %v5045, 0.35355338
        %v5137 = vmul.f32 %v5049, 0.35355338
        %v5138 = vmul.f32 %v5051, 0.35355338
        %v5139 = vmul.f32 %v5053, 0.35355338
        %v5140 = vmul.f32 %v5055, 0.35355338
        %v5141 = vmul.f32 %v5059, 0.35355338
        %v5142 = vmul.f32 %v5061, 0.35355338
        %v5143 = vmul.f32 %v5063, 0.35355338
        %v5144 = vmul.f32 %v5065, 0.35355338
        %v5145 = vmul.f32 %v5069, 0.35355338
        %v5146 = vmul.f32 %v5071, 0.35355338
        %v5147 = vmul.f32 %v5073, 0.35355338
        %v5148 = vmul.f32 %v5075, 0.35355338
        %v5149 = vmul.f32 %v5079, 0.35355338
        %v5150 = vmul.f32 %v5081, 0.35355338
        %v5151 = vmul.f32 %v5083, 0.35355338
        %v5152 = vmul.f32 %v5085, 0.35355338
        %v5153 = vmul.f32 %v5089, 0.35355338
        %v5154 = vmul.f32 %v5091, 0.35355338
        %v5155 = vmul.f32 %v5093, 0.35355338
        %v5156 = vmul.f32 %v5095, 0.35355338
        %v5157 = vmul.f32 %v5099, 0.35355338
        %v5158 = vmul.f32 %v5101, 0.35355338
        %v5159 = vmul.f32 %v5103, 0.35355338
        %v5160 = vmul.f32 %v5105, 0.35355338
        %v5161 = vmul.f32 %v5109, 0.35355338
        %v5162 = vmul.f32 %v5111, 0.35355338
        %v5163 = vmul.f32 %v5113, 0.35355338
        %v5164 = vmul.f32 %v5115, 0.35355338
        %v5165 = vadd.f32 %v5117, %v1268
        %v5166 = vadd.f32 %v5118, %v1269
        %v5167 = vadd.f32 %v5119, %v1270
        %v5168 = vadd.f32 %v5120, %v1271
        %v5169 = vadd.f32 %v5121, %v1272
        %v5170 = vadd.f32 %v5122, %v1273
        %v5171 = vadd.f32 %v5123, %v1274
        %v5172 = vadd.f32 %v5124, %v1275
        %v5173 = vadd.f32 %v5125, %v1276
        %v5174 = vadd.f32 %v5126, %v1277
        %v5175 = vadd.f32 %v5127, %v1278
        %v5176 = vadd.f32 %v5128, %v1279
        %v5177 = vadd.f32 %v5129, %v1280
        %v5178 = vadd.f32 %v5130, %v1281
        %v5179 = vadd.f32 %v5131, %v1282
        %v5180 = vadd.f32 %v5132, %v1283
        %v5181 = vadd.f32 %v5133, %v1284
        %v5182 = vadd.f32 %v5134, %v1285
        %v5183 = vadd.f32 %v5135, %v1286
        %v5184 = vadd.f32 %v5136, %v1287
        %v5185 = vadd.f32 %v5137, %v1288
        %v5186 = vadd.f32 %v5138, %v1289
        %v5187 = vadd.f32 %v5139, %v1290
        %v5188 = vadd.f32 %v5140, %v1291
        %v5189 = vadd.f32 %v5141, %v1292
        %v5190 = vadd.f32 %v5142, %v1293
        %v5191 = vadd.f32 %v5143, %v1294
        %v5192 = vadd.f32 %v5144, %v1295
        %v5193 = vadd.f32 %v5145, %v1296
        %v5194 = vadd.f32 %v5146, %v1297
        %v5195 = vadd.f32 %v5147, %v1298
        %v5196 = vadd.f32 %v5148, %v1299
        %v5197 = vadd.f32 %v5149, %v1300
        %v5198 = vadd.f32 %v5150, %v1301
        %v5199 = vadd.f32 %v5151, %v1302
        %v5200 = vadd.f32 %v5152, %v1303
        %v5201 = vadd.f32 %v5153, %v1304
        %v5202 = vadd.f32 %v5154, %v1305
        %v5203 = vadd.f32 %v5155, %v1306
        %v5204 = vadd.f32 %v5156, %v1307
        %v5205 = vadd.f32 %v5157, %v1308
        %v5206 = vadd.f32 %v5158, %v1309
        %v5207 = vadd.f32 %v5159, %v1310
        %v5208 = vadd.f32 %v5160, %v1311
        %v5209 = vadd.f32 %v5161, %v1312
        %v5210 = vadd.f32 %v5162, %v1313
        %v5211 = vadd.f32 %v5163, %v1314
        %v5212 = vadd.f32 %v5164, %v1315
        %v5213 = vsel %vm1674, %v5166, -inf
        %v5214 = vmax.f32 %v5165, %v5213
        %5215 = vmax.xlane.f32.xlu0 %v5214
        %v5216 = vpop.xlane.xlu0 %5215
        %v5217 = vsel %vm1674, %v5168, -inf
        %v5218 = vmax.f32 %v5167, %v5217
        %5219 = vmax.xlane.f32.xlu0 %v5218
        %v5220 = vpop.xlane.xlu0 %5219
        %v5221 = vsel %vm1674, %v5170, -inf
        %v5222 = vmax.f32 %v5169, %v5221
        %5223 = vmax.xlane.f32.xlu0 %v5222
        %v5224 = vpop.xlane.xlu0 %5223
        %v5225 = vsel %vm1674, %v5172, -inf
        %v5226 = vmax.f32 %v5171, %v5225
        %5227 = vmax.xlane.f32.xlu0 %v5226
        %v5228 = vpop.xlane.xlu0 %5227
        %v5229 = vsel %vm1674, %v5174, -inf
        %v5230 = vmax.f32 %v5173, %v5229
        %5231 = vmax.xlane.f32.xlu0 %v5230
        %v5232 = vpop.xlane.xlu0 %5231
        %v5233 = vsel %vm1674, %v5176, -inf
        %v5234 = vmax.f32 %v5175, %v5233
        %5235 = vmax.xlane.f32.xlu0 %v5234
        %v5236 = vpop.xlane.xlu0 %5235
        %v5237 = vsel %vm1674, %v5178, -inf
        %v5238 = vmax.f32 %v5177, %v5237
        %5239 = vmax.xlane.f32.xlu0 %v5238
        %v5240 = vpop.xlane.xlu0 %5239
        %v5241 = vsel %vm1674, %v5180, -inf
        %v5242 = vmax.f32 %v5179, %v5241
        %5243 = vmax.xlane.f32.xlu0 %v5242
        %v5244 = vpop.xlane.xlu0 %5243
        %v5245 = vsel %vm1674, %v5182, -inf
        %v5246 = vmax.f32 %v5181, %v5245
        %5247 = vmax.xlane.f32.xlu0 %v5246
        %v5248 = vpop.xlane.xlu0 %5247
        %v5249 = vsel %vm1674, %v5184, -inf
        %v5250 = vmax.f32 %v5183, %v5249
        %5251 = vmax.xlane.f32.xlu0 %v5250
        %v5252 = vpop.xlane.xlu0 %5251
        %v5253 = vsel %vm1674, %v5186, -inf
        %v5254 = vmax.f32 %v5185, %v5253
        %5255 = vmax.xlane.f32.xlu0 %v5254
        %v5256 = vpop.xlane.xlu0 %5255
        %v5257 = vsel %vm1674, %v5188, -inf
        %v5258 = vmax.f32 %v5187, %v5257
        %5259 = vmax.xlane.f32.xlu0 %v5258
        %v5260 = vpop.xlane.xlu0 %5259
        %v5261 = vsel %vm1674, %v5190, -inf
        %v5262 = vmax.f32 %v5189, %v5261
        %5263 = vmax.xlane.f32.xlu0 %v5262
        %v5264 = vpop.xlane.xlu0 %5263
        %v5265 = vsel %vm1674, %v5192, -inf
        %v5266 = vmax.f32 %v5191, %v5265
        %5267 = vmax.xlane.f32.xlu0 %v5266
        %v5268 = vpop.xlane.xlu0 %5267
        %v5269 = vsel %vm1674, %v5194, -inf
        %v5270 = vmax.f32 %v5193, %v5269
        %5271 = vmax.xlane.f32.xlu0 %v5270
        %v5272 = vpop.xlane.xlu0 %5271
        %v5273 = vsel %vm1674, %v5196, -inf
        %v5274 = vmax.f32 %v5195, %v5273
        %5275 = vmax.xlane.f32.xlu0 %v5274
        %v5276 = vpop.xlane.xlu0 %5275
        %v5277 = vsel %vm1674, %v5198, -inf
        %v5278 = vmax.f32 %v5197, %v5277
        %5279 = vmax.xlane.f32.xlu0 %v5278
        %v5280 = vpop.xlane.xlu0 %5279
        %v5281 = vsel %vm1674, %v5200, -inf
        %v5282 = vmax.f32 %v5199, %v5281
        %5283 = vmax.xlane.f32.xlu0 %v5282
        %v5284 = vpop.xlane.xlu0 %5283
        %v5285 = vsel %vm1674, %v5202, -inf
        %v5286 = vmax.f32 %v5201, %v5285
        %5287 = vmax.xlane.f32.xlu0 %v5286
        %v5288 = vpop.xlane.xlu0 %5287
        %v5289 = vsel %vm1674, %v5204, -inf
        %v5290 = vmax.f32 %v5203, %v5289
        %5291 = vmax.xlane.f32.xlu0 %v5290
        %v5292 = vpop.xlane.xlu0 %5291
        %v5293 = vsel %vm1674, %v5206, -inf
        %v5294 = vmax.f32 %v5205, %v5293
        %5295 = vmax.xlane.f32.xlu0 %v5294
        %v5296 = vpop.xlane.xlu0 %5295
        %v5297 = vsel %vm1674, %v5208, -inf
        %v5298 = vmax.f32 %v5207, %v5297
        %5299 = vmax.xlane.f32.xlu0 %v5298
        %v5300 = vpop.xlane.xlu0 %5299
        %v5301 = vsel %vm1674, %v5210, -inf
        %v5302 = vmax.f32 %v5209, %v5301
        %5303 = vmax.xlane.f32.xlu0 %v5302
        %v5304 = vpop.xlane.xlu0 %5303
        %v5305 = vsel %vm1674, %v5212, -inf
        %v5306 = vmax.f32 %v5211, %v5305
        %5307 = vmax.xlane.f32.xlu0 %v5306
        %v5308 = vpop.xlane.xlu0 %5307
        %v5309 = vsub.f32 %v5165, %v5216
        %v5310 = vsub.f32 %v5166, %v5216
        %v5311 = vsub.f32 %v5167, %v5220
        %v5312 = vsub.f32 %v5168, %v5220
        %v5313 = vsub.f32 %v5169, %v5224
        %v5314 = vsub.f32 %v5170, %v5224
        %v5315 = vsub.f32 %v5171, %v5228
        %v5316 = vsub.f32 %v5172, %v5228
        %v5317 = vsub.f32 %v5173, %v5232
        %v5318 = vsub.f32 %v5174, %v5232
        %v5319 = vsub.f32 %v5175, %v5236
        %v5320 = vsub.f32 %v5176, %v5236
        %v5321 = vsub.f32 %v5177, %v5240
        %v5322 = vsub.f32 %v5178, %v5240
        %v5323 = vsub.f32 %v5179, %v5244
        %v5324 = vsub.f32 %v5180, %v5244
        %v5325 = vsub.f32 %v5181, %v5248
        %v5326 = vsub.f32 %v5182, %v5248
        %v5327 = vsub.f32 %v5183, %v5252
        %v5328 = vsub.f32 %v5184, %v5252
        %v5329 = vsub.f32 %v5185, %v5256
        %v5330 = vsub.f32 %v5186, %v5256
        %v5331 = vsub.f32 %v5187, %v5260
        %v5332 = vsub.f32 %v5188, %v5260
        %v5333 = vsub.f32 %v5189, %v5264
        %v5334 = vsub.f32 %v5190, %v5264
        %v5335 = vsub.f32 %v5191, %v5268
        %v5336 = vsub.f32 %v5192, %v5268
        %v5337 = vsub.f32 %v5193, %v5272
        %v5338 = vsub.f32 %v5194, %v5272
        %v5339 = vsub.f32 %v5195, %v5276
        %v5340 = vsub.f32 %v5196, %v5276
        %v5341 = vsub.f32 %v5197, %v5280
        %v5342 = vsub.f32 %v5198, %v5280
        %v5343 = vsub.f32 %v5199, %v5284
        %v5344 = vsub.f32 %v5200, %v5284
        %v5345 = vsub.f32 %v5201, %v5288
        %v5346 = vsub.f32 %v5202, %v5288
        %v5347 = vsub.f32 %v5203, %v5292
        %v5348 = vsub.f32 %v5204, %v5292
        %v5349 = vsub.f32 %v5205, %v5296
        %v5350 = vsub.f32 %v5206, %v5296
        %v5351 = vsub.f32 %v5207, %v5300
        %v5352 = vsub.f32 %v5208, %v5300
        %v5353 = vsub.f32 %v5209, %v5304
        %v5354 = vsub.f32 %v5210, %v5304
        %v5355 = vsub.f32 %v5211, %v5308
        %v5356 = vsub.f32 %v5212, %v5308
        %v5357 = vmul.f32 %v5309, 1.442695
        %v5358 = vpow.pop %v5357
        %v5359 = vmul.f32 %v5310, 1.442695
        %v5360 = vpow.pop %v5359
        %v5361 = vmul.f32 %v5311, 1.442695
        %v5362 = vpow.pop %v5361
        %v5363 = vmul.f32 %v5312, 1.442695
        %v5364 = vpow.pop %v5363
        %v5365 = vmul.f32 %v5313, 1.442695
        %v5366 = vpow.pop %v5365
        %v5367 = vmul.f32 %v5314, 1.442695
        %v5368 = vpow.pop %v5367
        %v5369 = vmul.f32 %v5315, 1.442695
        %v5370 = vpow.pop %v5369
        %v5371 = vmul.f32 %v5316, 1.442695
        %v5372 = vpow.pop %v5371
        %v5373 = vmul.f32 %v5317, 1.442695
        %v5374 = vpow.pop %v5373
        %v5375 = vmul.f32 %v5318, 1.442695
        %v5376 = vpow.pop %v5375
        %v5377 = vmul.f32 %v5319, 1.442695
        %v5378 = vpow.pop %v5377
        %v5379 = vmul.f32 %v5320, 1.442695
        %v5380 = vpow.pop %v5379
        %v5381 = vmul.f32 %v5321, 1.442695
        %v5382 = vpow.pop %v5381
        %v5383 = vmul.f32 %v5322, 1.442695
        %v5384 = vpow.pop %v5383
        %v5385 = vmul.f32 %v5323, 1.442695
        %v5386 = vpow.pop %v5385
        %v5387 = vmul.f32 %v5324, 1.442695
        %v5388 = vpow.pop %v5387
        %v5389 = vmul.f32 %v5325, 1.442695
        %v5390 = vpow.pop %v5389
        %v5391 = vmul.f32 %v5326, 1.442695
        %v5392 = vpow.pop %v5391
        %v5393 = vmul.f32 %v5327, 1.442695
        %v5394 = vpow.pop %v5393
        %v5395 = vmul.f32 %v5328, 1.442695
        %v5396 = vpow.pop %v5395
        %v5397 = vmul.f32 %v5329, 1.442695
        %v5398 = vpow.pop %v5397
        %v5399 = vmul.f32 %v5330, 1.442695
        %v5400 = vpow.pop %v5399
        %v5401 = vmul.f32 %v5331, 1.442695
        %v5402 = vpow.pop %v5401
        %v5403 = vmul.f32 %v5332, 1.442695
        %v5404 = vpow.pop %v5403
        %v5405 = vmul.f32 %v5333, 1.442695
        %v5406 = vpow.pop %v5405
        %v5407 = vmul.f32 %v5334, 1.442695
        %v5408 = vpow.pop %v5407
        %v5409 = vmul.f32 %v5335, 1.442695
        %v5410 = vpow.pop %v5409
        %v5411 = vmul.f32 %v5336, 1.442695
        %v5412 = vpow.pop %v5411
        %v5413 = vmul.f32 %v5337, 1.442695
        %v5414 = vpow.pop %v5413
        %v5415 = vmul.f32 %v5338, 1.442695
        %v5416 = vpow.pop %v5415
        %v5417 = vmul.f32 %v5339, 1.442695
        %v5418 = vpow.pop %v5417
        %v5419 = vmul.f32 %v5340, 1.442695
        %v5420 = vpow.pop %v5419
        %v5421 = vmul.f32 %v5341, 1.442695
        %v5422 = vpow.pop %v5421
        %v5423 = vmul.f32 %v5342, 1.442695
        %v5424 = vpow.pop %v5423
        %v5425 = vmul.f32 %v5343, 1.442695
        %v5426 = vpow.pop %v5425
        %v5427 = vmul.f32 %v5344, 1.442695
        %v5428 = vpow.pop %v5427
        %v5429 = vmul.f32 %v5345, 1.442695
        %v5430 = vpow.pop %v5429
        %v5431 = vmul.f32 %v5346, 1.442695
        %v5432 = vpow.pop %v5431
        %v5433 = vmul.f32 %v5347, 1.442695
        %v5434 = vpow.pop %v5433
        %v5435 = vmul.f32 %v5348, 1.442695
        %v5436 = vpow.pop %v5435
        %v5437 = vmul.f32 %v5349, 1.442695
        %v5438 = vpow.pop %v5437
        %v5439 = vmul.f32 %v5350, 1.442695
        %v5440 = vpow.pop %v5439
        %v5441 = vmul.f32 %v5351, 1.442695
        %v5442 = vpow.pop %v5441
        %v5443 = vmul.f32 %v5352, 1.442695
        %v5444 = vpow.pop %v5443
        %v5445 = vmul.f32 %v5353, 1.442695
        %v5446 = vpow.pop %v5445
        %v5447 = vmul.f32 %v5354, 1.442695
        %v5448 = vpow.pop %v5447
        %v5449 = vmul.f32 %v5355, 1.442695
        %v5450 = vpow.pop %v5449
        %v5451 = vmul.f32 %v5356, 1.442695
        %v5452 = vpow.pop %v5451
        %v5453 = vsel %vm1674, %v5360, 0.0
        %v5454 = vadd.f32 %v5358, %v5453
        %5455 = vadd.xlane.f32.xlu0 %v5454
        %v5456 = vpop.xlane.xlu0 %5455
        %v5457 = vsel %vm1674, %v5364, 0.0
        %v5458 = vadd.f32 %v5362, %v5457
        %5459 = vadd.xlane.f32.xlu0 %v5458
        %v5460 = vpop.xlane.xlu0 %5459
        %v5461 = vsel %vm1674, %v5368, 0.0
        %v5462 = vadd.f32 %v5366, %v5461
        %5463 = vadd.xlane.f32.xlu0 %v5462
        %v5464 = vpop.xlane.xlu0 %5463
        %v5465 = vsel %vm1674, %v5372, 0.0
        %v5466 = vadd.f32 %v5370, %v5465
        %5467 = vadd.xlane.f32.xlu0 %v5466
        %v5468 = vpop.xlane.xlu0 %5467
        %v5469 = vsel %vm1674, %v5376, 0.0
        %v5470 = vadd.f32 %v5374, %v5469
        %5471 = vadd.xlane.f32.xlu0 %v5470
        %v5472 = vpop.xlane.xlu0 %5471
        %v5473 = vsel %vm1674, %v5380, 0.0
        %v5474 = vadd.f32 %v5378, %v5473
        %5475 = vadd.xlane.f32.xlu0 %v5474
        %v5476 = vpop.xlane.xlu0 %5475
        %v5477 = vsel %vm1674, %v5384, 0.0
        %v5478 = vadd.f32 %v5382, %v5477
        %5479 = vadd.xlane.f32.xlu0 %v5478
        %v5480 = vpop.xlane.xlu0 %5479
        %v5481 = vsel %vm1674, %v5388, 0.0
        %v5482 = vadd.f32 %v5386, %v5481
        %5483 = vadd.xlane.f32.xlu0 %v5482
        %v5484 = vpop.xlane.xlu0 %5483
        %v5485 = vsel %vm1674, %v5392, 0.0
        %v5486 = vadd.f32 %v5390, %v5485
        %5487 = vadd.xlane.f32.xlu0 %v5486
        %v5488 = vpop.xlane.xlu0 %5487
        %v5489 = vsel %vm1674, %v5396, 0.0
        %v5490 = vadd.f32 %v5394, %v5489
        %5491 = vadd.xlane.f32.xlu0 %v5490
        %v5492 = vpop.xlane.xlu0 %5491
        %v5493 = vsel %vm1674, %v5400, 0.0
        %v5494 = vadd.f32 %v5398, %v5493
        %5495 = vadd.xlane.f32.xlu0 %v5494
        %v5496 = vpop.xlane.xlu0 %5495
        %v5497 = vsel %vm1674, %v5404, 0.0
        %v5498 = vadd.f32 %v5402, %v5497
        %5499 = vadd.xlane.f32.xlu0 %v5498
        %v5500 = vpop.xlane.xlu0 %5499
        %v5501 = vsel %vm1674, %v5408, 0.0
        %v5502 = vadd.f32 %v5406, %v5501
        %5503 = vadd.xlane.f32.xlu0 %v5502
        %v5504 = vpop.xlane.xlu0 %5503
        %v5505 = vsel %vm1674, %v5412, 0.0
        %v5506 = vadd.f32 %v5410, %v5505
        %5507 = vadd.xlane.f32.xlu0 %v5506
        %v5508 = vpop.xlane.xlu0 %5507
        %v5509 = vsel %vm1674, %v5416, 0.0
        %v5510 = vadd.f32 %v5414, %v5509
        %5511 = vadd.xlane.f32.xlu0 %v5510
        %v5512 = vpop.xlane.xlu0 %5511
        %v5513 = vsel %vm1674, %v5420, 0.0
        %v5514 = vadd.f32 %v5418, %v5513
        %5515 = vadd.xlane.f32.xlu0 %v5514
        %v5516 = vpop.xlane.xlu0 %5515
        %v5517 = vsel %vm1674, %v5424, 0.0
        %v5518 = vadd.f32 %v5422, %v5517
        %5519 = vadd.xlane.f32.xlu0 %v5518
        %v5520 = vpop.xlane.xlu0 %5519
        %v5521 = vsel %vm1674, %v5428, 0.0
        %v5522 = vadd.f32 %v5426, %v5521
        %5523 = vadd.xlane.f32.xlu0 %v5522
        %v5524 = vpop.xlane.xlu0 %5523
        %v5525 = vsel %vm1674, %v5432, 0.0
        %v5526 = vadd.f32 %v5430, %v5525
        %5527 = vadd.xlane.f32.xlu0 %v5526
        %v5528 = vpop.xlane.xlu0 %5527
        %v5529 = vsel %vm1674, %v5436, 0.0
        %v5530 = vadd.f32 %v5434, %v5529
        %5531 = vadd.xlane.f32.xlu0 %v5530
        %v5532 = vpop.xlane.xlu0 %5531
        %v5533 = vsel %vm1674, %v5440, 0.0
        %v5534 = vadd.f32 %v5438, %v5533
        %5535 = vadd.xlane.f32.xlu0 %v5534
        %v5536 = vpop.xlane.xlu0 %5535
        %v5537 = vsel %vm1674, %v5444, 0.0
        %v5538 = vadd.f32 %v5442, %v5537
        %5539 = vadd.xlane.f32.xlu0 %v5538
        %v5540 = vpop.xlane.xlu0 %5539
        %v5541 = vsel %vm1674, %v5448, 0.0
        %v5542 = vadd.f32 %v5446, %v5541
        %5543 = vadd.xlane.f32.xlu0 %v5542
        %v5544 = vpop.xlane.xlu0 %5543
        %v5545 = vsel %vm1674, %v5452, 0.0
        %v5546 = vadd.f32 %v5450, %v5545
        %5547 = vadd.xlane.f32.xlu0 %v5546
        %v5548 = vpop.xlane.xlu0 %5547
        %v5549 = vrcp.pop %v5456
        %v5550 = vrcp.pop %v5460
        %v5551 = vrcp.pop %v5464
        %v5552 = vrcp.pop %v5468
        %v5553 = vrcp.pop %v5472
        %v5554 = vrcp.pop %v5476
        %v5555 = vrcp.pop %v5480
        %v5556 = vrcp.pop %v5484
        %v5557 = vrcp.pop %v5488
        %v5558 = vrcp.pop %v5492
        %v5559 = vrcp.pop %v5496
        %v5560 = vrcp.pop %v5500
        %v5561 = vrcp.pop %v5504
        %v5562 = vrcp.pop %v5508
        %v5563 = vrcp.pop %v5512
        %v5564 = vrcp.pop %v5516
        %v5565 = vrcp.pop %v5520
        %v5566 = vrcp.pop %v5524
        %v5567 = vrcp.pop %v5528
        %v5568 = vrcp.pop %v5532
        %v5569 = vrcp.pop %v5536
        %v5570 = vrcp.pop %v5540
        %v5571 = vrcp.pop %v5544
        %v5572 = vrcp.pop %v5548
        %v5573 = vmul.f32 %v5358, %v5549
        %v5574 = vmul.f32 %v5360, %v5549
        %v5575 = vmul.f32 %v5362, %v5550
        %v5576 = vmul.f32 %v5364, %v5550
        %v5577 = vmul.f32 %v5366, %v5551
        %v5578 = vmul.f32 %v5368, %v5551
        %v5579 = vmul.f32 %v5370, %v5552
        %v5580 = vmul.f32 %v5372, %v5552
        %v5581 = vmul.f32 %v5374, %v5553
        %v5582 = vmul.f32 %v5376, %v5553
        %v5583 = vmul.f32 %v5378, %v5554
        %v5584 = vmul.f32 %v5380, %v5554
        %v5585 = vmul.f32 %v5382, %v5555
        %v5586 = vmul.f32 %v5384, %v5555
        %v5587 = vmul.f32 %v5386, %v5556
        %v5588 = vmul.f32 %v5388, %v5556
        %v5589 = vmul.f32 %v5390, %v5557
        %v5590 = vmul.f32 %v5392, %v5557
        %v5591 = vmul.f32 %v5394, %v5558
        %v5592 = vmul.f32 %v5396, %v5558
        %v5593 = vmul.f32 %v5398, %v5559
        %v5594 = vmul.f32 %v5400, %v5559
        %v5595 = vmul.f32 %v5402, %v5560
        %v5596 = vmul.f32 %v5404, %v5560
        %v5597 = vmul.f32 %v5406, %v5561
        %v5598 = vmul.f32 %v5408, %v5561
        %v5599 = vmul.f32 %v5410, %v5562
        %v5600 = vmul.f32 %v5412, %v5562
        %v5601 = vmul.f32 %v5414, %v5563
        %v5602 = vmul.f32 %v5416, %v5563
        %v5603 = vmul.f32 %v5418, %v5564
        %v5604 = vmul.f32 %v5420, %v5564
        %v5605 = vmul.f32 %v5422, %v5565
        %v5606 = vmul.f32 %v5424, %v5565
        %v5607 = vmul.f32 %v5426, %v5566
        %v5608 = vmul.f32 %v5428, %v5566
        %v5609 = vmul.f32 %v5430, %v5567
        %v5610 = vmul.f32 %v5432, %v5567
        %v5611 = vmul.f32 %v5434, %v5568
        %v5612 = vmul.f32 %v5436, %v5568
        %v5613 = vmul.f32 %v5438, %v5569
        %v5614 = vmul.f32 %v5440, %v5569
        %v5615 = vmul.f32 %v5442, %v5570
        %v5616 = vmul.f32 %v5444, %v5570
        %v5617 = vmul.f32 %v5446, %v5571
        %v5618 = vmul.f32 %v5448, %v5571
        %v5619 = vmul.f32 %v5450, %v5572
        %v5620 = vmul.f32 %v5452, %v5572
        %v5621 = vld [vmem:[%s7 + $0xc] sm:$0xf]
        %5622 = vrot.lane.b32.xlu0 %v1256, 40
        %v5623 = vpop.permute.xlu0 %5622
        %5624 = vrot.lane.b32.xlu0 %v1257, 40
        %v5625 = vpop.permute.xlu0 %5624
        %5626 = vrot.lane.b32.xlu0 %v1258, 40
        %v5627 = vpop.permute.xlu0 %5626
        %5628 = vrot.lane.b32.xlu0 %v1259, 40
        %v5629 = vpop.permute.xlu0 %5628
        %5630 = vrot.lane.b32.xlu0 %v1260, 40
        %v5631 = vpop.permute.xlu0 %5630
        %5632 = vrot.lane.b32.xlu0 %v1261, 40
        %v5633 = vpop.permute.xlu0 %5632
        %5634 = vrot.lane.b32.xlu0 %v1262, 40
        %v5635 = vpop.permute.xlu0 %5634
        %5636 = vrot.lane.b32.xlu0 %v1263, 40
        %v5637 = vpop.permute.xlu0 %5636
        %5638 = vrot.lane.b32.xlu0 %v1264, 40
        %v5639 = vpop.permute.xlu0 %5638
        %5640 = vrot.lane.b32.xlu0 %v1265, 40
        %v5641 = vpop.permute.xlu0 %5640
        %5642 = vrot.lane.b32.xlu0 %v1266, 40
        %v5643 = vpop.permute.xlu0 %5642
        %5644 = vrot.lane.b32.xlu0 %v1267, 40
        %v5645 = vpop.permute.xlu0 %5644
        %v5647 = vsel %vm1352, %v5623, 0
        %v5650 = vsel %vm1352, %v5625, 0
        %v5653 = vsel %vm1352, %v5627, 0
        %v5656 = vsel %vm1352, %v5629, 0
        %v5659 = vsel %vm1352, %v5631, 0
        %v5662 = vsel %vm1352, %v5633, 0
        %v5665 = vsel %vm1352, %v5635, 0
        %v5668 = vsel %vm1352, %v5637, 0
        %v5671 = vsel %vm1352, %v5639, 0
        %v5674 = vsel %vm1352, %v5641, 0
        %v5677 = vsel %vm1352, %v5643, 0
        %v5680 = vsel %vm1352, %v5645, 0
        %v5683 = vsel %vm2144, %v5621, 0
        %5685 = vmatprep.subr.bf16.mxu0 0
        %5686 = vmatpush1.bf16.msra.mxu0 %v5683
        %5687 = vmatprep.subr.bf16.mxu0 0
        %5688 = vmatpush1.bf16.msra.mxu0 0
        %5689 = vmatprep.subr.bf16.mxu0 0
        %5690 = vmatpush1.bf16.msra.mxu0 0
        %5691 = vmatprep.subr.bf16.mxu0 0
        %5692 = vmatpush1.bf16.msra.mxu0 0
        %5693 = vmatprep.subr.bf16.mxu0 0
        %5694 = vmatpush1.bf16.msra.mxu0 0
        %5695 = vmatprep.subr.bf16.mxu0 0
        %5696 = vmatpush1.bf16.msra.mxu0 0
        %5697 = vmatprep.subr.bf16.mxu0 0
        %5698 = vmatpush1.bf16.msra.mxu0 0
        %5699 = vmatprep.subr.bf16.mxu0 0
        %5700 = vmatpush1.bf16.msra.mxu0 0
        %5701 = vmatprep.subr.bf16.mxu0 0
        %5702 = vmatpush1.bf16.msra.mxu0 0
        %5703 = vmatprep.subr.bf16.mxu0 0
        %5704 = vmatpush1.bf16.msra.mxu0 0
        %5705 = vmatprep.subr.bf16.mxu0 0
        %5706 = vmatpush1.bf16.msra.mxu0 0
        %5707 = vmatprep.subr.bf16.mxu0 0
        %5708 = vmatpush1.bf16.msra.mxu0 0
        %5709 = vmatprep.subr.bf16.mxu0 0
        %5710 = vmatpush1.bf16.msra.mxu0 0
        %5711 = vmatprep.subr.bf16.mxu0 0
        %5712 = vmatpush1.bf16.msra.mxu0 0
        %5713 = vmatprep.subr.bf16.mxu0 0
        %5714 = vmatpush1.bf16.msra.mxu0 0
        %5715 = vmatprep.subr.bf16.mxu0 0
        %5716 = vmatpush1.bf16.msra.mxu0 0
        %5717 = vmatprep.mubr.bf16.mxu0 0
        %5718 = vmatmul.mubr.bf16.gmra.mrb[0].mxu0 %v5647
        %v5719 = vpop.f32.mrb[0].mxu0
        %v5720 = vadd.f32 0.0, %v5719
        %v5721 = vpop.f32.mrb[0].mxu0
        %v5722 = vpop.f32.mrb[0].mxu0
        %v5723 = vadd.f32 0.0, %v5722
        %v5724 = vpop.f32.mrb[0].mxu0
        %5725 = vmatprep.mubr.bf16.mxu0 0
        %5726 = vmatmul.mubr.bf16.gmra.mrb[0].mxu0 %v5650
        %v5727 = vpop.f32.mrb[0].mxu0
        %v5728 = vadd.f32 0.0, %v5727
        %v5729 = vpop.f32.mrb[0].mxu0
        %v5730 = vpop.f32.mrb[0].mxu0
        %v5731 = vadd.f32 0.0, %v5730
        %v5732 = vpop.f32.mrb[0].mxu0
        %5733 = vmatprep.mubr.bf16.mxu0 0
        %5734 = vmatmul.mubr.bf16.gmra.mrb[0].mxu0 %v5653
        %v5735 = vpop.f32.mrb[0].mxu0
        %v5736 = vadd.f32 0.0, %v5735
        %v5737 = vpop.f32.mrb[0].mxu0
        %v5738 = vpop.f32.mrb[0].mxu0
        %v5739 = vadd.f32 0.0, %v5738
        %v5740 = vpop.f32.mrb[0].mxu0
        %5741 = vmatprep.mubr.bf16.mxu0 0
        %5742 = vmatmul.mubr.bf16.gmra.mrb[0].mxu0 %v5656
        %v5743 = vpop.f32.mrb[0].mxu0
        %v5744 = vadd.f32 0.0, %v5743
        %v5745 = vpop.f32.mrb[0].mxu0
        %v5746 = vpop.f32.mrb[0].mxu0
        %v5747 = vadd.f32 0.0, %v5746
        %v5748 = vpop.f32.mrb[0].mxu0
        %5749 = vmatprep.mubr.bf16.mxu0 0
        %5750 = vmatmul.mubr.bf16.gmra.mrb[0].mxu0 %v5659
        %v5751 = vpop.f32.mrb[0].mxu0
        %v5752 = vadd.f32 0.0, %v5751
        %v5753 = vpop.f32.mrb[0].mxu0
        %v5754 = vpop.f32.mrb[0].mxu0
        %v5755 = vadd.f32 0.0, %v5754
        %v5756 = vpop.f32.mrb[0].mxu0
        %5757 = vmatprep.mubr.bf16.mxu0 0
        %5758 = vmatmul.mubr.bf16.gmra.mrb[0].mxu0 %v5662
        %v5759 = vpop.f32.mrb[0].mxu0
        %v5760 = vadd.f32 0.0, %v5759
        %v5761 = vpop.f32.mrb[0].mxu0
        %v5762 = vpop.f32.mrb[0].mxu0
        %v5763 = vadd.f32 0.0, %v5762
        %v5764 = vpop.f32.mrb[0].mxu0
        %5765 = vmatprep.mubr.bf16.mxu0 0
        %5766 = vmatmul.mubr.bf16.gmra.mrb[0].mxu0 %v5665
        %v5767 = vpop.f32.mrb[0].mxu0
        %v5768 = vadd.f32 0.0, %v5767
        %v5769 = vpop.f32.mrb[0].mxu0
        %v5770 = vpop.f32.mrb[0].mxu0
        %v5771 = vadd.f32 0.0, %v5770
        %v5772 = vpop.f32.mrb[0].mxu0
        %5773 = vmatprep.mubr.bf16.mxu0 0
        %5774 = vmatmul.mubr.bf16.gmra.mrb[0].mxu0 %v5668
        %v5775 = vpop.f32.mrb[0].mxu0
        %v5776 = vadd.f32 0.0, %v5775
        %v5777 = vpop.f32.mrb[0].mxu0
        %v5778 = vpop.f32.mrb[0].mxu0
        %v5779 = vadd.f32 0.0, %v5778
        %v5780 = vpop.f32.mrb[0].mxu0
        %5781 = vmatprep.mubr.bf16.mxu0 0
        %5782 = vmatmul.mubr.bf16.gmra.mrb[0].mxu0 %v5671
        %v5783 = vpop.f32.mrb[0].mxu0
        %v5784 = vadd.f32 0.0, %v5783
        %v5785 = vpop.f32.mrb[0].mxu0
        %v5786 = vpop.f32.mrb[0].mxu0
        %v5787 = vadd.f32 0.0, %v5786
        %v5788 = vpop.f32.mrb[0].mxu0
        %5789 = vmatprep.mubr.bf16.mxu0 0
        %5790 = vmatmul.mubr.bf16.gmra.mrb[0].mxu0 %v5674
        %v5791 = vpop.f32.mrb[0].mxu0
        %v5792 = vadd.f32 0.0, %v5791
        %v5793 = vpop.f32.mrb[0].mxu0
        %v5794 = vpop.f32.mrb[0].mxu0
        %v5795 = vadd.f32 0.0, %v5794
        %v5796 = vpop.f32.mrb[0].mxu0
        %5797 = vmatprep.mubr.bf16.mxu0 0
        %5798 = vmatmul.mubr.bf16.gmra.mrb[0].mxu0 %v5677
        %v5799 = vpop.f32.mrb[0].mxu0
        %v5800 = vadd.f32 0.0, %v5799
        %v5801 = vpop.f32.mrb[0].mxu0
        %v5802 = vpop.f32.mrb[0].mxu0
        %v5803 = vadd.f32 0.0, %v5802
        %v5804 = vpop.f32.mrb[0].mxu0
        %5805 = vmatprep.mubr.bf16.mxu0 0
        %5806 = vmatmul.mubr.bf16.gmra.mrb[0].mxu0 %v5680
        %v5807 = vpop.f32.mrb[0].mxu0
        %v5808 = vadd.f32 0.0, %v5807
        %v5809 = vpop.f32.mrb[0].mxu0
        %v5810 = vpop.f32.mrb[0].mxu0
        %v5811 = vadd.f32 0.0, %v5810
        %v5812 = vpop.f32.mrb[0].mxu0
        %5813 = vdwg.mxu0
        %v5814 = vpack.c.bf16 %v5723, %v5720
        %v5815 = vpack.c.bf16 %v5731, %v5728
        %v5816 = vpack.c.bf16 %v5739, %v5736
        %v5817 = vpack.c.bf16 %v5747, %v5744
        %v5818 = vpack.c.bf16 %v5755, %v5752
        %v5819 = vpack.c.bf16 %v5763, %v5760
        %v5820 = vpack.c.bf16 %v5771, %v5768
        %v5821 = vpack.c.bf16 %v5779, %v5776
        %v5822 = vpack.c.bf16 %v5787, %v5784
        %v5823 = vpack.c.bf16 %v5795, %v5792
        %v5824 = vpack.c.bf16 %v5803, %v5800
        %v5825 = vpack.c.bf16 %v5811, %v5808
        %v5826 = vpack.c.bf16 %v5575, %v5573
        %v5827 = vpack.c.bf16 %v5576, %v5574
        %v5828 = vpack.c.bf16 %v5579, %v5577
        %v5829 = vpack.c.bf16 %v5580, %v5578
        %v5830 = vpack.c.bf16 %v5583, %v5581
        %v5831 = vpack.c.bf16 %v5584, %v5582
        %v5832 = vpack.c.bf16 %v5587, %v5585
        %v5833 = vpack.c.bf16 %v5588, %v5586
        %v5834 = vpack.c.bf16 %v5591, %v5589
        %v5835 = vpack.c.bf16 %v5592, %v5590
        %v5836 = vpack.c.bf16 %v5595, %v5593
        %v5837 = vpack.c.bf16 %v5596, %v5594
        %v5838 = vpack.c.bf16 %v5599, %v5597
        %v5839 = vpack.c.bf16 %v5600, %v5598
        %v5840 = vpack.c.bf16 %v5603, %v5601
        %v5841 = vpack.c.bf16 %v5604, %v5602
        %v5842 = vpack.c.bf16 %v5607, %v5605
        %v5843 = vpack.c.bf16 %v5608, %v5606
        %v5844 = vpack.c.bf16 %v5611, %v5609
        %v5845 = vpack.c.bf16 %v5612, %v5610
        %v5846 = vpack.c.bf16 %v5615, %v5613
        %v5847 = vpack.c.bf16 %v5616, %v5614
        %v5848 = vpack.c.bf16 %v5619, %v5617
        %v5849 = vpack.c.bf16 %v5620, %v5618
        %v5851 = vsel %vm1674, %v5827, 0
        %v5854 = vsel %vm1674, %v5829, 0
        %v5857 = vsel %vm1674, %v5831, 0
        %v5860 = vsel %vm1674, %v5833, 0
        %v5863 = vsel %vm1674, %v5835, 0
        %v5866 = vsel %vm1674, %v5837, 0
        %v5869 = vsel %vm1674, %v5839, 0
        %v5872 = vsel %vm1674, %v5841, 0
        %v5875 = vsel %vm1674, %v5843, 0
        %v5878 = vsel %vm1674, %v5845, 0
        %v5881 = vsel %vm1674, %v5847, 0
        %v5884 = vsel %vm1674, %v5849, 0
        %5886 = vmatprep.subr.bf16.mxu0 0
        %5887 = vmatpush1.bf16.msra.mxu0 %v5814
        %5888 = vmatprep.subr.bf16.mxu0 0
        %5889 = vmatpush1.bf16.msra.mxu0 %v5815
        %5890 = vmatprep.subr.bf16.mxu0 0
        %5891 = vmatpush1.bf16.msra.mxu0 %v5816
        %5892 = vmatprep.subr.bf16.mxu0 0
        %5893 = vmatpush1.bf16.msra.mxu0 %v5817
        %5894 = vmatprep.subr.bf16.mxu0 0
        %5895 = vmatpush1.bf16.msra.mxu0 %v5818
        %5896 = vmatprep.subr.bf16.mxu0 0
        %5897 = vmatpush1.bf16.msra.mxu0 %v5819
        %5898 = vmatprep.subr.bf16.mxu0 0
        %5899 = vmatpush1.bf16.msra.mxu0 %v5820
        %5900 = vmatprep.subr.bf16.mxu0 0
        %5901 = vmatpush1.bf16.msra.mxu0 %v5821
        %5902 = vmatprep.subr.bf16.mxu0 0
        %5903 = vmatpush1.bf16.msra.mxu0 %v5822
        %5904 = vmatprep.subr.bf16.mxu0 0
        %5905 = vmatpush1.bf16.msra.mxu0 %v5823
        %5906 = vmatprep.subr.bf16.mxu0 0
        %5907 = vmatpush1.bf16.msra.mxu0 %v5824
        %5908 = vmatprep.subr.bf16.mxu0 0
        %5909 = vmatpush1.bf16.msra.mxu0 %v5825
        %5910 = vmatprep.subr.bf16.mxu0 0
        %5911 = vmatpush1.bf16.msra.mxu0 0
        %5912 = vmatprep.subr.bf16.mxu0 0
        %5913 = vmatpush1.bf16.msra.mxu0 0
        %5914 = vmatprep.subr.bf16.mxu0 0
        %5915 = vmatpush1.bf16.msra.mxu0 0
        %5916 = vmatprep.subr.bf16.mxu0 0
        %5917 = vmatpush1.bf16.msra.mxu0 0
        %5918 = vmatprep.mubr.bf16.mxu0 %v5851
        %5919 = vmatmul.mubr.bf16.gmra.mrb[0].mxu0 %v5826
        %v5920 = vpop.f32.mrb[0].mxu0
        %v5921 = vadd.f32 0.0, %v5920
        %v5922 = vpop.f32.mrb[0].mxu0
        %v5923 = vpop.f32.mrb[0].mxu0
        %v5924 = vadd.f32 0.0, %v5923
        %v5925 = vpop.f32.mrb[0].mxu0
        %5926 = vmatprep.mubr.bf16.mxu0 %v5854
        %5927 = vmatmul.mubr.bf16.gmra.mrb[0].mxu0 %v5828
        %v5928 = vpop.f32.mrb[0].mxu0
        %v5929 = vadd.f32 0.0, %v5928
        %v5930 = vpop.f32.mrb[0].mxu0
        %v5931 = vpop.f32.mrb[0].mxu0
        %v5932 = vadd.f32 0.0, %v5931
        %v5933 = vpop.f32.mrb[0].mxu0
        %5934 = vmatprep.mubr.bf16.mxu0 %v5857
        %5935 = vmatmul.mubr.bf16.gmra.mrb[0].mxu0 %v5830
        %v5936 = vpop.f32.mrb[0].mxu0
        %v5937 = vadd.f32 0.0, %v5936
        %v5938 = vpop.f32.mrb[0].mxu0
        %v5939 = vpop.f32.mrb[0].mxu0
        %v5940 = vadd.f32 0.0, %v5939
        %v5941 = vpop.f32.mrb[0].mxu0
        %5942 = vmatprep.mubr.bf16.mxu0 %v5860
        %5943 = vmatmul.mubr.bf16.gmra.mrb[0].mxu0 %v5832
        %v5944 = vpop.f32.mrb[0].mxu0
        %v5945 = vadd.f32 0.0, %v5944
        %v5946 = vpop.f32.mrb[0].mxu0
        %v5947 = vpop.f32.mrb[0].mxu0
        %v5948 = vadd.f32 0.0, %v5947
        %v5949 = vpop.f32.mrb[0].mxu0
        %5950 = vmatprep.mubr.bf16.mxu0 %v5863
        %5951 = vmatmul.mubr.bf16.gmra.mrb[0].mxu0 %v5834
        %v5952 = vpop.f32.mrb[0].mxu0
        %v5953 = vadd.f32 0.0, %v5952
        %v5954 = vpop.f32.mrb[0].mxu0
        %v5955 = vpop.f32.mrb[0].mxu0
        %v5956 = vadd.f32 0.0, %v5955
        %v5957 = vpop.f32.mrb[0].mxu0
        %5958 = vmatprep.mubr.bf16.mxu0 %v5866
        %5959 = vmatmul.mubr.bf16.gmra.mrb[0].mxu0 %v5836
        %v5960 = vpop.f32.mrb[0].mxu0
        %v5961 = vadd.f32 0.0, %v5960
        %v5962 = vpop.f32.mrb[0].mxu0
        %v5963 = vpop.f32.mrb[0].mxu0
        %v5964 = vadd.f32 0.0, %v5963
        %v5965 = vpop.f32.mrb[0].mxu0
        %5966 = vmatprep.mubr.bf16.mxu0 %v5869
        %5967 = vmatmul.mubr.bf16.gmra.mrb[0].mxu0 %v5838
        %v5968 = vpop.f32.mrb[0].mxu0
        %v5969 = vadd.f32 0.0, %v5968
        %v5970 = vpop.f32.mrb[0].mxu0
        %v5971 = vpop.f32.mrb[0].mxu0
        %v5972 = vadd.f32 0.0, %v5971
        %v5973 = vpop.f32.mrb[0].mxu0
        %5974 = vmatprep.mubr.bf16.mxu0 %v5872
        %5975 = vmatmul.mubr.bf16.gmra.mrb[0].mxu0 %v5840
        %v5976 = vpop.f32.mrb[0].mxu0
        %v5977 = vadd.f32 0.0, %v5976
        %v5978 = vpop.f32.mrb[0].mxu0
        %v5979 = vpop.f32.mrb[0].mxu0
        %v5980 = vadd.f32 0.0, %v5979
        %v5981 = vpop.f32.mrb[0].mxu0
        %5982 = vmatprep.mubr.bf16.mxu0 %v5875
        %5983 = vmatmul.mubr.bf16.gmra.mrb[0].mxu0 %v5842
        %v5984 = vpop.f32.mrb[0].mxu0
        %v5985 = vadd.f32 0.0, %v5984
        %v5986 = vpop.f32.mrb[0].mxu0
        %v5987 = vpop.f32.mrb[0].mxu0
        %v5988 = vadd.f32 0.0, %v5987
        %v5989 = vpop.f32.mrb[0].mxu0
        %5990 = vmatprep.mubr.bf16.mxu0 %v5878
        %5991 = vmatmul.mubr.bf16.gmra.mrb[0].mxu0 %v5844
        %v5992 = vpop.f32.mrb[0].mxu0
        %v5993 = vadd.f32 0.0, %v5992
        %v5994 = vpop.f32.mrb[0].mxu0
        %v5995 = vpop.f32.mrb[0].mxu0
        %v5996 = vadd.f32 0.0, %v5995
        %v5997 = vpop.f32.mrb[0].mxu0
        %5998 = vmatprep.mubr.bf16.mxu0 %v5881
        %5999 = vmatmul.mubr.bf16.gmra.mrb[0].mxu0 %v5846
        %v6000 = vpop.f32.mrb[0].mxu0
        %v6001 = vadd.f32 0.0, %v6000
        %v6002 = vpop.f32.mrb[0].mxu0
        %v6003 = vpop.f32.mrb[0].mxu0
        %v6004 = vadd.f32 0.0, %v6003
        %v6005 = vpop.f32.mrb[0].mxu0
        %6006 = vmatprep.mubr.bf16.mxu0 %v5884
        %6007 = vmatmul.mubr.bf16.gmra.mrb[0].mxu0 %v5848
        %v6008 = vpop.f32.mrb[0].mxu0
        %v6009 = vadd.f32 0.0, %v6008
        %v6010 = vpop.f32.mrb[0].mxu0
        %v6011 = vpop.f32.mrb[0].mxu0
        %v6012 = vadd.f32 0.0, %v6011
        %v6013 = vpop.f32.mrb[0].mxu0
        %6014 = vdwg.mxu0
        %v6015 = vadd.f32 %v4820, %v5921
        %v6016 = vadd.f32 %v4821, %v5924
        %v6017 = vadd.f32 %v4822, %v5929
        %v6018 = vadd.f32 %v4823, %v5932
        %v6019 = vadd.f32 %v4824, %v5937
        %v6020 = vadd.f32 %v4825, %v5940
        %v6021 = vadd.f32 %v4826, %v5945
        %v6022 = vadd.f32 %v4827, %v5948
        %v6023 = vadd.f32 %v4828, %v5953
        %v6024 = vadd.f32 %v4829, %v5956
        %v6025 = vadd.f32 %v4830, %v5961
        %v6026 = vadd.f32 %v4831, %v5964
        %v6027 = vadd.f32 %v4832, %v5969
        %v6028 = vadd.f32 %v4833, %v5972
        %v6029 = vadd.f32 %v4834, %v5977
        %v6030 = vadd.f32 %v4835, %v5980
        %v6031 = vadd.f32 %v4836, %v5985
        %v6032 = vadd.f32 %v4837, %v5988
        %v6033 = vadd.f32 %v4838, %v5993
        %v6034 = vadd.f32 %v4839, %v5996
        %v6035 = vadd.f32 %v4840, %v6001
        %v6036 = vadd.f32 %v4841, %v6004
        %v6037 = vadd.f32 %v4842, %v6009
        %v6038 = vadd.f32 %v4843, %v6012
        %v6039 = vadd.f32 %v592, %v6015
        %v6040 = vadd.f32 %v595, %v6016
        %v6041 = vadd.f32 %v600, %v6017
        %v6042 = vadd.f32 %v603, %v6018
        %v6043 = vadd.f32 %v608, %v6019
        %v6044 = vadd.f32 %v611, %v6020
        %v6045 = vadd.f32 %v616, %v6021
        %v6046 = vadd.f32 %v619, %v6022
        %v6047 = vadd.f32 %v624, %v6023
        %v6048 = vadd.f32 %v627, %v6024
        %v6049 = vadd.f32 %v632, %v6025
        %v6050 = vadd.f32 %v635, %v6026
        %v6051 = vadd.f32 %v640, %v6027
        %v6052 = vadd.f32 %v643, %v6028
        %v6053 = vadd.f32 %v648, %v6029
        %v6054 = vadd.f32 %v651, %v6030
        %v6055 = vadd.f32 %v656, %v6031
        %v6056 = vadd.f32 %v659, %v6032
        %v6057 = vadd.f32 %v664, %v6033
        %v6058 = vadd.f32 %v667, %v6034
        %v6059 = vadd.f32 %v672, %v6035
        %v6060 = vadd.f32 %v675, %v6036
        %v6061 = vadd.f32 %v680, %v6037
        %v6062 = vadd.f32 %v683, %v6038
        %v6063 = vld [vmem:[%s3 + $0x2] sm:$0x1]
        %v6064 = vlaneseq
        %v6065 = vshrl.u32 %v6064, 7
        %v6066 = vsub.s32 0, %v6065
        %v6067 = vrot.slane %v6063, %v6066
        %v6068 = vadd.f32 %v6039, %v6067
        %v6069 = vadd.f32 %v6040, %v6067
        %v6070 = vadd.f32 %v6041, %v6067
        %v6071 = vadd.f32 %v6042, %v6067
        %v6072 = vadd.f32 %v6043, %v6067
        %v6073 = vadd.f32 %v6044, %v6067
        %v6074 = vadd.f32 %v6045, %v6067
        %v6075 = vadd.f32 %v6046, %v6067
        %v6076 = vadd.f32 %v6047, %v6067
        %v6077 = vadd.f32 %v6048, %v6067
        %v6078 = vadd.f32 %v6049, %v6067
        %v6079 = vadd.f32 %v6050, %v6067
        %v6080 = vadd.f32 %v6051, %v6067
        %v6081 = vadd.f32 %v6052, %v6067
        %v6082 = vadd.f32 %v6053, %v6067
        %v6083 = vadd.f32 %v6054, %v6067
        %v6084 = vadd.f32 %v6055, %v6067
        %v6085 = vadd.f32 %v6056, %v6067
        %v6086 = vadd.f32 %v6057, %v6067
        %v6087 = vadd.f32 %v6058, %v6067
        %v6088 = vadd.f32 %v6059, %v6067
        %v6089 = vadd.f32 %v6060, %v6067
        %v6090 = vadd.f32 %v6061, %v6067
        %v6091 = vadd.f32 %v6062, %v6067
        %v6092 = vld [vmem:[%s3 + $0x3] sm:$0x1]
        %v6093 = vld [vmem:[%s3 + $0x4] sm:$0x1]
        %v6094 = vsel %vm688, %v6068, 0.0
        %6095 = vadd.xlane.f32.xlu0 %v6094
        %v6096 = vpop.xlane.xlu0 %6095
        %v6097 = vsel %vm688, %v6069, 0.0
        %6098 = vadd.xlane.f32.xlu0 %v6097
        %v6099 = vpop.xlane.xlu0 %6098
        %v6100 = vsel %vm688, %v6070, 0.0
        %6101 = vadd.xlane.f32.xlu0 %v6100
        %v6102 = vpop.xlane.xlu0 %6101
        %v6103 = vsel %vm688, %v6071, 0.0
        %6104 = vadd.xlane.f32.xlu0 %v6103
        %v6105 = vpop.xlane.xlu0 %6104
        %v6106 = vsel %vm688, %v6072, 0.0
        %6107 = vadd.xlane.f32.xlu0 %v6106
        %v6108 = vpop.xlane.xlu0 %6107
        %v6109 = vsel %vm688, %v6073, 0.0
        %6110 = vadd.xlane.f32.xlu0 %v6109
        %v6111 = vpop.xlane.xlu0 %6110
        %v6112 = vsel %vm688, %v6074, 0.0
        %6113 = vadd.xlane.f32.xlu0 %v6112
        %v6114 = vpop.xlane.xlu0 %6113
        %v6115 = vsel %vm688, %v6075, 0.0
        %6116 = vadd.xlane.f32.xlu0 %v6115
        %v6117 = vpop.xlane.xlu0 %6116
        %v6118 = vsel %vm688, %v6076, 0.0
        %6119 = vadd.xlane.f32.xlu0 %v6118
        %v6120 = vpop.xlane.xlu0 %6119
        %v6121 = vsel %vm688, %v6077, 0.0
        %6122 = vadd.xlane.f32.xlu0 %v6121
        %v6123 = vpop.xlane.xlu0 %6122
        %v6124 = vsel %vm688, %v6078, 0.0
        %6125 = vadd.xlane.f32.xlu0 %v6124
        %v6126 = vpop.xlane.xlu0 %6125
        %v6127 = vsel %vm688, %v6079, 0.0
        %6128 = vadd.xlane.f32.xlu0 %v6127
        %v6129 = vpop.xlane.xlu0 %6128
        %v6130 = vsel %vm688, %v6080, 0.0
        %6131 = vadd.xlane.f32.xlu0 %v6130
        %v6132 = vpop.xlane.xlu0 %6131
        %v6133 = vsel %vm688, %v6081, 0.0
        %6134 = vadd.xlane.f32.xlu0 %v6133
        %v6135 = vpop.xlane.xlu0 %6134
        %v6136 = vsel %vm688, %v6082, 0.0
        %6137 = vadd.xlane.f32.xlu0 %v6136
        %v6138 = vpop.xlane.xlu0 %6137
        %v6139 = vsel %vm688, %v6083, 0.0
        %6140 = vadd.xlane.f32.xlu0 %v6139
        %v6141 = vpop.xlane.xlu0 %6140
        %v6142 = vsel %vm688, %v6084, 0.0
        %6143 = vadd.xlane.f32.xlu0 %v6142
        %v6144 = vpop.xlane.xlu0 %6143
        %v6145 = vsel %vm688, %v6085, 0.0
        %6146 = vadd.xlane.f32.xlu0 %v6145
        %v6147 = vpop.xlane.xlu0 %6146
        %v6148 = vsel %vm688, %v6086, 0.0
        %6149 = vadd.xlane.f32.xlu0 %v6148
        %v6150 = vpop.xlane.xlu0 %6149
        %v6151 = vsel %vm688, %v6087, 0.0
        %6152 = vadd.xlane.f32.xlu0 %v6151
        %v6153 = vpop.xlane.xlu0 %6152
        %v6154 = vsel %vm688, %v6088, 0.0
        %6155 = vadd.xlane.f32.xlu0 %v6154
        %v6156 = vpop.xlane.xlu0 %6155
        %v6157 = vsel %vm688, %v6089, 0.0
        %6158 = vadd.xlane.f32.xlu0 %v6157
        %v6159 = vpop.xlane.xlu0 %6158
        %v6160 = vsel %vm688, %v6090, 0.0
        %6161 = vadd.xlane.f32.xlu0 %v6160
        %v6162 = vpop.xlane.xlu0 %6161
        %v6163 = vsel %vm688, %v6091, 0.0
        %6164 = vadd.xlane.f32.xlu0 %v6163
        %v6165 = vpop.xlane.xlu0 %6164
        %v6166 = vmul.f32 %v6096, %v761
        %v6167 = vmul.f32 %v6099, %v761
        %v6168 = vmul.f32 %v6102, %v761
        %v6169 = vmul.f32 %v6105, %v761
        %v6170 = vmul.f32 %v6108, %v761
        %v6171 = vmul.f32 %v6111, %v761
        %v6172 = vmul.f32 %v6114, %v761
        %v6173 = vmul.f32 %v6117, %v761
        %v6174 = vmul.f32 %v6120, %v761
        %v6175 = vmul.f32 %v6123, %v761
        %v6176 = vmul.f32 %v6126, %v761
        %v6177 = vmul.f32 %v6129, %v761
        %v6178 = vmul.f32 %v6132, %v761
        %v6179 = vmul.f32 %v6135, %v761
        %v6180 = vmul.f32 %v6138, %v761
        %v6181 = vmul.f32 %v6141, %v761
        %v6182 = vmul.f32 %v6144, %v761
        %v6183 = vmul.f32 %v6147, %v761
        %v6184 = vmul.f32 %v6150, %v761
        %v6185 = vmul.f32 %v6153, %v761
        %v6186 = vmul.f32 %v6156, %v761
        %v6187 = vmul.f32 %v6159, %v761
        %v6188 = vmul.f32 %v6162, %v761
        %v6189 = vmul.f32 %v6165, %v761
        %v6190 = vsub.f32 %v6068, %v6166
        %v6191 = vsub.f32 %v6069, %v6167
        %v6192 = vsub.f32 %v6070, %v6168
        %v6193 = vsub.f32 %v6071, %v6169
        %v6194 = vsub.f32 %v6072, %v6170
        %v6195 = vsub.f32 %v6073, %v6171
        %v6196 = vsub.f32 %v6074, %v6172
        %v6197 = vsub.f32 %v6075, %v6173
        %v6198 = vsub.f32 %v6076, %v6174
        %v6199 = vsub.f32 %v6077, %v6175
        %v6200 = vsub.f32 %v6078, %v6176
        %v6201 = vsub.f32 %v6079, %v6177
        %v6202 = vsub.f32 %v6080, %v6178
        %v6203 = vsub.f32 %v6081, %v6179
        %v6204 = vsub.f32 %v6082, %v6180
        %v6205 = vsub.f32 %v6083, %v6181
        %v6206 = vsub.f32 %v6084, %v6182
        %v6207 = vsub.f32 %v6085, %v6183
        %v6208 = vsub.f32 %v6086, %v6184
        %v6209 = vsub.f32 %v6087, %v6185
        %v6210 = vsub.f32 %v6088, %v6186
        %v6211 = vsub.f32 %v6089, %v6187
        %v6212 = vsub.f32 %v6090, %v6188
        %v6213 = vsub.f32 %v6091, %v6189
        %v6214 = vmul.f32 %v6190, %v6190
        %v6215 = vmul.f32 %v6191, %v6191
        %v6216 = vmul.f32 %v6192, %v6192
        %v6217 = vmul.f32 %v6193, %v6193
        %v6218 = vmul.f32 %v6194, %v6194
        %v6219 = vmul.f32 %v6195, %v6195
        %v6220 = vmul.f32 %v6196, %v6196
        %v6221 = vmul.f32 %v6197, %v6197
        %v6222 = vmul.f32 %v6198, %v6198
        %v6223 = vmul.f32 %v6199, %v6199
        %v6224 = vmul.f32 %v6200, %v6200
        %v6225 = vmul.f32 %v6201, %v6201
        %v6226 = vmul.f32 %v6202, %v6202
        %v6227 = vmul.f32 %v6203, %v6203
        %v6228 = vmul.f32 %v6204, %v6204
        %v6229 = vmul.f32 %v6205, %v6205
        %v6230 = vmul.f32 %v6206, %v6206
        %v6231 = vmul.f32 %v6207, %v6207
        %v6232 = vmul.f32 %v6208, %v6208
        %v6233 = vmul.f32 %v6209, %v6209
        %v6234 = vmul.f32 %v6210, %v6210
        %v6235 = vmul.f32 %v6211, %v6211
        %v6236 = vmul.f32 %v6212, %v6212
        %v6237 = vmul.f32 %v6213, %v6213
        %v6238 = vsel %vm688, %v6214, 0.0
        %6239 = vadd.xlane.f32.xlu0 %v6238
        %v6240 = vpop.xlane.xlu0 %6239
        %v6241 = vsel %vm688, %v6215, 0.0
        %6242 = vadd.xlane.f32.xlu0 %v6241
        %v6243 = vpop.xlane.xlu0 %6242
        %v6244 = vsel %vm688, %v6216, 0.0
        %6245 = vadd.xlane.f32.xlu0 %v6244
        %v6246 = vpop.xlane.xlu0 %6245
        %v6247 = vsel %vm688, %v6217, 0.0
        %6248 = vadd.xlane.f32.xlu0 %v6247
        %v6249 = vpop.xlane.xlu0 %6248
        %v6250 = vsel %vm688, %v6218, 0.0
        %6251 = vadd.xlane.f32.xlu0 %v6250
        %v6252 = vpop.xlane.xlu0 %6251
        %v6253 = vsel %vm688, %v6219, 0.0
        %6254 = vadd.xlane.f32.xlu0 %v6253
        %v6255 = vpop.xlane.xlu0 %6254
        %v6256 = vsel %vm688, %v6220, 0.0
        %6257 = vadd.xlane.f32.xlu0 %v6256
        %v6258 = vpop.xlane.xlu0 %6257
        %v6259 = vsel %vm688, %v6221, 0.0
        %6260 = vadd.xlane.f32.xlu0 %v6259
        %v6261 = vpop.xlane.xlu0 %6260
        %v6262 = vsel %vm688, %v6222, 0.0
        %6263 = vadd.xlane.f32.xlu0 %v6262
        %v6264 = vpop.xlane.xlu0 %6263
        %v6265 = vsel %vm688, %v6223, 0.0
        %6266 = vadd.xlane.f32.xlu0 %v6265
        %v6267 = vpop.xlane.xlu0 %6266
        %v6268 = vsel %vm688, %v6224, 0.0
        %6269 = vadd.xlane.f32.xlu0 %v6268
        %v6270 = vpop.xlane.xlu0 %6269
        %v6271 = vsel %vm688, %v6225, 0.0
        %6272 = vadd.xlane.f32.xlu0 %v6271
        %v6273 = vpop.xlane.xlu0 %6272
        %v6274 = vsel %vm688, %v6226, 0.0
        %6275 = vadd.xlane.f32.xlu0 %v6274
        %v6276 = vpop.xlane.xlu0 %6275
        %v6277 = vsel %vm688, %v6227, 0.0
        %6278 = vadd.xlane.f32.xlu0 %v6277
        %v6279 = vpop.xlane.xlu0 %6278
        %v6280 = vsel %vm688, %v6228, 0.0
        %6281 = vadd.xlane.f32.xlu0 %v6280
        %v6282 = vpop.xlane.xlu0 %6281
        %v6283 = vsel %vm688, %v6229, 0.0
        %6284 = vadd.xlane.f32.xlu0 %v6283
        %v6285 = vpop.xlane.xlu0 %6284
        %v6286 = vsel %vm688, %v6230, 0.0
        %6287 = vadd.xlane.f32.xlu0 %v6286
        %v6288 = vpop.xlane.xlu0 %6287
        %v6289 = vsel %vm688, %v6231, 0.0
        %6290 = vadd.xlane.f32.xlu0 %v6289
        %v6291 = vpop.xlane.xlu0 %6290
        %v6292 = vsel %vm688, %v6232, 0.0
        %6293 = vadd.xlane.f32.xlu0 %v6292
        %v6294 = vpop.xlane.xlu0 %6293
        %v6295 = vsel %vm688, %v6233, 0.0
        %6296 = vadd.xlane.f32.xlu0 %v6295
        %v6297 = vpop.xlane.xlu0 %6296
        %v6298 = vsel %vm688, %v6234, 0.0
        %6299 = vadd.xlane.f32.xlu0 %v6298
        %v6300 = vpop.xlane.xlu0 %6299
        %v6301 = vsel %vm688, %v6235, 0.0
        %6302 = vadd.xlane.f32.xlu0 %v6301
        %v6303 = vpop.xlane.xlu0 %6302
        %v6304 = vsel %vm688, %v6236, 0.0
        %6305 = vadd.xlane.f32.xlu0 %v6304
        %v6306 = vpop.xlane.xlu0 %6305
        %v6307 = vsel %vm688, %v6237, 0.0
        %6308 = vadd.xlane.f32.xlu0 %v6307
        %v6309 = vpop.xlane.xlu0 %6308
        %v6310 = vmul.f32 %v6240, %v761
        %v6311 = vmul.f32 %v6243, %v761
        %v6312 = vmul.f32 %v6246, %v761
        %v6313 = vmul.f32 %v6249, %v761
        %v6314 = vmul.f32 %v6252, %v761
        %v6315 = vmul.f32 %v6255, %v761
        %v6316 = vmul.f32 %v6258, %v761
        %v6317 = vmul.f32 %v6261, %v761
        %v6318 = vmul.f32 %v6264, %v761
        %v6319 = vmul.f32 %v6267, %v761
        %v6320 = vmul.f32 %v6270, %v761
        %v6321 = vmul.f32 %v6273, %v761
        %v6322 = vmul.f32 %v6276, %v761
        %v6323 = vmul.f32 %v6279, %v761
        %v6324 = vmul.f32 %v6282, %v761
        %v6325 = vmul.f32 %v6285, %v761
        %v6326 = vmul.f32 %v6288, %v761
        %v6327 = vmul.f32 %v6291, %v761
        %v6328 = vmul.f32 %v6294, %v761
        %v6329 = vmul.f32 %v6297, %v761
        %v6330 = vmul.f32 %v6300, %v761
        %v6331 = vmul.f32 %v6303, %v761
        %v6332 = vmul.f32 %v6306, %v761
        %v6333 = vmul.f32 %v6309, %v761
        %v6334 = vadd.f32 %v6310, 1e-05
        %v6335 = vadd.f32 %v6311, 1e-05
        %v6336 = vadd.f32 %v6312, 1e-05
        %v6337 = vadd.f32 %v6313, 1e-05
        %v6338 = vadd.f32 %v6314, 1e-05
        %v6339 = vadd.f32 %v6315, 1e-05
        %v6340 = vadd.f32 %v6316, 1e-05
        %v6341 = vadd.f32 %v6317, 1e-05
        %v6342 = vadd.f32 %v6318, 1e-05
        %v6343 = vadd.f32 %v6319, 1e-05
        %v6344 = vadd.f32 %v6320, 1e-05
        %v6345 = vadd.f32 %v6321, 1e-05
        %v6346 = vadd.f32 %v6322, 1e-05
        %v6347 = vadd.f32 %v6323, 1e-05
        %v6348 = vadd.f32 %v6324, 1e-05
        %v6349 = vadd.f32 %v6325, 1e-05
        %v6350 = vadd.f32 %v6326, 1e-05
        %v6351 = vadd.f32 %v6327, 1e-05
        %v6352 = vadd.f32 %v6328, 1e-05
        %v6353 = vadd.f32 %v6329, 1e-05
        %v6354 = vadd.f32 %v6330, 1e-05
        %v6355 = vadd.f32 %v6331, 1e-05
        %v6356 = vadd.f32 %v6332, 1e-05
        %v6357 = vadd.f32 %v6333, 1e-05
        %v6358 = vrsqrt.pop %v6334
        %v6359 = vrsqrt.pop %v6335
        %v6360 = vrsqrt.pop %v6336
        %v6361 = vrsqrt.pop %v6337
        %v6362 = vrsqrt.pop %v6338
        %v6363 = vrsqrt.pop %v6339
        %v6364 = vrsqrt.pop %v6340
        %v6365 = vrsqrt.pop %v6341
        %v6366 = vrsqrt.pop %v6342
        %v6367 = vrsqrt.pop %v6343
        %v6368 = vrsqrt.pop %v6344
        %v6369 = vrsqrt.pop %v6345
        %v6370 = vrsqrt.pop %v6346
        %v6371 = vrsqrt.pop %v6347
        %v6372 = vrsqrt.pop %v6348
        %v6373 = vrsqrt.pop %v6349
        %v6374 = vrsqrt.pop %v6350
        %v6375 = vrsqrt.pop %v6351
        %v6376 = vrsqrt.pop %v6352
        %v6377 = vrsqrt.pop %v6353
        %v6378 = vrsqrt.pop %v6354
        %v6379 = vrsqrt.pop %v6355
        %v6380 = vrsqrt.pop %v6356
        %v6381 = vrsqrt.pop %v6357
        %v6382 = vmul.f32 %v6190, %v6358
        %v6383 = vmul.f32 %v6191, %v6359
        %v6384 = vmul.f32 %v6192, %v6360
        %v6385 = vmul.f32 %v6193, %v6361
        %v6386 = vmul.f32 %v6194, %v6362
        %v6387 = vmul.f32 %v6195, %v6363
        %v6388 = vmul.f32 %v6196, %v6364
        %v6389 = vmul.f32 %v6197, %v6365
        %v6390 = vmul.f32 %v6198, %v6366
        %v6391 = vmul.f32 %v6199, %v6367
        %v6392 = vmul.f32 %v6200, %v6368
        %v6393 = vmul.f32 %v6201, %v6369
        %v6394 = vmul.f32 %v6202, %v6370
        %v6395 = vmul.f32 %v6203, %v6371
        %v6396 = vmul.f32 %v6204, %v6372
        %v6397 = vmul.f32 %v6205, %v6373
        %v6398 = vmul.f32 %v6206, %v6374
        %v6399 = vmul.f32 %v6207, %v6375
        %v6400 = vmul.f32 %v6208, %v6376
        %v6401 = vmul.f32 %v6209, %v6377
        %v6402 = vmul.f32 %v6210, %v6378
        %v6403 = vmul.f32 %v6211, %v6379
        %v6404 = vmul.f32 %v6212, %v6380
        %v6405 = vmul.f32 %v6213, %v6381
        %v6406 = vlaneseq
        %v6407 = vshrl.u32 %v6406, 7
        %v6408 = vsub.s32 0, %v6407
        %v6409 = vrot.slane %v6092, %v6408
        %v6410 = vmul.f32 %v6382, %v6409
        %v6411 = vmul.f32 %v6383, %v6409
        %v6412 = vmul.f32 %v6384, %v6409
        %v6413 = vmul.f32 %v6385, %v6409
        %v6414 = vmul.f32 %v6386, %v6409
        %v6415 = vmul.f32 %v6387, %v6409
        %v6416 = vmul.f32 %v6388, %v6409
        %v6417 = vmul.f32 %v6389, %v6409
        %v6418 = vmul.f32 %v6390, %v6409
        %v6419 = vmul.f32 %v6391, %v6409
        %v6420 = vmul.f32 %v6392, %v6409
        %v6421 = vmul.f32 %v6393, %v6409
        %v6422 = vmul.f32 %v6394, %v6409
        %v6423 = vmul.f32 %v6395, %v6409
        %v6424 = vmul.f32 %v6396, %v6409
        %v6425 = vmul.f32 %v6397, %v6409
        %v6426 = vmul.f32 %v6398, %v6409
        %v6427 = vmul.f32 %v6399, %v6409
        %v6428 = vmul.f32 %v6400, %v6409
        %v6429 = vmul.f32 %v6401, %v6409
        %v6430 = vmul.f32 %v6402, %v6409
        %v6431 = vmul.f32 %v6403, %v6409
        %v6432 = vmul.f32 %v6404, %v6409
        %v6433 = vmul.f32 %v6405, %v6409
        %v6434 = vlaneseq
        %v6435 = vshrl.u32 %v6434, 7
        %v6436 = vsub.s32 0, %v6435
        %v6437 = vrot.slane %v6093, %v6436
        %v6438 = vadd.f32 %v6410, %v6437
        %v6439 = vadd.f32 %v6411, %v6437
        %v6440 = vadd.f32 %v6412, %v6437
        %v6441 = vadd.f32 %v6413, %v6437
        %v6442 = vadd.f32 %v6414, %v6437
        %v6443 = vadd.f32 %v6415, %v6437
        %v6444 = vadd.f32 %v6416, %v6437
        %v6445 = vadd.f32 %v6417, %v6437
        %v6446 = vadd.f32 %v6418, %v6437
        %v6447 = vadd.f32 %v6419, %v6437
        %v6448 = vadd.f32 %v6420, %v6437
        %v6449 = vadd.f32 %v6421, %v6437
        %v6450 = vadd.f32 %v6422, %v6437
        %v6451 = vadd.f32 %v6423, %v6437
        %v6452 = vadd.f32 %v6424, %v6437
        %v6453 = vadd.f32 %v6425, %v6437
        %v6454 = vadd.f32 %v6426, %v6437
        %v6455 = vadd.f32 %v6427, %v6437
        %v6456 = vadd.f32 %v6428, %v6437
        %v6457 = vadd.f32 %v6429, %v6437
        %v6458 = vadd.f32 %v6430, %v6437
        %v6459 = vadd.f32 %v6431, %v6437
        %v6460 = vadd.f32 %v6432, %v6437
        %v6461 = vadd.f32 %v6433, %v6437
        %v6462 = vld [vmem:[%s8] sm:$0xf]
        %v6463 = vld [vmem:[%s8 + $0x4] sm:$0xf]
        %v6464 = vld [vmem:[%s8 + $0x8] sm:$0xf]
        %v6465 = vld [vmem:[%s8 + $0xc] sm:$0xf]
        %v6466 = vpack.c.bf16 %v6439, %v6438
        %v6467 = vpack.c.bf16 %v6441, %v6440
        %v6468 = vpack.c.bf16 %v6443, %v6442
        %v6469 = vpack.c.bf16 %v6445, %v6444
        %v6470 = vpack.c.bf16 %v6447, %v6446
        %v6471 = vpack.c.bf16 %v6449, %v6448
        %v6472 = vpack.c.bf16 %v6451, %v6450
        %v6473 = vpack.c.bf16 %v6453, %v6452
        %v6474 = vpack.c.bf16 %v6455, %v6454
        %v6475 = vpack.c.bf16 %v6457, %v6456
        %v6476 = vpack.c.bf16 %v6459, %v6458
        %v6477 = vpack.c.bf16 %v6461, %v6460
        %v6478 = vld [vmem:[%s4 + $0x1] sm:$0x1]
        %v6479 = vlaneseq
        %v6480 = vshrl.u32 %v6479, 7
        %v6481 = vsub.s32 0, %v6480
        %v6482 = vrot.slane %v6478, %v6481
        %v6487 = vunpack.c.l.b16 %v6462
        %v6488 = vunpack.c.l.b16 %v6463
        %v6489 = vunpack.c.l.b16 %v6464
        %v6490 = vunpack.c.l.b16 %v6465
        %v6491 = vpack.c.b16 %v6488, %v6487
        %v6492 = vpack.c.b16 %v6490, %v6489
        %v6496 = vsel %vm688, %v6466, 0
        %v6499 = vsel %vm688, %v6467, 0
        %v6502 = vsel %vm688, %v6468, 0
        %v6505 = vsel %vm688, %v6469, 0
        %v6508 = vsel %vm688, %v6470, 0
        %v6511 = vsel %vm688, %v6471, 0
        %v6514 = vsel %vm688, %v6472, 0
        %v6517 = vsel %vm688, %v6473, 0
        %v6520 = vsel %vm688, %v6474, 0
        %v6523 = vsel %vm688, %v6475, 0
        %v6526 = vsel %vm688, %v6476, 0
        %v6529 = vsel %vm688, %v6477, 0
        %6531 = vmatprep.subr.bf16.mxu0 0
        %6532 = vmatpush1.bf16.msra.mxu0 %v6491
        %6533 = vmatprep.subr.bf16.mxu0 0
        %6534 = vmatpush1.bf16.msra.mxu0 %v6492
        %6535 = vmatprep.subr.bf16.mxu0 0
        %6536 = vmatpush1.bf16.msra.mxu0 0
        %6537 = vmatprep.subr.bf16.mxu0 0
        %6538 = vmatpush1.bf16.msra.mxu0 0
        %6539 = vmatprep.subr.bf16.mxu0 0
        %6540 = vmatpush1.bf16.msra.mxu0 0
        %6541 = vmatprep.subr.bf16.mxu0 0
        %6542 = vmatpush1.bf16.msra.mxu0 0
        %6543 = vmatprep.subr.bf16.mxu0 0
        %6544 = vmatpush1.bf16.msra.mxu0 0
        %6545 = vmatprep.subr.bf16.mxu0 0
        %6546 = vmatpush1.bf16.msra.mxu0 0
        %6547 = vmatprep.subr.bf16.mxu0 0
        %6548 = vmatpush1.bf16.msra.mxu0 0
        %6549 = vmatprep.subr.bf16.mxu0 0
        %6550 = vmatpush1.bf16.msra.mxu0 0
        %6551 = vmatprep.subr.bf16.mxu0 0
        %6552 = vmatpush1.bf16.msra.mxu0 0
        %6553 = vmatprep.subr.bf16.mxu0 0
        %6554 = vmatpush1.bf16.msra.mxu0 0
        %6555 = vmatprep.subr.bf16.mxu0 0
        %6556 = vmatpush1.bf16.msra.mxu0 0
        %6557 = vmatprep.subr.bf16.mxu0 0
        %6558 = vmatpush1.bf16.msra.mxu0 0
        %6559 = vmatprep.subr.bf16.mxu0 0
        %6560 = vmatpush1.bf16.msra.mxu0 0
        %6561 = vmatprep.subr.bf16.mxu0 0
        %6562 = vmatpush1.bf16.msra.mxu0 0
        %6563 = vmatprep.mubr.bf16.mxu0 0
        %6564 = vmatmul.mubr.bf16.gmra.mrb[0].mxu0 %v6496
        %v6565 = vpop.f32.mrb[0].mxu0
        %v6566 = vadd.f32 %v6482, %v6565
        %v6567 = vpop.f32.mrb[0].mxu0
        %v6568 = vpop.f32.mrb[0].mxu0
        %v6569 = vadd.f32 %v6482, %v6568
        %v6570 = vpop.f32.mrb[0].mxu0
        %6571 = vmatprep.mubr.bf16.mxu0 0
        %6572 = vmatmul.mubr.bf16.gmra.mrb[0].mxu0 %v6499
        %v6573 = vpop.f32.mrb[0].mxu0
        %v6574 = vadd.f32 %v6482, %v6573
        %v6575 = vpop.f32.mrb[0].mxu0
        %v6576 = vpop.f32.mrb[0].mxu0
        %v6577 = vadd.f32 %v6482, %v6576
        %v6578 = vpop.f32.mrb[0].mxu0
        %6579 = vmatprep.mubr.bf16.mxu0 0
        %6580 = vmatmul.mubr.bf16.gmra.mrb[0].mxu0 %v6502
        %v6581 = vpop.f32.mrb[0].mxu0
        %v6582 = vadd.f32 %v6482, %v6581
        %v6583 = vpop.f32.mrb[0].mxu0
        %v6584 = vpop.f32.mrb[0].mxu0
        %v6585 = vadd.f32 %v6482, %v6584
        %v6586 = vpop.f32.mrb[0].mxu0
        %6587 = vmatprep.mubr.bf16.mxu0 0
        %6588 = vmatmul.mubr.bf16.gmra.mrb[0].mxu0 %v6505
        %v6589 = vpop.f32.mrb[0].mxu0
        %v6590 = vadd.f32 %v6482, %v6589
        %v6591 = vpop.f32.mrb[0].mxu0
        %v6592 = vpop.f32.mrb[0].mxu0
        %v6593 = vadd.f32 %v6482, %v6592
        %v6594 = vpop.f32.mrb[0].mxu0
        %6595 = vmatprep.mubr.bf16.mxu0 0
        %6596 = vmatmul.mubr.bf16.gmra.mrb[0].mxu0 %v6508
        %v6597 = vpop.f32.mrb[0].mxu0
        %v6598 = vadd.f32 %v6482, %v6597
        %v6599 = vpop.f32.mrb[0].mxu0
        %v6600 = vpop.f32.mrb[0].mxu0
        %v6601 = vadd.f32 %v6482, %v6600
        %v6602 = vpop.f32.mrb[0].mxu0
        %6603 = vmatprep.mubr.bf16.mxu0 0
        %6604 = vmatmul.mubr.bf16.gmra.mrb[0].mxu0 %v6511
        %v6605 = vpop.f32.mrb[0].mxu0
        %v6606 = vadd.f32 %v6482, %v6605
        %v6607 = vpop.f32.mrb[0].mxu0
        %v6608 = vpop.f32.mrb[0].mxu0
        %v6609 = vadd.f32 %v6482, %v6608
        %v6610 = vpop.f32.mrb[0].mxu0
        %6611 = vmatprep.mubr.bf16.mxu0 0
        %6612 = vmatmul.mubr.bf16.gmra.mrb[0].mxu0 %v6514
        %v6613 = vpop.f32.mrb[0].mxu0
        %v6614 = vadd.f32 %v6482, %v6613
        %v6615 = vpop.f32.mrb[0].mxu0
        %v6616 = vpop.f32.mrb[0].mxu0
        %v6617 = vadd.f32 %v6482, %v6616
        %v6618 = vpop.f32.mrb[0].mxu0
        %6619 = vmatprep.mubr.bf16.mxu0 0
        %6620 = vmatmul.mubr.bf16.gmra.mrb[0].mxu0 %v6517
        %v6621 = vpop.f32.mrb[0].mxu0
        %v6622 = vadd.f32 %v6482, %v6621
        %v6623 = vpop.f32.mrb[0].mxu0
        %v6624 = vpop.f32.mrb[0].mxu0
        %v6625 = vadd.f32 %v6482, %v6624
        %v6626 = vpop.f32.mrb[0].mxu0
        %6627 = vmatprep.mubr.bf16.mxu0 0
        %6628 = vmatmul.mubr.bf16.gmra.mrb[0].mxu0 %v6520
        %v6629 = vpop.f32.mrb[0].mxu0
        %v6630 = vadd.f32 %v6482, %v6629
        %v6631 = vpop.f32.mrb[0].mxu0
        %v6632 = vpop.f32.mrb[0].mxu0
        %v6633 = vadd.f32 %v6482, %v6632
        %v6634 = vpop.f32.mrb[0].mxu0
        %6635 = vmatprep.mubr.bf16.mxu0 0
        %6636 = vmatmul.mubr.bf16.gmra.mrb[0].mxu0 %v6523
        %v6637 = vpop.f32.mrb[0].mxu0
        %v6638 = vadd.f32 %v6482, %v6637
        %v6639 = vpop.f32.mrb[0].mxu0
        %v6640 = vpop.f32.mrb[0].mxu0
        %v6641 = vadd.f32 %v6482, %v6640
        %v6642 = vpop.f32.mrb[0].mxu0
        %6643 = vmatprep.mubr.bf16.mxu0 0
        %6644 = vmatmul.mubr.bf16.gmra.mrb[0].mxu0 %v6526
        %v6645 = vpop.f32.mrb[0].mxu0
        %v6646 = vadd.f32 %v6482, %v6645
        %v6647 = vpop.f32.mrb[0].mxu0
        %v6648 = vpop.f32.mrb[0].mxu0
        %v6649 = vadd.f32 %v6482, %v6648
        %v6650 = vpop.f32.mrb[0].mxu0
        %6651 = vmatprep.mubr.bf16.mxu0 0
        %6652 = vmatmul.mubr.bf16.gmra.mrb[0].mxu0 %v6529
        %v6653 = vpop.f32.mrb[0].mxu0
        %v6654 = vadd.f32 %v6482, %v6653
        %v6655 = vpop.f32.mrb[0].mxu0
        %v6656 = vpop.f32.mrb[0].mxu0
        %v6657 = vadd.f32 %v6482, %v6656
        %v6658 = vpop.f32.mrb[0].mxu0
        %6659 = vdwg.mxu0
        %v6660 = vmul.f32 %v6566, 0.5
        %v6661 = vmul.f32 %v6569, 0.5
        %v6662 = vmul.f32 %v6574, 0.5
        %v6663 = vmul.f32 %v6577, 0.5
        %v6664 = vmul.f32 %v6582, 0.5
        %v6665 = vmul.f32 %v6585, 0.5
        %v6666 = vmul.f32 %v6590, 0.5
        %v6667 = vmul.f32 %v6593, 0.5
        %v6668 = vmul.f32 %v6598, 0.5
        %v6669 = vmul.f32 %v6601, 0.5
        %v6670 = vmul.f32 %v6606, 0.5
        %v6671 = vmul.f32 %v6609, 0.5
        %v6672 = vmul.f32 %v6614, 0.5
        %v6673 = vmul.f32 %v6617, 0.5
        %v6674 = vmul.f32 %v6622, 0.5
        %v6675 = vmul.f32 %v6625, 0.5
        %v6676 = vmul.f32 %v6630, 0.5
        %v6677 = vmul.f32 %v6633, 0.5
        %v6678 = vmul.f32 %v6638, 0.5
        %v6679 = vmul.f32 %v6641, 0.5
        %v6680 = vmul.f32 %v6646, 0.5
        %v6681 = vmul.f32 %v6649, 0.5
        %v6682 = vmul.f32 %v6654, 0.5
        %v6683 = vmul.f32 %v6657, 0.5
        %v6684 = vmul.f32 %v6566, 0.70710677
        %v6685 = vmul.f32 %v6569, 0.70710677
        %v6686 = vmul.f32 %v6574, 0.70710677
        %v6687 = vmul.f32 %v6577, 0.70710677
        %v6688 = vmul.f32 %v6582, 0.70710677
        %v6689 = vmul.f32 %v6585, 0.70710677
        %v6690 = vmul.f32 %v6590, 0.70710677
        %v6691 = vmul.f32 %v6593, 0.70710677
        %v6692 = vmul.f32 %v6598, 0.70710677
        %v6693 = vmul.f32 %v6601, 0.70710677
        %v6694 = vmul.f32 %v6606, 0.70710677
        %v6695 = vmul.f32 %v6609, 0.70710677
        %v6696 = vmul.f32 %v6614, 0.70710677
        %v6697 = vmul.f32 %v6617, 0.70710677
        %v6698 = vmul.f32 %v6622, 0.70710677
        %v6699 = vmul.f32 %v6625, 0.70710677
        %v6700 = vmul.f32 %v6630, 0.70710677
        %v6701 = vmul.f32 %v6633, 0.70710677
        %v6702 = vmul.f32 %v6638, 0.70710677
        %v6703 = vmul.f32 %v6641, 0.70710677
        %v6704 = vmul.f32 %v6646, 0.70710677
        %v6705 = vmul.f32 %v6649, 0.70710677
        %v6706 = vmul.f32 %v6654, 0.70710677
        %v6707 = vmul.f32 %v6657, 0.70710677
        %vm6708 = vcmp.ge.f32.partialorder %v6684, 0.0
        %vm6709 = vcmp.ge.f32.partialorder %v6685, 0.0
        %vm6710 = vcmp.ge.f32.partialorder %v6686, 0.0
        %vm6711 = vcmp.ge.f32.partialorder %v6687, 0.0
        %vm6712 = vcmp.ge.f32.partialorder %v6688, 0.0
        %vm6713 = vcmp.ge.f32.partialorder %v6689, 0.0
        %vm6714 = vcmp.ge.f32.partialorder %v6690, 0.0
        %vm6715 = vcmp.ge.f32.partialorder %v6691, 0.0
        %vm6716 = vcmp.ge.f32.partialorder %v6692, 0.0
        %vm6717 = vcmp.ge.f32.partialorder %v6693, 0.0
        %vm6718 = vcmp.ge.f32.partialorder %v6694, 0.0
        %vm6719 = vcmp.ge.f32.partialorder %v6695, 0.0
        %vm6720 = vcmp.ge.f32.partialorder %v6696, 0.0
        %vm6721 = vcmp.ge.f32.partialorder %v6697, 0.0
        %vm6722 = vcmp.ge.f32.partialorder %v6698, 0.0
        %vm6723 = vcmp.ge.f32.partialorder %v6699, 0.0
        %vm6724 = vcmp.ge.f32.partialorder %v6700, 0.0
        %vm6725 = vcmp.ge.f32.partialorder %v6701, 0.0
        %vm6726 = vcmp.ge.f32.partialorder %v6702, 0.0
        %vm6727 = vcmp.ge.f32.partialorder %v6703, 0.0
        %vm6728 = vcmp.ge.f32.partialorder %v6704, 0.0
        %vm6729 = vcmp.ge.f32.partialorder %v6705, 0.0
        %vm6730 = vcmp.ge.f32.partialorder %v6706, 0.0
        %vm6731 = vcmp.ge.f32.partialorder %v6707, 0.0
        %v6732 = vsub.f32 0.0, %v6684
        %v6733 = vsub.f32 0.0, %v6685
        %v6734 = vsub.f32 0.0, %v6686
        %v6735 = vsub.f32 0.0, %v6687
        %v6736 = vsub.f32 0.0, %v6688
        %v6737 = vsub.f32 0.0, %v6689
        %v6738 = vsub.f32 0.0, %v6690
        %v6739 = vsub.f32 0.0, %v6691
        %v6740 = vsub.f32 0.0, %v6692
        %v6741 = vsub.f32 0.0, %v6693
        %v6742 = vsub.f32 0.0, %v6694
        %v6743 = vsub.f32 0.0, %v6695
        %v6744 = vsub.f32 0.0, %v6696
        %v6745 = vsub.f32 0.0, %v6697
        %v6746 = vsub.f32 0.0, %v6698
        %v6747 = vsub.f32 0.0, %v6699
        %v6748 = vsub.f32 0.0, %v6700
        %v6749 = vsub.f32 0.0, %v6701
        %v6750 = vsub.f32 0.0, %v6702
        %v6751 = vsub.f32 0.0, %v6703
        %v6752 = vsub.f32 0.0, %v6704
        %v6753 = vsub.f32 0.0, %v6705
        %v6754 = vsub.f32 0.0, %v6706
        %v6755 = vsub.f32 0.0, %v6707
        %v6756 = vsel %vm6708, %v6684, %v6732
        %v6757 = vsel %vm6709, %v6685, %v6733
        %v6758 = vsel %vm6710, %v6686, %v6734
        %v6759 = vsel %vm6711, %v6687, %v6735
        %v6760 = vsel %vm6712, %v6688, %v6736
        %v6761 = vsel %vm6713, %v6689, %v6737
        %v6762 = vsel %vm6714, %v6690, %v6738
        %v6763 = vsel %vm6715, %v6691, %v6739
        %v6764 = vsel %vm6716, %v6692, %v6740
        %v6765 = vsel %vm6717, %v6693, %v6741
        %v6766 = vsel %vm6718, %v6694, %v6742
        %v6767 = vsel %vm6719, %v6695, %v6743
        %v6768 = vsel %vm6720, %v6696, %v6744
        %v6769 = vsel %vm6721, %v6697, %v6745
        %v6770 = vsel %vm6722, %v6698, %v6746
        %v6771 = vsel %vm6723, %v6699, %v6747
        %v6772 = vsel %vm6724, %v6700, %v6748
        %v6773 = vsel %vm6725, %v6701, %v6749
        %v6774 = vsel %vm6726, %v6702, %v6750
        %v6775 = vsel %vm6727, %v6703, %v6751
        %v6776 = vsel %vm6728, %v6704, %v6752
        %v6777 = vsel %vm6729, %v6705, %v6753
        %v6778 = vsel %vm6730, %v6706, %v6754
        %v6779 = vsel %vm6731, %v6707, %v6755
        %v6780 = vmul.f32 %v6756, 0.3275911
        %v6781 = vmul.f32 %v6757, 0.3275911
        %v6782 = vmul.f32 %v6758, 0.3275911
        %v6783 = vmul.f32 %v6759, 0.3275911
        %v6784 = vmul.f32 %v6760, 0.3275911
        %v6785 = vmul.f32 %v6761, 0.3275911
        %v6786 = vmul.f32 %v6762, 0.3275911
        %v6787 = vmul.f32 %v6763, 0.3275911
        %v6788 = vmul.f32 %v6764, 0.3275911
        %v6789 = vmul.f32 %v6765, 0.3275911
        %v6790 = vmul.f32 %v6766, 0.3275911
        %v6791 = vmul.f32 %v6767, 0.3275911
        %v6792 = vmul.f32 %v6768, 0.3275911
        %v6793 = vmul.f32 %v6769, 0.3275911
        %v6794 = vmul.f32 %v6770, 0.3275911
        %v6795 = vmul.f32 %v6771, 0.3275911
        %v6796 = vmul.f32 %v6772, 0.3275911
        %v6797 = vmul.f32 %v6773, 0.3275911
        %v6798 = vmul.f32 %v6774, 0.3275911
        %v6799 = vmul.f32 %v6775, 0.3275911
        %v6800 = vmul.f32 %v6776, 0.3275911
        %v6801 = vmul.f32 %v6777, 0.3275911
        %v6802 = vmul.f32 %v6778, 0.3275911
        %v6803 = vmul.f32 %v6779, 0.3275911
        %v6804 = vadd.f32 %v6780, 1.0
        %v6805 = vadd.f32 %v6781, 1.0
        %v6806 = vadd.f32 %v6782, 1.0
        %v6807 = vadd.f32 %v6783, 1.0
        %v6808 = vadd.f32 %v6784, 1.0
        %v6809 = vadd.f32 %v6785, 1.0
        %v6810 = vadd.f32 %v6786, 1.0
        %v6811 = vadd.f32 %v6787, 1.0
        %v6812 = vadd.f32 %v6788, 1.0
        %v6813 = vadd.f32 %v6789, 1.0
        %v6814 = vadd.f32 %v6790, 1.0
        %v6815 = vadd.f32 %v6791, 1.0
        %v6816 = vadd.f32 %v6792, 1.0
        %v6817 = vadd.f32 %v6793, 1.0
        %v6818 = vadd.f32 %v6794, 1.0
        %v6819 = vadd.f32 %v6795, 1.0
        %v6820 = vadd.f32 %v6796, 1.0
        %v6821 = vadd.f32 %v6797, 1.0
        %v6822 = vadd.f32 %v6798, 1.0
        %v6823 = vadd.f32 %v6799, 1.0
        %v6824 = vadd.f32 %v6800, 1.0
        %v6825 = vadd.f32 %v6801, 1.0
        %v6826 = vadd.f32 %v6802, 1.0
        %v6827 = vadd.f32 %v6803, 1.0
        %v6828 = vrcp.pop %v6804
        %v6829 = vmul.f32 1.0, %v6828
        %v6830 = vrcp.pop %v6805
        %v6831 = vmul.f32 1.0, %v6830
        %v6832 = vrcp.pop %v6806
        %v6833 = vmul.f32 1.0, %v6832
        %v6834 = vrcp.pop %v6807
        %v6835 = vmul.f32 1.0, %v6834
        %v6836 = vrcp.pop %v6808
        %v6837 = vmul.f32 1.0, %v6836
        %v6838 = vrcp.pop %v6809
        %v6839 = vmul.f32 1.0, %v6838
        %v6840 = vrcp.pop %v6810
        %v6841 = vmul.f32 1.0, %v6840
        %v6842 = vrcp.pop %v6811
        %v6843 = vmul.f32 1.0, %v6842
        %v6844 = vrcp.pop %v6812
        %v6845 = vmul.f32 1.0, %v6844
        %v6846 = vrcp.pop %v6813
        %v6847 = vmul.f32 1.0, %v6846
        %v6848 = vrcp.pop %v6814
        %v6849 = vmul.f32 1.0, %v6848
        %v6850 = vrcp.pop %v6815
        %v6851 = vmul.f32 1.0, %v6850
        %v6852 = vrcp.pop %v6816
        %v6853 = vmul.f32 1.0, %v6852
        %v6854 = vrcp.pop %v6817
        %v6855 = vmul.f32 1.0, %v6854
        %v6856 = vrcp.pop %v6818
        %v6857 = vmul.f32 1.0, %v6856
        %v6858 = vrcp.pop %v6819
        %v6859 = vmul.f32 1.0, %v6858
        %v6860 = vrcp.pop %v6820
        %v6861 = vmul.f32 1.0, %v6860
        %v6862 = vrcp.pop %v6821
        %v6863 = vmul.f32 1.0, %v6862
        %v6864 = vrcp.pop %v6822
        %v6865 = vmul.f32 1.0, %v6864
        %v6866 = vrcp.pop %v6823
        %v6867 = vmul.f32 1.0, %v6866
        %v6868 = vrcp.pop %v6824
        %v6869 = vmul.f32 1.0, %v6868
        %v6870 = vrcp.pop %v6825
        %v6871 = vmul.f32 1.0, %v6870
        %v6872 = vrcp.pop %v6826
        %v6873 = vmul.f32 1.0, %v6872
        %v6874 = vrcp.pop %v6827
        %v6875 = vmul.f32 1.0, %v6874
        %v6876 = vmul.f32 %v6829, 1.0614054
        %v6877 = vmul.f32 %v6831, 1.0614054
        %v6878 = vmul.f32 %v6833, 1.0614054
        %v6879 = vmul.f32 %v6835, 1.0614054
        %v6880 = vmul.f32 %v6837, 1.0614054
        %v6881 = vmul.f32 %v6839, 1.0614054
        %v6882 = vmul.f32 %v6841, 1.0614054
        %v6883 = vmul.f32 %v6843, 1.0614054
        %v6884 = vmul.f32 %v6845, 1.0614054
        %v6885 = vmul.f32 %v6847, 1.0614054
        %v6886 = vmul.f32 %v6849, 1.0614054
        %v6887 = vmul.f32 %v6851, 1.0614054
        %v6888 = vmul.f32 %v6853, 1.0614054
        %v6889 = vmul.f32 %v6855, 1.0614054
        %v6890 = vmul.f32 %v6857, 1.0614054
        %v6891 = vmul.f32 %v6859, 1.0614054
        %v6892 = vmul.f32 %v6861, 1.0614054
        %v6893 = vmul.f32 %v6863, 1.0614054
        %v6894 = vmul.f32 %v6865, 1.0614054
        %v6895 = vmul.f32 %v6867, 1.0614054
        %v6896 = vmul.f32 %v6869, 1.0614054
        %v6897 = vmul.f32 %v6871, 1.0614054
        %v6898 = vmul.f32 %v6873, 1.0614054
        %v6899 = vmul.f32 %v6875, 1.0614054
        %v6900 = vadd.f32 %v6876, -1.4531521
        %v6901 = vadd.f32 %v6877, -1.4531521
        %v6902 = vadd.f32 %v6878, -1.4531521
        %v6903 = vadd.f32 %v6879, -1.4531521
        %v6904 = vadd.f32 %v6880, -1.4531521
        %v6905 = vadd.f32 %v6881, -1.4531521
        %v6906 = vadd.f32 %v6882, -1.4531521
        %v6907 = vadd.f32 %v6883, -1.4531521
        %v6908 = vadd.f32 %v6884, -1.4531521
        %v6909 = vadd.f32 %v6885, -1.4531521
        %v6910 = vadd.f32 %v6886, -1.4531521
        %v6911 = vadd.f32 %v6887, -1.4531521
        %v6912 = vadd.f32 %v6888, -1.4531521
        %v6913 = vadd.f32 %v6889, -1.4531521
        %v6914 = vadd.f32 %v6890, -1.4531521
        %v6915 = vadd.f32 %v6891, -1.4531521
        %v6916 = vadd.f32 %v6892, -1.4531521
        %v6917 = vadd.f32 %v6893, -1.4531521
        %v6918 = vadd.f32 %v6894, -1.4531521
        %v6919 = vadd.f32 %v6895, -1.4531521
        %v6920 = vadd.f32 %v6896, -1.4531521
        %v6921 = vadd.f32 %v6897, -1.4531521
        %v6922 = vadd.f32 %v6898, -1.4531521
        %v6923 = vadd.f32 %v6899, -1.4531521
        %v6924 = vmul.f32 %v6900, %v6829
        %v6925 = vmul.f32 %v6901, %v6831
        %v6926 = vmul.f32 %v6902, %v6833
        %v6927 = vmul.f32 %v6903, %v6835
        %v6928 = vmul.f32 %v6904, %v6837
        %v6929 = vmul.f32 %v6905, %v6839
        %v6930 = vmul.f32 %v6906, %v6841
        %v6931 = vmul.f32 %v6907, %v6843
        %v6932 = vmul.f32 %v6908, %v6845
        %v6933 = vmul.f32 %v6909, %v6847
        %v6934 = vmul.f32 %v6910, %v6849
        %v6935 = vmul.f32 %v6911, %v6851
        %v6936 = vmul.f32 %v6912, %v6853
        %v6937 = vmul.f32 %v6913, %v6855
        %v6938 = vmul.f32 %v6914, %v6857
        %v6939 = vmul.f32 %v6915, %v6859
        %v6940 = vmul.f32 %v6916, %v6861
        %v6941 = vmul.f32 %v6917, %v6863
        %v6942 = vmul.f32 %v6918, %v6865
        %v6943 = vmul.f32 %v6919, %v6867
        %v6944 = vmul.f32 %v6920, %v6869
        %v6945 = vmul.f32 %v6921, %v6871
        %v6946 = vmul.f32 %v6922, %v6873
        %v6947 = vmul.f32 %v6923, %v6875
        %v6948 = vadd.f32 %v6924, 1.4214138
        %v6949 = vadd.f32 %v6925, 1.4214138
        %v6950 = vadd.f32 %v6926, 1.4214138
        %v6951 = vadd.f32 %v6927, 1.4214138
        %v6952 = vadd.f32 %v6928, 1.4214138
        %v6953 = vadd.f32 %v6929, 1.4214138
        %v6954 = vadd.f32 %v6930, 1.4214138
        %v6955 = vadd.f32 %v6931, 1.4214138
        %v6956 = vadd.f32 %v6932, 1.4214138
        %v6957 = vadd.f32 %v6933, 1.4214138
        %v6958 = vadd.f32 %v6934, 1.4214138
        %v6959 = vadd.f32 %v6935, 1.4214138
        %v6960 = vadd.f32 %v6936, 1.4214138
        %v6961 = vadd.f32 %v6937, 1.4214138
        %v6962 = vadd.f32 %v6938, 1.4214138
        %v6963 = vadd.f32 %v6939, 1.4214138
        %v6964 = vadd.f32 %v6940, 1.4214138
        %v6965 = vadd.f32 %v6941, 1.4214138
        %v6966 = vadd.f32 %v6942, 1.4214138
        %v6967 = vadd.f32 %v6943, 1.4214138
        %v6968 = vadd.f32 %v6944, 1.4214138
        %v6969 = vadd.f32 %v6945, 1.4214138
        %v6970 = vadd.f32 %v6946, 1.4214138
        %v6971 = vadd.f32 %v6947, 1.4214138
        %v6972 = vmul.f32 %v6948, %v6829
        %v6973 = vmul.f32 %v6949, %v6831
        %v6974 = vmul.f32 %v6950, %v6833
        %v6975 = vmul.f32 %v6951, %v6835
        %v6976 = vmul.f32 %v6952, %v6837
        %v6977 = vmul.f32 %v6953, %v6839
        %v6978 = vmul.f32 %v6954, %v6841
        %v6979 = vmul.f32 %v6955, %v6843
        %v6980 = vmul.f32 %v6956, %v6845
        %v6981 = vmul.f32 %v6957, %v6847
        %v6982 = vmul.f32 %v6958, %v6849
        %v6983 = vmul.f32 %v6959, %v6851
        %v6984 = vmul.f32 %v6960, %v6853
        %v6985 = vmul.f32 %v6961, %v6855
        %v6986 = vmul.f32 %v6962, %v6857
        %v6987 = vmul.f32 %v6963, %v6859
        %v6988 = vmul.f32 %v6964, %v6861
        %v6989 = vmul.f32 %v6965, %v6863
        %v6990 = vmul.f32 %v6966, %v6865
        %v6991 = vmul.f32 %v6967, %v6867
        %v6992 = vmul.f32 %v6968, %v6869
        %v6993 = vmul.f32 %v6969, %v6871
        %v6994 = vmul.f32 %v6970, %v6873
        %v6995 = vmul.f32 %v6971, %v6875
        %v6996 = vadd.f32 %v6972, -0.28449672
        %v6997 = vadd.f32 %v6973, -0.28449672
        %v6998 = vadd.f32 %v6974, -0.28449672
        %v6999 = vadd.f32 %v6975, -0.28449672
        %v7000 = vadd.f32 %v6976, -0.28449672
        %v7001 = vadd.f32 %v6977, -0.28449672
        %v7002 = vadd.f32 %v6978, -0.28449672
        %v7003 = vadd.f32 %v6979, -0.28449672
        %v7004 = vadd.f32 %v6980, -0.28449672
        %v7005 = vadd.f32 %v6981, -0.28449672
        %v7006 = vadd.f32 %v6982, -0.28449672
        %v7007 = vadd.f32 %v6983, -0.28449672
        %v7008 = vadd.f32 %v6984, -0.28449672
        %v7009 = vadd.f32 %v6985, -0.28449672
        %v7010 = vadd.f32 %v6986, -0.28449672
        %v7011 = vadd.f32 %v6987, -0.28449672
        %v7012 = vadd.f32 %v6988, -0.28449672
        %v7013 = vadd.f32 %v6989, -0.28449672
        %v7014 = vadd.f32 %v6990, -0.28449672
        %v7015 = vadd.f32 %v6991, -0.28449672
        %v7016 = vadd.f32 %v6992, -0.28449672
        %v7017 = vadd.f32 %v6993, -0.28449672
        %v7018 = vadd.f32 %v6994, -0.28449672
        %v7019 = vadd.f32 %v6995, -0.28449672
        %v7020 = vmul.f32 %v6996, %v6829
        %v7021 = vmul.f32 %v6997, %v6831
        %v7022 = vmul.f32 %v6998, %v6833
        %v7023 = vmul.f32 %v6999, %v6835
        %v7024 = vmul.f32 %v7000, %v6837
        %v7025 = vmul.f32 %v7001, %v6839
        %v7026 = vmul.f32 %v7002, %v6841
        %v7027 = vmul.f32 %v7003, %v6843
        %v7028 = vmul.f32 %v7004, %v6845
        %v7029 = vmul.f32 %v7005, %v6847
        %v7030 = vmul.f32 %v7006, %v6849
        %v7031 = vmul.f32 %v7007, %v6851
        %v7032 = vmul.f32 %v7008, %v6853
        %v7033 = vmul.f32 %v7009, %v6855
        %v7034 = vmul.f32 %v7010, %v6857
        %v7035 = vmul.f32 %v7011, %v6859
        %v7036 = vmul.f32 %v7012, %v6861
        %v7037 = vmul.f32 %v7013, %v6863
        %v7038 = vmul.f32 %v7014, %v6865
        %v7039 = vmul.f32 %v7015, %v6867
        %v7040 = vmul.f32 %v7016, %v6869
        %v7041 = vmul.f32 %v7017, %v6871
        %v7042 = vmul.f32 %v7018, %v6873
        %v7043 = vmul.f32 %v7019, %v6875
        %v7044 = vadd.f32 %v7020, 0.2548296
        %v7045 = vadd.f32 %v7021, 0.2548296
        %v7046 = vadd.f32 %v7022, 0.2548296
        %v7047 = vadd.f32 %v7023, 0.2548296
        %v7048 = vadd.f32 %v7024, 0.2548296
        %v7049 = vadd.f32 %v7025, 0.2548296
        %v7050 = vadd.f32 %v7026, 0.2548296
        %v7051 = vadd.f32 %v7027, 0.2548296
        %v7052 = vadd.f32 %v7028, 0.2548296
        %v7053 = vadd.f32 %v7029, 0.2548296
        %v7054 = vadd.f32 %v7030, 0.2548296
        %v7055 = vadd.f32 %v7031, 0.2548296
        %v7056 = vadd.f32 %v7032, 0.2548296
        %v7057 = vadd.f32 %v7033, 0.2548296
        %v7058 = vadd.f32 %v7034, 0.2548296
        %v7059 = vadd.f32 %v7035, 0.2548296
        %v7060 = vadd.f32 %v7036, 0.2548296
        %v7061 = vadd.f32 %v7037, 0.2548296
        %v7062 = vadd.f32 %v7038, 0.2548296
        %v7063 = vadd.f32 %v7039, 0.2548296
        %v7064 = vadd.f32 %v7040, 0.2548296
        %v7065 = vadd.f32 %v7041, 0.2548296
        %v7066 = vadd.f32 %v7042, 0.2548296
        %v7067 = vadd.f32 %v7043, 0.2548296
        %v7068 = vmul.f32 %v7044, %v6829
        %v7069 = vmul.f32 %v7045, %v6831
        %v7070 = vmul.f32 %v7046, %v6833
        %v7071 = vmul.f32 %v7047, %v6835
        %v7072 = vmul.f32 %v7048, %v6837
        %v7073 = vmul.f32 %v7049, %v6839
        %v7074 = vmul.f32 %v7050, %v6841
        %v7075 = vmul.f32 %v7051, %v6843
        %v7076 = vmul.f32 %v7052, %v6845
        %v7077 = vmul.f32 %v7053, %v6847
        %v7078 = vmul.f32 %v7054, %v6849
        %v7079 = vmul.f32 %v7055, %v6851
        %v7080 = vmul.f32 %v7056, %v6853
        %v7081 = vmul.f32 %v7057, %v6855
        %v7082 = vmul.f32 %v7058, %v6857
        %v7083 = vmul.f32 %v7059, %v6859
        %v7084 = vmul.f32 %v7060, %v6861
        %v7085 = vmul.f32 %v7061, %v6863
        %v7086 = vmul.f32 %v7062, %v6865
        %v7087 = vmul.f32 %v7063, %v6867
        %v7088 = vmul.f32 %v7064, %v6869
        %v7089 = vmul.f32 %v7065, %v6871
        %v7090 = vmul.f32 %v7066, %v6873
        %v7091 = vmul.f32 %v7067, %v6875
        %v7092 = vsub.f32 0.0, %v6756
        %v7093 = vsub.f32 0.0, %v6757
        %v7094 = vsub.f32 0.0, %v6758
        %v7095 = vsub.f32 0.0, %v6759
        %v7096 = vsub.f32 0.0, %v6760
        %v7097 = vsub.f32 0.0, %v6761
        %v7098 = vsub.f32 0.0, %v6762
        %v7099 = vsub.f32 0.0, %v6763
        %v7100 = vsub.f32 0.0, %v6764
        %v7101 = vsub.f32 0.0, %v6765
        %v7102 = vsub.f32 0.0, %v6766
        %v7103 = vsub.f32 0.0, %v6767
        %v7104 = vsub.f32 0.0, %v6768
        %v7105 = vsub.f32 0.0, %v6769
        %v7106 = vsub.f32 0.0, %v6770
        %v7107 = vsub.f32 0.0, %v6771
        %v7108 = vsub.f32 0.0, %v6772
        %v7109 = vsub.f32 0.0, %v6773
        %v7110 = vsub.f32 0.0, %v6774
        %v7111 = vsub.f32 0.0, %v6775
        %v7112 = vsub.f32 0.0, %v6776
        %v7113 = vsub.f32 0.0, %v6777
        %v7114 = vsub.f32 0.0, %v6778
        %v7115 = vsub.f32 0.0, %v6779
        %v7116 = vmul.f32 %v7092, %v6756
        %v7117 = vmul.f32 %v7093, %v6757
        %v7118 = vmul.f32 %v7094, %v6758
        %v7119 = vmul.f32 %v7095, %v6759
        %v7120 = vmul.f32 %v7096, %v6760
        %v7121 = vmul.f32 %v7097, %v6761
        %v7122 = vmul.f32 %v7098, %v6762
        %v7123 = vmul.f32 %v7099, %v6763
        %v7124 = vmul.f32 %v7100, %v6764
        %v7125 = vmul.f32 %v7101, %v6765
        %v7126 = vmul.f32 %v7102, %v6766
        %v7127 = vmul.f32 %v7103, %v6767
        %v7128 = vmul.f32 %v7104, %v6768
        %v7129 = vmul.f32 %v7105, %v6769
        %v7130 = vmul.f32 %v7106, %v6770
        %v7131 = vmul.f32 %v7107, %v6771
        %v7132 = vmul.f32 %v7108, %v6772
        %v7133 = vmul.f32 %v7109, %v6773
        %v7134 = vmul.f32 %v7110, %v6774
        %v7135 = vmul.f32 %v7111, %v6775
        %v7136 = vmul.f32 %v7112, %v6776
        %v7137 = vmul.f32 %v7113, %v6777
        %v7138 = vmul.f32 %v7114, %v6778
        %v7139 = vmul.f32 %v7115, %v6779
        %v7140 = vmul.f32 %v7116, 1.442695
        %v7141 = vpow.pop %v7140
        %v7142 = vmul.f32 %v7117, 1.442695
        %v7143 = vpow.pop %v7142
        %v7144 = vmul.f32 %v7118, 1.442695
        %v7145 = vpow.pop %v7144
        %v7146 = vmul.f32 %v7119, 1.442695
        %v7147 = vpow.pop %v7146
        %v7148 = vmul.f32 %v7120, 1.442695
        %v7149 = vpow.pop %v7148
        %v7150 = vmul.f32 %v7121, 1.442695
        %v7151 = vpow.pop %v7150
        %v7152 = vmul.f32 %v7122, 1.442695
        %v7153 = vpow.pop %v7152
        %v7154 = vmul.f32 %v7123, 1.442695
        %v7155 = vpow.pop %v7154
        %v7156 = vmul.f32 %v7124, 1.442695
        %v7157 = vpow.pop %v7156
        %v7158 = vmul.f32 %v7125, 1.442695
        %v7159 = vpow.pop %v7158
        %v7160 = vmul.f32 %v7126, 1.442695
        %v7161 = vpow.pop %v7160
        %v7162 = vmul.f32 %v7127, 1.442695
        %v7163 = vpow.pop %v7162
        %v7164 = vmul.f32 %v7128, 1.442695
        %v7165 = vpow.pop %v7164
        %v7166 = vmul.f32 %v7129, 1.442695
        %v7167 = vpow.pop %v7166
        %v7168 = vmul.f32 %v7130, 1.442695
        %v7169 = vpow.pop %v7168
        %v7170 = vmul.f32 %v7131, 1.442695
        %v7171 = vpow.pop %v7170
        %v7172 = vmul.f32 %v7132, 1.442695
        %v7173 = vpow.pop %v7172
        %v7174 = vmul.f32 %v7133, 1.442695
        %v7175 = vpow.pop %v7174
        %v7176 = vmul.f32 %v7134, 1.442695
        %v7177 = vpow.pop %v7176
        %v7178 = vmul.f32 %v7135, 1.442695
        %v7179 = vpow.pop %v7178
        %v7180 = vmul.f32 %v7136, 1.442695
        %v7181 = vpow.pop %v7180
        %v7182 = vmul.f32 %v7137, 1.442695
        %v7183 = vpow.pop %v7182
        %v7184 = vmul.f32 %v7138, 1.442695
        %v7185 = vpow.pop %v7184
        %v7186 = vmul.f32 %v7139, 1.442695
        %v7187 = vpow.pop %v7186
        %v7188 = vmul.f32 %v7068, %v7141
        %v7189 = vmul.f32 %v7069, %v7143
        %v7190 = vmul.f32 %v7070, %v7145
        %v7191 = vmul.f32 %v7071, %v7147
        %v7192 = vmul.f32 %v7072, %v7149
        %v7193 = vmul.f32 %v7073, %v7151
        %v7194 = vmul.f32 %v7074, %v7153
        %v7195 = vmul.f32 %v7075, %v7155
        %v7196 = vmul.f32 %v7076, %v7157
        %v7197 = vmul.f32 %v7077, %v7159
        %v7198 = vmul.f32 %v7078, %v7161
        %v7199 = vmul.f32 %v7079, %v7163
        %v7200 = vmul.f32 %v7080, %v7165
        %v7201 = vmul.f32 %v7081, %v7167
        %v7202 = vmul.f32 %v7082, %v7169
        %v7203 = vmul.f32 %v7083, %v7171
        %v7204 = vmul.f32 %v7084, %v7173
        %v7205 = vmul.f32 %v7085, %v7175
        %v7206 = vmul.f32 %v7086, %v7177
        %v7207 = vmul.f32 %v7087, %v7179
        %v7208 = vmul.f32 %v7088, %v7181
        %v7209 = vmul.f32 %v7089, %v7183
        %v7210 = vmul.f32 %v7090, %v7185
        %v7211 = vmul.f32 %v7091, %v7187
        %v7212 = vsub.f32 1.0, %v7188
        %v7213 = vsub.f32 1.0, %v7189
        %v7214 = vsub.f32 1.0, %v7190
        %v7215 = vsub.f32 1.0, %v7191
        %v7216 = vsub.f32 1.0, %v7192
        %v7217 = vsub.f32 1.0, %v7193
        %v7218 = vsub.f32 1.0, %v7194
        %v7219 = vsub.f32 1.0, %v7195
        %v7220 = vsub.f32 1.0, %v7196
        %v7221 = vsub.f32 1.0, %v7197
        %v7222 = vsub.f32 1.0, %v7198
        %v7223 = vsub.f32 1.0, %v7199
        %v7224 = vsub.f32 1.0, %v7200
        %v7225 = vsub.f32 1.0, %v7201
        %v7226 = vsub.f32 1.0, %v7202
        %v7227 = vsub.f32 1.0, %v7203
        %v7228 = vsub.f32 1.0, %v7204
        %v7229 = vsub.f32 1.0, %v7205
        %v7230 = vsub.f32 1.0, %v7206
        %v7231 = vsub.f32 1.0, %v7207
        %v7232 = vsub.f32 1.0, %v7208
        %v7233 = vsub.f32 1.0, %v7209
        %v7234 = vsub.f32 1.0, %v7210
        %v7235 = vsub.f32 1.0, %v7211
        %v7236 = vsub.f32 0.0, %v7212
        %v7237 = vsub.f32 0.0, %v7213
        %v7238 = vsub.f32 0.0, %v7214
        %v7239 = vsub.f32 0.0, %v7215
        %v7240 = vsub.f32 0.0, %v7216
        %v7241 = vsub.f32 0.0, %v7217
        %v7242 = vsub.f32 0.0, %v7218
        %v7243 = vsub.f32 0.0, %v7219
        %v7244 = vsub.f32 0.0, %v7220
        %v7245 = vsub.f32 0.0, %v7221
        %v7246 = vsub.f32 0.0, %v7222
        %v7247 = vsub.f32 0.0, %v7223
        %v7248 = vsub.f32 0.0, %v7224
        %v7249 = vsub.f32 0.0, %v7225
        %v7250 = vsub.f32 0.0, %v7226
        %v7251 = vsub.f32 0.0, %v7227
        %v7252 = vsub.f32 0.0, %v7228
        %v7253 = vsub.f32 0.0, %v7229
        %v7254 = vsub.f32 0.0, %v7230
        %v7255 = vsub.f32 0.0, %v7231
        %v7256 = vsub.f32 0.0, %v7232
        %v7257 = vsub.f32 0.0, %v7233
        %v7258 = vsub.f32 0.0, %v7234
        %v7259 = vsub.f32 0.0, %v7235
        %v7260 = vsel %vm6708, %v7212, %v7236
        %v7261 = vsel %vm6709, %v7213, %v7237
        %v7262 = vsel %vm6710, %v7214, %v7238
        %v7263 = vsel %vm6711, %v7215, %v7239
        %v7264 = vsel %vm6712, %v7216, %v7240
        %v7265 = vsel %vm6713, %v7217, %v7241
        %v7266 = vsel %vm6714, %v7218, %v7242
        %v7267 = vsel %vm6715, %v7219, %v7243
        %v7268 = vsel %vm6716, %v7220, %v7244
        %v7269 = vsel %vm6717, %v7221, %v7245
        %v7270 = vsel %vm6718, %v7222, %v7246
        %v7271 = vsel %vm6719, %v7223, %v7247
        %v7272 = vsel %vm6720, %v7224, %v7248
        %v7273 = vsel %vm6721, %v7225, %v7249
        %v7274 = vsel %vm6722, %v7226, %v7250
        %v7275 = vsel %vm6723, %v7227, %v7251
        %v7276 = vsel %vm6724, %v7228, %v7252
        %v7277 = vsel %vm6725, %v7229, %v7253
        %v7278 = vsel %vm6726, %v7230, %v7254
        %v7279 = vsel %vm6727, %v7231, %v7255
        %v7280 = vsel %vm6728, %v7232, %v7256
        %v7281 = vsel %vm6729, %v7233, %v7257
        %v7282 = vsel %vm6730, %v7234, %v7258
        %v7283 = vsel %vm6731, %v7235, %v7259
        %v7284 = vadd.f32 %v7260, 1.0
        %v7285 = vadd.f32 %v7261, 1.0
        %v7286 = vadd.f32 %v7262, 1.0
        %v7287 = vadd.f32 %v7263, 1.0
        %v7288 = vadd.f32 %v7264, 1.0
        %v7289 = vadd.f32 %v7265, 1.0
        %v7290 = vadd.f32 %v7266, 1.0
        %v7291 = vadd.f32 %v7267, 1.0
        %v7292 = vadd.f32 %v7268, 1.0
        %v7293 = vadd.f32 %v7269, 1.0
        %v7294 = vadd.f32 %v7270, 1.0
        %v7295 = vadd.f32 %v7271, 1.0
        %v7296 = vadd.f32 %v7272, 1.0
        %v7297 = vadd.f32 %v7273, 1.0
        %v7298 = vadd.f32 %v7274, 1.0
        %v7299 = vadd.f32 %v7275, 1.0
        %v7300 = vadd.f32 %v7276, 1.0
        %v7301 = vadd.f32 %v7277, 1.0
        %v7302 = vadd.f32 %v7278, 1.0
        %v7303 = vadd.f32 %v7279, 1.0
        %v7304 = vadd.f32 %v7280, 1.0
        %v7305 = vadd.f32 %v7281, 1.0
        %v7306 = vadd.f32 %v7282, 1.0
        %v7307 = vadd.f32 %v7283, 1.0
        %v7308 = vmul.f32 %v6660, %v7284
        %v7309 = vmul.f32 %v6661, %v7285
        %v7310 = vmul.f32 %v6662, %v7286
        %v7311 = vmul.f32 %v6663, %v7287
        %v7312 = vmul.f32 %v6664, %v7288
        %v7313 = vmul.f32 %v6665, %v7289
        %v7314 = vmul.f32 %v6666, %v7290
        %v7315 = vmul.f32 %v6667, %v7291
        %v7316 = vmul.f32 %v6668, %v7292
        %v7317 = vmul.f32 %v6669, %v7293
        %v7318 = vmul.f32 %v6670, %v7294
        %v7319 = vmul.f32 %v6671, %v7295
        %v7320 = vmul.f32 %v6672, %v7296
        %v7321 = vmul.f32 %v6673, %v7297
        %v7322 = vmul.f32 %v6674, %v7298
        %v7323 = vmul.f32 %v6675, %v7299
        %v7324 = vmul.f32 %v6676, %v7300
        %v7325 = vmul.f32 %v6677, %v7301
        %v7326 = vmul.f32 %v6678, %v7302
        %v7327 = vmul.f32 %v6679, %v7303
        %v7328 = vmul.f32 %v6680, %v7304
        %v7329 = vmul.f32 %v6681, %v7305
        %v7330 = vmul.f32 %v6682, %v7306
        %v7331 = vmul.f32 %v6683, %v7307
        %v7332 = vld [vmem:[%s9] sm:$0xf]
        %v7333 = vld [vmem:[%s9 + $0x4] sm:$0xf]
        %v7334 = vld [vmem:[%s9 + $0x8] sm:$0xf]
        %v7335 = vld [vmem:[%s9 + $0xc] sm:$0xf]
        %v7336 = vld [vmem:[%s9 + $0x10] sm:$0xf]
        %v7337 = vld [vmem:[%s9 + $0x14] sm:$0xf]
        %v7338 = vld [vmem:[%s9 + $0x18] sm:$0xf]
        %v7339 = vld [vmem:[%s9 + $0x1c] sm:$0xf]
        %v7340 = vld [vmem:[%s9 + $0x20] sm:$0xf]
        %v7341 = vld [vmem:[%s9 + $0x24] sm:$0xf]
        %v7342 = vld [vmem:[%s9 + $0x28] sm:$0xf]
        %v7343 = vld [vmem:[%s9 + $0x2c] sm:$0xf]
        %v7344 = vld [vmem:[%s9 + $0x30] sm:$0xf]
        %v7345 = vld [vmem:[%s9 + $0x34] sm:$0xf]
        %v7346 = vld [vmem:[%s9 + $0x38] sm:$0xf]
        %v7347 = vld [vmem:[%s9 + $0x3c] sm:$0xf]
        %v7348 = vpack.c.bf16 %v7309, %v7308
        %v7349 = vpack.c.bf16 %v7311, %v7310
        %v7350 = vpack.c.bf16 %v7313, %v7312
        %v7351 = vpack.c.bf16 %v7315, %v7314
        %v7352 = vpack.c.bf16 %v7317, %v7316
        %v7353 = vpack.c.bf16 %v7319, %v7318
        %v7354 = vpack.c.bf16 %v7321, %v7320
        %v7355 = vpack.c.bf16 %v7323, %v7322
        %v7356 = vpack.c.bf16 %v7325, %v7324
        %v7357 = vpack.c.bf16 %v7327, %v7326
        %v7358 = vpack.c.bf16 %v7329, %v7328
        %v7359 = vpack.c.bf16 %v7331, %v7330
        %v7360 = vld [vmem:[%s3 + $0x5] sm:$0x1]
        %v7361 = vlaneseq
        %v7362 = vshrl.u32 %v7361, 7
        %v7363 = vsub.s32 0, %v7362
        %v7364 = vrot.slane %v7360, %v7363
        %v7381 = vunpack.c.l.b16 %v7332
        %v7382 = vunpack.c.l.b16 %v7333
        %v7383 = vunpack.c.l.b16 %v7334
        %v7384 = vunpack.c.l.b16 %v7335
        %v7385 = vunpack.c.l.b16 %v7336
        %v7386 = vunpack.c.l.b16 %v7337
        %v7387 = vunpack.c.l.b16 %v7338
        %v7388 = vunpack.c.l.b16 %v7339
        %v7389 = vunpack.c.l.b16 %v7340
        %v7390 = vunpack.c.l.b16 %v7341
        %v7391 = vunpack.c.l.b16 %v7342
        %v7392 = vunpack.c.l.b16 %v7343
        %v7393 = vunpack.c.l.b16 %v7344
        %v7394 = vunpack.c.l.b16 %v7345
        %v7395 = vunpack.c.l.b16 %v7346
        %v7396 = vunpack.c.l.b16 %v7347
        %v7397 = vpack.c.b16 %v7382, %v7381
        %v7398 = vpack.c.b16 %v7384, %v7383
        %v7399 = vpack.c.b16 %v7386, %v7385
        %v7400 = vpack.c.b16 %v7388, %v7387
        %v7401 = vpack.c.b16 %v7390, %v7389
        %v7402 = vpack.c.b16 %v7392, %v7391
        %v7403 = vpack.c.b16 %v7394, %v7393
        %v7404 = vpack.c.b16 %v7396, %v7395
        %7413 = vmatprep.subr.bf16.mxu0 0
        %7414 = vmatpush1.bf16.msra.mxu0 %v7397
        %7415 = vmatprep.subr.bf16.mxu0 0
        %7416 = vmatpush1.bf16.msra.mxu0 %v7398
        %7417 = vmatprep.subr.bf16.mxu0 0
        %7418 = vmatpush1.bf16.msra.mxu0 %v7399
        %7419 = vmatprep.subr.bf16.mxu0 0
        %7420 = vmatpush1.bf16.msra.mxu0 %v7400
        %7421 = vmatprep.subr.bf16.mxu0 0
        %7422 = vmatpush1.bf16.msra.mxu0 %v7401
        %7423 = vmatprep.subr.bf16.mxu0 0
        %7424 = vmatpush1.bf16.msra.mxu0 %v7402
        %7425 = vmatprep.subr.bf16.mxu0 0
        %7426 = vmatpush1.bf16.msra.mxu0 %v7403
        %7427 = vmatprep.subr.bf16.mxu0 0
        %7428 = vmatpush1.bf16.msra.mxu0 %v7404
        %7429 = vmatprep.subr.bf16.mxu0 0
        %7430 = vmatpush1.bf16.msra.mxu0 0
        %7431 = vmatprep.subr.bf16.mxu0 0
        %7432 = vmatpush1.bf16.msra.mxu0 0
        %7433 = vmatprep.subr.bf16.mxu0 0
        %7434 = vmatpush1.bf16.msra.mxu0 0
        %7435 = vmatprep.subr.bf16.mxu0 0
        %7436 = vmatpush1.bf16.msra.mxu0 0
        %7437 = vmatprep.subr.bf16.mxu0 0
        %7438 = vmatpush1.bf16.msra.mxu0 0
        %7439 = vmatprep.subr.bf16.mxu0 0
        %7440 = vmatpush1.bf16.msra.mxu0 0
        %7441 = vmatprep.subr.bf16.mxu0 0
        %7442 = vmatpush1.bf16.msra.mxu0 0
        %7443 = vmatprep.subr.bf16.mxu0 0
        %7444 = vmatpush1.bf16.msra.mxu0 0
        %7445 = vmatprep.mubr.bf16.mxu0 0
        %7446 = vmatmul.mubr.bf16.gmra.mrb[0].mxu0 %v7348
        %v7447 = vpop.f32.mrb[0].mxu0
        %v7448 = vadd.f32 %v7364, %v7447
        %v7449 = vpop.f32.mrb[0].mxu0
        %v7450 = vpop.f32.mrb[0].mxu0
        %v7451 = vadd.f32 %v7364, %v7450
        %v7452 = vpop.f32.mrb[0].mxu0
        %7453 = vmatprep.mubr.bf16.mxu0 0
        %7454 = vmatmul.mubr.bf16.gmra.mrb[0].mxu0 %v7349
        %v7455 = vpop.f32.mrb[0].mxu0
        %v7456 = vadd.f32 %v7364, %v7455
        %v7457 = vpop.f32.mrb[0].mxu0
        %v7458 = vpop.f32.mrb[0].mxu0
        %v7459 = vadd.f32 %v7364, %v7458
        %v7460 = vpop.f32.mrb[0].mxu0
        %7461 = vmatprep.mubr.bf16.mxu0 0
        %7462 = vmatmul.mubr.bf16.gmra.mrb[0].mxu0 %v7350
        %v7463 = vpop.f32.mrb[0].mxu0
        %v7464 = vadd.f32 %v7364, %v7463
        %v7465 = vpop.f32.mrb[0].mxu0
        %v7466 = vpop.f32.mrb[0].mxu0
        %v7467 = vadd.f32 %v7364, %v7466
        %v7468 = vpop.f32.mrb[0].mxu0
        %7469 = vmatprep.mubr.bf16.mxu0 0
        %7470 = vmatmul.mubr.bf16.gmra.mrb[0].mxu0 %v7351
        %v7471 = vpop.f32.mrb[0].mxu0
        %v7472 = vadd.f32 %v7364, %v7471
        %v7473 = vpop.f32.mrb[0].mxu0
        %v7474 = vpop.f32.mrb[0].mxu0
        %v7475 = vadd.f32 %v7364, %v7474
        %v7476 = vpop.f32.mrb[0].mxu0
        %7477 = vmatprep.mubr.bf16.mxu0 0
        %7478 = vmatmul.mubr.bf16.gmra.mrb[0].mxu0 %v7352
        %v7479 = vpop.f32.mrb[0].mxu0
        %v7480 = vadd.f32 %v7364, %v7479
        %v7481 = vpop.f32.mrb[0].mxu0
        %v7482 = vpop.f32.mrb[0].mxu0
        %v7483 = vadd.f32 %v7364, %v7482
        %v7484 = vpop.f32.mrb[0].mxu0
        %7485 = vmatprep.mubr.bf16.mxu0 0
        %7486 = vmatmul.mubr.bf16.gmra.mrb[0].mxu0 %v7353
        %v7487 = vpop.f32.mrb[0].mxu0
        %v7488 = vadd.f32 %v7364, %v7487
        %v7489 = vpop.f32.mrb[0].mxu0
        %v7490 = vpop.f32.mrb[0].mxu0
        %v7491 = vadd.f32 %v7364, %v7490
        %v7492 = vpop.f32.mrb[0].mxu0
        %7493 = vmatprep.mubr.bf16.mxu0 0
        %7494 = vmatmul.mubr.bf16.gmra.mrb[0].mxu0 %v7354
        %v7495 = vpop.f32.mrb[0].mxu0
        %v7496 = vadd.f32 %v7364, %v7495
        %v7497 = vpop.f32.mrb[0].mxu0
        %v7498 = vpop.f32.mrb[0].mxu0
        %v7499 = vadd.f32 %v7364, %v7498
        %v7500 = vpop.f32.mrb[0].mxu0
        %7501 = vmatprep.mubr.bf16.mxu0 0
        %7502 = vmatmul.mubr.bf16.gmra.mrb[0].mxu0 %v7355
        %v7503 = vpop.f32.mrb[0].mxu0
        %v7504 = vadd.f32 %v7364, %v7503
        %v7505 = vpop.f32.mrb[0].mxu0
        %v7506 = vpop.f32.mrb[0].mxu0
        %v7507 = vadd.f32 %v7364, %v7506
        %v7508 = vpop.f32.mrb[0].mxu0
        %7509 = vmatprep.mubr.bf16.mxu0 0
        %7510 = vmatmul.mubr.bf16.gmra.mrb[0].mxu0 %v7356
        %v7511 = vpop.f32.mrb[0].mxu0
        %v7512 = vadd.f32 %v7364, %v7511
        %v7513 = vpop.f32.mrb[0].mxu0
        %v7514 = vpop.f32.mrb[0].mxu0
        %v7515 = vadd.f32 %v7364, %v7514
        %v7516 = vpop.f32.mrb[0].mxu0
        %7517 = vmatprep.mubr.bf16.mxu0 0
        %7518 = vmatmul.mubr.bf16.gmra.mrb[0].mxu0 %v7357
        %v7519 = vpop.f32.mrb[0].mxu0
        %v7520 = vadd.f32 %v7364, %v7519
        %v7521 = vpop.f32.mrb[0].mxu0
        %v7522 = vpop.f32.mrb[0].mxu0
        %v7523 = vadd.f32 %v7364, %v7522
        %v7524 = vpop.f32.mrb[0].mxu0
        %7525 = vmatprep.mubr.bf16.mxu0 0
        %7526 = vmatmul.mubr.bf16.gmra.mrb[0].mxu0 %v7358
        %v7527 = vpop.f32.mrb[0].mxu0
        %v7528 = vadd.f32 %v7364, %v7527
        %v7529 = vpop.f32.mrb[0].mxu0
        %v7530 = vpop.f32.mrb[0].mxu0
        %v7531 = vadd.f32 %v7364, %v7530
        %v7532 = vpop.f32.mrb[0].mxu0
        %7533 = vmatprep.mubr.bf16.mxu0 0
        %7534 = vmatmul.mubr.bf16.gmra.mrb[0].mxu0 %v7359
        %v7535 = vpop.f32.mrb[0].mxu0
        %v7536 = vadd.f32 %v7364, %v7535
        %v7537 = vpop.f32.mrb[0].mxu0
        %v7538 = vpop.f32.mrb[0].mxu0
        %v7539 = vadd.f32 %v7364, %v7538
        %v7540 = vpop.f32.mrb[0].mxu0
        %7541 = vdwg.mxu0
        %v7542 = vadd.f32 %v6068, %v7448
        %v7543 = vadd.f32 %v6069, %v7451
        %v7544 = vadd.f32 %v6070, %v7456
        %v7545 = vadd.f32 %v6071, %v7459
        %v7546 = vadd.f32 %v6072, %v7464
        %v7547 = vadd.f32 %v6073, %v7467
        %v7548 = vadd.f32 %v6074, %v7472
        %v7549 = vadd.f32 %v6075, %v7475
        %v7550 = vadd.f32 %v6076, %v7480
        %v7551 = vadd.f32 %v6077, %v7483
        %v7552 = vadd.f32 %v6078, %v7488
        %v7553 = vadd.f32 %v6079, %v7491
        %v7554 = vadd.f32 %v6080, %v7496
        %v7555 = vadd.f32 %v6081, %v7499
        %v7556 = vadd.f32 %v6082, %v7504
        %v7557 = vadd.f32 %v6083, %v7507
        %v7558 = vadd.f32 %v6084, %v7512
        %v7559 = vadd.f32 %v6085, %v7515
        %v7560 = vadd.f32 %v6086, %v7520
        %v7561 = vadd.f32 %v6087, %v7523
        %v7562 = vadd.f32 %v6088, %v7528
        %v7563 = vadd.f32 %v6089, %v7531
        %v7564 = vadd.f32 %v6090, %v7536
        %v7565 = vadd.f32 %v6091, %v7539
        %v7566 = vld [vmem:[%s3 + $0x6] sm:$0x1]
        %v7567 = vld [vmem:[%s3 + $0x7] sm:$0x1]
        %v7568 = vsel %vm688, %v7542, 0.0
        %7569 = vadd.xlane.f32.xlu0 %v7568
        %v7570 = vpop.xlane.xlu0 %7569
        %v7571 = vsel %vm688, %v7543, 0.0
        %7572 = vadd.xlane.f32.xlu0 %v7571
        %v7573 = vpop.xlane.xlu0 %7572
        %v7574 = vsel %vm688, %v7544, 0.0
        %7575 = vadd.xlane.f32.xlu0 %v7574
        %v7576 = vpop.xlane.xlu0 %7575
        %v7577 = vsel %vm688, %v7545, 0.0
        %7578 = vadd.xlane.f32.xlu0 %v7577
        %v7579 = vpop.xlane.xlu0 %7578
        %v7580 = vsel %vm688, %v7546, 0.0
        %7581 = vadd.xlane.f32.xlu0 %v7580
        %v7582 = vpop.xlane.xlu0 %7581
        %v7583 = vsel %vm688, %v7547, 0.0
        %7584 = vadd.xlane.f32.xlu0 %v7583
        %v7585 = vpop.xlane.xlu0 %7584
        %v7586 = vsel %vm688, %v7548, 0.0
        %7587 = vadd.xlane.f32.xlu0 %v7586
        %v7588 = vpop.xlane.xlu0 %7587
        %v7589 = vsel %vm688, %v7549, 0.0
        %7590 = vadd.xlane.f32.xlu0 %v7589
        %v7591 = vpop.xlane.xlu0 %7590
        %v7592 = vsel %vm688, %v7550, 0.0
        %7593 = vadd.xlane.f32.xlu0 %v7592
        %v7594 = vpop.xlane.xlu0 %7593
        %v7595 = vsel %vm688, %v7551, 0.0
        %7596 = vadd.xlane.f32.xlu0 %v7595
        %v7597 = vpop.xlane.xlu0 %7596
        %v7598 = vsel %vm688, %v7552, 0.0
        %7599 = vadd.xlane.f32.xlu0 %v7598
        %v7600 = vpop.xlane.xlu0 %7599
        %v7601 = vsel %vm688, %v7553, 0.0
        %7602 = vadd.xlane.f32.xlu0 %v7601
        %v7603 = vpop.xlane.xlu0 %7602
        %v7604 = vsel %vm688, %v7554, 0.0
        %7605 = vadd.xlane.f32.xlu0 %v7604
        %v7606 = vpop.xlane.xlu0 %7605
        %v7607 = vsel %vm688, %v7555, 0.0
        %7608 = vadd.xlane.f32.xlu0 %v7607
        %v7609 = vpop.xlane.xlu0 %7608
        %v7610 = vsel %vm688, %v7556, 0.0
        %7611 = vadd.xlane.f32.xlu0 %v7610
        %v7612 = vpop.xlane.xlu0 %7611
        %v7613 = vsel %vm688, %v7557, 0.0
        %7614 = vadd.xlane.f32.xlu0 %v7613
        %v7615 = vpop.xlane.xlu0 %7614
        %v7616 = vsel %vm688, %v7558, 0.0
        %7617 = vadd.xlane.f32.xlu0 %v7616
        %v7618 = vpop.xlane.xlu0 %7617
        %v7619 = vsel %vm688, %v7559, 0.0
        %7620 = vadd.xlane.f32.xlu0 %v7619
        %v7621 = vpop.xlane.xlu0 %7620
        %v7622 = vsel %vm688, %v7560, 0.0
        %7623 = vadd.xlane.f32.xlu0 %v7622
        %v7624 = vpop.xlane.xlu0 %7623
        %v7625 = vsel %vm688, %v7561, 0.0
        %7626 = vadd.xlane.f32.xlu0 %v7625
        %v7627 = vpop.xlane.xlu0 %7626
        %v7628 = vsel %vm688, %v7562, 0.0
        %7629 = vadd.xlane.f32.xlu0 %v7628
        %v7630 = vpop.xlane.xlu0 %7629
        %v7631 = vsel %vm688, %v7563, 0.0
        %7632 = vadd.xlane.f32.xlu0 %v7631
        %v7633 = vpop.xlane.xlu0 %7632
        %v7634 = vsel %vm688, %v7564, 0.0
        %7635 = vadd.xlane.f32.xlu0 %v7634
        %v7636 = vpop.xlane.xlu0 %7635
        %v7637 = vsel %vm688, %v7565, 0.0
        %7638 = vadd.xlane.f32.xlu0 %v7637
        %v7639 = vpop.xlane.xlu0 %7638
        %v7640 = vmul.f32 %v7570, %v761
        %v7641 = vmul.f32 %v7573, %v761
        %v7642 = vmul.f32 %v7576, %v761
        %v7643 = vmul.f32 %v7579, %v761
        %v7644 = vmul.f32 %v7582, %v761
        %v7645 = vmul.f32 %v7585, %v761
        %v7646 = vmul.f32 %v7588, %v761
        %v7647 = vmul.f32 %v7591, %v761
        %v7648 = vmul.f32 %v7594, %v761
        %v7649 = vmul.f32 %v7597, %v761
        %v7650 = vmul.f32 %v7600, %v761
        %v7651 = vmul.f32 %v7603, %v761
        %v7652 = vmul.f32 %v7606, %v761
        %v7653 = vmul.f32 %v7609, %v761
        %v7654 = vmul.f32 %v7612, %v761
        %v7655 = vmul.f32 %v7615, %v761
        %v7656 = vmul.f32 %v7618, %v761
        %v7657 = vmul.f32 %v7621, %v761
        %v7658 = vmul.f32 %v7624, %v761
        %v7659 = vmul.f32 %v7627, %v761
        %v7660 = vmul.f32 %v7630, %v761
        %v7661 = vmul.f32 %v7633, %v761
        %v7662 = vmul.f32 %v7636, %v761
        %v7663 = vmul.f32 %v7639, %v761
        %v7664 = vsub.f32 %v7542, %v7640
        %v7665 = vsub.f32 %v7543, %v7641
        %v7666 = vsub.f32 %v7544, %v7642
        %v7667 = vsub.f32 %v7545, %v7643
        %v7668 = vsub.f32 %v7546, %v7644
        %v7669 = vsub.f32 %v7547, %v7645
        %v7670 = vsub.f32 %v7548, %v7646
        %v7671 = vsub.f32 %v7549, %v7647
        %v7672 = vsub.f32 %v7550, %v7648
        %v7673 = vsub.f32 %v7551, %v7649
        %v7674 = vsub.f32 %v7552, %v7650
        %v7675 = vsub.f32 %v7553, %v7651
        %v7676 = vsub.f32 %v7554, %v7652
        %v7677 = vsub.f32 %v7555, %v7653
        %v7678 = vsub.f32 %v7556, %v7654
        %v7679 = vsub.f32 %v7557, %v7655
        %v7680 = vsub.f32 %v7558, %v7656
        %v7681 = vsub.f32 %v7559, %v7657
        %v7682 = vsub.f32 %v7560, %v7658
        %v7683 = vsub.f32 %v7561, %v7659
        %v7684 = vsub.f32 %v7562, %v7660
        %v7685 = vsub.f32 %v7563, %v7661
        %v7686 = vsub.f32 %v7564, %v7662
        %v7687 = vsub.f32 %v7565, %v7663
        %v7688 = vmul.f32 %v7664, %v7664
        %v7689 = vmul.f32 %v7665, %v7665
        %v7690 = vmul.f32 %v7666, %v7666
        %v7691 = vmul.f32 %v7667, %v7667
        %v7692 = vmul.f32 %v7668, %v7668
        %v7693 = vmul.f32 %v7669, %v7669
        %v7694 = vmul.f32 %v7670, %v7670
        %v7695 = vmul.f32 %v7671, %v7671
        %v7696 = vmul.f32 %v7672, %v7672
        %v7697 = vmul.f32 %v7673, %v7673
        %v7698 = vmul.f32 %v7674, %v7674
        %v7699 = vmul.f32 %v7675, %v7675
        %v7700 = vmul.f32 %v7676, %v7676
        %v7701 = vmul.f32 %v7677, %v7677
        %v7702 = vmul.f32 %v7678, %v7678
        %v7703 = vmul.f32 %v7679, %v7679
        %v7704 = vmul.f32 %v7680, %v7680
        %v7705 = vmul.f32 %v7681, %v7681
        %v7706 = vmul.f32 %v7682, %v7682
        %v7707 = vmul.f32 %v7683, %v7683
        %v7708 = vmul.f32 %v7684, %v7684
        %v7709 = vmul.f32 %v7685, %v7685
        %v7710 = vmul.f32 %v7686, %v7686
        %v7711 = vmul.f32 %v7687, %v7687
        %v7712 = vsel %vm688, %v7688, 0.0
        %7713 = vadd.xlane.f32.xlu0 %v7712
        %v7714 = vpop.xlane.xlu0 %7713
        %v7715 = vsel %vm688, %v7689, 0.0
        %7716 = vadd.xlane.f32.xlu0 %v7715
        %v7717 = vpop.xlane.xlu0 %7716
        %v7718 = vsel %vm688, %v7690, 0.0
        %7719 = vadd.xlane.f32.xlu0 %v7718
        %v7720 = vpop.xlane.xlu0 %7719
        %v7721 = vsel %vm688, %v7691, 0.0
        %7722 = vadd.xlane.f32.xlu0 %v7721
        %v7723 = vpop.xlane.xlu0 %7722
        %v7724 = vsel %vm688, %v7692, 0.0
        %7725 = vadd.xlane.f32.xlu0 %v7724
        %v7726 = vpop.xlane.xlu0 %7725
        %v7727 = vsel %vm688, %v7693, 0.0
        %7728 = vadd.xlane.f32.xlu0 %v7727
        %v7729 = vpop.xlane.xlu0 %7728
        %v7730 = vsel %vm688, %v7694, 0.0
        %7731 = vadd.xlane.f32.xlu0 %v7730
        %v7732 = vpop.xlane.xlu0 %7731
        %v7733 = vsel %vm688, %v7695, 0.0
        %7734 = vadd.xlane.f32.xlu0 %v7733
        %v7735 = vpop.xlane.xlu0 %7734
        %v7736 = vsel %vm688, %v7696, 0.0
        %7737 = vadd.xlane.f32.xlu0 %v7736
        %v7738 = vpop.xlane.xlu0 %7737
        %v7739 = vsel %vm688, %v7697, 0.0
        %7740 = vadd.xlane.f32.xlu0 %v7739
        %v7741 = vpop.xlane.xlu0 %7740
        %v7742 = vsel %vm688, %v7698, 0.0
        %7743 = vadd.xlane.f32.xlu0 %v7742
        %v7744 = vpop.xlane.xlu0 %7743
        %v7745 = vsel %vm688, %v7699, 0.0
        %7746 = vadd.xlane.f32.xlu0 %v7745
        %v7747 = vpop.xlane.xlu0 %7746
        %v7748 = vsel %vm688, %v7700, 0.0
        %7749 = vadd.xlane.f32.xlu0 %v7748
        %v7750 = vpop.xlane.xlu0 %7749
        %v7751 = vsel %vm688, %v7701, 0.0
        %7752 = vadd.xlane.f32.xlu0 %v7751
        %v7753 = vpop.xlane.xlu0 %7752
        %v7754 = vsel %vm688, %v7702, 0.0
        %7755 = vadd.xlane.f32.xlu0 %v7754
        %v7756 = vpop.xlane.xlu0 %7755
        %v7757 = vsel %vm688, %v7703, 0.0
        %7758 = vadd.xlane.f32.xlu0 %v7757
        %v7759 = vpop.xlane.xlu0 %7758
        %v7760 = vsel %vm688, %v7704, 0.0
        %7761 = vadd.xlane.f32.xlu0 %v7760
        %v7762 = vpop.xlane.xlu0 %7761
        %v7763 = vsel %vm688, %v7705, 0.0
        %7764 = vadd.xlane.f32.xlu0 %v7763
        %v7765 = vpop.xlane.xlu0 %7764
        %v7766 = vsel %vm688, %v7706, 0.0
        %7767 = vadd.xlane.f32.xlu0 %v7766
        %v7768 = vpop.xlane.xlu0 %7767
        %v7769 = vsel %vm688, %v7707, 0.0
        %7770 = vadd.xlane.f32.xlu0 %v7769
        %v7771 = vpop.xlane.xlu0 %7770
        %v7772 = vsel %vm688, %v7708, 0.0
        %7773 = vadd.xlane.f32.xlu0 %v7772
        %v7774 = vpop.xlane.xlu0 %7773
        %v7775 = vsel %vm688, %v7709, 0.0
        %7776 = vadd.xlane.f32.xlu0 %v7775
        %v7777 = vpop.xlane.xlu0 %7776
        %v7778 = vsel %vm688, %v7710, 0.0
        %7779 = vadd.xlane.f32.xlu0 %v7778
        %v7780 = vpop.xlane.xlu0 %7779
        %v7781 = vsel %vm688, %v7711, 0.0
        %7782 = vadd.xlane.f32.xlu0 %v7781
        %v7783 = vpop.xlane.xlu0 %7782
        %v7784 = vmul.f32 %v7714, %v761
        %v7785 = vmul.f32 %v7717, %v761
        %v7786 = vmul.f32 %v7720, %v761
        %v7787 = vmul.f32 %v7723, %v761
        %v7788 = vmul.f32 %v7726, %v761
        %v7789 = vmul.f32 %v7729, %v761
        %v7790 = vmul.f32 %v7732, %v761
        %v7791 = vmul.f32 %v7735, %v761
        %v7792 = vmul.f32 %v7738, %v761
        %v7793 = vmul.f32 %v7741, %v761
        %v7794 = vmul.f32 %v7744, %v761
        %v7795 = vmul.f32 %v7747, %v761
        %v7796 = vmul.f32 %v7750, %v761
        %v7797 = vmul.f32 %v7753, %v761
        %v7798 = vmul.f32 %v7756, %v761
        %v7799 = vmul.f32 %v7759, %v761
        %v7800 = vmul.f32 %v7762, %v761
        %v7801 = vmul.f32 %v7765, %v761
        %v7802 = vmul.f32 %v7768, %v761
        %v7803 = vmul.f32 %v7771, %v761
        %v7804 = vmul.f32 %v7774, %v761
        %v7805 = vmul.f32 %v7777, %v761
        %v7806 = vmul.f32 %v7780, %v761
        %v7807 = vmul.f32 %v7783, %v761
        %v7808 = vadd.f32 %v7784, 1e-05
        %v7809 = vadd.f32 %v7785, 1e-05
        %v7810 = vadd.f32 %v7786, 1e-05
        %v7811 = vadd.f32 %v7787, 1e-05
        %v7812 = vadd.f32 %v7788, 1e-05
        %v7813 = vadd.f32 %v7789, 1e-05
        %v7814 = vadd.f32 %v7790, 1e-05
        %v7815 = vadd.f32 %v7791, 1e-05
        %v7816 = vadd.f32 %v7792, 1e-05
        %v7817 = vadd.f32 %v7793, 1e-05
        %v7818 = vadd.f32 %v7794, 1e-05
        %v7819 = vadd.f32 %v7795, 1e-05
        %v7820 = vadd.f32 %v7796, 1e-05
        %v7821 = vadd.f32 %v7797, 1e-05
        %v7822 = vadd.f32 %v7798, 1e-05
        %v7823 = vadd.f32 %v7799, 1e-05
        %v7824 = vadd.f32 %v7800, 1e-05
        %v7825 = vadd.f32 %v7801, 1e-05
        %v7826 = vadd.f32 %v7802, 1e-05
        %v7827 = vadd.f32 %v7803, 1e-05
        %v7828 = vadd.f32 %v7804, 1e-05
        %v7829 = vadd.f32 %v7805, 1e-05
        %v7830 = vadd.f32 %v7806, 1e-05
        %v7831 = vadd.f32 %v7807, 1e-05
        %v7832 = vrsqrt.pop %v7808
        %v7833 = vrsqrt.pop %v7809
        %v7834 = vrsqrt.pop %v7810
        %v7835 = vrsqrt.pop %v7811
        %v7836 = vrsqrt.pop %v7812
        %v7837 = vrsqrt.pop %v7813
        %v7838 = vrsqrt.pop %v7814
        %v7839 = vrsqrt.pop %v7815
        %v7840 = vrsqrt.pop %v7816
        %v7841 = vrsqrt.pop %v7817
        %v7842 = vrsqrt.pop %v7818
        %v7843 = vrsqrt.pop %v7819
        %v7844 = vrsqrt.pop %v7820
        %v7845 = vrsqrt.pop %v7821
        %v7846 = vrsqrt.pop %v7822
        %v7847 = vrsqrt.pop %v7823
        %v7848 = vrsqrt.pop %v7824
        %v7849 = vrsqrt.pop %v7825
        %v7850 = vrsqrt.pop %v7826
        %v7851 = vrsqrt.pop %v7827
        %v7852 = vrsqrt.pop %v7828
        %v7853 = vrsqrt.pop %v7829
        %v7854 = vrsqrt.pop %v7830
        %v7855 = vrsqrt.pop %v7831
        %v7856 = vmul.f32 %v7664, %v7832
        %v7857 = vmul.f32 %v7665, %v7833
        %v7858 = vmul.f32 %v7666, %v7834
        %v7859 = vmul.f32 %v7667, %v7835
        %v7860 = vmul.f32 %v7668, %v7836
        %v7861 = vmul.f32 %v7669, %v7837
        %v7862 = vmul.f32 %v7670, %v7838
        %v7863 = vmul.f32 %v7671, %v7839
        %v7864 = vmul.f32 %v7672, %v7840
        %v7865 = vmul.f32 %v7673, %v7841
        %v7866 = vmul.f32 %v7674, %v7842
        %v7867 = vmul.f32 %v7675, %v7843
        %v7868 = vmul.f32 %v7676, %v7844
        %v7869 = vmul.f32 %v7677, %v7845
        %v7870 = vmul.f32 %v7678, %v7846
        %v7871 = vmul.f32 %v7679, %v7847
        %v7872 = vmul.f32 %v7680, %v7848
        %v7873 = vmul.f32 %v7681, %v7849
        %v7874 = vmul.f32 %v7682, %v7850
        %v7875 = vmul.f32 %v7683, %v7851
        %v7876 = vmul.f32 %v7684, %v7852
        %v7877 = vmul.f32 %v7685, %v7853
        %v7878 = vmul.f32 %v7686, %v7854
        %v7879 = vmul.f32 %v7687, %v7855
        %v7880 = vlaneseq
        %v7881 = vshrl.u32 %v7880, 7
        %v7882 = vsub.s32 0, %v7881
        %v7883 = vrot.slane %v7566, %v7882
        %v7884 = vmul.f32 %v7856, %v7883
        %v7885 = vmul.f32 %v7857, %v7883
        %v7886 = vmul.f32 %v7858, %v7883
        %v7887 = vmul.f32 %v7859, %v7883
        %v7888 = vmul.f32 %v7860, %v7883
        %v7889 = vmul.f32 %v7861, %v7883
        %v7890 = vmul.f32 %v7862, %v7883
        %v7891 = vmul.f32 %v7863, %v7883
        %v7892 = vmul.f32 %v7864, %v7883
        %v7893 = vmul.f32 %v7865, %v7883
        %v7894 = vmul.f32 %v7866, %v7883
        %v7895 = vmul.f32 %v7867, %v7883
        %v7896 = vmul.f32 %v7868, %v7883
        %v7897 = vmul.f32 %v7869, %v7883
        %v7898 = vmul.f32 %v7870, %v7883
        %v7899 = vmul.f32 %v7871, %v7883
        %v7900 = vmul.f32 %v7872, %v7883
        %v7901 = vmul.f32 %v7873, %v7883
        %v7902 = vmul.f32 %v7874, %v7883
        %v7903 = vmul.f32 %v7875, %v7883
        %v7904 = vmul.f32 %v7876, %v7883
        %v7905 = vmul.f32 %v7877, %v7883
        %v7906 = vmul.f32 %v7878, %v7883
        %v7907 = vmul.f32 %v7879, %v7883
        %v7908 = vlaneseq
        %v7909 = vshrl.u32 %v7908, 7
        %v7910 = vsub.s32 0, %v7909
        %v7911 = vrot.slane %v7567, %v7910
        %v7912 = vadd.f32 %v7884, %v7911
        %v7913 = vadd.f32 %v7885, %v7911
        %v7914 = vadd.f32 %v7886, %v7911
        %v7915 = vadd.f32 %v7887, %v7911
        %v7916 = vadd.f32 %v7888, %v7911
        %v7917 = vadd.f32 %v7889, %v7911
        %v7918 = vadd.f32 %v7890, %v7911
        %v7919 = vadd.f32 %v7891, %v7911
        %v7920 = vadd.f32 %v7892, %v7911
        %v7921 = vadd.f32 %v7893, %v7911
        %v7922 = vadd.f32 %v7894, %v7911
        %v7923 = vadd.f32 %v7895, %v7911
        %v7924 = vadd.f32 %v7896, %v7911
        %v7925 = vadd.f32 %v7897, %v7911
        %v7926 = vadd.f32 %v7898, %v7911
        %v7927 = vadd.f32 %v7899, %v7911
        %v7928 = vadd.f32 %v7900, %v7911
        %v7929 = vadd.f32 %v7901, %v7911
        %v7930 = vadd.f32 %v7902, %v7911
        %v7931 = vadd.f32 %v7903, %v7911
        %v7932 = vadd.f32 %v7904, %v7911
        %v7933 = vadd.f32 %v7905, %v7911
        %v7934 = vadd.f32 %v7906, %v7911
        %v7935 = vadd.f32 %v7907, %v7911
        %v7936 = vld [vmem:[%s10] sm:$0xf]
        %v7937 = vld [vmem:[%s10 + $0x4] sm:$0xf]
        %v7938 = vld [vmem:[%s10 + $0x8] sm:$0xf]
        %v7939 = vld [vmem:[%s10 + $0xc] sm:$0xf]
        %v7940 = vpack.c.bf16 %v7913, %v7912
        %v7941 = vpack.c.bf16 %v7915, %v7914
        %v7942 = vpack.c.bf16 %v7917, %v7916
        %v7943 = vpack.c.bf16 %v7919, %v7918
        %v7944 = vpack.c.bf16 %v7921, %v7920
        %v7945 = vpack.c.bf16 %v7923, %v7922
        %v7946 = vpack.c.bf16 %v7925, %v7924
        %v7947 = vpack.c.bf16 %v7927, %v7926
        %v7948 = vpack.c.bf16 %v7929, %v7928
        %v7949 = vpack.c.bf16 %v7931, %v7930
        %v7950 = vpack.c.bf16 %v7933, %v7932
        %v7951 = vpack.c.bf16 %v7935, %v7934
        %v7952 = vld [vmem:[%s4 + $0x2] sm:$0x1]
        %v7953 = vlaneseq
        %v7954 = vshrl.u32 %v7953, 7
        %v7955 = vsub.s32 0, %v7954
        %v7956 = vrot.slane %v7952, %v7955
        %v7961 = vunpack.c.l.b16 %v7936
        %v7962 = vunpack.c.l.b16 %v7937
        %v7963 = vunpack.c.l.b16 %v7938
        %v7964 = vunpack.c.l.b16 %v7939
        %v7965 = vpack.c.b16 %v7962, %v7961
        %v7966 = vpack.c.b16 %v7964, %v7963
        %v7970 = vsel %vm688, %v7940, 0
        %v7973 = vsel %vm688, %v7941, 0
        %v7976 = vsel %vm688, %v7942, 0
        %v7979 = vsel %vm688, %v7943, 0
        %v7982 = vsel %vm688, %v7944, 0
        %v7985 = vsel %vm688, %v7945, 0
        %v7988 = vsel %vm688, %v7946, 0
        %v7991 = vsel %vm688, %v7947, 0
        %v7994 = vsel %vm688, %v7948, 0
        %v7997 = vsel %vm688, %v7949, 0
        %v8000 = vsel %vm688, %v7950, 0
        %v8003 = vsel %vm688, %v7951, 0
        %8005 = vmatprep.subr.bf16.mxu0 0
        %8006 = vmatpush1.bf16.msra.mxu0 %v7965
        %8007 = vmatprep.subr.bf16.mxu0 0
        %8008 = vmatpush1.bf16.msra.mxu0 %v7966
        %8009 = vmatprep.subr.bf16.mxu0 0
        %8010 = vmatpush1.bf16.msra.mxu0 0
        %8011 = vmatprep.subr.bf16.mxu0 0
        %8012 = vmatpush1.bf16.msra.mxu0 0
        %8013 = vmatprep.subr.bf16.mxu0 0
        %8014 = vmatpush1.bf16.msra.mxu0 0
        %8015 = vmatprep.subr.bf16.mxu0 0
        %8016 = vmatpush1.bf16.msra.mxu0 0
        %8017 = vmatprep.subr.bf16.mxu0 0
        %8018 = vmatpush1.bf16.msra.mxu0 0
        %8019 = vmatprep.subr.bf16.mxu0 0
        %8020 = vmatpush1.bf16.msra.mxu0 0
        %8021 = vmatprep.subr.bf16.mxu0 0
        %8022 = vmatpush1.bf16.msra.mxu0 0
        %8023 = vmatprep.subr.bf16.mxu0 0
        %8024 = vmatpush1.bf16.msra.mxu0 0
        %8025 = vmatprep.subr.bf16.mxu0 0
        %8026 = vmatpush1.bf16.msra.mxu0 0
        %8027 = vmatprep.subr.bf16.mxu0 0
        %8028 = vmatpush1.bf16.msra.mxu0 0
        %8029 = vmatprep.subr.bf16.mxu0 0
        %8030 = vmatpush1.bf16.msra.mxu0 0
        %8031 = vmatprep.subr.bf16.mxu0 0
        %8032 = vmatpush1.bf16.msra.mxu0 0
        %8033 = vmatprep.subr.bf16.mxu0 0
        %8034 = vmatpush1.bf16.msra.mxu0 0
        %8035 = vmatprep.subr.bf16.mxu0 0
        %8036 = vmatpush1.bf16.msra.mxu0 0
        %8037 = vmatprep.mubr.bf16.mxu0 0
        %8038 = vmatmul.mubr.bf16.gmra.mrb[0].mxu0 %v7970
        %v8039 = vpop.f32.mrb[0].mxu0
        %v8040 = vpop.f32.mrb[0].mxu0
        %v8041 = vpop.f32.mrb[0].mxu0
        %v8042 = vpop.f32.mrb[0].mxu0
        %8043 = vmatprep.mubr.bf16.mxu0 0
        %8044 = vmatmul.mubr.bf16.gmra.mrb[0].mxu0 %v7973
        %v8045 = vpop.f32.mrb[0].mxu0
        %v8046 = vadd.f32 %v7956, %v8045
        %v8047 = vpop.f32.mrb[0].mxu0
        %v8048 = vpop.f32.mrb[0].mxu0
        %v8049 = vpop.f32.mrb[0].mxu0
        %8050 = vmatprep.mubr.bf16.mxu0 0
        %8051 = vmatmul.mubr.bf16.gmra.mrb[0].mxu0 %v7976
        %v8052 = vpop.f32.mrb[0].mxu0
        %v8053 = vpop.f32.mrb[0].mxu0
        %v8054 = vpop.f32.mrb[0].mxu0
        %v8055 = vadd.f32 %v7956, %v8054
        %v8056 = vpop.f32.mrb[0].mxu0
        %8057 = vmatprep.mubr.bf16.mxu0 0
        %8058 = vmatmul.mubr.bf16.gmra.mrb[0].mxu0 %v7979
        %v8059 = vpop.f32.mrb[0].mxu0
        %v8060 = vpop.f32.mrb[0].mxu0
        %v8061 = vpop.f32.mrb[0].mxu0
        %v8062 = vpop.f32.mrb[0].mxu0
        %8063 = vmatprep.mubr.bf16.mxu0 0
        %8064 = vmatmul.mubr.bf16.gmra.mrb[0].mxu0 %v7982
        %v8065 = vpop.f32.mrb[0].mxu0
        %v8066 = vadd.f32 %v7956, %v8065
        %v8067 = vpop.f32.mrb[0].mxu0
        %v8068 = vpop.f32.mrb[0].mxu0
        %v8069 = vpop.f32.mrb[0].mxu0
        %8070 = vmatprep.mubr.bf16.mxu0 0
        %8071 = vmatmul.mubr.bf16.gmra.mrb[0].mxu0 %v7985
        %v8072 = vpop.f32.mrb[0].mxu0
        %v8073 = vpop.f32.mrb[0].mxu0
        %v8074 = vpop.f32.mrb[0].mxu0
        %v8075 = vadd.f32 %v7956, %v8074
        %v8076 = vpop.f32.mrb[0].mxu0
        %8077 = vmatprep.mubr.bf16.mxu0 0
        %8078 = vmatmul.mubr.bf16.gmra.mrb[0].mxu0 %v7988
        %v8079 = vpop.f32.mrb[0].mxu0
        %v8080 = vpop.f32.mrb[0].mxu0
        %v8081 = vpop.f32.mrb[0].mxu0
        %v8082 = vpop.f32.mrb[0].mxu0
        %8083 = vmatprep.mubr.bf16.mxu0 0
        %8084 = vmatmul.mubr.bf16.gmra.mrb[0].mxu0 %v7991
        %v8085 = vpop.f32.mrb[0].mxu0
        %v8086 = vadd.f32 %v7956, %v8085
        %v8087 = vpop.f32.mrb[0].mxu0
        %v8088 = vpop.f32.mrb[0].mxu0
        %v8089 = vpop.f32.mrb[0].mxu0
        %8090 = vmatprep.mubr.bf16.mxu0 0
        %8091 = vmatmul.mubr.bf16.gmra.mrb[0].mxu0 %v7994
        %v8092 = vpop.f32.mrb[0].mxu0
        %v8093 = vpop.f32.mrb[0].mxu0
        %v8094 = vpop.f32.mrb[0].mxu0
        %v8095 = vadd.f32 %v7956, %v8094
        %v8096 = vpop.f32.mrb[0].mxu0
        %8097 = vmatprep.mubr.bf16.mxu0 0
        %8098 = vmatmul.mubr.bf16.gmra.mrb[0].mxu0 %v7997
        %v8099 = vpop.f32.mrb[0].mxu0
        %v8100 = vpop.f32.mrb[0].mxu0
        %v8101 = vpop.f32.mrb[0].mxu0
        %v8102 = vpop.f32.mrb[0].mxu0
        %8103 = vmatprep.mubr.bf16.mxu0 0
        %8104 = vmatmul.mubr.bf16.gmra.mrb[0].mxu0 %v8000
        %v8105 = vpop.f32.mrb[0].mxu0
        %v8106 = vadd.f32 %v7956, %v8105
        %v8107 = vpop.f32.mrb[0].mxu0
        %v8108 = vpop.f32.mrb[0].mxu0
        %v8109 = vpop.f32.mrb[0].mxu0
        %8110 = vmatprep.mubr.bf16.mxu0 0
        %8111 = vmatmul.mubr.bf16.gmra.mrb[0].mxu0 %v8003
        %v8112 = vpop.f32.mrb[0].mxu0
        %v8113 = vpop.f32.mrb[0].mxu0
        %v8114 = vpop.f32.mrb[0].mxu0
        %v8115 = vadd.f32 %v7956, %v8114
        %v8116 = vpop.f32.mrb[0].mxu0
        %8117 = vdwg.mxu0
        %8118 = vst [vmem:[%s380] sm:$0x1] %v8046
        %8119 = vst [vmem:[%s380 + $0x1] sm:$0x1] %v8055
        %8120 = vst [vmem:[%s380 + $0x2] sm:$0x1] %v8066
        %8121 = vst [vmem:[%s380 + $0x3] sm:$0x1] %v8075
        %8122 = vst [vmem:[%s380 + $0x4] sm:$0x1] %v8086
        %8123 = vst [vmem:[%s380 + $0x5] sm:$0x1] %v8095
        %8124 = vst [vmem:[%s380 + $0x6] sm:$0x1] %v8106
        %8125 = vst [vmem:[%s380 + $0x7] sm:$0x1] %v8115
        %s8126 = sand.u32 %s269, 1
        %s8127 = scalar_lea.sflag [#allocation3], %s8126
        %s8128 = sand.u32 %s269, 1
        %s8129 = smul.addr %s8128, 8
        %s8130 = scalar_lea.vmem [#allocation2], %s8129
        // Predicated region
        $region65: #{classification_model_forward.1} parent=63 // pred_check
          %p8131 = pneg %p279
        $region66: #{classification_model_forward.1} parent=63 // pred_check_branch
          %8133 = sbr.rel (%p8131) target = $region68
        $region67: #{classification_model_forward.1} parent=63 // pred_region
          %s8135 = ssub.s32 128, 128
          %8136 = vsyncadd %s8127, %s8135
          %s8137 = smul.addr %s25, 128
          %s8138 = scalar_lea.hbm %s11, %s8137
          %s8140 = sshll.u32 %s8130, 4
          %s8141 = int_to_ptr.vmem [resolvable:$true] %s8140
          %8143 = dma.vmem_to_hbm [thread:$0]  %s8141, 128, %s8138, %s8127
        $region68: #{classification_model_forward.1} parent=63 // pred_fallthru
          _
      $region64: #{classification_model_forward.1} parent=5 // pred_fallthru
        _
      %p8144 = scmp.le.s32.totalorder 2, %s20
      // Predicated region
      $region69: #{classification_model_forward.1} parent=5 // pred_check
        %p8145 = pneg %p8144
      $region70: #{classification_model_forward.1} parent=5 // pred_check_branch
        %8147 = sbr.rel (%p8145) target = $region72
      $region71: #{classification_model_forward.1} parent=5 // pred_region
        %s8148 = ssub.s32 %s20, 2
        // Predicated region
        $region73: #{classification_model_forward.1} parent=71 // pred_check
          %p8149 = pneg %p285
        $region74: #{classification_model_forward.1} parent=71 // pred_check_branch
          %8151 = sbr.rel (%p8149) target = $region76
        $region75: #{classification_model_forward.1} parent=71 // pred_region
          %s8152 = sand.u32 %s270, 1
          %s8153 = scalar_lea.sflag [#allocation3], %s8152
          %s8154 = sand.u32 %s270, 1
          %s8155 = smul.addr %s8154, 8
          %s8156 = scalar_lea.vmem [#allocation2], %s8155
          %8157 = dma.done %s8153, 128
        $region76: #{classification_model_forward.1} parent=71 // pred_fallthru
          _
      $region72: #{classification_model_forward.1} parent=5 // pred_fallthru
        _
    $region6: #{classification_model_forward.1} parent=1 // loop_footer
      %s24 = sadd.s32 1, %s20
    $region7: #{classification_model_forward.1} parent=1 // loop_footer_branch
      %19 = sbr.rel target = $region3
    $region8: #{classification_model_forward.1} parent=1 // loop_exit
      _
    %8158 = vsyncpa [#allocation3], 1
    %s8159 = scalar_lea.sflag [#allocation3], 1
    %8160 = vsyncpa %s8159, 1

</llo_original>
